<compile_context>
chip_gen: v7x
topology: tpu7x:2x2x1
jax: 0.10.0
libtpu: 0.0.40
codegen_flags: <defaults>
</compile_context>

<pallas_src>
import functools
import math

import jax
import jax.numpy as jnp
from jax.experimental import pallas as pl
from jax.experimental.pallas import tpu as pltpu


_VMEM_LIMIT = 48 * 1024 * 1024  # <= v7x's 64 MiB VMEM; plenty on v5e/v6e


def _device_kind():
    try:
        return jax.devices()[0].device_kind.lower()
    except Exception:
        return ""


# v6e/v7x have a bf16 VPU/EUP; v2-v5 do not (keep their epilogue math in f32).
_HAS_BF16_VECTOR_UNITS = not any(t in _device_kind() for t in ("v2", "v3", "v4", "v5"))


# ------------------------------ helpers --------------------------------------

def _pick_tile(dim, target, align):
    """Pick a tile for `dim`: smallest aligned divisor in [target, 2*target],
    else the largest aligned divisor <= target, else the full dim (failing
    loudly if that full-dim fallback would be absurdly large)."""
    if dim <= target:
        return dim
    divisors = [d for d in range(align, dim + 1, align) if dim % d == 0]
    up = [d for d in divisors if target <= d <= 2 * target]
    if up:
        return min(up)
    down = [d for d in divisors if d <= target]
    if down:
        return max(down)
    if dim > 4 * target:
        raise ValueError(
            f"_pick_tile: no {align}-aligned divisor of {dim}; refusing full-dim block")
    return dim


def _gelu(x):
    # tanh-approximation GELU (HF BERT uses erf-based gelu: tiny numeric drift).
    c = jnp.asarray(0.7978845608028654, x.dtype)
    a = jnp.asarray(0.044715, x.dtype)
    half = jnp.asarray(0.5, x.dtype)
    one = jnp.asarray(1.0, x.dtype)
    return half * x * (one + jnp.tanh(c * (x + a * x * x * x)))


# ------------------------ tiled linear (+bias, +GELU) -------------------------

def _linear_kernel(x_ref, w_ref, b_ref, o_ref, acc_ref, *, activation, bf16_epilogue):
    k = pl.program_id(2)

    @pl.when(k == 0)
    def _init():
        acc_ref[...] = jnp.zeros_like(acc_ref)

    acc_ref[...] += jnp.dot(x_ref[...], w_ref[...],
                            preferred_element_type=jnp.float32)

    @pl.when(k == pl.num_programs(2) - 1)
    def _epilogue():
        y = acc_ref[...] + b_ref[...]
        if activation == "gelu":
            if bf16_epilogue:
                y = _gelu(y.astype(jnp.bfloat16))   # bf16 EUP/VPU on v6e/v7x
            else:
                y = _gelu(y)                        # f32 on v5e
        o_ref[...] = y.astype(o_ref.dtype)


def linear(x, w, b, activation="none", out_dtype=jnp.bfloat16,
           tm=512, tn=768, tk=768):
    """Tiled, pipelined (M,K)x(K,N) matmul with fused bias (+GELU) epilogue.
    bf16 MXU inputs, f32 accumulation in VMEM scratch, bf16 output."""
    M, K = x.shape
    N = w.shape[1]
    tm = _pick_tile(M, tm, 16)    # 16 sublanes per bf16 vreg
    tn = _pick_tile(N, tn, 128)
    tk = _pick_tile(K, tk, 128)
    grid = (M // tm, N // tn, K // tk)
    return pl.pallas_call(
        functools.partial(_linear_kernel, activation=activation,
                          bf16_epilogue=_HAS_BF16_VECTOR_UNITS),
        out_shape=jax.ShapeDtypeStruct((M, N), out_dtype),
        grid=grid,
        in_specs=[
            pl.BlockSpec((tm, tk), lambda i, j, k: (i, k)),
            pl.BlockSpec((tk, tn), lambda i, j, k: (k, j)),
            pl.BlockSpec((1, tn), lambda i, j, k: (0, j)),
        ],
        out_specs=pl.BlockSpec((tm, tn), lambda i, j, k: (i, j)),
        scratch_shapes=[pltpu.VMEM((tm, tn), jnp.float32)],
        compiler_params=pltpu.CompilerParams(
            dimension_semantics=("parallel", "parallel", "arbitrary"),
            vmem_limit_bytes=_VMEM_LIMIT),
    )(x.astype(jnp.bfloat16), w.astype(jnp.bfloat16),
      b.reshape(1, N).astype(jnp.float32))


# -------------- tiled linear with fused residual-add + LayerNorm --------------

def _linear_ln_kernel(x_ref, w_ref, b_ref, res_ref, g_ref, beta_ref,
                      o_ref, acc_ref, *, eps):
    k = pl.program_id(1)

    @pl.when(k == 0)
    def _init():
        acc_ref[...] = jnp.zeros_like(acc_ref)

    acc_ref[...] += jnp.dot(x_ref[...], w_ref[...],
                            preferred_element_type=jnp.float32)

    @pl.when(k == pl.num_programs(1) - 1)
    def _epilogue():
        # LayerNorm statistics stay f32 on every generation.
        y = acc_ref[...] + b_ref[...] + res_ref[...].astype(jnp.float32)
        mean = jnp.mean(y, axis=-1, keepdims=True)
        yc = y - mean
        var = jnp.mean(yc * yc, axis=-1, keepdims=True)
        inv = jax.lax.rsqrt(var + eps)
        o_ref[...] = (yc * inv * g_ref[...] + beta_ref[...]).astype(o_ref.dtype)


def linear_ln(x, w, b, res, gamma, beta, eps=1e-12, out_dtype=jnp.bfloat16,
              tm=512, tk=768):
    """Tiled matmul whose epilogue fuses bias + residual-add + LayerNorm.
    LN reduces over the full row, so the N axis stays un-tiled (tn == N)."""
    M, K = x.shape
    N = w.shape[1]
    tm = _pick_tile(M, tm, 16)
    tk = _pick_tile(K, tk, 128)
    grid = (M // tm, K // tk)
    return pl.pallas_call(
        functools.partial(_linear_ln_kernel, eps=eps),
        out_shape=jax.ShapeDtypeStruct((M, N), out_dtype),
        grid=grid,
        in_specs=[
            pl.BlockSpec((tm, tk), lambda i, k: (i, k)),
            pl.BlockSpec((tk, N), lambda i, k: (k, 0)),
            pl.BlockSpec((1, N), lambda i, k: (0, 0)),
            pl.BlockSpec((tm, N), lambda i, k: (i, 0)),
            pl.BlockSpec((1, N), lambda i, k: (0, 0)),
            pl.BlockSpec((1, N), lambda i, k: (0, 0)),
        ],
        out_specs=pl.BlockSpec((tm, N), lambda i, k: (i, 0)),
        scratch_shapes=[pltpu.VMEM((tm, N), jnp.float32)],
        compiler_params=pltpu.CompilerParams(
            dimension_semantics=("parallel", "arbitrary"),
            vmem_limit_bytes=_VMEM_LIMIT),
    )(x.astype(jnp.bfloat16), w.astype(jnp.bfloat16),
      b.reshape(1, N).astype(jnp.float32),
      res.astype(jnp.bfloat16),
      gamma.reshape(1, N).astype(jnp.float32),
      beta.reshape(1, N).astype(jnp.float32))


# ----------------------- standalone LayerNorm (embeddings) --------------------

def _ln_kernel(x_ref, g_ref, b_ref, o_ref, *, eps):
    x = x_ref[...].astype(jnp.float32)
    mean = jnp.mean(x, axis=-1, keepdims=True)
    xc = x - mean
    var = jnp.mean(xc * xc, axis=-1, keepdims=True)
    inv = jax.lax.rsqrt(var + eps)
    o_ref[...] = (xc * inv * g_ref[...] + b_ref[...]).astype(o_ref.dtype)


def layernorm(x, gamma, beta, eps=1e-12, out_dtype=jnp.bfloat16, tm=512):
    """Row-tiled LayerNorm over the last dim (embedding LN)."""
    M, H = x.shape
    tm = _pick_tile(M, tm, 16)
    return pl.pallas_call(
        functools.partial(_ln_kernel, eps=eps),
        out_shape=jax.ShapeDtypeStruct((M, H), out_dtype),
        grid=(M // tm,),
        in_specs=[pl.BlockSpec((tm, H), lambda i: (i, 0)),
                  pl.BlockSpec((1, H), lambda i: (0, 0)),
                  pl.BlockSpec((1, H), lambda i: (0, 0))],
        out_specs=pl.BlockSpec((tm, H), lambda i: (i, 0)),
        compiler_params=pltpu.CompilerParams(
            dimension_semantics=("parallel",)),
    )(x, gamma.reshape(1, H).astype(jnp.float32),
      beta.reshape(1, H).astype(jnp.float32))


# ------------------------------- attention ------------------------------------

def _attn_kernel(mask_ref, q_ref, k_ref, v_ref, o_ref, *, heads, scale, bf16_softmax):
    S, H = q_ref.shape[1], q_ref.shape[2]
    dh = H // heads

    # Scale folded into Q: O(S*H) bf16 muls instead of O(S^2) f32 muls on scores.
    q = (q_ref[0] * scale).reshape(S, heads, dh)          # (S, heads, dh) bf16
    k = k_ref[0].reshape(S, heads, dh)
    v = v_ref[0].reshape(S, heads, dh)

    # All heads in one batched matmul: (heads, S, S) f32 scores.
    s = jnp.einsum('qhd,khd->hqk', q, k, preferred_element_type=jnp.float32)
    s = s + mask_ref[...]                                 # additive key mask (1, 1, S)

    m = jnp.max(s, axis=-1, keepdims=True)
    if bf16_softmax:
        # bf16 EUP on v6e/v7x (~2x exp rate); row-sum / reciprocal stay f32.
        p = jnp.exp((s - m).astype(jnp.bfloat16))
        denom = jnp.sum(p.astype(jnp.float32), axis=-1, keepdims=True)
    else:
        p32 = jnp.exp(s - m)                              # f32 path (v5e)
        denom = jnp.sum(p32, axis=-1, keepdims=True)
        p = p32.astype(jnp.bfloat16)
    inv = pl.reciprocal(denom, approx=True)               # (heads, S, 1) f32, EUP

    # p @ V first, then normalize: O(S*dh) muls instead of O(S^2).
    ctx = jnp.einsum('hqk,khd->qhd', p, v, preferred_element_type=jnp.float32)
    ctx = ctx * jnp.swapaxes(inv, 0, 1)                   # (S, heads, 1) broadcast
    o_ref[0] = ctx.reshape(S, H).astype(o_ref.dtype)      # lane-dense (S, H) store


def attention(qkv, add_mask, *, heads):
    """qkv: (B, S, 3H) bf16 fused projection; add_mask: (B, 1, S) f32 (0 / -1e4).

    One grid step per batch element (all heads merged): wide contiguous (S, H)
    DMAs for Q/K/V, lane-dense (S, H) output, batch axis kept 'parallel' so it
    shards across v7x's 2 TensorCores. Works for any head_dim (incl. dh=64).
    """
    B, S, H3 = qkv.shape
    H = H3 // 3
    assert H % heads == 0
    scale = 1.0 / math.sqrt(H // heads)
    # TODO(synk): for dh=64 at real bert-base shapes, lane-pack 2 heads per
    # 128-lane block for the QK^T contraction to raise MXU row occupancy, and
    # tile the KV axis (flash-style) for very long S.

    return pl.pallas_call(
        functools.partial(_attn_kernel, heads=heads, scale=scale,
                          bf16_softmax=_HAS_BF16_VECTOR_UNITS),
        out_shape=jax.ShapeDtypeStruct((B, S, H), jnp.bfloat16),
        grid=(B,),
        in_specs=[
            pl.BlockSpec((1, 1, S), lambda b: (b, 0, 0)),   # mask
            pl.BlockSpec((1, S, H), lambda b: (b, 0, 0)),   # Q slab of fused QKV
            pl.BlockSpec((1, S, H), lambda b: (b, 0, 1)),   # K slab
            pl.BlockSpec((1, S, H), lambda b: (b, 0, 2)),   # V slab
        ],
        out_specs=pl.BlockSpec((1, S, H), lambda b: (b, 0, 0)),
        compiler_params=pltpu.CompilerParams(
            dimension_semantics=("parallel",),
            vmem_limit_bytes=_VMEM_LIMIT),
    )(add_mask, qkv, qkv, qkv)


# ------------------------------ parameters ------------------------------------

def init_params(key, *, vocab, type_vocab, max_pos, hidden, n_layers, inter, n_class):
    keys = iter(jax.random.split(key, 8 + 8 * n_layers))

    def nrm(shape):
        return (0.02 * jax.random.normal(next(keys), shape)).astype(jnp.float32)

    zeros = lambda s: jnp.zeros(s, jnp.float32)
    ones = lambda s: jnp.ones(s, jnp.float32)
    bf16 = lambda a: a.astype(jnp.bfloat16)

    params = {
        "word_emb": nrm((vocab, hidden)),
        "pos_emb": nrm((max_pos, hidden)),
        "type_emb": nrm((type_vocab, hidden)),
        "emb_ln_g": ones((hidden,)), "emb_ln_b": zeros((hidden,)),
        "layers": [],
        # pooler + classifier head (self.out) stay in XLA -> f32 weights
        "pool_w": nrm((hidden, hidden)), "pool_b": zeros((hidden,)),
        "cls_w": nrm((hidden, n_class)), "cls_b": zeros((n_class,)),
    }
    for _ in range(n_layers):
        wq, wk, wv = nrm((hidden, hidden)), nrm((hidden, hidden)), nrm((hidden, hidden))
        params["layers"].append({
            # fused QKV projection: one (H, 3H) matmul instead of three (H, H)
            "wqkv": bf16(jnp.concatenate([wq, wk, wv], axis=1)),
            "bqkv": zeros((3 * hidden,)),
            "wo": bf16(nrm((hidden, hidden))), "bo": zeros((hidden,)),
            "ln1_g": ones((hidden,)), "ln1_b": zeros((hidden,)),
            "w1": bf16(nrm((hidden, inter))), "b1": zeros((inter,)),
            "w2": bf16(nrm((inter, hidden))), "b2": zeros((hidden,)),
            "ln2_g": ones((hidden,)), "ln2_b": zeros((hidden,)),
        })
    return params


# ------------------------------ forward pass ----------------------------------

def bert_sentiment_forward(params, input_ids, attention_mask, token_type_ids, *, heads):
    B, S = input_ids.shape
    H = params["word_emb"].shape[1]

    # Embeddings (gathers are XLA glue); LayerNorm in Pallas. Dropout: eval -> identity.
    pos_ids = jnp.arange(S)
    emb = (jnp.take(params["word_emb"], input_ids, axis=0)
           + params["pos_emb"][pos_ids][None, :, :]
           + jnp.take(params["type_emb"], token_type_ids, axis=0))   # (B, S, H) f32
    x = layernorm(emb.reshape(B * S, H),
                  params["emb_ln_g"], params["emb_ln_b"])            # (B*S, H) bf16

    # HF-style extended attention mask, kept un-broadcast over heads: (B, 1, S).
    add_mask = ((1.0 - attention_mask.astype(jnp.float32)) * -10000.0)[:, None, :]

    # TODO(synk): next structural step is removing the per-layer HBM round trip of
    # the (B*S,3H) QKV / (B,S,H) context tensors (emit_pipeline the attention
    # stage directly out of the QKV matmul epilogue).
    for lp in params["layers"]:
        qkv = linear(x, lp["wqkv"], lp["bqkv"])                      # (B*S, 3H) bf16
        ctx = attention(qkv.reshape(B, S, 3 * H), add_mask, heads=heads)  # (B, S, H)
        x = linear_ln(ctx.reshape(B * S, H), lp["wo"], lp["bo"],
                      x, lp["ln1_g"], lp["ln1_b"])                   # attn out-proj + residual + LN
        h1 = linear(x, lp["w1"], lp["b1"], activation="gelu")        # FFN up + GELU
        x = linear_ln(h1, lp["w2"], lp["b2"],
                      x, lp["ln2_g"], lp["ln2_b"])                   # FFN down + residual + LN

    # Pooler: tanh(W @ h_[CLS] + b), then classifier head (self.out). Tiny -> XLA.
    cls = x.reshape(B, S, H)[:, 0, :].astype(jnp.float32)            # (B, H)
    pooled = jnp.tanh(cls @ params["pool_w"] + params["pool_b"])     # (B, H)
    logits = pooled @ params["cls_w"] + params["cls_b"]              # (B, n_class)
    return logits


# ---------------------------------- main ---------------------------------------

if __name__ == "__main__":
    B, S = 2, 8
    VOCAB, TYPE_VOCAB, MAX_POS = 100, 2, 64
    HIDDEN, N_LAYERS, HEADS, INTER, N_CLASS = 256, 2, 4, 512, 3   # head_dim = 64 (like real BERT)

    key = jax.random.PRNGKey(0)
    pkey, ikey = jax.random.split(key)

    params = init_params(pkey, vocab=VOCAB, type_vocab=TYPE_VOCAB, max_pos=MAX_POS,
                         hidden=HIDDEN, n_layers=N_LAYERS, inter=INTER, n_class=N_CLASS)

    input_ids = jax.random.randint(ikey, (B, S), 0, VOCAB, dtype=jnp.int32)
    attention_mask = jnp.array([[1, 1, 1, 1, 1, 1, 1, 1],
                                [1, 1, 1, 1, 1, 1, 0, 0]], dtype=jnp.int32)
    token_type_ids = jnp.zeros((B, S), dtype=jnp.int32)

    fwd = jax.jit(functools.partial(bert_sentiment_forward, heads=HEADS))
    logits = fwd(params, input_ids, attention_mask, token_type_ids)
    jax.block_until_ready(logits)

    assert logits.shape == (B, N_CLASS)
    assert bool(jnp.all(jnp.isfinite(logits)))
    print("KERNEL_OK")
</pallas_src>

<mosaic_0001>
module attributes {stable_mosaic.version = 11 : i64} {
  func.func @_linear_kernel(%arg0: i32, %arg1: i32, %arg2: i32, %arg3: memref<16x256xbf16, #tpu.memory_space<vmem>>, %arg4: memref<256x768xbf16, #tpu.memory_space<vmem>>, %arg5: memref<1x768xf32, #tpu.memory_space<vmem>>, %arg6: memref<16x768xbf16, #tpu.memory_space<vmem>>, %arg7: memref<16x768xf32, #tpu.memory_space<vmem>>) attributes {dimension_semantics = [#tpu.dimension_semantics<parallel>, #tpu.dimension_semantics<parallel>, #tpu.dimension_semantics<arbitrary>], iteration_bounds = array<i64: 1, 1, 1>, scalar_prefetch = 0 : i64, scratch_operands = 1 : i64, tpu.core_type = #tpu.core_type<tc>, window_params = [{transform_indices = @transform_0, window_bounds = array<i64: 16, 256>}, {transform_indices = @transform_1, window_bounds = array<i64: 256, 768>}, {transform_indices = @transform_2, window_bounds = array<i64: 1, 768>}, {transform_indices = @transform_3, window_bounds = array<i64: 16, 768>}]} {
    %c0_i32 = arith.constant 0 : i32
    %0 = arith.cmpi eq, %arg2, %c0_i32 : i32
    %1 = arith.extui %0 : i1 to i32
    %c0_i32_0 = arith.constant 0 : i32
    %2 = arith.cmpi ne, %1, %c0_i32_0 : i32
    scf.if %2 {
      %cst_10 = arith.constant 0.000000e+00 : f32
      %12 = vector.broadcast %cst_10 : f32 to vector<16x768xf32>
      %c0_11 = arith.constant 0 : index
      %c0_12 = arith.constant 0 : index
      %13 = vector.load %arg7[%c0_11, %c0_12] : memref<16x768xf32, #tpu.memory_space<vmem>>, vector<16x768xf32>
      tpu.vector_store %arg7[%c0_11, %c0_12], %12 {strides = array<i32>} : memref<16x768xf32, #tpu.memory_space<vmem>>, vector<16x768xf32>,
    } else {
    }
    %c0 = arith.constant 0 : index
    %c0_1 = arith.constant 0 : index
    %3 = vector.load %arg7[%c0, %c0_1] : memref<16x768xf32, #tpu.memory_space<vmem>>, vector<16x768xf32>
    %c0_2 = arith.constant 0 : index
    %c0_3 = arith.constant 0 : index
    %4 = vector.load %arg3[%c0_2, %c0_3] : memref<16x256xbf16, #tpu.memory_space<vmem>>, vector<16x256xbf16>
    %c0_4 = arith.constant 0 : index
    %c0_5 = arith.constant 0 : index
    %5 = vector.load %arg4[%c0_4, %c0_5] : memref<256x768xbf16, #tpu.memory_space<vmem>>, vector<256x768xbf16>
    %cst = arith.constant dense<0.000000e+00> : vector<16x768xf32>
    %6 = tpu.matmul %4, %5, %cst {dimension_numbers = #tpu.dot_dimension_numbers<[1], [0], [0], [1], [0, 0, 1, 1], [], []>} : vector<16x256xbf16>, vector<256x768xbf16>, vector<16x768xf32> -> vector<16x768xf32>
    %7 = arith.addf %3, %6 : vector<16x768xf32>
    %c0_6 = arith.constant 0 : index
    %c0_7 = arith.constant 0 : index
    %8 = vector.load %arg7[%c0_6, %c0_7] : memref<16x768xf32, #tpu.memory_space<vmem>>, vector<16x768xf32>
    tpu.vector_store %arg7[%c0_6, %c0_7], %7 {strides = array<i32>} : memref<16x768xf32, #tpu.memory_space<vmem>>, vector<16x768xf32>,
    %c0_i32_8 = arith.constant 0 : i32
    %9 = arith.cmpi eq, %arg2, %c0_i32_8 : i32
    %10 = arith.extui %9 : i1 to i32
    %c0_i32_9 = arith.constant 0 : i32
    %11 = arith.cmpi ne, %10, %c0_i32_9 : i32
    scf.if %11 {
      %c0_10 = arith.constant 0 : index
      %c0_11 = arith.constant 0 : index
      %12 = vector.load %arg7[%c0_10, %c0_11] : memref<16x768xf32, #tpu.memory_space<vmem>>, vector<16x768xf32>
      %c0_12 = arith.constant 0 : index
      %c0_13 = arith.constant 0 : index
      %13 = vector.load %arg5[%c0_12, %c0_13] : memref<1x768xf32, #tpu.memory_space<vmem>>, vector<1x768xf32>
      %14 = vector.broadcast %13 : vector<1x768xf32> to vector<16x768xf32>
      %15 = arith.addf %12, %14 : vector<16x768xf32>
      %16 = arith.truncf %15 : vector<16x768xf32> to vector<16x768xbf16>
      %c0_14 = arith.constant 0 : index
      %c0_15 = arith.constant 0 : index
      %17 = vector.load %arg6[%c0_14, %c0_15] : memref<16x768xbf16, #tpu.memory_space<vmem>>, vector<16x768xbf16>
      tpu.vector_store %arg6[%c0_14, %c0_15], %16 {strides = array<i32>} : memref<16x768xbf16, #tpu.memory_space<vmem>>, vector<16x768xbf16>,
    } else {
    }
    return
  }
  func.func @transform_0(%arg0: i32, %arg1: i32, %arg2: i32) -> (i32, i32) {
    %c0_i32 = arith.constant 0 : i32
    return %arg0, %arg2 : i32, i32
  }
  func.func @transform_1(%arg0: i32, %arg1: i32, %arg2: i32) -> (i32, i32) {
    %c0_i32 = arith.constant 0 : i32
    return %arg2, %arg1 : i32, i32
  }
  func.func @transform_2(%arg0: i32, %arg1: i32, %arg2: i32) -> (i32, i32) {
    %c0_i32 = arith.constant 0 : i32
    %c0_i32_0 = arith.constant 0 : i32
    return %c0_i32, %arg1 : i32, i32
  }
  func.func @transform_3(%arg0: i32, %arg1: i32, %arg2: i32) -> (i32, i32) {
    %c0_i32 = arith.constant 0 : i32
    return %arg0, %arg1 : i32, i32
  }
}

module attributes {stable_mosaic.version = 11 : i64} {
  func.func @_attn_kernel(%arg0: i32, %arg1: memref<1x1x8xf32, #tpu.memory_space<vmem>>, %arg2: memref<1x8x256xbf16, #tpu.memory_space<vmem>>, %arg3: memref<1x8x256xbf16, #tpu.memory_space<vmem>>, %arg4: memref<1x8x256xbf16, #tpu.memory_space<vmem>>, %arg5: memref<1x8x256xbf16, #tpu.memory_space<vmem>>) attributes {dimension_semantics = [#tpu.dimension_semantics<parallel>], iteration_bounds = array<i64: 2>, scalar_prefetch = 0 : i64, scratch_operands = 0 : i64, tpu.core_type = #tpu.core_type<tc>, window_params = [{transform_indices = @transform_0, window_bounds = array<i64: 1, 1, 8>}, {transform_indices = @transform_1, window_bounds = array<i64: 1, 8, 256>}, {transform_indices = @transform_2, window_bounds = array<i64: 1, 8, 256>}, {transform_indices = @transform_3, window_bounds = array<i64: 1, 8, 256>}, {transform_indices = @transform_4, window_bounds = array<i64: 1, 8, 256>}]} {
    %c0 = arith.constant 0 : index
    %c0_0 = arith.constant 0 : index
    %c0_1 = arith.constant 0 : index
    %0 = vector.load %arg2[%c0, %c0_0, %c0_1] : memref<1x8x256xbf16, #tpu.memory_space<vmem>>, vector<1x8x256xbf16>
    %1 = vector.shape_cast %0 : vector<1x8x256xbf16> to vector<8x256xbf16>
    %cst = arith.constant 1.250000e-01 : bf16
    %2 = vector.broadcast %cst : bf16 to vector<8x256xbf16>
    %3 = arith.mulf %1, %2 : vector<8x256xbf16>
    %4 = vector.shape_cast %3 : vector<8x256xbf16> to vector<8x4x64xbf16>
    %c0_2 = arith.constant 0 : index
    %c0_3 = arith.constant 0 : index
    %c0_4 = arith.constant 0 : index
    %5 = vector.load %arg3[%c0_2, %c0_3, %c0_4] : memref<1x8x256xbf16, #tpu.memory_space<vmem>>, vector<1x8x256xbf16>
    %6 = vector.shape_cast %5 : vector<1x8x256xbf16> to vector<8x256xbf16>
    %7 = vector.shape_cast %6 : vector<8x256xbf16> to vector<8x4x64xbf16>
    %c0_5 = arith.constant 0 : index
    %c0_6 = arith.constant 0 : index
    %c0_7 = arith.constant 0 : index
    %8 = vector.load %arg4[%c0_5, %c0_6, %c0_7] : memref<1x8x256xbf16, #tpu.memory_space<vmem>>, vector<1x8x256xbf16>
    %9 = vector.shape_cast %8 : vector<1x8x256xbf16> to vector<8x256xbf16>
    %10 = vector.shape_cast %9 : vector<8x256xbf16> to vector<8x4x64xbf16>
    "tpu.trace_start"() <{level = 10 : i32, message = "qhd,khd->hqk"}> : () -> ()
    %cst_8 = arith.constant dense<0.000000e+00> : vector<4x8x8xf32>
    %11 = tpu.matmul %4, %7, %cst_8 {dimension_numbers = #tpu.dot_dimension_numbers<[2], [2], [0], [0], [0, 1, 0, 0, 1, 0], [1], [1]>} : vector<8x4x64xbf16>, vector<8x4x64xbf16>, vector<4x8x8xf32> -> vector<4x8x8xf32>
    "tpu.trace_stop"() : () -> ()
    %c0_9 = arith.constant 0 : index
    %c0_10 = arith.constant 0 : index
    %c0_11 = arith.constant 0 : index
    %12 = vector.load %arg1[%c0_9, %c0_10, %c0_11] : memref<1x1x8xf32, #tpu.memory_space<vmem>>, vector<1x1x8xf32>
    %13 = vector.broadcast %12 : vector<1x1x8xf32> to vector<4x8x8xf32>
    %14 = arith.addf %11, %13 : vector<4x8x8xf32>
    %cst_12 = arith.constant dense<0xFF800000> : vector<4x8xf32>
    %15 = vector.multi_reduction <maximumf>, %14, %cst_12 [2] : vector<4x8x8xf32> to vector<4x8xf32>
    %16 = vector.shape_cast %15 : vector<4x8xf32> to vector<4x8x1xf32>
    %17 = vector.broadcast %16 : vector<4x8x1xf32> to vector<4x8x8xf32>
    %18 = arith.subf %14, %17 : vector<4x8x8xf32>
    %19 = arith.truncf %18 : vector<4x8x8xf32> to vector<4x8x8xbf16>
    %20 = math.exp %19 : vector<4x8x8xbf16>
    %21 = arith.extf %20 : vector<4x8x8xbf16> to vector<4x8x8xf32>
    %cst_13 = arith.constant dense<0.000000e+00> : vector<4x8xf32>
    %22 = vector.multi_reduction <add>, %21, %cst_13 [2] : vector<4x8x8xf32> to vector<4x8xf32>
    %23 = vector.shape_cast %22 : vector<4x8xf32> to vector<4x8x1xf32>
    %24 = tpu.reciprocal %23 {approx = true} : vector<4x8x1xf32> -> vector<4x8x1xf32>
    "tpu.trace_start"() <{level = 10 : i32, message = "hqk,khd->qhd"}> : () -> ()
    %cst_14 = arith.constant dense<0.000000e+00> : vector<4x64x8xf32>
    %25 = tpu.matmul %10, %20, %cst_14 {dimension_numbers = #tpu.dot_dimension_numbers<[0], [2], [2], [1], [0, 1, 0, 2, 1, 1], [1], [0]>} : vector<8x4x64xbf16>, vector<4x8x8xbf16>, vector<4x64x8xf32> -> vector<4x64x8xf32>
    %26 = tpu.transpose %25, [2, 0, 1] : vector<4x64x8xf32> -> vector<8x4x64xf32>
    "tpu.trace_stop"() : () -> ()
    %27 = tpu.transpose %24, [1, 0, 2] : vector<4x8x1xf32> -> vector<8x4x1xf32>
    %28 = vector.broadcast %27 : vector<8x4x1xf32> to vector<8x4x64xf32>
    %29 = arith.mulf %26, %28 : vector<8x4x64xf32>
    %30 = vector.shape_cast %29 : vector<8x4x64xf32> to vector<8x256xf32>
    %31 = arith.truncf %30 : vector<8x256xf32> to vector<8x256xbf16>
    %c0_15 = arith.constant 0 : index
    %c0_16 = arith.constant 0 : index
    %c0_17 = arith.constant 0 : index
    %32 = vector.load %arg5[%c0_15, %c0_16, %c0_17] : memref<1x8x256xbf16, #tpu.memory_space<vmem>>, vector<1x8x256xbf16>
    %33 = vector.shape_cast %32 : vector<1x8x256xbf16> to vector<8x256xbf16>
    %34 = vector.shape_cast %31 : vector<8x256xbf16> to vector<1x8x256xbf16>
    tpu.vector_store %arg5[%c0_15, %c0_16, %c0_17], %34 {strides = array<i32>} : memref<1x8x256xbf16, #tpu.memory_space<vmem>>, vector<1x8x256xbf16>,
    return
  }
  func.func @transform_0(%arg0: i32) -> (i32, i32, i32) {
    %c0_i32 = arith.constant 0 : i32
    %c0_i32_0 = arith.constant 0 : i32
    %c0_i32_1 = arith.constant 0 : i32
    return %arg0, %c0_i32, %c0_i32_0 : i32, i32, i32
  }
  func.func @transform_1(%arg0: i32) -> (i32, i32, i32) {
    %c0_i32 = arith.constant 0 : i32
    %c0_i32_0 = arith.constant 0 : i32
    %c0_i32_1 = arith.constant 0 : i32
    return %arg0, %c0_i32, %c0_i32_0 : i32, i32, i32
  }
  func.func @transform_2(%arg0: i32) -> (i32, i32, i32) {
    %c0_i32 = arith.constant 0 : i32
    %c1_i32 = arith.constant 1 : i32
    %c0_i32_0 = arith.constant 0 : i32
    return %arg0, %c0_i32, %c1_i32 : i32, i32, i32
  }
  func.func @transform_3(%arg0: i32) -> (i32, i32, i32) {
    %c0_i32 = arith.constant 0 : i32
    %c2_i32 = arith.constant 2 : i32
    %c0_i32_0 = arith.constant 0 : i32
    return %arg0, %c0_i32, %c2_i32 : i32, i32, i32
  }
  func.func @transform_4(%arg0: i32) -> (i32, i32, i32) {
    %c0_i32 = arith.constant 0 : i32
    %c0_i32_0 = arith.constant 0 : i32
    %c0_i32_1 = arith.constant 0 : i32
    return %arg0, %c0_i32, %c0_i32_0 : i32, i32, i32
  }
}

module attributes {stable_mosaic.version = 11 : i64} {
  func.func @_ln_kernel(%arg0: i32, %arg1: memref<16x256xf32, #tpu.memory_space<vmem>>, %arg2: memref<1x256xf32, #tpu.memory_space<vmem>>, %arg3: memref<1x256xf32, #tpu.memory_space<vmem>>, %arg4: memref<16x256xbf16, #tpu.memory_space<vmem>>) attributes {dimension_semantics = [#tpu.dimension_semantics<parallel>], iteration_bounds = array<i64: 1>, scalar_prefetch = 0 : i64, scratch_operands = 0 : i64, tpu.core_type = #tpu.core_type<tc>, window_params = [{transform_indices = @transform_0, window_bounds = array<i64: 16, 256>}, {pipeline_mode = #tpu.pipeline_mode<synchronous>, transform_indices = @transform_1, window_bounds = array<i64: 1, 256>}, {pipeline_mode = #tpu.pipeline_mode<synchronous>, transform_indices = @transform_2, window_bounds = array<i64: 1, 256>}, {transform_indices = @transform_3, window_bounds = array<i64: 16, 256>}]} {
    %c0 = arith.constant 0 : index
    %c0_0 = arith.constant 0 : index
    %0 = vector.load %arg1[%c0, %c0_0] : memref<16x256xf32, #tpu.memory_space<vmem>>, vector<16x256xf32>
    %cst = arith.constant dense<0.000000e+00> : vector<16xf32>
    %1 = vector.multi_reduction <add>, %0, %cst [1] : vector<16x256xf32> to vector<16xf32>
    %2 = vector.shape_cast %1 : vector<16xf32> to vector<16x1xf32>
    %cst_1 = arith.constant 2.560000e+02 : f32
    %3 = vector.broadcast %cst_1 : f32 to vector<16x1xf32>
    %4 = arith.divf %2, %3 : vector<16x1xf32>
    %5 = vector.broadcast %4 : vector<16x1xf32> to vector<16x256xf32>
    %6 = arith.subf %0, %5 : vector<16x256xf32>
    %7 = arith.mulf %6, %6 : vector<16x256xf32>
    %cst_2 = arith.constant dense<0.000000e+00> : vector<16xf32>
    %8 = vector.multi_reduction <add>, %7, %cst_2 [1] : vector<16x256xf32> to vector<16xf32>
    %9 = vector.shape_cast %8 : vector<16xf32> to vector<16x1xf32>
    %cst_3 = arith.constant 2.560000e+02 : f32
    %10 = vector.broadcast %cst_3 : f32 to vector<16x1xf32>
    %11 = arith.divf %9, %10 : vector<16x1xf32>
    %cst_4 = arith.constant 9.99999996E-13 : f32
    %12 = vector.broadcast %cst_4 : f32 to vector<16x1xf32>
    %13 = arith.addf %11, %12 : vector<16x1xf32>
    %14 = math.rsqrt %13 : vector<16x1xf32>
    %15 = vector.broadcast %14 : vector<16x1xf32> to vector<16x256xf32>
    %16 = arith.mulf %6, %15 : vector<16x256xf32>
    %c0_5 = arith.constant 0 : index
    %c0_6 = arith.constant 0 : index
    %17 = vector.load %arg2[%c0_5, %c0_6] : memref<1x256xf32, #tpu.memory_space<vmem>>, vector<1x256xf32>
    %18 = vector.broadcast %17 : vector<1x256xf32> to vector<16x256xf32>
    %19 = arith.mulf %16, %18 : vector<16x256xf32>
    %c0_7 = arith.constant 0 : index
    %c0_8 = arith.constant 0 : index
    %20 = vector.load %arg3[%c0_7, %c0_8] : memref<1x256xf32, #tpu.memory_space<vmem>>, vector<1x256xf32>
    %21 = vector.broadcast %20 : vector<1x256xf32> to vector<16x256xf32>
    %22 = arith.addf %19, %21 : vector<16x256xf32>
    %23 = arith.truncf %22 : vector<16x256xf32> to vector<16x256xbf16>
    %c0_9 = arith.constant 0 : index
    %c0_10 = arith.constant 0 : index
    %24 = vector.load %arg4[%c0_9, %c0_10] : memref<16x256xbf16, #tpu.memory_space<vmem>>, vector<16x256xbf16>
    tpu.vector_store %arg4[%c0_9, %c0_10], %23 {strides = array<i32>} : memref<16x256xbf16, #tpu.memory_space<vmem>>, vector<16x256xbf16>,
    return
  }
  func.func @transform_0(%arg0: i32) -> (i32, i32) {
    %c0_i32 = arith.constant 0 : i32
    %c0_i32_0 = arith.constant 0 : i32
    return %arg0, %c0_i32 : i32, i32
  }
  func.func @transform_1(%arg0: i32) -> (i32, i32) {
    %c0_i32 = arith.constant 0 : i32
    %c0_i32_0 = arith.constant 0 : i32
    %c0_i32_1 = arith.constant 0 : i32
    return %c0_i32, %c0_i32_0 : i32, i32
  }
  func.func @transform_2(%arg0: i32) -> (i32, i32) {
    %c0_i32 = arith.constant 0 : i32
    %c0_i32_0 = arith.constant 0 : i32
    %c0_i32_1 = arith.constant 0 : i32
    return %c0_i32, %c0_i32_0 : i32, i32
  }
  func.func @transform_3(%arg0: i32) -> (i32, i32) {
    %c0_i32 = arith.constant 0 : i32
    %c0_i32_0 = arith.constant 0 : i32
    return %arg0, %c0_i32 : i32, i32
  }
}

module attributes {stable_mosaic.version = 11 : i64} {
  func.func @_linear_ln_kernel(%arg0: i32, %arg1: i32, %arg2: memref<16x256xbf16, #tpu.memory_space<vmem>>, %arg3: memref<256x256xbf16, #tpu.memory_space<vmem>>, %arg4: memref<1x256xf32, #tpu.memory_space<vmem>>, %arg5: memref<16x256xbf16, #tpu.memory_space<vmem>>, %arg6: memref<1x256xf32, #tpu.memory_space<vmem>>, %arg7: memref<1x256xf32, #tpu.memory_space<vmem>>, %arg8: memref<16x256xbf16, #tpu.memory_space<vmem>>, %arg9: memref<16x256xf32, #tpu.memory_space<vmem>>) attributes {dimension_semantics = [#tpu.dimension_semantics<parallel>, #tpu.dimension_semantics<arbitrary>], iteration_bounds = array<i64: 1, 1>, scalar_prefetch = 0 : i64, scratch_operands = 1 : i64, tpu.core_type = #tpu.core_type<tc>, window_params = [{transform_indices = @transform_0, window_bounds = array<i64: 16, 256>}, {transform_indices = @transform_1, window_bounds = array<i64: 256, 256>}, {pipeline_mode = #tpu.pipeline_mode<synchronous>, transform_indices = @transform_2, window_bounds = array<i64: 1, 256>}, {transform_indices = @transform_3, window_bounds = array<i64: 16, 256>}, {pipeline_mode = #tpu.pipeline_mode<synchronous>, transform_indices = @transform_4, window_bounds = array<i64: 1, 256>}, {pipeline_mode = #tpu.pipeline_mode<synchronous>, transform_indices = @transform_5, window_bounds = array<i64: 1, 256>}, {transform_indices = @transform_6, window_bounds = array<i64: 16, 256>}]} {
    %c0_i32 = arith.constant 0 : i32
    %0 = arith.cmpi eq, %arg1, %c0_i32 : i32
    %1 = arith.extui %0 : i1 to i32
    %c0_i32_0 = arith.constant 0 : i32
    %2 = arith.cmpi ne, %1, %c0_i32_0 : i32
    scf.if %2 {
      %cst_10 = arith.constant 0.000000e+00 : f32
      %12 = vector.broadcast %cst_10 : f32 to vector<16x256xf32>
      %c0_11 = arith.constant 0 : index
      %c0_12 = arith.constant 0 : index
      %13 = vector.load %arg9[%c0_11, %c0_12] : memref<16x256xf32, #tpu.memory_space<vmem>>, vector<16x256xf32>
      tpu.vector_store %arg9[%c0_11, %c0_12], %12 {strides = array<i32>} : memref<16x256xf32, #tpu.memory_space<vmem>>, vector<16x256xf32>,
    } else {
    }
    %c0 = arith.constant 0 : index
    %c0_1 = arith.constant 0 : index
    %3 = vector.load %arg9[%c0, %c0_1] : memref<16x256xf32, #tpu.memory_space<vmem>>, vector<16x256xf32>
    %c0_2 = arith.constant 0 : index
    %c0_3 = arith.constant 0 : index
    %4 = vector.load %arg2[%c0_2, %c0_3] : memref<16x256xbf16, #tpu.memory_space<vmem>>, vector<16x256xbf16>
    %c0_4 = arith.constant 0 : index
    %c0_5 = arith.constant 0 : index
    %5 = vector.load %arg3[%c0_4, %c0_5] : memref<256x256xbf16, #tpu.memory_space<vmem>>, vector<256x256xbf16>
    %cst = arith.constant dense<0.000000e+00> : vector<16x256xf32>
    %6 = tpu.matmul %4, %5, %cst {dimension_numbers = #tpu.dot_dimension_numbers<[1], [0], [0], [1], [0, 0, 1, 1], [], []>} : vector<16x256xbf16>, vector<256x256xbf16>, vector<16x256xf32> -> vector<16x256xf32>
    %7 = arith.addf %3, %6 : vector<16x256xf32>
    %c0_6 = arith.constant 0 : index
    %c0_7 = arith.constant 0 : index
    %8 = vector.load %arg9[%c0_6, %c0_7] : memref<16x256xf32, #tpu.memory_space<vmem>>, vector<16x256xf32>
    tpu.vector_store %arg9[%c0_6, %c0_7], %7 {strides = array<i32>} : memref<16x256xf32, #tpu.memory_space<vmem>>, vector<16x256xf32>,
    %c0_i32_8 = arith.constant 0 : i32
    %9 = arith.cmpi eq, %arg1, %c0_i32_8 : i32
    %10 = arith.extui %9 : i1 to i32
    %c0_i32_9 = arith.constant 0 : i32
    %11 = arith.cmpi ne, %10, %c0_i32_9 : i32
    scf.if %11 {
      %c0_10 = arith.constant 0 : index
      %c0_11 = arith.constant 0 : index
      %12 = vector.load %arg9[%c0_10, %c0_11] : memref<16x256xf32, #tpu.memory_space<vmem>>, vector<16x256xf32>
      %c0_12 = arith.constant 0 : index
      %c0_13 = arith.constant 0 : index
      %13 = vector.load %arg4[%c0_12, %c0_13] : memref<1x256xf32, #tpu.memory_space<vmem>>, vector<1x256xf32>
      %14 = vector.broadcast %13 : vector<1x256xf32> to vector<16x256xf32>
      %15 = arith.addf %12, %14 : vector<16x256xf32>
      %c0_14 = arith.constant 0 : index
      %c0_15 = arith.constant 0 : index
      %16 = vector.load %arg5[%c0_14, %c0_15] : memref<16x256xbf16, #tpu.memory_space<vmem>>, vector<16x256xbf16>
      %17 = arith.extf %16 : vector<16x256xbf16> to vector<16x256xf32>
      %18 = arith.addf %15, %17 : vector<16x256xf32>
      %cst_16 = arith.constant dense<0.000000e+00> : vector<16xf32>
      %19 = vector.multi_reduction <add>, %18, %cst_16 [1] : vector<16x256xf32> to vector<16xf32>
      %20 = vector.shape_cast %19 : vector<16xf32> to vector<16x1xf32>
      %cst_17 = arith.constant 2.560000e+02 : f32
      %21 = vector.broadcast %cst_17 : f32 to vector<16x1xf32>
      %22 = arith.divf %20, %21 : vector<16x1xf32>
      %23 = vector.broadcast %22 : vector<16x1xf32> to vector<16x256xf32>
      %24 = arith.subf %18, %23 : vector<16x256xf32>
      %25 = arith.mulf %24, %24 : vector<16x256xf32>
      %cst_18 = arith.constant dense<0.000000e+00> : vector<16xf32>
      %26 = vector.multi_reduction <add>, %25, %cst_18 [1] : vector<16x256xf32> to vector<16xf32>
      %27 = vector.shape_cast %26 : vector<16xf32> to vector<16x1xf32>
      %cst_19 = arith.constant 2.560000e+02 : f32
      %28 = vector.broadcast %cst_19 : f32 to vector<16x1xf32>
      %29 = arith.divf %27, %28 : vector<16x1xf32>
      %cst_20 = arith.constant 9.99999996E-13 : f32
      %30 = vector.broadcast %cst_20 : f32 to vector<16x1xf32>
      %31 = arith.addf %29, %30 : vector<16x1xf32>
      %32 = math.rsqrt %31 : vector<16x1xf32>
      %33 = vector.broadcast %32 : vector<16x1xf32> to vector<16x256xf32>
      %34 = arith.mulf %24, %33 : vector<16x256xf32>
      %c0_21 = arith.constant 0 : index
      %c0_22 = arith.constant 0 : index
      %35 = vector.load %arg6[%c0_21, %c0_22] : memref<1x256xf32, #tpu.memory_space<vmem>>, vector<1x256xf32>
      %36 = vector.broadcast %35 : vector<1x256xf32> to vector<16x256xf32>
      %37 = arith.mulf %34, %36 : vector<16x256xf32>
      %c0_23 = arith.constant 0 : index
      %c0_24 = arith.constant 0 : index
      %38 = vector.load %arg7[%c0_23, %c0_24] : memref<1x256xf32, #tpu.memory_space<vmem>>, vector<1x256xf32>
      %39 = vector.broadcast %38 : vector<1x256xf32> to vector<16x256xf32>
      %40 = arith.addf %37, %39 : vector<16x256xf32>
      %41 = arith.truncf %40 : vector<16x256xf32> to vector<16x256xbf16>
      %c0_25 = arith.constant 0 : index
      %c0_26 = arith.constant 0 : index
      %42 = vector.load %arg8[%c0_25, %c0_26] : memref<16x256xbf16, #tpu.memory_space<vmem>>, vector<16x256xbf16>
      tpu.vector_store %arg8[%c0_25, %c0_26], %41 {strides = array<i32>} : memref<16x256xbf16, #tpu.memory_space<vmem>>, vector<16x256xbf16>,
    } else {
    }
    return
  }
  func.func @transform_0(%arg0: i32, %arg1: i32) -> (i32, i32) {
    %c0_i32 = arith.constant 0 : i32
    return %arg0, %arg1 : i32, i32
  }
  func.func @transform_1(%arg0: i32, %arg1: i32) -> (i32, i32) {
    %c0_i32 = arith.constant 0 : i32
    %c0_i32_0 = arith.constant 0 : i32
    return %arg1, %c0_i32 : i32, i32
  }
  func.func @transform_2(%arg0: i32, %arg1: i32) -> (i32, i32) {
    %c0_i32 = arith.constant 0 : i32
    %c0_i32_0 = arith.constant 0 : i32
    %c0_i32_1 = arith.constant 0 : i32
    return %c0_i32, %c0_i32_0 : i32, i32
  }
  func.func @transform_3(%arg0: i32, %arg1: i32) -> (i32, i32) {
    %c0_i32 = arith.constant 0 : i32
    %c0_i32_0 = arith.constant 0 : i32
    return %arg0, %c0_i32 : i32, i32
  }
  func.func @transform_4(%arg0: i32, %arg1: i32) -> (i32, i32) {
    %c0_i32 = arith.constant 0 : i32
    %c0_i32_0 = arith.constant 0 : i32
    %c0_i32_1 = arith.constant 0 : i32
    return %c0_i32, %c0_i32_0 : i32, i32
  }
  func.func @transform_5(%arg0: i32, %arg1: i32) -> (i32, i32) {
    %c0_i32 = arith.constant 0 : i32
    %c0_i32_0 = arith.constant 0 : i32
    %c0_i32_1 = arith.constant 0 : i32
    return %c0_i32, %c0_i32_0 : i32, i32
  }
  func.func @transform_6(%arg0: i32, %arg1: i32) -> (i32, i32) {
    %c0_i32 = arith.constant 0 : i32
    %c0_i32_0 = arith.constant 0 : i32
    return %arg0, %c0_i32 : i32, i32
  }
}

module attributes {stable_mosaic.version = 11 : i64} {
  func.func @_linear_kernel(%arg0: i32, %arg1: i32, %arg2: i32, %arg3: memref<16x256xbf16, #tpu.memory_space<vmem>>, %arg4: memref<256x512xbf16, #tpu.memory_space<vmem>>, %arg5: memref<1x512xf32, #tpu.memory_space<vmem>>, %arg6: memref<16x512xbf16, #tpu.memory_space<vmem>>, %arg7: memref<16x512xf32, #tpu.memory_space<vmem>>) attributes {dimension_semantics = [#tpu.dimension_semantics<parallel>, #tpu.dimension_semantics<parallel>, #tpu.dimension_semantics<arbitrary>], iteration_bounds = array<i64: 1, 1, 1>, scalar_prefetch = 0 : i64, scratch_operands = 1 : i64, tpu.core_type = #tpu.core_type<tc>, window_params = [{transform_indices = @transform_0, window_bounds = array<i64: 16, 256>}, {transform_indices = @transform_1, window_bounds = array<i64: 256, 512>}, {transform_indices = @transform_2, window_bounds = array<i64: 1, 512>}, {transform_indices = @transform_3, window_bounds = array<i64: 16, 512>}]} {
    %c0_i32 = arith.constant 0 : i32
    %0 = arith.cmpi eq, %arg2, %c0_i32 : i32
    %1 = arith.extui %0 : i1 to i32
    %c0_i32_0 = arith.constant 0 : i32
    %2 = arith.cmpi ne, %1, %c0_i32_0 : i32
    scf.if %2 {
      %cst_10 = arith.constant 0.000000e+00 : f32
      %12 = vector.broadcast %cst_10 : f32 to vector<16x512xf32>
      %c0_11 = arith.constant 0 : index
      %c0_12 = arith.constant 0 : index
      %13 = vector.load %arg7[%c0_11, %c0_12] : memref<16x512xf32, #tpu.memory_space<vmem>>, vector<16x512xf32>
      tpu.vector_store %arg7[%c0_11, %c0_12], %12 {strides = array<i32>} : memref<16x512xf32, #tpu.memory_space<vmem>>, vector<16x512xf32>,
    } else {
    }
    %c0 = arith.constant 0 : index
    %c0_1 = arith.constant 0 : index
    %3 = vector.load %arg7[%c0, %c0_1] : memref<16x512xf32, #tpu.memory_space<vmem>>, vector<16x512xf32>
    %c0_2 = arith.constant 0 : index
    %c0_3 = arith.constant 0 : index
    %4 = vector.load %arg3[%c0_2, %c0_3] : memref<16x256xbf16, #tpu.memory_space<vmem>>, vector<16x256xbf16>
    %c0_4 = arith.constant 0 : index
    %c0_5 = arith.constant 0 : index
    %5 = vector.load %arg4[%c0_4, %c0_5] : memref<256x512xbf16, #tpu.memory_space<vmem>>, vector<256x512xbf16>
    %cst = arith.constant dense<0.000000e+00> : vector<16x512xf32>
    %6 = tpu.matmul %4, %5, %cst {dimension_numbers = #tpu.dot_dimension_numbers<[1], [0], [0], [1], [0, 0, 1, 1], [], []>} : vector<16x256xbf16>, vector<256x512xbf16>, vector<16x512xf32> -> vector<16x512xf32>
    %7 = arith.addf %3, %6 : vector<16x512xf32>
    %c0_6 = arith.constant 0 : index
    %c0_7 = arith.constant 0 : index
    %8 = vector.load %arg7[%c0_6, %c0_7] : memref<16x512xf32, #tpu.memory_space<vmem>>, vector<16x512xf32>
    tpu.vector_store %arg7[%c0_6, %c0_7], %7 {strides = array<i32>} : memref<16x512xf32, #tpu.memory_space<vmem>>, vector<16x512xf32>,
    %c0_i32_8 = arith.constant 0 : i32
    %9 = arith.cmpi eq, %arg2, %c0_i32_8 : i32
    %10 = arith.extui %9 : i1 to i32
    %c0_i32_9 = arith.constant 0 : i32
    %11 = arith.cmpi ne, %10, %c0_i32_9 : i32
    scf.if %11 {
      %c0_10 = arith.constant 0 : index
      %c0_11 = arith.constant 0 : index
      %12 = vector.load %arg7[%c0_10, %c0_11] : memref<16x512xf32, #tpu.memory_space<vmem>>, vector<16x512xf32>
      %c0_12 = arith.constant 0 : index
      %c0_13 = arith.constant 0 : index
      %13 = vector.load %arg5[%c0_12, %c0_13] : memref<1x512xf32, #tpu.memory_space<vmem>>, vector<1x512xf32>
      %14 = vector.broadcast %13 : vector<1x512xf32> to vector<16x512xf32>
      %15 = arith.addf %12, %14 : vector<16x512xf32>
      %16 = arith.truncf %15 : vector<16x512xf32> to vector<16x512xbf16>
      %cst_14 = arith.constant 5.000000e-01 : bf16
      %17 = vector.broadcast %cst_14 : bf16 to vector<16x512xbf16>
      %18 = arith.mulf %17, %16 : vector<16x512xbf16>
      %cst_15 = arith.constant 4.467770e-02 : bf16
      %19 = vector.broadcast %cst_15 : bf16 to vector<16x512xbf16>
      %20 = arith.mulf %19, %16 : vector<16x512xbf16>
      %21 = arith.mulf %20, %16 : vector<16x512xbf16>
      %22 = arith.mulf %21, %16 : vector<16x512xbf16>
      %23 = arith.addf %16, %22 : vector<16x512xbf16>
      %cst_16 = arith.constant 7.968750e-01 : bf16
      %24 = vector.broadcast %cst_16 : bf16 to vector<16x512xbf16>
      %25 = arith.mulf %24, %23 : vector<16x512xbf16>
      %26 = math.tanh %25 : vector<16x512xbf16>
      %cst_17 = arith.constant 1.000000e+00 : bf16
      %27 = vector.broadcast %cst_17 : bf16 to vector<16x512xbf16>
      %28 = arith.addf %27, %26 : vector<16x512xbf16>
      %29 = arith.mulf %18, %28 : vector<16x512xbf16>
      %c0_18 = arith.constant 0 : index
      %c0_19 = arith.constant 0 : index
      %30 = vector.load %arg6[%c0_18, %c0_19] : memref<16x512xbf16, #tpu.memory_space<vmem>>, vector<16x512xbf16>
      tpu.vector_store %arg6[%c0_18, %c0_19], %29 {strides = array<i32>} : memref<16x512xbf16, #tpu.memory_space<vmem>>, vector<16x512xbf16>,
    } else {
    }
    return
  }
  func.func @transform_0(%arg0: i32, %arg1: i32, %arg2: i32) -> (i32, i32) {
    %c0_i32 = arith.constant 0 : i32
    return %arg0, %arg2 : i32, i32
  }
  func.func @transform_1(%arg0: i32, %arg1: i32, %arg2: i32) -> (i32, i32) {
    %c0_i32 = arith.constant 0 : i32
    return %arg2, %arg1 : i32, i32
  }
  func.func @transform_2(%arg0: i32, %arg1: i32, %arg2: i32) -> (i32, i32) {
    %c0_i32 = arith.constant 0 : i32
    %c0_i32_0 = arith.constant 0 : i32
    return %c0_i32, %arg1 : i32, i32
  }
  func.func @transform_3(%arg0: i32, %arg1: i32, %arg2: i32) -> (i32, i32) {
    %c0_i32 = arith.constant 0 : i32
    return %arg0, %arg1 : i32, i32
  }
}

module attributes {stable_mosaic.version = 11 : i64} {
  func.func @_linear_kernel(%arg0: i32, %arg1: i32, %arg2: i32, %arg3: memref<16x256xbf16, #tpu.memory_space<vmem>>, %arg4: memref<256x768xbf16, #tpu.memory_space<vmem>>, %arg5: memref<1x768xf32, #tpu.memory_space<vmem>>, %arg6: memref<16x768xbf16, #tpu.memory_space<vmem>>, %arg7: memref<16x768xf32, #tpu.memory_space<vmem>>) attributes {dimension_semantics = [#tpu.dimension_semantics<parallel>, #tpu.dimension_semantics<parallel>, #tpu.dimension_semantics<arbitrary>], iteration_bounds = array<i64: 1, 1, 1>, scalar_prefetch = 0 : i64, scratch_operands = 1 : i64, tpu.core_type = #tpu.core_type<tc>, window_params = [{transform_indices = @transform_0, window_bounds = array<i64: 16, 256>}, {transform_indices = @transform_1, window_bounds = array<i64: 256, 768>}, {transform_indices = @transform_2, window_bounds = array<i64: 1, 768>}, {transform_indices = @transform_3, window_bounds = array<i64: 16, 768>}]} {
    %c0_i32 = arith.constant 0 : i32
    %0 = arith.cmpi eq, %arg2, %c0_i32 : i32
    %1 = arith.extui %0 : i1 to i32
    %c0_i32_0 = arith.constant 0 : i32
    %2 = arith.cmpi ne, %1, %c0_i32_0 : i32
    scf.if %2 {
      %cst_10 = arith.constant 0.000000e+00 : f32
      %12 = vector.broadcast %cst_10 : f32 to vector<16x768xf32>
      %c0_11 = arith.constant 0 : index
      %c0_12 = arith.constant 0 : index
      %13 = vector.load %arg7[%c0_11, %c0_12] : memref<16x768xf32, #tpu.memory_space<vmem>>, vector<16x768xf32>
      tpu.vector_store %arg7[%c0_11, %c0_12], %12 {strides = array<i32>} : memref<16x768xf32, #tpu.memory_space<vmem>>, vector<16x768xf32>,
    } else {
    }
    %c0 = arith.constant 0 : index
    %c0_1 = arith.constant 0 : index
    %3 = vector.load %arg7[%c0, %c0_1] : memref<16x768xf32, #tpu.memory_space<vmem>>, vector<16x768xf32>
    %c0_2 = arith.constant 0 : index
    %c0_3 = arith.constant 0 : index
    %4 = vector.load %arg3[%c0_2, %c0_3] : memref<16x256xbf16, #tpu.memory_space<vmem>>, vector<16x256xbf16>
    %c0_4 = arith.constant 0 : index
    %c0_5 = arith.constant 0 : index
    %5 = vector.load %arg4[%c0_4, %c0_5] : memref<256x768xbf16, #tpu.memory_space<vmem>>, vector<256x768xbf16>
    %cst = arith.constant dense<0.000000e+00> : vector<16x768xf32>
    %6 = tpu.matmul %4, %5, %cst {dimension_numbers = #tpu.dot_dimension_numbers<[1], [0], [0], [1], [0, 0, 1, 1], [], []>} : vector<16x256xbf16>, vector<256x768xbf16>, vector<16x768xf32> -> vector<16x768xf32>
    %7 = arith.addf %3, %6 : vector<16x768xf32>
    %c0_6 = arith.constant 0 : index
    %c0_7 = arith.constant 0 : index
    %8 = vector.load %arg7[%c0_6, %c0_7] : memref<16x768xf32, #tpu.memory_space<vmem>>, vector<16x768xf32>
    tpu.vector_store %arg7[%c0_6, %c0_7], %7 {strides = array<i32>} : memref<16x768xf32, #tpu.memory_space<vmem>>, vector<16x768xf32>,
    %c0_i32_8 = arith.constant 0 : i32
    %9 = arith.cmpi eq, %arg2, %c0_i32_8 : i32
    %10 = arith.extui %9 : i1 to i32
    %c0_i32_9 = arith.constant 0 : i32
    %11 = arith.cmpi ne, %10, %c0_i32_9 : i32
    scf.if %11 {
      %c0_10 = arith.constant 0 : index
      %c0_11 = arith.constant 0 : index
      %12 = vector.load %arg7[%c0_10, %c0_11] : memref<16x768xf32, #tpu.memory_space<vmem>>, vector<16x768xf32>
      %c0_12 = arith.constant 0 : index
      %c0_13 = arith.constant 0 : index
      %13 = vector.load %arg5[%c0_12, %c0_13] : memref<1x768xf32, #tpu.memory_space<vmem>>, vector<1x768xf32>
      %14 = vector.broadcast %13 : vector<1x768xf32> to vector<16x768xf32>
      %15 = arith.addf %12, %14 : vector<16x768xf32>
      %16 = arith.truncf %15 : vector<16x768xf32> to vector<16x768xbf16>
      %c0_14 = arith.constant 0 : index
      %c0_15 = arith.constant 0 : index
      %17 = vector.load %arg6[%c0_14, %c0_15] : memref<16x768xbf16, #tpu.memory_space<vmem>>, vector<16x768xbf16>
      tpu.vector_store %arg6[%c0_14, %c0_15], %16 {strides = array<i32>} : memref<16x768xbf16, #tpu.memory_space<vmem>>, vector<16x768xbf16>,
    } else {
    }
    return
  }
  func.func @transform_0(%arg0: i32, %arg1: i32, %arg2: i32) -> (i32, i32) {
    %c0_i32 = arith.constant 0 : i32
    return %arg0, %arg2 : i32, i32
  }
  func.func @transform_1(%arg0: i32, %arg1: i32, %arg2: i32) -> (i32, i32) {
    %c0_i32 = arith.constant 0 : i32
    return %arg2, %arg1 : i32, i32
  }
  func.func @transform_2(%arg0: i32, %arg1: i32, %arg2: i32) -> (i32, i32) {
    %c0_i32 = arith.constant 0 : i32
    %c0_i32_0 = arith.constant 0 : i32
    return %c0_i32, %arg1 : i32, i32
  }
  func.func @transform_3(%arg0: i32, %arg1: i32, %arg2: i32) -> (i32, i32) {
    %c0_i32 = arith.constant 0 : i32
    return %arg0, %arg1 : i32, i32
  }
}

module attributes {stable_mosaic.version = 11 : i64} {
  func.func @_linear_ln_kernel(%arg0: i32, %arg1: i32, %arg2: memref<16x512xbf16, #tpu.memory_space<vmem>>, %arg3: memref<512x256xbf16, #tpu.memory_space<vmem>>, %arg4: memref<1x256xf32, #tpu.memory_space<vmem>>, %arg5: memref<16x256xbf16, #tpu.memory_space<vmem>>, %arg6: memref<1x256xf32, #tpu.memory_space<vmem>>, %arg7: memref<1x256xf32, #tpu.memory_space<vmem>>, %arg8: memref<16x256xbf16, #tpu.memory_space<vmem>>, %arg9: memref<16x256xf32, #tpu.memory_space<vmem>>) attributes {dimension_semantics = [#tpu.dimension_semantics<parallel>, #tpu.dimension_semantics<arbitrary>], iteration_bounds = array<i64: 1, 1>, scalar_prefetch = 0 : i64, scratch_operands = 1 : i64, tpu.core_type = #tpu.core_type<tc>, window_params = [{transform_indices = @transform_0, window_bounds = array<i64: 16, 512>}, {transform_indices = @transform_1, window_bounds = array<i64: 512, 256>}, {pipeline_mode = #tpu.pipeline_mode<synchronous>, transform_indices = @transform_2, window_bounds = array<i64: 1, 256>}, {transform_indices = @transform_3, window_bounds = array<i64: 16, 256>}, {pipeline_mode = #tpu.pipeline_mode<synchronous>, transform_indices = @transform_4, window_bounds = array<i64: 1, 256>}, {pipeline_mode = #tpu.pipeline_mode<synchronous>, transform_indices = @transform_5, window_bounds = array<i64: 1, 256>}, {transform_indices = @transform_6, window_bounds = array<i64: 16, 256>}]} {
    %c0_i32 = arith.constant 0 : i32
    %0 = arith.cmpi eq, %arg1, %c0_i32 : i32
    %1 = arith.extui %0 : i1 to i32
    %c0_i32_0 = arith.constant 0 : i32
    %2 = arith.cmpi ne, %1, %c0_i32_0 : i32
    scf.if %2 {
      %cst_10 = arith.constant 0.000000e+00 : f32
      %12 = vector.broadcast %cst_10 : f32 to vector<16x256xf32>
      %c0_11 = arith.constant 0 : index
      %c0_12 = arith.constant 0 : index
      %13 = vector.load %arg9[%c0_11, %c0_12] : memref<16x256xf32, #tpu.memory_space<vmem>>, vector<16x256xf32>
      tpu.vector_store %arg9[%c0_11, %c0_12], %12 {strides = array<i32>} : memref<16x256xf32, #tpu.memory_space<vmem>>, vector<16x256xf32>,
    } else {
    }
    %c0 = arith.constant 0 : index
    %c0_1 = arith.constant 0 : index
    %3 = vector.load %arg9[%c0, %c0_1] : memref<16x256xf32, #tpu.memory_space<vmem>>, vector<16x256xf32>
    %c0_2 = arith.constant 0 : index
    %c0_3 = arith.constant 0 : index
    %4 = vector.load %arg2[%c0_2, %c0_3] : memref<16x512xbf16, #tpu.memory_space<vmem>>, vector<16x512xbf16>
    %c0_4 = arith.constant 0 : index
    %c0_5 = arith.constant 0 : index
    %5 = vector.load %arg3[%c0_4, %c0_5] : memref<512x256xbf16, #tpu.memory_space<vmem>>, vector<512x256xbf16>
    %cst = arith.constant dense<0.000000e+00> : vector<16x256xf32>
    %6 = tpu.matmul %4, %5, %cst {dimension_numbers = #tpu.dot_dimension_numbers<[1], [0], [0], [1], [0, 0, 1, 1], [], []>} : vector<16x512xbf16>, vector<512x256xbf16>, vector<16x256xf32> -> vector<16x256xf32>
    %7 = arith.addf %3, %6 : vector<16x256xf32>
    %c0_6 = arith.constant 0 : index
    %c0_7 = arith.constant 0 : index
    %8 = vector.load %arg9[%c0_6, %c0_7] : memref<16x256xf32, #tpu.memory_space<vmem>>, vector<16x256xf32>
    tpu.vector_store %arg9[%c0_6, %c0_7], %7 {strides = array<i32>} : memref<16x256xf32, #tpu.memory_space<vmem>>, vector<16x256xf32>,
    %c0_i32_8 = arith.constant 0 : i32
    %9 = arith.cmpi eq, %arg1, %c0_i32_8 : i32
    %10 = arith.extui %9 : i1 to i32
    %c0_i32_9 = arith.constant 0 : i32
    %11 = arith.cmpi ne, %10, %c0_i32_9 : i32
    scf.if %11 {
      %c0_10 = arith.constant 0 : index
      %c0_11 = arith.constant 0 : index
      %12 = vector.load %arg9[%c0_10, %c0_11] : memref<16x256xf32, #tpu.memory_space<vmem>>, vector<16x256xf32>
      %c0_12 = arith.constant 0 : index
      %c0_13 = arith.constant 0 : index
      %13 = vector.load %arg4[%c0_12, %c0_13] : memref<1x256xf32, #tpu.memory_space<vmem>>, vector<1x256xf32>
      %14 = vector.broadcast %13 : vector<1x256xf32> to vector<16x256xf32>
      %15 = arith.addf %12, %14 : vector<16x256xf32>
      %c0_14 = arith.constant 0 : index
      %c0_15 = arith.constant 0 : index
      %16 = vector.load %arg5[%c0_14, %c0_15] : memref<16x256xbf16, #tpu.memory_space<vmem>>, vector<16x256xbf16>
      %17 = arith.extf %16 : vector<16x256xbf16> to vector<16x256xf32>
      %18 = arith.addf %15, %17 : vector<16x256xf32>
      %cst_16 = arith.constant dense<0.000000e+00> : vector<16xf32>
      %19 = vector.multi_reduction <add>, %18, %cst_16 [1] : vector<16x256xf32> to vector<16xf32>
      %20 = vector.shape_cast %19 : vector<16xf32> to vector<16x1xf32>
      %cst_17 = arith.constant 2.560000e+02 : f32
      %21 = vector.broadcast %cst_17 : f32 to vector<16x1xf32>
      %22 = arith.divf %20, %21 : vector<16x1xf32>
      %23 = vector.broadcast %22 : vector<16x1xf32> to vector<16x256xf32>
      %24 = arith.subf %18, %23 : vector<16x256xf32>
      %25 = arith.mulf %24, %24 : vector<16x256xf32>
      %cst_18 = arith.constant dense<0.000000e+00> : vector<16xf32>
      %26 = vector.multi_reduction <add>, %25, %cst_18 [1] : vector<16x256xf32> to vector<16xf32>
      %27 = vector.shape_cast %26 : vector<16xf32> to vector<16x1xf32>
      %cst_19 = arith.constant 2.560000e+02 : f32
      %28 = vector.broadcast %cst_19 : f32 to vector<16x1xf32>
      %29 = arith.divf %27, %28 : vector<16x1xf32>
      %cst_20 = arith.constant 9.99999996E-13 : f32
      %30 = vector.broadcast %cst_20 : f32 to vector<16x1xf32>
      %31 = arith.addf %29, %30 : vector<16x1xf32>
      %32 = math.rsqrt %31 : vector<16x1xf32>
      %33 = vector.broadcast %32 : vector<16x1xf32> to vector<16x256xf32>
      %34 = arith.mulf %24, %33 : vector<16x256xf32>
      %c0_21 = arith.constant 0 : index
      %c0_22 = arith.constant 0 : index
      %35 = vector.load %arg6[%c0_21, %c0_22] : memref<1x256xf32, #tpu.memory_space<vmem>>, vector<1x256xf32>
      %36 = vector.broadcast %35 : vector<1x256xf32> to vector<16x256xf32>
      %37 = arith.mulf %34, %36 : vector<16x256xf32>
      %c0_23 = arith.constant 0 : index
      %c0_24 = arith.constant 0 : index
      %38 = vector.load %arg7[%c0_23, %c0_24] : memref<1x256xf32, #tpu.memory_space<vmem>>, vector<1x256xf32>
      %39 = vector.broadcast %38 : vector<1x256xf32> to vector<16x256xf32>
      %40 = arith.addf %37, %39 : vector<16x256xf32>
      %41 = arith.truncf %40 : vector<16x256xf32> to vector<16x256xbf16>
      %c0_25 = arith.constant 0 : index
      %c0_26 = arith.constant 0 : index
      %42 = vector.load %arg8[%c0_25, %c0_26] : memref<16x256xbf16, #tpu.memory_space<vmem>>, vector<16x256xbf16>
      tpu.vector_store %arg8[%c0_25, %c0_26], %41 {strides = array<i32>} : memref<16x256xbf16, #tpu.memory_space<vmem>>, vector<16x256xbf16>,
    } else {
    }
    return
  }
  func.func @transform_0(%arg0: i32, %arg1: i32) -> (i32, i32) {
    %c0_i32 = arith.constant 0 : i32
    return %arg0, %arg1 : i32, i32
  }
  func.func @transform_1(%arg0: i32, %arg1: i32) -> (i32, i32) {
    %c0_i32 = arith.constant 0 : i32
    %c0_i32_0 = arith.constant 0 : i32
    return %arg1, %c0_i32 : i32, i32
  }
  func.func @transform_2(%arg0: i32, %arg1: i32) -> (i32, i32) {
    %c0_i32 = arith.constant 0 : i32
    %c0_i32_0 = arith.constant 0 : i32
    %c0_i32_1 = arith.constant 0 : i32
    return %c0_i32, %c0_i32_0 : i32, i32
  }
  func.func @transform_3(%arg0: i32, %arg1: i32) -> (i32, i32) {
    %c0_i32 = arith.constant 0 : i32
    %c0_i32_0 = arith.constant 0 : i32
    return %arg0, %c0_i32 : i32, i32
  }
  func.func @transform_4(%arg0: i32, %arg1: i32) -> (i32, i32) {
    %c0_i32 = arith.constant 0 : i32
    %c0_i32_0 = arith.constant 0 : i32
    %c0_i32_1 = arith.constant 0 : i32
    return %c0_i32, %c0_i32_0 : i32, i32
  }
  func.func @transform_5(%arg0: i32, %arg1: i32) -> (i32, i32) {
    %c0_i32 = arith.constant 0 : i32
    %c0_i32_0 = arith.constant 0 : i32
    %c0_i32_1 = arith.constant 0 : i32
    return %c0_i32, %c0_i32_0 : i32, i32
  }
  func.func @transform_6(%arg0: i32, %arg1: i32) -> (i32, i32) {
    %c0_i32 = arith.constant 0 : i32
    %c0_i32_0 = arith.constant 0 : i32
    return %arg0, %c0_i32 : i32, i32
  }
}

</mosaic_0001>

<llo_original>
// kernel: bert_sentiment_forward.11
$region0: #{bert_sentiment_forward.11}
  #allocation0 [shape = 'u32[]', space=smem, size = 0x4, offset = 0x4, fixed_abs, tag = 'smem constant byte address 0x4 - core index']
  #allocation1 [shape = 'u32[144,128]{1,0:T(1,128)}', space=vmem, size = 0x12000, scoped, tag = 'internal scratch']
  %s0 = inlined_call_operand.vmem [shape: f32[16,256], index: 0, kind: input, shape index: {}]
  %s1 = inlined_call_operand.vmem [shape: f32[1,256], index: 1, kind: input, shape index: {}]
  %s2 = inlined_call_operand.vmem [shape: f32[1,256], index: 2, kind: input, shape index: {}]
  %s3 = inlined_call_operand.vmem [shape: bf16[16,256], index: 3, kind: output, shape index: {}]
  %s4 = sld [smem:[#allocation0]]
  $region22: #{bert_sentiment_forward.11} parent=0
    _
  %s6 = ssub.s32 1, %s4
  %s7 = scalar_select 0, %s6, %s4
  // Predicated region
  $region2: #{bert_sentiment_forward.11} parent=0 // pred_check
    _
  $region3: #{bert_sentiment_forward.11} parent=0 // pred_check_branch
    %9 = sbr.rel (0) target = $region5
  $region4: #{bert_sentiment_forward.11} parent=0 // pred_region
    _
  $region5: #{bert_sentiment_forward.11} parent=0 // pred_fallthru
    _
  // Predicated region
  $region6: #{bert_sentiment_forward.11} parent=0 // pred_check
    _
  $region7: #{bert_sentiment_forward.11} parent=0 // pred_check_branch
    %11 = sbr.rel (0) target = $region9
  $region8: #{bert_sentiment_forward.11} parent=0 // pred_region
    _
  $region9: #{bert_sentiment_forward.11} parent=0 // pred_fallthru
    _
  // Predicated region
  $region10: #{bert_sentiment_forward.11} parent=0 // pred_check
    _
  $region11: #{bert_sentiment_forward.11} parent=0 // pred_check_branch
    %13 = sbr.rel (0) target = $region13
  $region12: #{bert_sentiment_forward.11} parent=0 // pred_region
    _
  $region13: #{bert_sentiment_forward.11} parent=0 // pred_fallthru
    _
  %v14 = vld [vmem:[%s0] sm:$0xff]
  %v15 = vld [vmem:[%s0 + $0x8] sm:$0xff]
  %v16 = vld [vmem:[%s0 + $0x10] sm:$0xff]
  %v17 = vld [vmem:[%s0 + $0x18] sm:$0xff]
  %v18 = vadd.f32 %v14, %v15
  %19 = vadd.xlane.f32.xlu0 %v18
  %v20 = vpop.xlane.xlu0 %19
  %v21 = vadd.f32 %v16, %v17
  %22 = vadd.xlane.f32.xlu0 %v21
  %v23 = vpop.xlane.xlu0 %22
  %v24 = vrcp.pop 256.0
  %v25 = vmul.f32 %v20, %v24
  %v26 = vmul.f32 %v23, %v24
  %v27 = vsub.f32 %v14, %v25
  %v28 = vsub.f32 %v15, %v25
  %v29 = vsub.f32 %v16, %v26
  %v30 = vsub.f32 %v17, %v26
  %v31 = vmul.f32 %v27, %v27
  %v32 = vmul.f32 %v28, %v28
  %v33 = vmul.f32 %v29, %v29
  %v34 = vmul.f32 %v30, %v30
  %v35 = vadd.f32 %v31, %v32
  %36 = vadd.xlane.f32.xlu0 %v35
  %v37 = vpop.xlane.xlu0 %36
  %v38 = vadd.f32 %v33, %v34
  %39 = vadd.xlane.f32.xlu0 %v38
  %v40 = vpop.xlane.xlu0 %39
  %v41 = vmul.f32 %v37, %v24
  %v42 = vmul.f32 %v40, %v24
  %v43 = vadd.f32 %v41, 1e-12
  %v44 = vadd.f32 %v42, 1e-12
  %v45 = vrsqrt.pop %v43
  %v46 = vrsqrt.pop %v44
  %v47 = vmul.f32 %v27, %v45
  %v48 = vmul.f32 %v28, %v45
  %v49 = vmul.f32 %v29, %v46
  %v50 = vmul.f32 %v30, %v46
  %v51 = vld [vmem:[%s1] sm:$0x3]
  %v53 = vlaneseq
  %v54 = vshrl.u32 %v53, 7
  %v55 = vsub.s32 0, %v54
  %v56 = vrot.slane %v51, %v55
  %v57 = vlaneseq
  %v58 = vshrl.u32 %v57, 7
  %v59 = vsub.s32 1, %v58
  %v60 = vrot.slane %v51, %v59
  %v63 = vmul.f32 %v47, %v56
  %v64 = vmul.f32 %v48, %v60
  %v65 = vmul.f32 %v49, %v56
  %v66 = vmul.f32 %v50, %v60
  %v67 = vld [vmem:[%s2] sm:$0x3]
  %v69 = vlaneseq
  %v70 = vshrl.u32 %v69, 7
  %v71 = vsub.s32 0, %v70
  %v72 = vrot.slane %v67, %v71
  %v73 = vlaneseq
  %v74 = vshrl.u32 %v73, 7
  %v75 = vsub.s32 1, %v74
  %v76 = vrot.slane %v67, %v75
  %v79 = vadd.f32 %v63, %v72
  %v80 = vadd.f32 %v64, %v76
  %v81 = vadd.f32 %v65, %v72
  %v82 = vadd.f32 %v66, %v76
  %v83 = vpack.c.bf16 %v81, %v79
  %v84 = vpack.c.bf16 %v82, %v80
  %v87 = vunpack.c.l.b16 %v83
  %v88 = vunpack.c.l.b16 %v84
  %v89 = vunpack.c.h.b16 %v83
  %v90 = vunpack.c.h.b16 %v84
  %v91 = vpack.c.b16 %v88, %v87
  %v92 = vpack.c.b16 %v90, %v89
  %95 = vst [vmem:[%s3] sm:$0xff] %v91
  %96 = vst [vmem:[%s3 + $0x8] sm:$0xff] %v92
  // Predicated region
  $region14: #{bert_sentiment_forward.11} parent=0 // pred_check
    _
  $region15: #{bert_sentiment_forward.11} parent=0 // pred_check_branch
    %98 = sbr.rel (0) target = $region17
  $region16: #{bert_sentiment_forward.11} parent=0 // pred_region
    _
  $region17: #{bert_sentiment_forward.11} parent=0 // pred_fallthru
    _
  // Predicated region
  $region18: #{bert_sentiment_forward.11} parent=0 // pred_check
    _
  $region19: #{bert_sentiment_forward.11} parent=0 // pred_check_branch
    %100 = sbr.rel (0) target = $region21
  $region20: #{bert_sentiment_forward.11} parent=0 // pred_region
    _
  $region21: #{bert_sentiment_forward.11} parent=0 // pred_fallthru
    _

// kernel: bert_sentiment_forward.14
$region0: #{bert_sentiment_forward.14}
  #allocation0 [shape = 'u32[]', space=smem, size = 0x4, offset = 0x4, fixed_abs, tag = 'smem constant byte address 0x4 - core index']
  #allocation1 [shape = 'u32[144,128]{1,0:T(1,128)}', space=vmem, size = 0x12000, scoped, tag = 'internal scratch']
  #allocation2 [shape = 'f32[16,256]{1,0:T(8,128)}', space=vmem, size = 0x4000, scoped, tag = 'scratch operand']
  %s0 = inlined_call_operand.vmem [shape: bf16[16,256], index: 0, kind: input, shape index: {}]
  %s1 = inlined_call_operand.vmem [shape: bf16[256,256], index: 1, kind: input, shape index: {}]
  %s2 = inlined_call_operand.vmem [shape: f32[1,256], index: 2, kind: input, shape index: {}]
  %s3 = inlined_call_operand.vmem [shape: bf16[16,256], index: 3, kind: input, shape index: {}]
  %s4 = inlined_call_operand.vmem [shape: f32[1,256], index: 4, kind: input, shape index: {}]
  %s5 = inlined_call_operand.vmem [shape: f32[1,256], index: 5, kind: input, shape index: {}]
  %s6 = inlined_call_operand.vmem [shape: bf16[16,256], index: 6, kind: output, shape index: {}]
  %s7 = sld [smem:[#allocation0]]
  $region42: #{bert_sentiment_forward.14} parent=0
    _
  %s9 = ssub.s32 1, %s7
  %s10 = scalar_select 0, %s9, %s7
  // Predicated region
  $region2: #{bert_sentiment_forward.14} parent=0 // pred_check
    _
  $region3: #{bert_sentiment_forward.14} parent=0 // pred_check_branch
    %12 = sbr.rel (0) target = $region5
  $region4: #{bert_sentiment_forward.14} parent=0 // pred_region
    _
  $region5: #{bert_sentiment_forward.14} parent=0 // pred_fallthru
    _
  // Predicated region
  $region6: #{bert_sentiment_forward.14} parent=0 // pred_check
    _
  $region7: #{bert_sentiment_forward.14} parent=0 // pred_check_branch
    %14 = sbr.rel (0) target = $region9
  $region8: #{bert_sentiment_forward.14} parent=0 // pred_region
    _
  $region9: #{bert_sentiment_forward.14} parent=0 // pred_fallthru
    _
  // Predicated region
  $region10: #{bert_sentiment_forward.14} parent=0 // pred_check
    _
  $region11: #{bert_sentiment_forward.14} parent=0 // pred_check_branch
    %16 = sbr.rel (0) target = $region13
  $region12: #{bert_sentiment_forward.14} parent=0 // pred_region
    _
  $region13: #{bert_sentiment_forward.14} parent=0 // pred_fallthru
    _
  // Predicated region
  $region14: #{bert_sentiment_forward.14} parent=0 // pred_check
    _
  $region15: #{bert_sentiment_forward.14} parent=0 // pred_check_branch
    %18 = sbr.rel (0) target = $region17
  $region16: #{bert_sentiment_forward.14} parent=0 // pred_region
    _
  $region17: #{bert_sentiment_forward.14} parent=0 // pred_fallthru
    _
  // Predicated region
  $region18: #{bert_sentiment_forward.14} parent=0 // pred_check
    _
  $region19: #{bert_sentiment_forward.14} parent=0 // pred_check_branch
    %20 = sbr.rel (0) target = $region21
  $region20: #{bert_sentiment_forward.14} parent=0 // pred_region
    _
  $region21: #{bert_sentiment_forward.14} parent=0 // pred_fallthru
    _
  // Predicated region
  $region22: #{bert_sentiment_forward.14} parent=0 // pred_check
    _
  $region23: #{bert_sentiment_forward.14} parent=0 // pred_check_branch
    %22 = sbr.rel (0) target = $region25
  $region24: #{bert_sentiment_forward.14} parent=0 // pred_region
    _
  $region25: #{bert_sentiment_forward.14} parent=0 // pred_fallthru
    _
  %p23 = scmp.eq.s32.totalorder 0, 0
  // Predicated region
  $region26: #{bert_sentiment_forward.14} parent=0 // pred_check
    %p24 = pneg %p23
  $region27: #{bert_sentiment_forward.14} parent=0 // pred_check_branch
    %26 = sbr.rel (%p24) target = $region29
  $region28: #{bert_sentiment_forward.14} parent=0 // pred_region
    %27 = vst [vmem:[#allocation2] sm:$0xff] 0.0
    %28 = vst [vmem:[#allocation2 + $0x8] sm:$0xff] 0.0
    %29 = vst [vmem:[#allocation2 + $0x10] sm:$0xff] 0.0
    %30 = vst [vmem:[#allocation2 + $0x18] sm:$0xff] 0.0
  $region29: #{bert_sentiment_forward.14} parent=0 // pred_fallthru
    _
  %v31 = vld [vmem:[#allocation2] sm:$0xff]
  %v32 = vld [vmem:[#allocation2 + $0x8] sm:$0xff]
  %v33 = vld [vmem:[#allocation2 + $0x10] sm:$0xff]
  %v34 = vld [vmem:[#allocation2 + $0x18] sm:$0xff]
  %v35 = vld [vmem:[%s0] sm:$0xff]
  %v36 = vld [vmem:[%s0 + $0x8] sm:$0xff]
  %v37 = vld [vmem:[%s1] sm:$0xff]
  %v38 = vld [vmem:[%s1 + $0x8] sm:$0xff]
  %v39 = vld [vmem:[%s1 + $0x10] sm:$0xff]
  %v40 = vld [vmem:[%s1 + $0x18] sm:$0xff]
  %v41 = vld [vmem:[%s1 + $0x20] sm:$0xff]
  %v42 = vld [vmem:[%s1 + $0x28] sm:$0xff]
  %v43 = vld [vmem:[%s1 + $0x30] sm:$0xff]
  %v44 = vld [vmem:[%s1 + $0x38] sm:$0xff]
  %v45 = vld [vmem:[%s1 + $0x40] sm:$0xff]
  %v46 = vld [vmem:[%s1 + $0x48] sm:$0xff]
  %v47 = vld [vmem:[%s1 + $0x50] sm:$0xff]
  %v48 = vld [vmem:[%s1 + $0x58] sm:$0xff]
  %v49 = vld [vmem:[%s1 + $0x60] sm:$0xff]
  %v50 = vld [vmem:[%s1 + $0x68] sm:$0xff]
  %v51 = vld [vmem:[%s1 + $0x70] sm:$0xff]
  %v52 = vld [vmem:[%s1 + $0x78] sm:$0xff]
  %v53 = vld [vmem:[%s1 + $0x80] sm:$0xff]
  %v54 = vld [vmem:[%s1 + $0x88] sm:$0xff]
  %v55 = vld [vmem:[%s1 + $0x90] sm:$0xff]
  %v56 = vld [vmem:[%s1 + $0x98] sm:$0xff]
  %v57 = vld [vmem:[%s1 + $0xa0] sm:$0xff]
  %v58 = vld [vmem:[%s1 + $0xa8] sm:$0xff]
  %v59 = vld [vmem:[%s1 + $0xb0] sm:$0xff]
  %v60 = vld [vmem:[%s1 + $0xb8] sm:$0xff]
  %v61 = vld [vmem:[%s1 + $0xc0] sm:$0xff]
  %v62 = vld [vmem:[%s1 + $0xc8] sm:$0xff]
  %v63 = vld [vmem:[%s1 + $0xd0] sm:$0xff]
  %v64 = vld [vmem:[%s1 + $0xd8] sm:$0xff]
  %v65 = vld [vmem:[%s1 + $0xe0] sm:$0xff]
  %v66 = vld [vmem:[%s1 + $0xe8] sm:$0xff]
  %v67 = vld [vmem:[%s1 + $0xf0] sm:$0xff]
  %v68 = vld [vmem:[%s1 + $0xf8] sm:$0xff]
  %v71 = vunpack.c.l.b16 %v35
  %v72 = vunpack.c.h.b16 %v35
  %v73 = vunpack.c.l.b16 %v36
  %v74 = vunpack.c.h.b16 %v36
  %v75 = vpack.c.b16 %v73, %v71
  %v76 = vpack.c.b16 %v74, %v72
  %v111 = vunpack.c.l.b16 %v37
  %v112 = vunpack.c.h.b16 %v37
  %v113 = vunpack.c.l.b16 %v38
  %v114 = vunpack.c.h.b16 %v38
  %v115 = vunpack.c.l.b16 %v39
  %v116 = vunpack.c.h.b16 %v39
  %v117 = vunpack.c.l.b16 %v40
  %v118 = vunpack.c.h.b16 %v40
  %v119 = vunpack.c.l.b16 %v41
  %v120 = vunpack.c.h.b16 %v41
  %v121 = vunpack.c.l.b16 %v42
  %v122 = vunpack.c.h.b16 %v42
  %v123 = vunpack.c.l.b16 %v43
  %v124 = vunpack.c.h.b16 %v43
  %v125 = vunpack.c.l.b16 %v44
  %v126 = vunpack.c.h.b16 %v44
  %v127 = vunpack.c.l.b16 %v45
  %v128 = vunpack.c.h.b16 %v45
  %v129 = vunpack.c.l.b16 %v46
  %v130 = vunpack.c.h.b16 %v46
  %v131 = vunpack.c.l.b16 %v47
  %v132 = vunpack.c.h.b16 %v47
  %v133 = vunpack.c.l.b16 %v48
  %v134 = vunpack.c.h.b16 %v48
  %v135 = vunpack.c.l.b16 %v49
  %v136 = vunpack.c.h.b16 %v49
  %v137 = vunpack.c.l.b16 %v50
  %v138 = vunpack.c.h.b16 %v50
  %v139 = vunpack.c.l.b16 %v51
  %v140 = vunpack.c.h.b16 %v51
  %v141 = vunpack.c.l.b16 %v52
  %v142 = vunpack.c.h.b16 %v52
  %v143 = vunpack.c.l.b16 %v53
  %v144 = vunpack.c.h.b16 %v53
  %v145 = vunpack.c.l.b16 %v54
  %v146 = vunpack.c.h.b16 %v54
  %v147 = vunpack.c.l.b16 %v55
  %v148 = vunpack.c.h.b16 %v55
  %v149 = vunpack.c.l.b16 %v56
  %v150 = vunpack.c.h.b16 %v56
  %v151 = vunpack.c.l.b16 %v57
  %v152 = vunpack.c.h.b16 %v57
  %v153 = vunpack.c.l.b16 %v58
  %v154 = vunpack.c.h.b16 %v58
  %v155 = vunpack.c.l.b16 %v59
  %v156 = vunpack.c.h.b16 %v59
  %v157 = vunpack.c.l.b16 %v60
  %v158 = vunpack.c.h.b16 %v60
  %v159 = vunpack.c.l.b16 %v61
  %v160 = vunpack.c.h.b16 %v61
  %v161 = vunpack.c.l.b16 %v62
  %v162 = vunpack.c.h.b16 %v62
  %v163 = vunpack.c.l.b16 %v63
  %v164 = vunpack.c.h.b16 %v63
  %v165 = vunpack.c.l.b16 %v64
  %v166 = vunpack.c.h.b16 %v64
  %v167 = vunpack.c.l.b16 %v65
  %v168 = vunpack.c.h.b16 %v65
  %v169 = vunpack.c.l.b16 %v66
  %v170 = vunpack.c.h.b16 %v66
  %v171 = vunpack.c.l.b16 %v67
  %v172 = vunpack.c.h.b16 %v67
  %v173 = vunpack.c.l.b16 %v68
  %v174 = vunpack.c.h.b16 %v68
  %v175 = vpack.c.b16 %v113, %v111
  %v176 = vpack.c.b16 %v114, %v112
  %v177 = vpack.c.b16 %v117, %v115
  %v178 = vpack.c.b16 %v118, %v116
  %v179 = vpack.c.b16 %v121, %v119
  %v180 = vpack.c.b16 %v122, %v120
  %v181 = vpack.c.b16 %v125, %v123
  %v182 = vpack.c.b16 %v126, %v124
  %v183 = vpack.c.b16 %v129, %v127
  %v184 = vpack.c.b16 %v130, %v128
  %v185 = vpack.c.b16 %v133, %v131
  %v186 = vpack.c.b16 %v134, %v132
  %v187 = vpack.c.b16 %v137, %v135
  %v188 = vpack.c.b16 %v138, %v136
  %v189 = vpack.c.b16 %v141, %v139
  %v190 = vpack.c.b16 %v142, %v140
  %v191 = vpack.c.b16 %v145, %v143
  %v192 = vpack.c.b16 %v146, %v144
  %v193 = vpack.c.b16 %v149, %v147
  %v194 = vpack.c.b16 %v150, %v148
  %v195 = vpack.c.b16 %v153, %v151
  %v196 = vpack.c.b16 %v154, %v152
  %v197 = vpack.c.b16 %v157, %v155
  %v198 = vpack.c.b16 %v158, %v156
  %v199 = vpack.c.b16 %v161, %v159
  %v200 = vpack.c.b16 %v162, %v160
  %v201 = vpack.c.b16 %v165, %v163
  %v202 = vpack.c.b16 %v166, %v164
  %v203 = vpack.c.b16 %v169, %v167
  %v204 = vpack.c.b16 %v170, %v168
  %v205 = vpack.c.b16 %v173, %v171
  %v206 = vpack.c.b16 %v174, %v172
  %239 = vmatprep.subr.bf16.mxu0 %v176
  %240 = vmatpush1.bf16.msra.mxu0 %v175
  %241 = vmatprep.subr.bf16.mxu0 %v178
  %242 = vmatpush1.bf16.msra.mxu0 %v177
  %243 = vmatprep.subr.bf16.mxu0 %v180
  %244 = vmatpush1.bf16.msra.mxu0 %v179
  %245 = vmatprep.subr.bf16.mxu0 %v182
  %246 = vmatpush1.bf16.msra.mxu0 %v181
  %247 = vmatprep.subr.bf16.mxu0 %v184
  %248 = vmatpush1.bf16.msra.mxu0 %v183
  %249 = vmatprep.subr.bf16.mxu0 %v186
  %250 = vmatpush1.bf16.msra.mxu0 %v185
  %251 = vmatprep.subr.bf16.mxu0 %v188
  %252 = vmatpush1.bf16.msra.mxu0 %v187
  %253 = vmatprep.subr.bf16.mxu0 %v190
  %254 = vmatpush1.bf16.msra.mxu0 %v189
  %255 = vmatprep.subr.bf16.mxu0 %v192
  %256 = vmatpush1.bf16.msra.mxu0 %v191
  %257 = vmatprep.subr.bf16.mxu0 %v194
  %258 = vmatpush1.bf16.msra.mxu0 %v193
  %259 = vmatprep.subr.bf16.mxu0 %v196
  %260 = vmatpush1.bf16.msra.mxu0 %v195
  %261 = vmatprep.subr.bf16.mxu0 %v198
  %262 = vmatpush1.bf16.msra.mxu0 %v197
  %263 = vmatprep.subr.bf16.mxu0 %v200
  %264 = vmatpush1.bf16.msra.mxu0 %v199
  %265 = vmatprep.subr.bf16.mxu0 %v202
  %266 = vmatpush1.bf16.msra.mxu0 %v201
  %267 = vmatprep.subr.bf16.mxu0 %v204
  %268 = vmatpush1.bf16.msra.mxu0 %v203
  %269 = vmatprep.subr.bf16.mxu0 %v206
  %270 = vmatpush1.bf16.msra.mxu0 %v205
  %271 = vmatprep.mubr.bf16.mxu0 %v76
  %272 = vmatmul.mubr.bf16.gmra.mrb[0].mxu0 %v75
  %v273 = vpop.f32.mrb[0].mxu0
  %v274 = vadd.f32 0.0, %v273
  %v275 = vpop.f32.mrb[0].mxu0
  %v276 = vadd.f32 0.0, %v275
  %v277 = vpop.f32.mrb[0].mxu0
  %v278 = vadd.f32 0.0, %v277
  %v279 = vpop.f32.mrb[0].mxu0
  %v280 = vadd.f32 0.0, %v279
  %281 = vdwg.mxu0
  %v282 = vadd.f32 %v31, %v274
  %v283 = vadd.f32 %v32, %v276
  %v284 = vadd.f32 %v33, %v278
  %v285 = vadd.f32 %v34, %v280
  %286 = vst [vmem:[#allocation2] sm:$0xff] %v282
  %287 = vst [vmem:[#allocation2 + $0x8] sm:$0xff] %v283
  %288 = vst [vmem:[#allocation2 + $0x10] sm:$0xff] %v284
  %289 = vst [vmem:[#allocation2 + $0x18] sm:$0xff] %v285
  // Predicated region
  $region30: #{bert_sentiment_forward.14} parent=0 // pred_check
    %p290 = pneg %p23
  $region31: #{bert_sentiment_forward.14} parent=0 // pred_check_branch
    %292 = sbr.rel (%p290) target = $region33
  $region32: #{bert_sentiment_forward.14} parent=0 // pred_region
    %v293 = vld [vmem:[#allocation2] sm:$0xff]
    %v294 = vld [vmem:[#allocation2 + $0x8] sm:$0xff]
    %v295 = vld [vmem:[#allocation2 + $0x10] sm:$0xff]
    %v296 = vld [vmem:[#allocation2 + $0x18] sm:$0xff]
    %v297 = vld [vmem:[%s2] sm:$0x3]
    %v299 = vlaneseq
    %v300 = vshrl.u32 %v299, 7
    %v301 = vsub.s32 0, %v300
    %v302 = vrot.slane %v297, %v301
    %v303 = vlaneseq
    %v304 = vshrl.u32 %v303, 7
    %v305 = vsub.s32 1, %v304
    %v306 = vrot.slane %v297, %v305
    %v309 = vadd.f32 %v293, %v302
    %v310 = vadd.f32 %v294, %v306
    %v311 = vadd.f32 %v295, %v302
    %v312 = vadd.f32 %v296, %v306
    %v313 = vld [vmem:[%s3] sm:$0xff]
    %v314 = vld [vmem:[%s3 + $0x8] sm:$0xff]
    %v315 = vunpack.c.l.bf16 %v313
    %v316 = vunpack.c.h.bf16 %v313
    %v317 = vunpack.c.l.bf16 %v314
    %v318 = vunpack.c.h.bf16 %v314
    %v319 = vadd.f32 %v309, %v315
    %v320 = vadd.f32 %v310, %v316
    %v321 = vadd.f32 %v311, %v317
    %v322 = vadd.f32 %v312, %v318
    %v323 = vadd.f32 %v319, %v320
    %324 = vadd.xlane.f32.xlu0 %v323
    %v325 = vpop.xlane.xlu0 %324
    %v326 = vadd.f32 %v321, %v322
    %327 = vadd.xlane.f32.xlu0 %v326
    %v328 = vpop.xlane.xlu0 %327
    %v329 = vrcp.pop 256.0
    %v330 = vmul.f32 %v325, %v329
    %v331 = vmul.f32 %v328, %v329
    %v332 = vsub.f32 %v319, %v330
    %v333 = vsub.f32 %v320, %v330
    %v334 = vsub.f32 %v321, %v331
    %v335 = vsub.f32 %v322, %v331
    %v336 = vmul.f32 %v332, %v332
    %v337 = vmul.f32 %v333, %v333
    %v338 = vmul.f32 %v334, %v334
    %v339 = vmul.f32 %v335, %v335
    %v340 = vadd.f32 %v336, %v337
    %341 = vadd.xlane.f32.xlu0 %v340
    %v342 = vpop.xlane.xlu0 %341
    %v343 = vadd.f32 %v338, %v339
    %344 = vadd.xlane.f32.xlu0 %v343
    %v345 = vpop.xlane.xlu0 %344
    %v346 = vmul.f32 %v342, %v329
    %v347 = vmul.f32 %v345, %v329
    %v348 = vadd.f32 %v346, 1e-12
    %v349 = vadd.f32 %v347, 1e-12
    %v350 = vrsqrt.pop %v348
    %v351 = vrsqrt.pop %v349
    %v352 = vmul.f32 %v332, %v350
    %v353 = vmul.f32 %v333, %v350
    %v354 = vmul.f32 %v334, %v351
    %v355 = vmul.f32 %v335, %v351
    %v356 = vld [vmem:[%s4] sm:$0x3]
    %v358 = vlaneseq
    %v359 = vshrl.u32 %v358, 7
    %v360 = vsub.s32 0, %v359
    %v361 = vrot.slane %v356, %v360
    %v362 = vlaneseq
    %v363 = vshrl.u32 %v362, 7
    %v364 = vsub.s32 1, %v363
    %v365 = vrot.slane %v356, %v364
    %v368 = vmul.f32 %v352, %v361
    %v369 = vmul.f32 %v353, %v365
    %v370 = vmul.f32 %v354, %v361
    %v371 = vmul.f32 %v355, %v365
    %v372 = vld [vmem:[%s5] sm:$0x3]
    %v374 = vlaneseq
    %v375 = vshrl.u32 %v374, 7
    %v376 = vsub.s32 0, %v375
    %v377 = vrot.slane %v372, %v376
    %v378 = vlaneseq
    %v379 = vshrl.u32 %v378, 7
    %v380 = vsub.s32 1, %v379
    %v381 = vrot.slane %v372, %v380
    %v384 = vadd.f32 %v368, %v377
    %v385 = vadd.f32 %v369, %v381
    %v386 = vadd.f32 %v370, %v377
    %v387 = vadd.f32 %v371, %v381
    %v388 = vpack.c.bf16 %v386, %v384
    %v389 = vpack.c.bf16 %v387, %v385
    %v392 = vunpack.c.l.b16 %v388
    %v393 = vunpack.c.l.b16 %v389
    %v394 = vunpack.c.h.b16 %v388
    %v395 = vunpack.c.h.b16 %v389
    %v396 = vpack.c.b16 %v393, %v392
    %v397 = vpack.c.b16 %v395, %v394
    %400 = vst [vmem:[%s6] sm:$0xff] %v396
    %401 = vst [vmem:[%s6 + $0x8] sm:$0xff] %v397
  $region33: #{bert_sentiment_forward.14} parent=0 // pred_fallthru
    _
  // Predicated region
  $region34: #{bert_sentiment_forward.14} parent=0 // pred_check
    _
  $region35: #{bert_sentiment_forward.14} parent=0 // pred_check_branch
    %403 = sbr.rel (0) target = $region37
  $region36: #{bert_sentiment_forward.14} parent=0 // pred_region
    _
  $region37: #{bert_sentiment_forward.14} parent=0 // pred_fallthru
    _
  // Predicated region
  $region38: #{bert_sentiment_forward.14} parent=0 // pred_check
    _
  $region39: #{bert_sentiment_forward.14} parent=0 // pred_check_branch
    %405 = sbr.rel (0) target = $region41
  $region40: #{bert_sentiment_forward.14} parent=0 // pred_region
    _
  $region41: #{bert_sentiment_forward.14} parent=0 // pred_fallthru
    _

// kernel: bert_sentiment_forward.12
$region0: #{bert_sentiment_forward.12}
  #allocation0 [shape = 'u32[]', space=smem, size = 0x4, offset = 0x4, fixed_abs, tag = 'smem constant byte address 0x4 - core index']
  #allocation1 [shape = 'u32[144,128]{1,0:T(1,128)}', space=vmem, size = 0x12000, scoped, tag = 'internal scratch']
  #allocation2 [shape = 'f32[16,768]{1,0:T(8,128)}', space=vmem, size = 0xc000, scoped, tag = 'scratch operand']
  %s0 = inlined_call_operand.vmem [shape: bf16[16,256], index: 0, kind: input, shape index: {}]
  %s1 = inlined_call_operand.hbm [shape: bf16[256,768], index: 1, kind: input, shape index: {}]
  %s2 = inlined_call_operand.vmem [shape: f32[1,768], index: 2, kind: input, shape index: {}]
  %s3 = inlined_call_operand.vmem [shape: bf16[16,768], index: 3, kind: output, shape index: {}]
  %s4 = sld [smem:[#allocation0]]
  $region34: #{bert_sentiment_forward.12} parent=0
    _
  %s6 = ssub.s32 1, %s4
  %s7 = scalar_select 0, %s6, %s4
  $region1: #{bert_sentiment_forward.12} parent=0
    #allocation3 [shape = 'u8[393216]{0}', space=vmem, size = 0x60000, scoped, tag = 'input window, operand 1, single buffered']
    #allocation4 [shape = 's32[1]{0}', space=sflag, size = 0x4, scoped, tag = 'scoped memory for bert_sentiment_forward.12']
    %8 = vsyncpa [#allocation4], 0
    // Predicated region
    $region2: #{bert_sentiment_forward.12} parent=1 // pred_check
      _
    $region3: #{bert_sentiment_forward.12} parent=1 // pred_check_branch
      %10 = sbr.rel (0) target = $region5
    $region4: #{bert_sentiment_forward.12} parent=1 // pred_region
      _
    $region5: #{bert_sentiment_forward.12} parent=1 // pred_fallthru
      _
    // Predicated region
    $region6: #{bert_sentiment_forward.12} parent=1 // pred_check
      _
    $region7: #{bert_sentiment_forward.12} parent=1 // pred_check_branch
      %12 = sbr.rel (0) target = $region9
    $region8: #{bert_sentiment_forward.12} parent=1 // pred_region
      %s14 = ssub.s32 12288, 12288
      %15 = vsyncadd [#allocation4], %s14
      %s16 = sshll.u32 [#allocation3], 4
      %s17 = int_to_ptr.vmem [resolvable:$true] %s16
      %22 = dma.hbm_to_vmem [thread:$0]  %s1, 12288, %s17, [#allocation4], 384, 384, 24
    $region9: #{bert_sentiment_forward.12} parent=1 // pred_fallthru
      _
    // Predicated region
    $region10: #{bert_sentiment_forward.12} parent=1 // pred_check
      _
    $region11: #{bert_sentiment_forward.12} parent=1 // pred_check_branch
      %24 = sbr.rel (0) target = $region13
    $region12: #{bert_sentiment_forward.12} parent=1 // pred_region
      _
    $region13: #{bert_sentiment_forward.12} parent=1 // pred_fallthru
      _
    // Predicated region
    $region14: #{bert_sentiment_forward.12} parent=1 // pred_check
      _
    $region15: #{bert_sentiment_forward.12} parent=1 // pred_check_branch
      %26 = sbr.rel (0) target = $region17
    $region16: #{bert_sentiment_forward.12} parent=1 // pred_region
      %27 = dma.done [#allocation4], 12288
    $region17: #{bert_sentiment_forward.12} parent=1 // pred_fallthru
      _
    %p28 = scmp.eq.s32.totalorder 0, 0
    // Predicated region
    $region18: #{bert_sentiment_forward.12} parent=1 // pred_check
      %p29 = pneg %p28
    $region19: #{bert_sentiment_forward.12} parent=1 // pred_check_branch
      %31 = sbr.rel (%p29) target = $region21
    $region20: #{bert_sentiment_forward.12} parent=1 // pred_region
      %32 = vst [vmem:[#allocation2] sm:$0xff] 0.0
      %33 = vst [vmem:[#allocation2 + $0x8] sm:$0xff] 0.0
      %34 = vst [vmem:[#allocation2 + $0x10] sm:$0xff] 0.0
      %35 = vst [vmem:[#allocation2 + $0x18] sm:$0xff] 0.0
      %36 = vst [vmem:[#allocation2 + $0x20] sm:$0xff] 0.0
      %37 = vst [vmem:[#allocation2 + $0x28] sm:$0xff] 0.0
      %38 = vst [vmem:[#allocation2 + $0x30] sm:$0xff] 0.0
      %39 = vst [vmem:[#allocation2 + $0x38] sm:$0xff] 0.0
      %40 = vst [vmem:[#allocation2 + $0x40] sm:$0xff] 0.0
      %41 = vst [vmem:[#allocation2 + $0x48] sm:$0xff] 0.0
      %42 = vst [vmem:[#allocation2 + $0x50] sm:$0xff] 0.0
      %43 = vst [vmem:[#allocation2 + $0x58] sm:$0xff] 0.0
    $region21: #{bert_sentiment_forward.12} parent=1 // pred_fallthru
      _
    %v44 = vld [vmem:[#allocation2] sm:$0xff]
    %v45 = vld [vmem:[#allocation2 + $0x8] sm:$0xff]
    %v46 = vld [vmem:[#allocation2 + $0x10] sm:$0xff]
    %v47 = vld [vmem:[#allocation2 + $0x18] sm:$0xff]
    %v48 = vld [vmem:[#allocation2 + $0x20] sm:$0xff]
    %v49 = vld [vmem:[#allocation2 + $0x28] sm:$0xff]
    %v50 = vld [vmem:[#allocation2 + $0x30] sm:$0xff]
    %v51 = vld [vmem:[#allocation2 + $0x38] sm:$0xff]
    %v52 = vld [vmem:[#allocation2 + $0x40] sm:$0xff]
    %v53 = vld [vmem:[#allocation2 + $0x48] sm:$0xff]
    %v54 = vld [vmem:[#allocation2 + $0x50] sm:$0xff]
    %v55 = vld [vmem:[#allocation2 + $0x58] sm:$0xff]
    %v56 = vld [vmem:[%s0] sm:$0xff]
    %v57 = vld [vmem:[%s0 + $0x8] sm:$0xff]
    %v58 = vld [vmem:[#allocation3] sm:$0xff]
    %v59 = vld [vmem:[#allocation3 + $0x8] sm:$0xff]
    %v60 = vld [vmem:[#allocation3 + $0x10] sm:$0xff]
    %v61 = vld [vmem:[#allocation3 + $0x18] sm:$0xff]
    %v62 = vld [vmem:[#allocation3 + $0x20] sm:$0xff]
    %v63 = vld [vmem:[#allocation3 + $0x28] sm:$0xff]
    %v64 = vld [vmem:[#allocation3 + $0x30] sm:$0xff]
    %v65 = vld [vmem:[#allocation3 + $0x38] sm:$0xff]
    %v66 = vld [vmem:[#allocation3 + $0x40] sm:$0xff]
    %v67 = vld [vmem:[#allocation3 + $0x48] sm:$0xff]
    %v68 = vld [vmem:[#allocation3 + $0x50] sm:$0xff]
    %v69 = vld [vmem:[#allocation3 + $0x58] sm:$0xff]
    %v70 = vld [vmem:[#allocation3 + $0x60] sm:$0xff]
    %v71 = vld [vmem:[#allocation3 + $0x68] sm:$0xff]
    %v72 = vld [vmem:[#allocation3 + $0x70] sm:$0xff]
    %v73 = vld [vmem:[#allocation3 + $0x78] sm:$0xff]
    %v74 = vld [vmem:[#allocation3 + $0x80] sm:$0xff]
    %v75 = vld [vmem:[#allocation3 + $0x88] sm:$0xff]
    %v76 = vld [vmem:[#allocation3 + $0x90] sm:$0xff]
    %v77 = vld [vmem:[#allocation3 + $0x98] sm:$0xff]
    %v78 = vld [vmem:[#allocation3 + $0xa0] sm:$0xff]
    %v79 = vld [vmem:[#allocation3 + $0xa8] sm:$0xff]
    %v80 = vld [vmem:[#allocation3 + $0xb0] sm:$0xff]
    %v81 = vld [vmem:[#allocation3 + $0xb8] sm:$0xff]
    %v82 = vld [vmem:[#allocation3 + $0xc0] sm:$0xff]
    %v83 = vld [vmem:[#allocation3 + $0xc8] sm:$0xff]
    %v84 = vld [vmem:[#allocation3 + $0xd0] sm:$0xff]
    %v85 = vld [vmem:[#allocation3 + $0xd8] sm:$0xff]
    %v86 = vld [vmem:[#allocation3 + $0xe0] sm:$0xff]
    %v87 = vld [vmem:[#allocation3 + $0xe8] sm:$0xff]
    %v88 = vld [vmem:[#allocation3 + $0xf0] sm:$0xff]
    %v89 = vld [vmem:[#allocation3 + $0xf8] sm:$0xff]
    %v90 = vld [vmem:[#allocation3 + $0x100] sm:$0xff]
    %v91 = vld [vmem:[#allocation3 + $0x108] sm:$0xff]
    %v92 = vld [vmem:[#allocation3 + $0x110] sm:$0xff]
    %v93 = vld [vmem:[#allocation3 + $0x118] sm:$0xff]
    %v94 = vld [vmem:[#allocation3 + $0x120] sm:$0xff]
    %v95 = vld [vmem:[#allocation3 + $0x128] sm:$0xff]
    %v96 = vld [vmem:[#allocation3 + $0x130] sm:$0xff]
    %v97 = vld [vmem:[#allocation3 + $0x138] sm:$0xff]
    %v98 = vld [vmem:[#allocation3 + $0x140] sm:$0xff]
    %v99 = vld [vmem:[#allocation3 + $0x148] sm:$0xff]
    %v100 = vld [vmem:[#allocation3 + $0x150] sm:$0xff]
    %v101 = vld [vmem:[#allocation3 + $0x158] sm:$0xff]
    %v102 = vld [vmem:[#allocation3 + $0x160] sm:$0xff]
    %v103 = vld [vmem:[#allocation3 + $0x168] sm:$0xff]
    %v104 = vld [vmem:[#allocation3 + $0x170] sm:$0xff]
    %v105 = vld [vmem:[#allocation3 + $0x178] sm:$0xff]
    %v106 = vld [vmem:[#allocation3 + $0x180] sm:$0xff]
    %v107 = vld [vmem:[#allocation3 + $0x188] sm:$0xff]
    %v108 = vld [vmem:[#allocation3 + $0x190] sm:$0xff]
    %v109 = vld [vmem:[#allocation3 + $0x198] sm:$0xff]
    %v110 = vld [vmem:[#allocation3 + $0x1a0] sm:$0xff]
    %v111 = vld [vmem:[#allocation3 + $0x1a8] sm:$0xff]
    %v112 = vld [vmem:[#allocation3 + $0x1b0] sm:$0xff]
    %v113 = vld [vmem:[#allocation3 + $0x1b8] sm:$0xff]
    %v114 = vld [vmem:[#allocation3 + $0x1c0] sm:$0xff]
    %v115 = vld [vmem:[#allocation3 + $0x1c8] sm:$0xff]
    %v116 = vld [vmem:[#allocation3 + $0x1d0] sm:$0xff]
    %v117 = vld [vmem:[#allocation3 + $0x1d8] sm:$0xff]
    %v118 = vld [vmem:[#allocation3 + $0x1e0] sm:$0xff]
    %v119 = vld [vmem:[#allocation3 + $0x1e8] sm:$0xff]
    %v120 = vld [vmem:[#allocation3 + $0x1f0] sm:$0xff]
    %v121 = vld [vmem:[#allocation3 + $0x1f8] sm:$0xff]
    %v122 = vld [vmem:[#allocation3 + $0x200] sm:$0xff]
    %v123 = vld [vmem:[#allocation3 + $0x208] sm:$0xff]
    %v124 = vld [vmem:[#allocation3 + $0x210] sm:$0xff]
    %v125 = vld [vmem:[#allocation3 + $0x218] sm:$0xff]
    %v126 = vld [vmem:[#allocation3 + $0x220] sm:$0xff]
    %v127 = vld [vmem:[#allocation3 + $0x228] sm:$0xff]
    %v128 = vld [vmem:[#allocation3 + $0x230] sm:$0xff]
    %v129 = vld [vmem:[#allocation3 + $0x238] sm:$0xff]
    %v130 = vld [vmem:[#allocation3 + $0x240] sm:$0xff]
    %v131 = vld [vmem:[#allocation3 + $0x248] sm:$0xff]
    %v132 = vld [vmem:[#allocation3 + $0x250] sm:$0xff]
    %v133 = vld [vmem:[#allocation3 + $0x258] sm:$0xff]
    %v134 = vld [vmem:[#allocation3 + $0x260] sm:$0xff]
    %v135 = vld [vmem:[#allocation3 + $0x268] sm:$0xff]
    %v136 = vld [vmem:[#allocation3 + $0x270] sm:$0xff]
    %v137 = vld [vmem:[#allocation3 + $0x278] sm:$0xff]
    %v138 = vld [vmem:[#allocation3 + $0x280] sm:$0xff]
    %v139 = vld [vmem:[#allocation3 + $0x288] sm:$0xff]
    %v140 = vld [vmem:[#allocation3 + $0x290] sm:$0xff]
    %v141 = vld [vmem:[#allocation3 + $0x298] sm:$0xff]
    %v142 = vld [vmem:[#allocation3 + $0x2a0] sm:$0xff]
    %v143 = vld [vmem:[#allocation3 + $0x2a8] sm:$0xff]
    %v144 = vld [vmem:[#allocation3 + $0x2b0] sm:$0xff]
    %v145 = vld [vmem:[#allocation3 + $0x2b8] sm:$0xff]
    %v146 = vld [vmem:[#allocation3 + $0x2c0] sm:$0xff]
    %v147 = vld [vmem:[#allocation3 + $0x2c8] sm:$0xff]
    %v148 = vld [vmem:[#allocation3 + $0x2d0] sm:$0xff]
    %v149 = vld [vmem:[#allocation3 + $0x2d8] sm:$0xff]
    %v150 = vld [vmem:[#allocation3 + $0x2e0] sm:$0xff]
    %v151 = vld [vmem:[#allocation3 + $0x2e8] sm:$0xff]
    %v152 = vld [vmem:[#allocation3 + $0x2f0] sm:$0xff]
    %v153 = vld [vmem:[#allocation3 + $0x2f8] sm:$0xff]
    %v156 = vunpack.c.l.b16 %v56
    %v157 = vunpack.c.h.b16 %v56
    %v158 = vunpack.c.l.b16 %v57
    %v159 = vunpack.c.h.b16 %v57
    %v160 = vpack.c.b16 %v158, %v156
    %v161 = vpack.c.b16 %v159, %v157
    %v260 = vunpack.c.l.b16 %v58
    %v261 = vunpack.c.h.b16 %v58
    %v262 = vunpack.c.l.b16 %v59
    %v263 = vunpack.c.h.b16 %v59
    %v264 = vunpack.c.l.b16 %v60
    %v265 = vunpack.c.h.b16 %v60
    %v266 = vunpack.c.l.b16 %v61
    %v267 = vunpack.c.h.b16 %v61
    %v268 = vunpack.c.l.b16 %v62
    %v269 = vunpack.c.h.b16 %v62
    %v270 = vunpack.c.l.b16 %v63
    %v271 = vunpack.c.h.b16 %v63
    %v272 = vunpack.c.l.b16 %v64
    %v273 = vunpack.c.h.b16 %v64
    %v274 = vunpack.c.l.b16 %v65
    %v275 = vunpack.c.h.b16 %v65
    %v276 = vunpack.c.l.b16 %v66
    %v277 = vunpack.c.h.b16 %v66
    %v278 = vunpack.c.l.b16 %v67
    %v279 = vunpack.c.h.b16 %v67
    %v280 = vunpack.c.l.b16 %v68
    %v281 = vunpack.c.h.b16 %v68
    %v282 = vunpack.c.l.b16 %v69
    %v283 = vunpack.c.h.b16 %v69
    %v284 = vunpack.c.l.b16 %v70
    %v285 = vunpack.c.h.b16 %v70
    %v286 = vunpack.c.l.b16 %v71
    %v287 = vunpack.c.h.b16 %v71
    %v288 = vunpack.c.l.b16 %v72
    %v289 = vunpack.c.h.b16 %v72
    %v290 = vunpack.c.l.b16 %v73
    %v291 = vunpack.c.h.b16 %v73
    %v292 = vunpack.c.l.b16 %v74
    %v293 = vunpack.c.h.b16 %v74
    %v294 = vunpack.c.l.b16 %v75
    %v295 = vunpack.c.h.b16 %v75
    %v296 = vunpack.c.l.b16 %v76
    %v297 = vunpack.c.h.b16 %v76
    %v298 = vunpack.c.l.b16 %v77
    %v299 = vunpack.c.h.b16 %v77
    %v300 = vunpack.c.l.b16 %v78
    %v301 = vunpack.c.h.b16 %v78
    %v302 = vunpack.c.l.b16 %v79
    %v303 = vunpack.c.h.b16 %v79
    %v304 = vunpack.c.l.b16 %v80
    %v305 = vunpack.c.h.b16 %v80
    %v306 = vunpack.c.l.b16 %v81
    %v307 = vunpack.c.h.b16 %v81
    %v308 = vunpack.c.l.b16 %v82
    %v309 = vunpack.c.h.b16 %v82
    %v310 = vunpack.c.l.b16 %v83
    %v311 = vunpack.c.h.b16 %v83
    %v312 = vunpack.c.l.b16 %v84
    %v313 = vunpack.c.h.b16 %v84
    %v314 = vunpack.c.l.b16 %v85
    %v315 = vunpack.c.h.b16 %v85
    %v316 = vunpack.c.l.b16 %v86
    %v317 = vunpack.c.h.b16 %v86
    %v318 = vunpack.c.l.b16 %v87
    %v319 = vunpack.c.h.b16 %v87
    %v320 = vunpack.c.l.b16 %v88
    %v321 = vunpack.c.h.b16 %v88
    %v322 = vunpack.c.l.b16 %v89
    %v323 = vunpack.c.h.b16 %v89
    %v324 = vunpack.c.l.b16 %v90
    %v325 = vunpack.c.h.b16 %v90
    %v326 = vunpack.c.l.b16 %v91
    %v327 = vunpack.c.h.b16 %v91
    %v328 = vunpack.c.l.b16 %v92
    %v329 = vunpack.c.h.b16 %v92
    %v330 = vunpack.c.l.b16 %v93
    %v331 = vunpack.c.h.b16 %v93
    %v332 = vunpack.c.l.b16 %v94
    %v333 = vunpack.c.h.b16 %v94
    %v334 = vunpack.c.l.b16 %v95
    %v335 = vunpack.c.h.b16 %v95
    %v336 = vunpack.c.l.b16 %v96
    %v337 = vunpack.c.h.b16 %v96
    %v338 = vunpack.c.l.b16 %v97
    %v339 = vunpack.c.h.b16 %v97
    %v340 = vunpack.c.l.b16 %v98
    %v341 = vunpack.c.h.b16 %v98
    %v342 = vunpack.c.l.b16 %v99
    %v343 = vunpack.c.h.b16 %v99
    %v344 = vunpack.c.l.b16 %v100
    %v345 = vunpack.c.h.b16 %v100
    %v346 = vunpack.c.l.b16 %v101
    %v347 = vunpack.c.h.b16 %v101
    %v348 = vunpack.c.l.b16 %v102
    %v349 = vunpack.c.h.b16 %v102
    %v350 = vunpack.c.l.b16 %v103
    %v351 = vunpack.c.h.b16 %v103
    %v352 = vunpack.c.l.b16 %v104
    %v353 = vunpack.c.h.b16 %v104
    %v354 = vunpack.c.l.b16 %v105
    %v355 = vunpack.c.h.b16 %v105
    %v356 = vunpack.c.l.b16 %v106
    %v357 = vunpack.c.h.b16 %v106
    %v358 = vunpack.c.l.b16 %v107
    %v359 = vunpack.c.h.b16 %v107
    %v360 = vunpack.c.l.b16 %v108
    %v361 = vunpack.c.h.b16 %v108
    %v362 = vunpack.c.l.b16 %v109
    %v363 = vunpack.c.h.b16 %v109
    %v364 = vunpack.c.l.b16 %v110
    %v365 = vunpack.c.h.b16 %v110
    %v366 = vunpack.c.l.b16 %v111
    %v367 = vunpack.c.h.b16 %v111
    %v368 = vunpack.c.l.b16 %v112
    %v369 = vunpack.c.h.b16 %v112
    %v370 = vunpack.c.l.b16 %v113
    %v371 = vunpack.c.h.b16 %v113
    %v372 = vunpack.c.l.b16 %v114
    %v373 = vunpack.c.h.b16 %v114
    %v374 = vunpack.c.l.b16 %v115
    %v375 = vunpack.c.h.b16 %v115
    %v376 = vunpack.c.l.b16 %v116
    %v377 = vunpack.c.h.b16 %v116
    %v378 = vunpack.c.l.b16 %v117
    %v379 = vunpack.c.h.b16 %v117
    %v380 = vunpack.c.l.b16 %v118
    %v381 = vunpack.c.h.b16 %v118
    %v382 = vunpack.c.l.b16 %v119
    %v383 = vunpack.c.h.b16 %v119
    %v384 = vunpack.c.l.b16 %v120
    %v385 = vunpack.c.h.b16 %v120
    %v386 = vunpack.c.l.b16 %v121
    %v387 = vunpack.c.h.b16 %v121
    %v388 = vunpack.c.l.b16 %v122
    %v389 = vunpack.c.h.b16 %v122
    %v390 = vunpack.c.l.b16 %v123
    %v391 = vunpack.c.h.b16 %v123
    %v392 = vunpack.c.l.b16 %v124
    %v393 = vunpack.c.h.b16 %v124
    %v394 = vunpack.c.l.b16 %v125
    %v395 = vunpack.c.h.b16 %v125
    %v396 = vunpack.c.l.b16 %v126
    %v397 = vunpack.c.h.b16 %v126
    %v398 = vunpack.c.l.b16 %v127
    %v399 = vunpack.c.h.b16 %v127
    %v400 = vunpack.c.l.b16 %v128
    %v401 = vunpack.c.h.b16 %v128
    %v402 = vunpack.c.l.b16 %v129
    %v403 = vunpack.c.h.b16 %v129
    %v404 = vunpack.c.l.b16 %v130
    %v405 = vunpack.c.h.b16 %v130
    %v406 = vunpack.c.l.b16 %v131
    %v407 = vunpack.c.h.b16 %v131
    %v408 = vunpack.c.l.b16 %v132
    %v409 = vunpack.c.h.b16 %v132
    %v410 = vunpack.c.l.b16 %v133
    %v411 = vunpack.c.h.b16 %v133
    %v412 = vunpack.c.l.b16 %v134
    %v413 = vunpack.c.h.b16 %v134
    %v414 = vunpack.c.l.b16 %v135
    %v415 = vunpack.c.h.b16 %v135
    %v416 = vunpack.c.l.b16 %v136
    %v417 = vunpack.c.h.b16 %v136
    %v418 = vunpack.c.l.b16 %v137
    %v419 = vunpack.c.h.b16 %v137
    %v420 = vunpack.c.l.b16 %v138
    %v421 = vunpack.c.h.b16 %v138
    %v422 = vunpack.c.l.b16 %v139
    %v423 = vunpack.c.h.b16 %v139
    %v424 = vunpack.c.l.b16 %v140
    %v425 = vunpack.c.h.b16 %v140
    %v426 = vunpack.c.l.b16 %v141
    %v427 = vunpack.c.h.b16 %v141
    %v428 = vunpack.c.l.b16 %v142
    %v429 = vunpack.c.h.b16 %v142
    %v430 = vunpack.c.l.b16 %v143
    %v431 = vunpack.c.h.b16 %v143
    %v432 = vunpack.c.l.b16 %v144
    %v433 = vunpack.c.h.b16 %v144
    %v434 = vunpack.c.l.b16 %v145
    %v435 = vunpack.c.h.b16 %v145
    %v436 = vunpack.c.l.b16 %v146
    %v437 = vunpack.c.h.b16 %v146
    %v438 = vunpack.c.l.b16 %v147
    %v439 = vunpack.c.h.b16 %v147
    %v440 = vunpack.c.l.b16 %v148
    %v441 = vunpack.c.h.b16 %v148
    %v442 = vunpack.c.l.b16 %v149
    %v443 = vunpack.c.h.b16 %v149
    %v444 = vunpack.c.l.b16 %v150
    %v445 = vunpack.c.h.b16 %v150
    %v446 = vunpack.c.l.b16 %v151
    %v447 = vunpack.c.h.b16 %v151
    %v448 = vunpack.c.l.b16 %v152
    %v449 = vunpack.c.h.b16 %v152
    %v450 = vunpack.c.l.b16 %v153
    %v451 = vunpack.c.h.b16 %v153
    %v452 = vpack.c.b16 %v266, %v260
    %v453 = vpack.c.b16 %v267, %v261
    %v454 = vpack.c.b16 %v268, %v262
    %v455 = vpack.c.b16 %v269, %v263
    %v456 = vpack.c.b16 %v270, %v264
    %v457 = vpack.c.b16 %v271, %v265
    %v458 = vpack.c.b16 %v278, %v272
    %v459 = vpack.c.b16 %v279, %v273
    %v460 = vpack.c.b16 %v280, %v274
    %v461 = vpack.c.b16 %v281, %v275
    %v462 = vpack.c.b16 %v282, %v276
    %v463 = vpack.c.b16 %v283, %v277
    %v464 = vpack.c.b16 %v290, %v284
    %v465 = vpack.c.b16 %v291, %v285
    %v466 = vpack.c.b16 %v292, %v286
    %v467 = vpack.c.b16 %v293, %v287
    %v468 = vpack.c.b16 %v294, %v288
    %v469 = vpack.c.b16 %v295, %v289
    %v470 = vpack.c.b16 %v302, %v296
    %v471 = vpack.c.b16 %v303, %v297
    %v472 = vpack.c.b16 %v304, %v298
    %v473 = vpack.c.b16 %v305, %v299
    %v474 = vpack.c.b16 %v306, %v300
    %v475 = vpack.c.b16 %v307, %v301
    %v476 = vpack.c.b16 %v314, %v308
    %v477 = vpack.c.b16 %v315, %v309
    %v478 = vpack.c.b16 %v316, %v310
    %v479 = vpack.c.b16 %v317, %v311
    %v480 = vpack.c.b16 %v318, %v312
    %v481 = vpack.c.b16 %v319, %v313
    %v482 = vpack.c.b16 %v326, %v320
    %v483 = vpack.c.b16 %v327, %v321
    %v484 = vpack.c.b16 %v328, %v322
    %v485 = vpack.c.b16 %v329, %v323
    %v486 = vpack.c.b16 %v330, %v324
    %v487 = vpack.c.b16 %v331, %v325
    %v488 = vpack.c.b16 %v338, %v332
    %v489 = vpack.c.b16 %v339, %v333
    %v490 = vpack.c.b16 %v340, %v334
    %v491 = vpack.c.b16 %v341, %v335
    %v492 = vpack.c.b16 %v342, %v336
    %v493 = vpack.c.b16 %v343, %v337
    %v494 = vpack.c.b16 %v350, %v344
    %v495 = vpack.c.b16 %v351, %v345
    %v496 = vpack.c.b16 %v352, %v346
    %v497 = vpack.c.b16 %v353, %v347
    %v498 = vpack.c.b16 %v354, %v348
    %v499 = vpack.c.b16 %v355, %v349
    %v500 = vpack.c.b16 %v362, %v356
    %v501 = vpack.c.b16 %v363, %v357
    %v502 = vpack.c.b16 %v364, %v358
    %v503 = vpack.c.b16 %v365, %v359
    %v504 = vpack.c.b16 %v366, %v360
    %v505 = vpack.c.b16 %v367, %v361
    %v506 = vpack.c.b16 %v374, %v368
    %v507 = vpack.c.b16 %v375, %v369
    %v508 = vpack.c.b16 %v376, %v370
    %v509 = vpack.c.b16 %v377, %v371
    %v510 = vpack.c.b16 %v378, %v372
    %v511 = vpack.c.b16 %v379, %v373
    %v512 = vpack.c.b16 %v386, %v380
    %v513 = vpack.c.b16 %v387, %v381
    %v514 = vpack.c.b16 %v388, %v382
    %v515 = vpack.c.b16 %v389, %v383
    %v516 = vpack.c.b16 %v390, %v384
    %v517 = vpack.c.b16 %v391, %v385
    %v518 = vpack.c.b16 %v398, %v392
    %v519 = vpack.c.b16 %v399, %v393
    %v520 = vpack.c.b16 %v400, %v394
    %v521 = vpack.c.b16 %v401, %v395
    %v522 = vpack.c.b16 %v402, %v396
    %v523 = vpack.c.b16 %v403, %v397
    %v524 = vpack.c.b16 %v410, %v404
    %v525 = vpack.c.b16 %v411, %v405
    %v526 = vpack.c.b16 %v412, %v406
    %v527 = vpack.c.b16 %v413, %v407
    %v528 = vpack.c.b16 %v414, %v408
    %v529 = vpack.c.b16 %v415, %v409
    %v530 = vpack.c.b16 %v422, %v416
    %v531 = vpack.c.b16 %v423, %v417
    %v532 = vpack.c.b16 %v424, %v418
    %v533 = vpack.c.b16 %v425, %v419
    %v534 = vpack.c.b16 %v426, %v420
    %v535 = vpack.c.b16 %v427, %v421
    %v536 = vpack.c.b16 %v434, %v428
    %v537 = vpack.c.b16 %v435, %v429
    %v538 = vpack.c.b16 %v436, %v430
    %v539 = vpack.c.b16 %v437, %v431
    %v540 = vpack.c.b16 %v438, %v432
    %v541 = vpack.c.b16 %v439, %v433
    %v542 = vpack.c.b16 %v446, %v440
    %v543 = vpack.c.b16 %v447, %v441
    %v544 = vpack.c.b16 %v448, %v442
    %v545 = vpack.c.b16 %v449, %v443
    %v546 = vpack.c.b16 %v450, %v444
    %v547 = vpack.c.b16 %v451, %v445
    %644 = vmatprep.subr.bf16.mxu0 %v453
    %645 = vmatpush1.bf16.msra.mxu0 %v452
    %646 = vmatprep.subr.bf16.mxu0 %v459
    %647 = vmatpush1.bf16.msra.mxu0 %v458
    %648 = vmatprep.subr.bf16.mxu0 %v465
    %649 = vmatpush1.bf16.msra.mxu0 %v464
    %650 = vmatprep.subr.bf16.mxu0 %v471
    %651 = vmatpush1.bf16.msra.mxu0 %v470
    %652 = vmatprep.subr.bf16.mxu0 %v477
    %653 = vmatpush1.bf16.msra.mxu0 %v476
    %654 = vmatprep.subr.bf16.mxu0 %v483
    %655 = vmatpush1.bf16.msra.mxu0 %v482
    %656 = vmatprep.subr.bf16.mxu0 %v489
    %657 = vmatpush1.bf16.msra.mxu0 %v488
    %658 = vmatprep.subr.bf16.mxu0 %v495
    %659 = vmatpush1.bf16.msra.mxu0 %v494
    %660 = vmatprep.subr.bf16.mxu0 %v501
    %661 = vmatpush1.bf16.msra.mxu0 %v500
    %662 = vmatprep.subr.bf16.mxu0 %v507
    %663 = vmatpush1.bf16.msra.mxu0 %v506
    %664 = vmatprep.subr.bf16.mxu0 %v513
    %665 = vmatpush1.bf16.msra.mxu0 %v512
    %666 = vmatprep.subr.bf16.mxu0 %v519
    %667 = vmatpush1.bf16.msra.mxu0 %v518
    %668 = vmatprep.subr.bf16.mxu0 %v525
    %669 = vmatpush1.bf16.msra.mxu0 %v524
    %670 = vmatprep.subr.bf16.mxu0 %v531
    %671 = vmatpush1.bf16.msra.mxu0 %v530
    %672 = vmatprep.subr.bf16.mxu0 %v537
    %673 = vmatpush1.bf16.msra.mxu0 %v536
    %674 = vmatprep.subr.bf16.mxu0 %v543
    %675 = vmatpush1.bf16.msra.mxu0 %v542
    %676 = vmatprep.mubr.bf16.mxu0 %v161
    %677 = vmatmul.mubr.bf16.gmra.mrb[0].mxu0 %v160
    %v678 = vpop.f32.mrb[0].mxu0
    %v679 = vadd.f32 0.0, %v678
    %v680 = vpop.f32.mrb[0].mxu0
    %v681 = vadd.f32 0.0, %v680
    %v682 = vpop.f32.mrb[0].mxu0
    %v683 = vadd.f32 0.0, %v682
    %v684 = vpop.f32.mrb[0].mxu0
    %v685 = vadd.f32 0.0, %v684
    %686 = vdwg.mxu0
    %687 = vmatprep.subr.bf16.mxu0 %v455
    %688 = vmatpush1.bf16.msra.mxu0 %v454
    %689 = vmatprep.subr.bf16.mxu0 %v461
    %690 = vmatpush1.bf16.msra.mxu0 %v460
    %691 = vmatprep.subr.bf16.mxu0 %v467
    %692 = vmatpush1.bf16.msra.mxu0 %v466
    %693 = vmatprep.subr.bf16.mxu0 %v473
    %694 = vmatpush1.bf16.msra.mxu0 %v472
    %695 = vmatprep.subr.bf16.mxu0 %v479
    %696 = vmatpush1.bf16.msra.mxu0 %v478
    %697 = vmatprep.subr.bf16.mxu0 %v485
    %698 = vmatpush1.bf16.msra.mxu0 %v484
    %699 = vmatprep.subr.bf16.mxu0 %v491
    %700 = vmatpush1.bf16.msra.mxu0 %v490
    %701 = vmatprep.subr.bf16.mxu0 %v497
    %702 = vmatpush1.bf16.msra.mxu0 %v496
    %703 = vmatprep.subr.bf16.mxu0 %v503
    %704 = vmatpush1.bf16.msra.mxu0 %v502
    %705 = vmatprep.subr.bf16.mxu0 %v509
    %706 = vmatpush1.bf16.msra.mxu0 %v508
    %707 = vmatprep.subr.bf16.mxu0 %v515
    %708 = vmatpush1.bf16.msra.mxu0 %v514
    %709 = vmatprep.subr.bf16.mxu0 %v521
    %710 = vmatpush1.bf16.msra.mxu0 %v520
    %711 = vmatprep.subr.bf16.mxu0 %v527
    %712 = vmatpush1.bf16.msra.mxu0 %v526
    %713 = vmatprep.subr.bf16.mxu0 %v533
    %714 = vmatpush1.bf16.msra.mxu0 %v532
    %715 = vmatprep.subr.bf16.mxu0 %v539
    %716 = vmatpush1.bf16.msra.mxu0 %v538
    %717 = vmatprep.subr.bf16.mxu0 %v545
    %718 = vmatpush1.bf16.msra.mxu0 %v544
    %719 = vmatprep.mubr.bf16.mxu0 %v161
    %720 = vmatmul.mubr.bf16.gmra.mrb[0].mxu0 %v160
    %v721 = vpop.f32.mrb[0].mxu0
    %v722 = vadd.f32 0.0, %v721
    %v723 = vpop.f32.mrb[0].mxu0
    %v724 = vadd.f32 0.0, %v723
    %v725 = vpop.f32.mrb[0].mxu0
    %v726 = vadd.f32 0.0, %v725
    %v727 = vpop.f32.mrb[0].mxu0
    %v728 = vadd.f32 0.0, %v727
    %729 = vdwg.mxu0
    %730 = vmatprep.subr.bf16.mxu0 %v457
    %731 = vmatpush1.bf16.msra.mxu0 %v456
    %732 = vmatprep.subr.bf16.mxu0 %v463
    %733 = vmatpush1.bf16.msra.mxu0 %v462
    %734 = vmatprep.subr.bf16.mxu0 %v469
    %735 = vmatpush1.bf16.msra.mxu0 %v468
    %736 = vmatprep.subr.bf16.mxu0 %v475
    %737 = vmatpush1.bf16.msra.mxu0 %v474
    %738 = vmatprep.subr.bf16.mxu0 %v481
    %739 = vmatpush1.bf16.msra.mxu0 %v480
    %740 = vmatprep.subr.bf16.mxu0 %v487
    %741 = vmatpush1.bf16.msra.mxu0 %v486
    %742 = vmatprep.subr.bf16.mxu0 %v493
    %743 = vmatpush1.bf16.msra.mxu0 %v492
    %744 = vmatprep.subr.bf16.mxu0 %v499
    %745 = vmatpush1.bf16.msra.mxu0 %v498
    %746 = vmatprep.subr.bf16.mxu0 %v505
    %747 = vmatpush1.bf16.msra.mxu0 %v504
    %748 = vmatprep.subr.bf16.mxu0 %v511
    %749 = vmatpush1.bf16.msra.mxu0 %v510
    %750 = vmatprep.subr.bf16.mxu0 %v517
    %751 = vmatpush1.bf16.msra.mxu0 %v516
    %752 = vmatprep.subr.bf16.mxu0 %v523
    %753 = vmatpush1.bf16.msra.mxu0 %v522
    %754 = vmatprep.subr.bf16.mxu0 %v529
    %755 = vmatpush1.bf16.msra.mxu0 %v528
    %756 = vmatprep.subr.bf16.mxu0 %v535
    %757 = vmatpush1.bf16.msra.mxu0 %v534
    %758 = vmatprep.subr.bf16.mxu0 %v541
    %759 = vmatpush1.bf16.msra.mxu0 %v540
    %760 = vmatprep.subr.bf16.mxu0 %v547
    %761 = vmatpush1.bf16.msra.mxu0 %v546
    %762 = vmatprep.mubr.bf16.mxu0 %v161
    %763 = vmatmul.mubr.bf16.gmra.mrb[0].mxu0 %v160
    %v764 = vpop.f32.mrb[0].mxu0
    %v765 = vadd.f32 0.0, %v764
    %v766 = vpop.f32.mrb[0].mxu0
    %v767 = vadd.f32 0.0, %v766
    %v768 = vpop.f32.mrb[0].mxu0
    %v769 = vadd.f32 0.0, %v768
    %v770 = vpop.f32.mrb[0].mxu0
    %v771 = vadd.f32 0.0, %v770
    %772 = vdwg.mxu0
    %v773 = vadd.f32 %v44, %v679
    %v774 = vadd.f32 %v45, %v681
    %v775 = vadd.f32 %v46, %v722
    %v776 = vadd.f32 %v47, %v724
    %v777 = vadd.f32 %v48, %v765
    %v778 = vadd.f32 %v49, %v767
    %v779 = vadd.f32 %v50, %v683
    %v780 = vadd.f32 %v51, %v685
    %v781 = vadd.f32 %v52, %v726
    %v782 = vadd.f32 %v53, %v728
    %v783 = vadd.f32 %v54, %v769
    %v784 = vadd.f32 %v55, %v771
    %785 = vst [vmem:[#allocation2] sm:$0xff] %v773
    %786 = vst [vmem:[#allocation2 + $0x8] sm:$0xff] %v774
    %787 = vst [vmem:[#allocation2 + $0x10] sm:$0xff] %v775
    %788 = vst [vmem:[#allocation2 + $0x18] sm:$0xff] %v776
    %789 = vst [vmem:[#allocation2 + $0x20] sm:$0xff] %v777
    %790 = vst [vmem:[#allocation2 + $0x28] sm:$0xff] %v778
    %791 = vst [vmem:[#allocation2 + $0x30] sm:$0xff] %v779
    %792 = vst [vmem:[#allocation2 + $0x38] sm:$0xff] %v780
    %793 = vst [vmem:[#allocation2 + $0x40] sm:$0xff] %v781
    %794 = vst [vmem:[#allocation2 + $0x48] sm:$0xff] %v782
    %795 = vst [vmem:[#allocation2 + $0x50] sm:$0xff] %v783
    %796 = vst [vmem:[#allocation2 + $0x58] sm:$0xff] %v784
    // Predicated region
    $region22: #{bert_sentiment_forward.12} parent=1 // pred_check
      %p797 = pneg %p28
    $region23: #{bert_sentiment_forward.12} parent=1 // pred_check_branch
      %799 = sbr.rel (%p797) target = $region25
    $region24: #{bert_sentiment_forward.12} parent=1 // pred_region
      %v800 = vld [vmem:[#allocation2] sm:$0xff]
      %v801 = vld [vmem:[#allocation2 + $0x8] sm:$0xff]
      %v802 = vld [vmem:[#allocation2 + $0x10] sm:$0xff]
      %v803 = vld [vmem:[#allocation2 + $0x18] sm:$0xff]
      %v804 = vld [vmem:[#allocation2 + $0x20] sm:$0xff]
      %v805 = vld [vmem:[#allocation2 + $0x28] sm:$0xff]
      %v806 = vld [vmem:[#allocation2 + $0x30] sm:$0xff]
      %v807 = vld [vmem:[#allocation2 + $0x38] sm:$0xff]
      %v808 = vld [vmem:[#allocation2 + $0x40] sm:$0xff]
      %v809 = vld [vmem:[#allocation2 + $0x48] sm:$0xff]
      %v810 = vld [vmem:[#allocation2 + $0x50] sm:$0xff]
      %v811 = vld [vmem:[#allocation2 + $0x58] sm:$0xff]
      %v812 = vld [vmem:[%s2] sm:$0x3f]
      %v814 = vlaneseq
      %v815 = vshrl.u32 %v814, 7
      %v816 = vsub.s32 0, %v815
      %v817 = vrot.slane %v812, %v816
      %v818 = vlaneseq
      %v819 = vshrl.u32 %v818, 7
      %v820 = vsub.s32 1, %v819
      %v821 = vrot.slane %v812, %v820
      %v822 = vlaneseq
      %v823 = vshrl.u32 %v822, 7
      %v824 = vsub.s32 2, %v823
      %v825 = vrot.slane %v812, %v824
      %v826 = vlaneseq
      %v827 = vshrl.u32 %v826, 7
      %v828 = vsub.s32 3, %v827
      %v829 = vrot.slane %v812, %v828
      %v830 = vlaneseq
      %v831 = vshrl.u32 %v830, 7
      %v832 = vsub.s32 4, %v831
      %v833 = vrot.slane %v812, %v832
      %v834 = vlaneseq
      %v835 = vshrl.u32 %v834, 7
      %v836 = vsub.s32 5, %v835
      %v837 = vrot.slane %v812, %v836
      %v844 = vadd.f32 %v800, %v817
      %v845 = vadd.f32 %v801, %v821
      %v846 = vadd.f32 %v802, %v825
      %v847 = vadd.f32 %v803, %v829
      %v848 = vadd.f32 %v804, %v833
      %v849 = vadd.f32 %v805, %v837
      %v850 = vadd.f32 %v806, %v817
      %v851 = vadd.f32 %v807, %v821
      %v852 = vadd.f32 %v808, %v825
      %v853 = vadd.f32 %v809, %v829
      %v854 = vadd.f32 %v810, %v833
      %v855 = vadd.f32 %v811, %v837
      %v856 = vpack.c.bf16 %v850, %v844
      %v857 = vpack.c.bf16 %v851, %v845
      %v858 = vpack.c.bf16 %v852, %v846
      %v859 = vpack.c.bf16 %v853, %v847
      %v860 = vpack.c.bf16 %v854, %v848
      %v861 = vpack.c.bf16 %v855, %v849
      %v868 = vunpack.c.l.b16 %v856
      %v869 = vunpack.c.l.b16 %v857
      %v870 = vunpack.c.l.b16 %v858
      %v871 = vunpack.c.l.b16 %v859
      %v872 = vunpack.c.l.b16 %v860
      %v873 = vunpack.c.l.b16 %v861
      %v874 = vunpack.c.h.b16 %v856
      %v875 = vunpack.c.h.b16 %v857
      %v876 = vunpack.c.h.b16 %v858
      %v877 = vunpack.c.h.b16 %v859
      %v878 = vunpack.c.h.b16 %v860
      %v879 = vunpack.c.h.b16 %v861
      %v880 = vpack.c.b16 %v869, %v868
      %v881 = vpack.c.b16 %v871, %v870
      %v882 = vpack.c.b16 %v873, %v872
      %v883 = vpack.c.b16 %v875, %v874
      %v884 = vpack.c.b16 %v877, %v876
      %v885 = vpack.c.b16 %v879, %v878
      %892 = vst [vmem:[%s3] sm:$0xff] %v880
      %893 = vst [vmem:[%s3 + $0x8] sm:$0xff] %v881
      %894 = vst [vmem:[%s3 + $0x10] sm:$0xff] %v882
      %895 = vst [vmem:[%s3 + $0x18] sm:$0xff] %v883
      %896 = vst [vmem:[%s3 + $0x20] sm:$0xff] %v884
      %897 = vst [vmem:[%s3 + $0x28] sm:$0xff] %v885
    $region25: #{bert_sentiment_forward.12} parent=1 // pred_fallthru
      _
    // Predicated region
    $region26: #{bert_sentiment_forward.12} parent=1 // pred_check
      _
    $region27: #{bert_sentiment_forward.12} parent=1 // pred_check_branch
      %899 = sbr.rel (0) target = $region29
    $region28: #{bert_sentiment_forward.12} parent=1 // pred_region
      _
    $region29: #{bert_sentiment_forward.12} parent=1 // pred_fallthru
      _
    // Predicated region
    $region30: #{bert_sentiment_forward.12} parent=1 // pred_check
      _
    $region31: #{bert_sentiment_forward.12} parent=1 // pred_check_branch
      %901 = sbr.rel (0) target = $region33
    $region32: #{bert_sentiment_forward.12} parent=1 // pred_region
      _
    $region33: #{bert_sentiment_forward.12} parent=1 // pred_fallthru
      _
    %902 = vsyncpa [#allocation4], 1

// kernel: bert_sentiment_forward.15
$region0: #{bert_sentiment_forward.15}
  #allocation0 [shape = 'u32[]', space=smem, size = 0x4, offset = 0x4, fixed_abs, tag = 'smem constant byte address 0x4 - core index']
  #allocation1 [shape = 'u32[144,128]{1,0:T(1,128)}', space=vmem, size = 0x12000, scoped, tag = 'internal scratch']
  #allocation2 [shape = 'f32[16,512]{1,0:T(8,128)}', space=vmem, size = 0x8000, scoped, tag = 'scratch operand']
  %s0 = inlined_call_operand.vmem [shape: bf16[16,256], index: 0, kind: input, shape index: {}]
  %s1 = inlined_call_operand.vmem [shape: bf16[256,512], index: 1, kind: input, shape index: {}]
  %s2 = inlined_call_operand.vmem [shape: f32[1,512], index: 2, kind: input, shape index: {}]
  %s3 = inlined_call_operand.vmem [shape: bf16[16,512], index: 3, kind: output, shape index: {}]
  %s4 = sld [smem:[#allocation0]]
  $region30: #{bert_sentiment_forward.15} parent=0
    _
  %s6 = ssub.s32 1, %s4
  %s7 = scalar_select 0, %s6, %s4
  // Predicated region
  $region2: #{bert_sentiment_forward.15} parent=0 // pred_check
    _
  $region3: #{bert_sentiment_forward.15} parent=0 // pred_check_branch
    %9 = sbr.rel (0) target = $region5
  $region4: #{bert_sentiment_forward.15} parent=0 // pred_region
    _
  $region5: #{bert_sentiment_forward.15} parent=0 // pred_fallthru
    _
  // Predicated region
  $region6: #{bert_sentiment_forward.15} parent=0 // pred_check
    _
  $region7: #{bert_sentiment_forward.15} parent=0 // pred_check_branch
    %11 = sbr.rel (0) target = $region9
  $region8: #{bert_sentiment_forward.15} parent=0 // pred_region
    _
  $region9: #{bert_sentiment_forward.15} parent=0 // pred_fallthru
    _
  // Predicated region
  $region10: #{bert_sentiment_forward.15} parent=0 // pred_check
    _
  $region11: #{bert_sentiment_forward.15} parent=0 // pred_check_branch
    %13 = sbr.rel (0) target = $region13
  $region12: #{bert_sentiment_forward.15} parent=0 // pred_region
    _
  $region13: #{bert_sentiment_forward.15} parent=0 // pred_fallthru
    _
  %p18 = scmp.eq.s32.totalorder 0, 0
  // Predicated region
  $region14: #{bert_sentiment_forward.15} parent=0 // pred_check
    %p19 = pneg %p18
  $region15: #{bert_sentiment_forward.15} parent=0 // pred_check_branch
    %21 = sbr.rel (%p19) target = $region17
  $region16: #{bert_sentiment_forward.15} parent=0 // pred_region
    %22 = vst [vmem:[#allocation2] sm:$0xff] 0.0
    %23 = vst [vmem:[#allocation2 + $0x8] sm:$0xff] 0.0
    %24 = vst [vmem:[#allocation2 + $0x10] sm:$0xff] 0.0
    %25 = vst [vmem:[#allocation2 + $0x18] sm:$0xff] 0.0
    %26 = vst [vmem:[#allocation2 + $0x20] sm:$0xff] 0.0
    %27 = vst [vmem:[#allocation2 + $0x28] sm:$0xff] 0.0
    %28 = vst [vmem:[#allocation2 + $0x30] sm:$0xff] 0.0
    %29 = vst [vmem:[#allocation2 + $0x38] sm:$0xff] 0.0
  $region17: #{bert_sentiment_forward.15} parent=0 // pred_fallthru
    _
  %v30 = vld [vmem:[#allocation2] sm:$0xff]
  %v31 = vld [vmem:[#allocation2 + $0x8] sm:$0xff]
  %v32 = vld [vmem:[#allocation2 + $0x10] sm:$0xff]
  %v33 = vld [vmem:[#allocation2 + $0x18] sm:$0xff]
  %v34 = vld [vmem:[#allocation2 + $0x20] sm:$0xff]
  %v35 = vld [vmem:[#allocation2 + $0x28] sm:$0xff]
  %v36 = vld [vmem:[#allocation2 + $0x30] sm:$0xff]
  %v37 = vld [vmem:[#allocation2 + $0x38] sm:$0xff]
  %v38 = vld [vmem:[%s0] sm:$0xff]
  %v39 = vld [vmem:[%s0 + $0x8] sm:$0xff]
  %v40 = vld [vmem:[%s1] sm:$0xff]
  %v41 = vld [vmem:[%s1 + $0x8] sm:$0xff]
  %v42 = vld [vmem:[%s1 + $0x10] sm:$0xff]
  %v43 = vld [vmem:[%s1 + $0x18] sm:$0xff]
  %v44 = vld [vmem:[%s1 + $0x20] sm:$0xff]
  %v45 = vld [vmem:[%s1 + $0x28] sm:$0xff]
  %v46 = vld [vmem:[%s1 + $0x30] sm:$0xff]
  %v47 = vld [vmem:[%s1 + $0x38] sm:$0xff]
  %v48 = vld [vmem:[%s1 + $0x40] sm:$0xff]
  %v49 = vld [vmem:[%s1 + $0x48] sm:$0xff]
  %v50 = vld [vmem:[%s1 + $0x50] sm:$0xff]
  %v51 = vld [vmem:[%s1 + $0x58] sm:$0xff]
  %v52 = vld [vmem:[%s1 + $0x60] sm:$0xff]
  %v53 = vld [vmem:[%s1 + $0x68] sm:$0xff]
  %v54 = vld [vmem:[%s1 + $0x70] sm:$0xff]
  %v55 = vld [vmem:[%s1 + $0x78] sm:$0xff]
  %v56 = vld [vmem:[%s1 + $0x80] sm:$0xff]
  %v57 = vld [vmem:[%s1 + $0x88] sm:$0xff]
  %v58 = vld [vmem:[%s1 + $0x90] sm:$0xff]
  %v59 = vld [vmem:[%s1 + $0x98] sm:$0xff]
  %v60 = vld [vmem:[%s1 + $0xa0] sm:$0xff]
  %v61 = vld [vmem:[%s1 + $0xa8] sm:$0xff]
  %v62 = vld [vmem:[%s1 + $0xb0] sm:$0xff]
  %v63 = vld [vmem:[%s1 + $0xb8] sm:$0xff]
  %v64 = vld [vmem:[%s1 + $0xc0] sm:$0xff]
  %v65 = vld [vmem:[%s1 + $0xc8] sm:$0xff]
  %v66 = vld [vmem:[%s1 + $0xd0] sm:$0xff]
  %v67 = vld [vmem:[%s1 + $0xd8] sm:$0xff]
  %v68 = vld [vmem:[%s1 + $0xe0] sm:$0xff]
  %v69 = vld [vmem:[%s1 + $0xe8] sm:$0xff]
  %v70 = vld [vmem:[%s1 + $0xf0] sm:$0xff]
  %v71 = vld [vmem:[%s1 + $0xf8] sm:$0xff]
  %v72 = vld [vmem:[%s1 + $0x100] sm:$0xff]
  %v73 = vld [vmem:[%s1 + $0x108] sm:$0xff]
  %v74 = vld [vmem:[%s1 + $0x110] sm:$0xff]
  %v75 = vld [vmem:[%s1 + $0x118] sm:$0xff]
  %v76 = vld [vmem:[%s1 + $0x120] sm:$0xff]
  %v77 = vld [vmem:[%s1 + $0x128] sm:$0xff]
  %v78 = vld [vmem:[%s1 + $0x130] sm:$0xff]
  %v79 = vld [vmem:[%s1 + $0x138] sm:$0xff]
  %v80 = vld [vmem:[%s1 + $0x140] sm:$0xff]
  %v81 = vld [vmem:[%s1 + $0x148] sm:$0xff]
  %v82 = vld [vmem:[%s1 + $0x150] sm:$0xff]
  %v83 = vld [vmem:[%s1 + $0x158] sm:$0xff]
  %v84 = vld [vmem:[%s1 + $0x160] sm:$0xff]
  %v85 = vld [vmem:[%s1 + $0x168] sm:$0xff]
  %v86 = vld [vmem:[%s1 + $0x170] sm:$0xff]
  %v87 = vld [vmem:[%s1 + $0x178] sm:$0xff]
  %v88 = vld [vmem:[%s1 + $0x180] sm:$0xff]
  %v89 = vld [vmem:[%s1 + $0x188] sm:$0xff]
  %v90 = vld [vmem:[%s1 + $0x190] sm:$0xff]
  %v91 = vld [vmem:[%s1 + $0x198] sm:$0xff]
  %v92 = vld [vmem:[%s1 + $0x1a0] sm:$0xff]
  %v93 = vld [vmem:[%s1 + $0x1a8] sm:$0xff]
  %v94 = vld [vmem:[%s1 + $0x1b0] sm:$0xff]
  %v95 = vld [vmem:[%s1 + $0x1b8] sm:$0xff]
  %v96 = vld [vmem:[%s1 + $0x1c0] sm:$0xff]
  %v97 = vld [vmem:[%s1 + $0x1c8] sm:$0xff]
  %v98 = vld [vmem:[%s1 + $0x1d0] sm:$0xff]
  %v99 = vld [vmem:[%s1 + $0x1d8] sm:$0xff]
  %v100 = vld [vmem:[%s1 + $0x1e0] sm:$0xff]
  %v101 = vld [vmem:[%s1 + $0x1e8] sm:$0xff]
  %v102 = vld [vmem:[%s1 + $0x1f0] sm:$0xff]
  %v103 = vld [vmem:[%s1 + $0x1f8] sm:$0xff]
  %v106 = vunpack.c.l.b16 %v38
  %v107 = vunpack.c.h.b16 %v38
  %v108 = vunpack.c.l.b16 %v39
  %v109 = vunpack.c.h.b16 %v39
  %v110 = vpack.c.b16 %v108, %v106
  %v111 = vpack.c.b16 %v109, %v107
  %v178 = vunpack.c.l.b16 %v40
  %v179 = vunpack.c.h.b16 %v40
  %v180 = vunpack.c.l.b16 %v41
  %v181 = vunpack.c.h.b16 %v41
  %v182 = vunpack.c.l.b16 %v42
  %v183 = vunpack.c.h.b16 %v42
  %v184 = vunpack.c.l.b16 %v43
  %v185 = vunpack.c.h.b16 %v43
  %v186 = vunpack.c.l.b16 %v44
  %v187 = vunpack.c.h.b16 %v44
  %v188 = vunpack.c.l.b16 %v45
  %v189 = vunpack.c.h.b16 %v45
  %v190 = vunpack.c.l.b16 %v46
  %v191 = vunpack.c.h.b16 %v46
  %v192 = vunpack.c.l.b16 %v47
  %v193 = vunpack.c.h.b16 %v47
  %v194 = vunpack.c.l.b16 %v48
  %v195 = vunpack.c.h.b16 %v48
  %v196 = vunpack.c.l.b16 %v49
  %v197 = vunpack.c.h.b16 %v49
  %v198 = vunpack.c.l.b16 %v50
  %v199 = vunpack.c.h.b16 %v50
  %v200 = vunpack.c.l.b16 %v51
  %v201 = vunpack.c.h.b16 %v51
  %v202 = vunpack.c.l.b16 %v52
  %v203 = vunpack.c.h.b16 %v52
  %v204 = vunpack.c.l.b16 %v53
  %v205 = vunpack.c.h.b16 %v53
  %v206 = vunpack.c.l.b16 %v54
  %v207 = vunpack.c.h.b16 %v54
  %v208 = vunpack.c.l.b16 %v55
  %v209 = vunpack.c.h.b16 %v55
  %v210 = vunpack.c.l.b16 %v56
  %v211 = vunpack.c.h.b16 %v56
  %v212 = vunpack.c.l.b16 %v57
  %v213 = vunpack.c.h.b16 %v57
  %v214 = vunpack.c.l.b16 %v58
  %v215 = vunpack.c.h.b16 %v58
  %v216 = vunpack.c.l.b16 %v59
  %v217 = vunpack.c.h.b16 %v59
  %v218 = vunpack.c.l.b16 %v60
  %v219 = vunpack.c.h.b16 %v60
  %v220 = vunpack.c.l.b16 %v61
  %v221 = vunpack.c.h.b16 %v61
  %v222 = vunpack.c.l.b16 %v62
  %v223 = vunpack.c.h.b16 %v62
  %v224 = vunpack.c.l.b16 %v63
  %v225 = vunpack.c.h.b16 %v63
  %v226 = vunpack.c.l.b16 %v64
  %v227 = vunpack.c.h.b16 %v64
  %v228 = vunpack.c.l.b16 %v65
  %v229 = vunpack.c.h.b16 %v65
  %v230 = vunpack.c.l.b16 %v66
  %v231 = vunpack.c.h.b16 %v66
  %v232 = vunpack.c.l.b16 %v67
  %v233 = vunpack.c.h.b16 %v67
  %v234 = vunpack.c.l.b16 %v68
  %v235 = vunpack.c.h.b16 %v68
  %v236 = vunpack.c.l.b16 %v69
  %v237 = vunpack.c.h.b16 %v69
  %v238 = vunpack.c.l.b16 %v70
  %v239 = vunpack.c.h.b16 %v70
  %v240 = vunpack.c.l.b16 %v71
  %v241 = vunpack.c.h.b16 %v71
  %v242 = vunpack.c.l.b16 %v72
  %v243 = vunpack.c.h.b16 %v72
  %v244 = vunpack.c.l.b16 %v73
  %v245 = vunpack.c.h.b16 %v73
  %v246 = vunpack.c.l.b16 %v74
  %v247 = vunpack.c.h.b16 %v74
  %v248 = vunpack.c.l.b16 %v75
  %v249 = vunpack.c.h.b16 %v75
  %v250 = vunpack.c.l.b16 %v76
  %v251 = vunpack.c.h.b16 %v76
  %v252 = vunpack.c.l.b16 %v77
  %v253 = vunpack.c.h.b16 %v77
  %v254 = vunpack.c.l.b16 %v78
  %v255 = vunpack.c.h.b16 %v78
  %v256 = vunpack.c.l.b16 %v79
  %v257 = vunpack.c.h.b16 %v79
  %v258 = vunpack.c.l.b16 %v80
  %v259 = vunpack.c.h.b16 %v80
  %v260 = vunpack.c.l.b16 %v81
  %v261 = vunpack.c.h.b16 %v81
  %v262 = vunpack.c.l.b16 %v82
  %v263 = vunpack.c.h.b16 %v82
  %v264 = vunpack.c.l.b16 %v83
  %v265 = vunpack.c.h.b16 %v83
  %v266 = vunpack.c.l.b16 %v84
  %v267 = vunpack.c.h.b16 %v84
  %v268 = vunpack.c.l.b16 %v85
  %v269 = vunpack.c.h.b16 %v85
  %v270 = vunpack.c.l.b16 %v86
  %v271 = vunpack.c.h.b16 %v86
  %v272 = vunpack.c.l.b16 %v87
  %v273 = vunpack.c.h.b16 %v87
  %v274 = vunpack.c.l.b16 %v88
  %v275 = vunpack.c.h.b16 %v88
  %v276 = vunpack.c.l.b16 %v89
  %v277 = vunpack.c.h.b16 %v89
  %v278 = vunpack.c.l.b16 %v90
  %v279 = vunpack.c.h.b16 %v90
  %v280 = vunpack.c.l.b16 %v91
  %v281 = vunpack.c.h.b16 %v91
  %v282 = vunpack.c.l.b16 %v92
  %v283 = vunpack.c.h.b16 %v92
  %v284 = vunpack.c.l.b16 %v93
  %v285 = vunpack.c.h.b16 %v93
  %v286 = vunpack.c.l.b16 %v94
  %v287 = vunpack.c.h.b16 %v94
  %v288 = vunpack.c.l.b16 %v95
  %v289 = vunpack.c.h.b16 %v95
  %v290 = vunpack.c.l.b16 %v96
  %v291 = vunpack.c.h.b16 %v96
  %v292 = vunpack.c.l.b16 %v97
  %v293 = vunpack.c.h.b16 %v97
  %v294 = vunpack.c.l.b16 %v98
  %v295 = vunpack.c.h.b16 %v98
  %v296 = vunpack.c.l.b16 %v99
  %v297 = vunpack.c.h.b16 %v99
  %v298 = vunpack.c.l.b16 %v100
  %v299 = vunpack.c.h.b16 %v100
  %v300 = vunpack.c.l.b16 %v101
  %v301 = vunpack.c.h.b16 %v101
  %v302 = vunpack.c.l.b16 %v102
  %v303 = vunpack.c.h.b16 %v102
  %v304 = vunpack.c.l.b16 %v103
  %v305 = vunpack.c.h.b16 %v103
  %v306 = vpack.c.b16 %v182, %v178
  %v307 = vpack.c.b16 %v183, %v179
  %v308 = vpack.c.b16 %v184, %v180
  %v309 = vpack.c.b16 %v185, %v181
  %v310 = vpack.c.b16 %v190, %v186
  %v311 = vpack.c.b16 %v191, %v187
  %v312 = vpack.c.b16 %v192, %v188
  %v313 = vpack.c.b16 %v193, %v189
  %v314 = vpack.c.b16 %v198, %v194
  %v315 = vpack.c.b16 %v199, %v195
  %v316 = vpack.c.b16 %v200, %v196
  %v317 = vpack.c.b16 %v201, %v197
  %v318 = vpack.c.b16 %v206, %v202
  %v319 = vpack.c.b16 %v207, %v203
  %v320 = vpack.c.b16 %v208, %v204
  %v321 = vpack.c.b16 %v209, %v205
  %v322 = vpack.c.b16 %v214, %v210
  %v323 = vpack.c.b16 %v215, %v211
  %v324 = vpack.c.b16 %v216, %v212
  %v325 = vpack.c.b16 %v217, %v213
  %v326 = vpack.c.b16 %v222, %v218
  %v327 = vpack.c.b16 %v223, %v219
  %v328 = vpack.c.b16 %v224, %v220
  %v329 = vpack.c.b16 %v225, %v221
  %v330 = vpack.c.b16 %v230, %v226
  %v331 = vpack.c.b16 %v231, %v227
  %v332 = vpack.c.b16 %v232, %v228
  %v333 = vpack.c.b16 %v233, %v229
  %v334 = vpack.c.b16 %v238, %v234
  %v335 = vpack.c.b16 %v239, %v235
  %v336 = vpack.c.b16 %v240, %v236
  %v337 = vpack.c.b16 %v241, %v237
  %v338 = vpack.c.b16 %v246, %v242
  %v339 = vpack.c.b16 %v247, %v243
  %v340 = vpack.c.b16 %v248, %v244
  %v341 = vpack.c.b16 %v249, %v245
  %v342 = vpack.c.b16 %v254, %v250
  %v343 = vpack.c.b16 %v255, %v251
  %v344 = vpack.c.b16 %v256, %v252
  %v345 = vpack.c.b16 %v257, %v253
  %v346 = vpack.c.b16 %v262, %v258
  %v347 = vpack.c.b16 %v263, %v259
  %v348 = vpack.c.b16 %v264, %v260
  %v349 = vpack.c.b16 %v265, %v261
  %v350 = vpack.c.b16 %v270, %v266
  %v351 = vpack.c.b16 %v271, %v267
  %v352 = vpack.c.b16 %v272, %v268
  %v353 = vpack.c.b16 %v273, %v269
  %v354 = vpack.c.b16 %v278, %v274
  %v355 = vpack.c.b16 %v279, %v275
  %v356 = vpack.c.b16 %v280, %v276
  %v357 = vpack.c.b16 %v281, %v277
  %v358 = vpack.c.b16 %v286, %v282
  %v359 = vpack.c.b16 %v287, %v283
  %v360 = vpack.c.b16 %v288, %v284
  %v361 = vpack.c.b16 %v289, %v285
  %v362 = vpack.c.b16 %v294, %v290
  %v363 = vpack.c.b16 %v295, %v291
  %v364 = vpack.c.b16 %v296, %v292
  %v365 = vpack.c.b16 %v297, %v293
  %v366 = vpack.c.b16 %v302, %v298
  %v367 = vpack.c.b16 %v303, %v299
  %v368 = vpack.c.b16 %v304, %v300
  %v369 = vpack.c.b16 %v305, %v301
  %434 = vmatprep.subr.bf16.mxu0 %v307
  %435 = vmatpush1.bf16.msra.mxu0 %v306
  %436 = vmatprep.subr.bf16.mxu0 %v311
  %437 = vmatpush1.bf16.msra.mxu0 %v310
  %438 = vmatprep.subr.bf16.mxu0 %v315
  %439 = vmatpush1.bf16.msra.mxu0 %v314
  %440 = vmatprep.subr.bf16.mxu0 %v319
  %441 = vmatpush1.bf16.msra.mxu0 %v318
  %442 = vmatprep.subr.bf16.mxu0 %v323
  %443 = vmatpush1.bf16.msra.mxu0 %v322
  %444 = vmatprep.subr.bf16.mxu0 %v327
  %445 = vmatpush1.bf16.msra.mxu0 %v326
  %446 = vmatprep.subr.bf16.mxu0 %v331
  %447 = vmatpush1.bf16.msra.mxu0 %v330
  %448 = vmatprep.subr.bf16.mxu0 %v335
  %449 = vmatpush1.bf16.msra.mxu0 %v334
  %450 = vmatprep.subr.bf16.mxu0 %v339
  %451 = vmatpush1.bf16.msra.mxu0 %v338
  %452 = vmatprep.subr.bf16.mxu0 %v343
  %453 = vmatpush1.bf16.msra.mxu0 %v342
  %454 = vmatprep.subr.bf16.mxu0 %v347
  %455 = vmatpush1.bf16.msra.mxu0 %v346
  %456 = vmatprep.subr.bf16.mxu0 %v351
  %457 = vmatpush1.bf16.msra.mxu0 %v350
  %458 = vmatprep.subr.bf16.mxu0 %v355
  %459 = vmatpush1.bf16.msra.mxu0 %v354
  %460 = vmatprep.subr.bf16.mxu0 %v359
  %461 = vmatpush1.bf16.msra.mxu0 %v358
  %462 = vmatprep.subr.bf16.mxu0 %v363
  %463 = vmatpush1.bf16.msra.mxu0 %v362
  %464 = vmatprep.subr.bf16.mxu0 %v367
  %465 = vmatpush1.bf16.msra.mxu0 %v366
  %466 = vmatprep.mubr.bf16.mxu0 %v111
  %467 = vmatmul.mubr.bf16.gmra.mrb[0].mxu0 %v110
  %v468 = vpop.f32.mrb[0].mxu0
  %v469 = vadd.f32 0.0, %v468
  %v470 = vpop.f32.mrb[0].mxu0
  %v471 = vadd.f32 0.0, %v470
  %v472 = vpop.f32.mrb[0].mxu0
  %v473 = vadd.f32 0.0, %v472
  %v474 = vpop.f32.mrb[0].mxu0
  %v475 = vadd.f32 0.0, %v474
  %476 = vdwg.mxu0
  %477 = vmatprep.subr.bf16.mxu0 %v309
  %478 = vmatpush1.bf16.msra.mxu0 %v308
  %479 = vmatprep.subr.bf16.mxu0 %v313
  %480 = vmatpush1.bf16.msra.mxu0 %v312
  %481 = vmatprep.subr.bf16.mxu0 %v317
  %482 = vmatpush1.bf16.msra.mxu0 %v316
  %483 = vmatprep.subr.bf16.mxu0 %v321
  %484 = vmatpush1.bf16.msra.mxu0 %v320
  %485 = vmatprep.subr.bf16.mxu0 %v325
  %486 = vmatpush1.bf16.msra.mxu0 %v324
  %487 = vmatprep.subr.bf16.mxu0 %v329
  %488 = vmatpush1.bf16.msra.mxu0 %v328
  %489 = vmatprep.subr.bf16.mxu0 %v333
  %490 = vmatpush1.bf16.msra.mxu0 %v332
  %491 = vmatprep.subr.bf16.mxu0 %v337
  %492 = vmatpush1.bf16.msra.mxu0 %v336
  %493 = vmatprep.subr.bf16.mxu0 %v341
  %494 = vmatpush1.bf16.msra.mxu0 %v340
  %495 = vmatprep.subr.bf16.mxu0 %v345
  %496 = vmatpush1.bf16.msra.mxu0 %v344
  %497 = vmatprep.subr.bf16.mxu0 %v349
  %498 = vmatpush1.bf16.msra.mxu0 %v348
  %499 = vmatprep.subr.bf16.mxu0 %v353
  %500 = vmatpush1.bf16.msra.mxu0 %v352
  %501 = vmatprep.subr.bf16.mxu0 %v357
  %502 = vmatpush1.bf16.msra.mxu0 %v356
  %503 = vmatprep.subr.bf16.mxu0 %v361
  %504 = vmatpush1.bf16.msra.mxu0 %v360
  %505 = vmatprep.subr.bf16.mxu0 %v365
  %506 = vmatpush1.bf16.msra.mxu0 %v364
  %507 = vmatprep.subr.bf16.mxu0 %v369
  %508 = vmatpush1.bf16.msra.mxu0 %v368
  %509 = vmatprep.mubr.bf16.mxu0 %v111
  %510 = vmatmul.mubr.bf16.gmra.mrb[0].mxu0 %v110
  %v511 = vpop.f32.mrb[0].mxu0
  %v512 = vadd.f32 0.0, %v511
  %v513 = vpop.f32.mrb[0].mxu0
  %v514 = vadd.f32 0.0, %v513
  %v515 = vpop.f32.mrb[0].mxu0
  %v516 = vadd.f32 0.0, %v515
  %v517 = vpop.f32.mrb[0].mxu0
  %v518 = vadd.f32 0.0, %v517
  %519 = vdwg.mxu0
  %v520 = vadd.f32 %v30, %v469
  %v521 = vadd.f32 %v31, %v471
  %v522 = vadd.f32 %v32, %v512
  %v523 = vadd.f32 %v33, %v514
  %v524 = vadd.f32 %v34, %v473
  %v525 = vadd.f32 %v35, %v475
  %v526 = vadd.f32 %v36, %v516
  %v527 = vadd.f32 %v37, %v518
  %528 = vst [vmem:[#allocation2] sm:$0xff] %v520
  %529 = vst [vmem:[#allocation2 + $0x8] sm:$0xff] %v521
  %530 = vst [vmem:[#allocation2 + $0x10] sm:$0xff] %v522
  %531 = vst [vmem:[#allocation2 + $0x18] sm:$0xff] %v523
  %532 = vst [vmem:[#allocation2 + $0x20] sm:$0xff] %v524
  %533 = vst [vmem:[#allocation2 + $0x28] sm:$0xff] %v525
  %534 = vst [vmem:[#allocation2 + $0x30] sm:$0xff] %v526
  %535 = vst [vmem:[#allocation2 + $0x38] sm:$0xff] %v527
  // Predicated region
  $region18: #{bert_sentiment_forward.15} parent=0 // pred_check
    %p536 = pneg %p18
  $region19: #{bert_sentiment_forward.15} parent=0 // pred_check_branch
    %538 = sbr.rel (%p536) target = $region21
  $region20: #{bert_sentiment_forward.15} parent=0 // pred_region
    %v539 = vld [vmem:[#allocation2] sm:$0xff]
    %v540 = vld [vmem:[#allocation2 + $0x8] sm:$0xff]
    %v541 = vld [vmem:[#allocation2 + $0x10] sm:$0xff]
    %v542 = vld [vmem:[#allocation2 + $0x18] sm:$0xff]
    %v543 = vld [vmem:[#allocation2 + $0x20] sm:$0xff]
    %v544 = vld [vmem:[#allocation2 + $0x28] sm:$0xff]
    %v545 = vld [vmem:[#allocation2 + $0x30] sm:$0xff]
    %v546 = vld [vmem:[#allocation2 + $0x38] sm:$0xff]
    %v547 = vld [vmem:[%s2] sm:$0xf]
    %v549 = vlaneseq
    %v550 = vshrl.u32 %v549, 7
    %v551 = vsub.s32 0, %v550
    %v552 = vrot.slane %v547, %v551
    %v553 = vlaneseq
    %v554 = vshrl.u32 %v553, 7
    %v555 = vsub.s32 1, %v554
    %v556 = vrot.slane %v547, %v555
    %v557 = vlaneseq
    %v558 = vshrl.u32 %v557, 7
    %v559 = vsub.s32 2, %v558
    %v560 = vrot.slane %v547, %v559
    %v561 = vlaneseq
    %v562 = vshrl.u32 %v561, 7
    %v563 = vsub.s32 3, %v562
    %v564 = vrot.slane %v547, %v563
    %v569 = vadd.f32 %v539, %v552
    %v570 = vadd.f32 %v540, %v556
    %v571 = vadd.f32 %v541, %v560
    %v572 = vadd.f32 %v542, %v564
    %v573 = vadd.f32 %v543, %v552
    %v574 = vadd.f32 %v544, %v556
    %v575 = vadd.f32 %v545, %v560
    %v576 = vadd.f32 %v546, %v564
    %v577 = vpack.c.bf16 %v573, %v569
    %v578 = vpack.c.bf16 %v574, %v570
    %v579 = vpack.c.bf16 %v575, %v571
    %v580 = vpack.c.bf16 %v576, %v572
    %v581 = vmul.bf16 %v577, 1056980736
    %v582 = vmul.bf16 %v578, 1056980736
    %v583 = vmul.bf16 %v579, 1056980736
    %v584 = vmul.bf16 %v580, 1056980736
    %v585 = vmul.bf16 %v577, 1027030327
    %v586 = vmul.bf16 %v578, 1027030327
    %v587 = vmul.bf16 %v579, 1027030327
    %v588 = vmul.bf16 %v580, 1027030327
    %v589 = vmul.bf16 %v585, %v577
    %v590 = vmul.bf16 %v586, %v578
    %v591 = vmul.bf16 %v587, %v579
    %v592 = vmul.bf16 %v588, %v580
    %v593 = vmul.bf16 %v589, %v577
    %v594 = vmul.bf16 %v590, %v578
    %v595 = vmul.bf16 %v591, %v579
    %v596 = vmul.bf16 %v592, %v580
    %v597 = vadd.bf16 %v577, %v593
    %v598 = vadd.bf16 %v578, %v594
    %v599 = vadd.bf16 %v579, %v595
    %v600 = vadd.bf16 %v580, %v596
    %v601 = vmul.bf16 %v597, 1061961548
    %v602 = vmul.bf16 %v598, 1061961548
    %v603 = vmul.bf16 %v599, 1061961548
    %v604 = vmul.bf16 %v600, 1061961548
    %v605 = vtanh.bf16.pop %v601
    %v606 = vtanh.bf16.pop %v602
    %v607 = vtanh.bf16.pop %v603
    %v608 = vtanh.bf16.pop %v604
    %v609 = vadd.bf16 %v605, 1065369472
    %v610 = vadd.bf16 %v606, 1065369472
    %v611 = vadd.bf16 %v607, 1065369472
    %v612 = vadd.bf16 %v608, 1065369472
    %v613 = vmul.bf16 %v581, %v609
    %v614 = vmul.bf16 %v582, %v610
    %v615 = vmul.bf16 %v583, %v611
    %v616 = vmul.bf16 %v584, %v612
    %v621 = vunpack.c.l.b16 %v613
    %v622 = vunpack.c.l.b16 %v614
    %v623 = vunpack.c.l.b16 %v615
    %v624 = vunpack.c.l.b16 %v616
    %v625 = vunpack.c.h.b16 %v613
    %v626 = vunpack.c.h.b16 %v614
    %v627 = vunpack.c.h.b16 %v615
    %v628 = vunpack.c.h.b16 %v616
    %v629 = vpack.c.b16 %v622, %v621
    %v630 = vpack.c.b16 %v624, %v623
    %v631 = vpack.c.b16 %v626, %v625
    %v632 = vpack.c.b16 %v628, %v627
    %637 = vst [vmem:[%s3] sm:$0xff] %v629
    %638 = vst [vmem:[%s3 + $0x8] sm:$0xff] %v630
    %639 = vst [vmem:[%s3 + $0x10] sm:$0xff] %v631
    %640 = vst [vmem:[%s3 + $0x18] sm:$0xff] %v632
  $region21: #{bert_sentiment_forward.15} parent=0 // pred_fallthru
    _
  // Predicated region
  $region22: #{bert_sentiment_forward.15} parent=0 // pred_check
    _
  $region23: #{bert_sentiment_forward.15} parent=0 // pred_check_branch
    %642 = sbr.rel (0) target = $region25
  $region24: #{bert_sentiment_forward.15} parent=0 // pred_region
    _
  $region25: #{bert_sentiment_forward.15} parent=0 // pred_fallthru
    _
  // Predicated region
  $region26: #{bert_sentiment_forward.15} parent=0 // pred_check
    _
  $region27: #{bert_sentiment_forward.15} parent=0 // pred_check_branch
    %644 = sbr.rel (0) target = $region29
  $region28: #{bert_sentiment_forward.15} parent=0 // pred_region
    _
  $region29: #{bert_sentiment_forward.15} parent=0 // pred_fallthru
    _

// kernel: bert_sentiment_forward.17
$region0: #{bert_sentiment_forward.17}
  #allocation0 [shape = 'u32[]', space=smem, size = 0x4, offset = 0x4, fixed_abs, tag = 'smem constant byte address 0x4 - core index']
  #allocation1 [shape = 'u32[144,128]{1,0:T(1,128)}', space=vmem, size = 0x12000, scoped, tag = 'internal scratch']
  #allocation2 [shape = 'f32[16,768]{1,0:T(8,128)}', space=vmem, size = 0xc000, scoped, tag = 'scratch operand']
  %s0 = inlined_call_operand.vmem [shape: bf16[16,256], index: 0, kind: input, shape index: {}]
  %s1 = inlined_call_operand.vmem [shape: bf16[256,768], index: 1, kind: input, shape index: {}]
  %s2 = inlined_call_operand.vmem [shape: f32[1,768], index: 2, kind: input, shape index: {}]
  %s3 = inlined_call_operand.vmem [shape: bf16[16,768], index: 3, kind: output, shape index: {}]
  %s4 = sld [smem:[#allocation0]]
  $region30: #{bert_sentiment_forward.17} parent=0
    _
  %s6 = ssub.s32 1, %s4
  %s7 = scalar_select 0, %s6, %s4
  // Predicated region
  $region2: #{bert_sentiment_forward.17} parent=0 // pred_check
    _
  $region3: #{bert_sentiment_forward.17} parent=0 // pred_check_branch
    %9 = sbr.rel (0) target = $region5
  $region4: #{bert_sentiment_forward.17} parent=0 // pred_region
    _
  $region5: #{bert_sentiment_forward.17} parent=0 // pred_fallthru
    _
  // Predicated region
  $region6: #{bert_sentiment_forward.17} parent=0 // pred_check
    _
  $region7: #{bert_sentiment_forward.17} parent=0 // pred_check_branch
    %11 = sbr.rel (0) target = $region9
  $region8: #{bert_sentiment_forward.17} parent=0 // pred_region
    _
  $region9: #{bert_sentiment_forward.17} parent=0 // pred_fallthru
    _
  // Predicated region
  $region10: #{bert_sentiment_forward.17} parent=0 // pred_check
    _
  $region11: #{bert_sentiment_forward.17} parent=0 // pred_check_branch
    %13 = sbr.rel (0) target = $region13
  $region12: #{bert_sentiment_forward.17} parent=0 // pred_region
    _
  $region13: #{bert_sentiment_forward.17} parent=0 // pred_fallthru
    _
  %p14 = scmp.eq.s32.totalorder 0, 0
  // Predicated region
  $region14: #{bert_sentiment_forward.17} parent=0 // pred_check
    %p15 = pneg %p14
  $region15: #{bert_sentiment_forward.17} parent=0 // pred_check_branch
    %17 = sbr.rel (%p15) target = $region17
  $region16: #{bert_sentiment_forward.17} parent=0 // pred_region
    %18 = vst [vmem:[#allocation2] sm:$0xff] 0.0
    %19 = vst [vmem:[#allocation2 + $0x8] sm:$0xff] 0.0
    %20 = vst [vmem:[#allocation2 + $0x10] sm:$0xff] 0.0
    %21 = vst [vmem:[#allocation2 + $0x18] sm:$0xff] 0.0
    %22 = vst [vmem:[#allocation2 + $0x20] sm:$0xff] 0.0
    %23 = vst [vmem:[#allocation2 + $0x28] sm:$0xff] 0.0
    %24 = vst [vmem:[#allocation2 + $0x30] sm:$0xff] 0.0
    %25 = vst [vmem:[#allocation2 + $0x38] sm:$0xff] 0.0
    %26 = vst [vmem:[#allocation2 + $0x40] sm:$0xff] 0.0
    %27 = vst [vmem:[#allocation2 + $0x48] sm:$0xff] 0.0
    %28 = vst [vmem:[#allocation2 + $0x50] sm:$0xff] 0.0
    %29 = vst [vmem:[#allocation2 + $0x58] sm:$0xff] 0.0
  $region17: #{bert_sentiment_forward.17} parent=0 // pred_fallthru
    _
  %v30 = vld [vmem:[#allocation2] sm:$0xff]
  %v31 = vld [vmem:[#allocation2 + $0x8] sm:$0xff]
  %v32 = vld [vmem:[#allocation2 + $0x10] sm:$0xff]
  %v33 = vld [vmem:[#allocation2 + $0x18] sm:$0xff]
  %v34 = vld [vmem:[#allocation2 + $0x20] sm:$0xff]
  %v35 = vld [vmem:[#allocation2 + $0x28] sm:$0xff]
  %v36 = vld [vmem:[#allocation2 + $0x30] sm:$0xff]
  %v37 = vld [vmem:[#allocation2 + $0x38] sm:$0xff]
  %v38 = vld [vmem:[#allocation2 + $0x40] sm:$0xff]
  %v39 = vld [vmem:[#allocation2 + $0x48] sm:$0xff]
  %v40 = vld [vmem:[#allocation2 + $0x50] sm:$0xff]
  %v41 = vld [vmem:[#allocation2 + $0x58] sm:$0xff]
  %v42 = vld [vmem:[%s0] sm:$0xff]
  %v43 = vld [vmem:[%s0 + $0x8] sm:$0xff]
  %v44 = vld [vmem:[%s1] sm:$0xff]
  %v45 = vld [vmem:[%s1 + $0x8] sm:$0xff]
  %v46 = vld [vmem:[%s1 + $0x10] sm:$0xff]
  %v47 = vld [vmem:[%s1 + $0x18] sm:$0xff]
  %v48 = vld [vmem:[%s1 + $0x20] sm:$0xff]
  %v49 = vld [vmem:[%s1 + $0x28] sm:$0xff]
  %v50 = vld [vmem:[%s1 + $0x30] sm:$0xff]
  %v51 = vld [vmem:[%s1 + $0x38] sm:$0xff]
  %v52 = vld [vmem:[%s1 + $0x40] sm:$0xff]
  %v53 = vld [vmem:[%s1 + $0x48] sm:$0xff]
  %v54 = vld [vmem:[%s1 + $0x50] sm:$0xff]
  %v55 = vld [vmem:[%s1 + $0x58] sm:$0xff]
  %v56 = vld [vmem:[%s1 + $0x60] sm:$0xff]
  %v57 = vld [vmem:[%s1 + $0x68] sm:$0xff]
  %v58 = vld [vmem:[%s1 + $0x70] sm:$0xff]
  %v59 = vld [vmem:[%s1 + $0x78] sm:$0xff]
  %v60 = vld [vmem:[%s1 + $0x80] sm:$0xff]
  %v61 = vld [vmem:[%s1 + $0x88] sm:$0xff]
  %v62 = vld [vmem:[%s1 + $0x90] sm:$0xff]
  %v63 = vld [vmem:[%s1 + $0x98] sm:$0xff]
  %v64 = vld [vmem:[%s1 + $0xa0] sm:$0xff]
  %v65 = vld [vmem:[%s1 + $0xa8] sm:$0xff]
  %v66 = vld [vmem:[%s1 + $0xb0] sm:$0xff]
  %v67 = vld [vmem:[%s1 + $0xb8] sm:$0xff]
  %v68 = vld [vmem:[%s1 + $0xc0] sm:$0xff]
  %v69 = vld [vmem:[%s1 + $0xc8] sm:$0xff]
  %v70 = vld [vmem:[%s1 + $0xd0] sm:$0xff]
  %v71 = vld [vmem:[%s1 + $0xd8] sm:$0xff]
  %v72 = vld [vmem:[%s1 + $0xe0] sm:$0xff]
  %v73 = vld [vmem:[%s1 + $0xe8] sm:$0xff]
  %v74 = vld [vmem:[%s1 + $0xf0] sm:$0xff]
  %v75 = vld [vmem:[%s1 + $0xf8] sm:$0xff]
  %v76 = vld [vmem:[%s1 + $0x100] sm:$0xff]
  %v77 = vld [vmem:[%s1 + $0x108] sm:$0xff]
  %v78 = vld [vmem:[%s1 + $0x110] sm:$0xff]
  %v79 = vld [vmem:[%s1 + $0x118] sm:$0xff]
  %v80 = vld [vmem:[%s1 + $0x120] sm:$0xff]
  %v81 = vld [vmem:[%s1 + $0x128] sm:$0xff]
  %v82 = vld [vmem:[%s1 + $0x130] sm:$0xff]
  %v83 = vld [vmem:[%s1 + $0x138] sm:$0xff]
  %v84 = vld [vmem:[%s1 + $0x140] sm:$0xff]
  %v85 = vld [vmem:[%s1 + $0x148] sm:$0xff]
  %v86 = vld [vmem:[%s1 + $0x150] sm:$0xff]
  %v87 = vld [vmem:[%s1 + $0x158] sm:$0xff]
  %v88 = vld [vmem:[%s1 + $0x160] sm:$0xff]
  %v89 = vld [vmem:[%s1 + $0x168] sm:$0xff]
  %v90 = vld [vmem:[%s1 + $0x170] sm:$0xff]
  %v91 = vld [vmem:[%s1 + $0x178] sm:$0xff]
  %v92 = vld [vmem:[%s1 + $0x180] sm:$0xff]
  %v93 = vld [vmem:[%s1 + $0x188] sm:$0xff]
  %v94 = vld [vmem:[%s1 + $0x190] sm:$0xff]
  %v95 = vld [vmem:[%s1 + $0x198] sm:$0xff]
  %v96 = vld [vmem:[%s1 + $0x1a0] sm:$0xff]
  %v97 = vld [vmem:[%s1 + $0x1a8] sm:$0xff]
  %v98 = vld [vmem:[%s1 + $0x1b0] sm:$0xff]
  %v99 = vld [vmem:[%s1 + $0x1b8] sm:$0xff]
  %v100 = vld [vmem:[%s1 + $0x1c0] sm:$0xff]
  %v101 = vld [vmem:[%s1 + $0x1c8] sm:$0xff]
  %v102 = vld [vmem:[%s1 + $0x1d0] sm:$0xff]
  %v103 = vld [vmem:[%s1 + $0x1d8] sm:$0xff]
  %v104 = vld [vmem:[%s1 + $0x1e0] sm:$0xff]
  %v105 = vld [vmem:[%s1 + $0x1e8] sm:$0xff]
  %v106 = vld [vmem:[%s1 + $0x1f0] sm:$0xff]
  %v107 = vld [vmem:[%s1 + $0x1f8] sm:$0xff]
  %v108 = vld [vmem:[%s1 + $0x200] sm:$0xff]
  %v109 = vld [vmem:[%s1 + $0x208] sm:$0xff]
  %v110 = vld [vmem:[%s1 + $0x210] sm:$0xff]
  %v111 = vld [vmem:[%s1 + $0x218] sm:$0xff]
  %v112 = vld [vmem:[%s1 + $0x220] sm:$0xff]
  %v113 = vld [vmem:[%s1 + $0x228] sm:$0xff]
  %v114 = vld [vmem:[%s1 + $0x230] sm:$0xff]
  %v115 = vld [vmem:[%s1 + $0x238] sm:$0xff]
  %v116 = vld [vmem:[%s1 + $0x240] sm:$0xff]
  %v117 = vld [vmem:[%s1 + $0x248] sm:$0xff]
  %v118 = vld [vmem:[%s1 + $0x250] sm:$0xff]
  %v119 = vld [vmem:[%s1 + $0x258] sm:$0xff]
  %v120 = vld [vmem:[%s1 + $0x260] sm:$0xff]
  %v121 = vld [vmem:[%s1 + $0x268] sm:$0xff]
  %v122 = vld [vmem:[%s1 + $0x270] sm:$0xff]
  %v123 = vld [vmem:[%s1 + $0x278] sm:$0xff]
  %v124 = vld [vmem:[%s1 + $0x280] sm:$0xff]
  %v125 = vld [vmem:[%s1 + $0x288] sm:$0xff]
  %v126 = vld [vmem:[%s1 + $0x290] sm:$0xff]
  %v127 = vld [vmem:[%s1 + $0x298] sm:$0xff]
  %v128 = vld [vmem:[%s1 + $0x2a0] sm:$0xff]
  %v129 = vld [vmem:[%s1 + $0x2a8] sm:$0xff]
  %v130 = vld [vmem:[%s1 + $0x2b0] sm:$0xff]
  %v131 = vld [vmem:[%s1 + $0x2b8] sm:$0xff]
  %v132 = vld [vmem:[%s1 + $0x2c0] sm:$0xff]
  %v133 = vld [vmem:[%s1 + $0x2c8] sm:$0xff]
  %v134 = vld [vmem:[%s1 + $0x2d0] sm:$0xff]
  %v135 = vld [vmem:[%s1 + $0x2d8] sm:$0xff]
  %v136 = vld [vmem:[%s1 + $0x2e0] sm:$0xff]
  %v137 = vld [vmem:[%s1 + $0x2e8] sm:$0xff]
  %v138 = vld [vmem:[%s1 + $0x2f0] sm:$0xff]
  %v139 = vld [vmem:[%s1 + $0x2f8] sm:$0xff]
  %v142 = vunpack.c.l.b16 %v42
  %v143 = vunpack.c.h.b16 %v42
  %v144 = vunpack.c.l.b16 %v43
  %v145 = vunpack.c.h.b16 %v43
  %v146 = vpack.c.b16 %v144, %v142
  %v147 = vpack.c.b16 %v145, %v143
  %v246 = vunpack.c.l.b16 %v44
  %v247 = vunpack.c.h.b16 %v44
  %v248 = vunpack.c.l.b16 %v45
  %v249 = vunpack.c.h.b16 %v45
  %v250 = vunpack.c.l.b16 %v46
  %v251 = vunpack.c.h.b16 %v46
  %v252 = vunpack.c.l.b16 %v47
  %v253 = vunpack.c.h.b16 %v47
  %v254 = vunpack.c.l.b16 %v48
  %v255 = vunpack.c.h.b16 %v48
  %v256 = vunpack.c.l.b16 %v49
  %v257 = vunpack.c.h.b16 %v49
  %v258 = vunpack.c.l.b16 %v50
  %v259 = vunpack.c.h.b16 %v50
  %v260 = vunpack.c.l.b16 %v51
  %v261 = vunpack.c.h.b16 %v51
  %v262 = vunpack.c.l.b16 %v52
  %v263 = vunpack.c.h.b16 %v52
  %v264 = vunpack.c.l.b16 %v53
  %v265 = vunpack.c.h.b16 %v53
  %v266 = vunpack.c.l.b16 %v54
  %v267 = vunpack.c.h.b16 %v54
  %v268 = vunpack.c.l.b16 %v55
  %v269 = vunpack.c.h.b16 %v55
  %v270 = vunpack.c.l.b16 %v56
  %v271 = vunpack.c.h.b16 %v56
  %v272 = vunpack.c.l.b16 %v57
  %v273 = vunpack.c.h.b16 %v57
  %v274 = vunpack.c.l.b16 %v58
  %v275 = vunpack.c.h.b16 %v58
  %v276 = vunpack.c.l.b16 %v59
  %v277 = vunpack.c.h.b16 %v59
  %v278 = vunpack.c.l.b16 %v60
  %v279 = vunpack.c.h.b16 %v60
  %v280 = vunpack.c.l.b16 %v61
  %v281 = vunpack.c.h.b16 %v61
  %v282 = vunpack.c.l.b16 %v62
  %v283 = vunpack.c.h.b16 %v62
  %v284 = vunpack.c.l.b16 %v63
  %v285 = vunpack.c.h.b16 %v63
  %v286 = vunpack.c.l.b16 %v64
  %v287 = vunpack.c.h.b16 %v64
  %v288 = vunpack.c.l.b16 %v65
  %v289 = vunpack.c.h.b16 %v65
  %v290 = vunpack.c.l.b16 %v66
  %v291 = vunpack.c.h.b16 %v66
  %v292 = vunpack.c.l.b16 %v67
  %v293 = vunpack.c.h.b16 %v67
  %v294 = vunpack.c.l.b16 %v68
  %v295 = vunpack.c.h.b16 %v68
  %v296 = vunpack.c.l.b16 %v69
  %v297 = vunpack.c.h.b16 %v69
  %v298 = vunpack.c.l.b16 %v70
  %v299 = vunpack.c.h.b16 %v70
  %v300 = vunpack.c.l.b16 %v71
  %v301 = vunpack.c.h.b16 %v71
  %v302 = vunpack.c.l.b16 %v72
  %v303 = vunpack.c.h.b16 %v72
  %v304 = vunpack.c.l.b16 %v73
  %v305 = vunpack.c.h.b16 %v73
  %v306 = vunpack.c.l.b16 %v74
  %v307 = vunpack.c.h.b16 %v74
  %v308 = vunpack.c.l.b16 %v75
  %v309 = vunpack.c.h.b16 %v75
  %v310 = vunpack.c.l.b16 %v76
  %v311 = vunpack.c.h.b16 %v76
  %v312 = vunpack.c.l.b16 %v77
  %v313 = vunpack.c.h.b16 %v77
  %v314 = vunpack.c.l.b16 %v78
  %v315 = vunpack.c.h.b16 %v78
  %v316 = vunpack.c.l.b16 %v79
  %v317 = vunpack.c.h.b16 %v79
  %v318 = vunpack.c.l.b16 %v80
  %v319 = vunpack.c.h.b16 %v80
  %v320 = vunpack.c.l.b16 %v81
  %v321 = vunpack.c.h.b16 %v81
  %v322 = vunpack.c.l.b16 %v82
  %v323 = vunpack.c.h.b16 %v82
  %v324 = vunpack.c.l.b16 %v83
  %v325 = vunpack.c.h.b16 %v83
  %v326 = vunpack.c.l.b16 %v84
  %v327 = vunpack.c.h.b16 %v84
  %v328 = vunpack.c.l.b16 %v85
  %v329 = vunpack.c.h.b16 %v85
  %v330 = vunpack.c.l.b16 %v86
  %v331 = vunpack.c.h.b16 %v86
  %v332 = vunpack.c.l.b16 %v87
  %v333 = vunpack.c.h.b16 %v87
  %v334 = vunpack.c.l.b16 %v88
  %v335 = vunpack.c.h.b16 %v88
  %v336 = vunpack.c.l.b16 %v89
  %v337 = vunpack.c.h.b16 %v89
  %v338 = vunpack.c.l.b16 %v90
  %v339 = vunpack.c.h.b16 %v90
  %v340 = vunpack.c.l.b16 %v91
  %v341 = vunpack.c.h.b16 %v91
  %v342 = vunpack.c.l.b16 %v92
  %v343 = vunpack.c.h.b16 %v92
  %v344 = vunpack.c.l.b16 %v93
  %v345 = vunpack.c.h.b16 %v93
  %v346 = vunpack.c.l.b16 %v94
  %v347 = vunpack.c.h.b16 %v94
  %v348 = vunpack.c.l.b16 %v95
  %v349 = vunpack.c.h.b16 %v95
  %v350 = vunpack.c.l.b16 %v96
  %v351 = vunpack.c.h.b16 %v96
  %v352 = vunpack.c.l.b16 %v97
  %v353 = vunpack.c.h.b16 %v97
  %v354 = vunpack.c.l.b16 %v98
  %v355 = vunpack.c.h.b16 %v98
  %v356 = vunpack.c.l.b16 %v99
  %v357 = vunpack.c.h.b16 %v99
  %v358 = vunpack.c.l.b16 %v100
  %v359 = vunpack.c.h.b16 %v100
  %v360 = vunpack.c.l.b16 %v101
  %v361 = vunpack.c.h.b16 %v101
  %v362 = vunpack.c.l.b16 %v102
  %v363 = vunpack.c.h.b16 %v102
  %v364 = vunpack.c.l.b16 %v103
  %v365 = vunpack.c.h.b16 %v103
  %v366 = vunpack.c.l.b16 %v104
  %v367 = vunpack.c.h.b16 %v104
  %v368 = vunpack.c.l.b16 %v105
  %v369 = vunpack.c.h.b16 %v105
  %v370 = vunpack.c.l.b16 %v106
  %v371 = vunpack.c.h.b16 %v106
  %v372 = vunpack.c.l.b16 %v107
  %v373 = vunpack.c.h.b16 %v107
  %v374 = vunpack.c.l.b16 %v108
  %v375 = vunpack.c.h.b16 %v108
  %v376 = vunpack.c.l.b16 %v109
  %v377 = vunpack.c.h.b16 %v109
  %v378 = vunpack.c.l.b16 %v110
  %v379 = vunpack.c.h.b16 %v110
  %v380 = vunpack.c.l.b16 %v111
  %v381 = vunpack.c.h.b16 %v111
  %v382 = vunpack.c.l.b16 %v112
  %v383 = vunpack.c.h.b16 %v112
  %v384 = vunpack.c.l.b16 %v113
  %v385 = vunpack.c.h.b16 %v113
  %v386 = vunpack.c.l.b16 %v114
  %v387 = vunpack.c.h.b16 %v114
  %v388 = vunpack.c.l.b16 %v115
  %v389 = vunpack.c.h.b16 %v115
  %v390 = vunpack.c.l.b16 %v116
  %v391 = vunpack.c.h.b16 %v116
  %v392 = vunpack.c.l.b16 %v117
  %v393 = vunpack.c.h.b16 %v117
  %v394 = vunpack.c.l.b16 %v118
  %v395 = vunpack.c.h.b16 %v118
  %v396 = vunpack.c.l.b16 %v119
  %v397 = vunpack.c.h.b16 %v119
  %v398 = vunpack.c.l.b16 %v120
  %v399 = vunpack.c.h.b16 %v120
  %v400 = vunpack.c.l.b16 %v121
  %v401 = vunpack.c.h.b16 %v121
  %v402 = vunpack.c.l.b16 %v122
  %v403 = vunpack.c.h.b16 %v122
  %v404 = vunpack.c.l.b16 %v123
  %v405 = vunpack.c.h.b16 %v123
  %v406 = vunpack.c.l.b16 %v124
  %v407 = vunpack.c.h.b16 %v124
  %v408 = vunpack.c.l.b16 %v125
  %v409 = vunpack.c.h.b16 %v125
  %v410 = vunpack.c.l.b16 %v126
  %v411 = vunpack.c.h.b16 %v126
  %v412 = vunpack.c.l.b16 %v127
  %v413 = vunpack.c.h.b16 %v127
  %v414 = vunpack.c.l.b16 %v128
  %v415 = vunpack.c.h.b16 %v128
  %v416 = vunpack.c.l.b16 %v129
  %v417 = vunpack.c.h.b16 %v129
  %v418 = vunpack.c.l.b16 %v130
  %v419 = vunpack.c.h.b16 %v130
  %v420 = vunpack.c.l.b16 %v131
  %v421 = vunpack.c.h.b16 %v131
  %v422 = vunpack.c.l.b16 %v132
  %v423 = vunpack.c.h.b16 %v132
  %v424 = vunpack.c.l.b16 %v133
  %v425 = vunpack.c.h.b16 %v133
  %v426 = vunpack.c.l.b16 %v134
  %v427 = vunpack.c.h.b16 %v134
  %v428 = vunpack.c.l.b16 %v135
  %v429 = vunpack.c.h.b16 %v135
  %v430 = vunpack.c.l.b16 %v136
  %v431 = vunpack.c.h.b16 %v136
  %v432 = vunpack.c.l.b16 %v137
  %v433 = vunpack.c.h.b16 %v137
  %v434 = vunpack.c.l.b16 %v138
  %v435 = vunpack.c.h.b16 %v138
  %v436 = vunpack.c.l.b16 %v139
  %v437 = vunpack.c.h.b16 %v139
  %v438 = vpack.c.b16 %v252, %v246
  %v439 = vpack.c.b16 %v253, %v247
  %v440 = vpack.c.b16 %v254, %v248
  %v441 = vpack.c.b16 %v255, %v249
  %v442 = vpack.c.b16 %v256, %v250
  %v443 = vpack.c.b16 %v257, %v251
  %v444 = vpack.c.b16 %v264, %v258
  %v445 = vpack.c.b16 %v265, %v259
  %v446 = vpack.c.b16 %v266, %v260
  %v447 = vpack.c.b16 %v267, %v261
  %v448 = vpack.c.b16 %v268, %v262
  %v449 = vpack.c.b16 %v269, %v263
  %v450 = vpack.c.b16 %v276, %v270
  %v451 = vpack.c.b16 %v277, %v271
  %v452 = vpack.c.b16 %v278, %v272
  %v453 = vpack.c.b16 %v279, %v273
  %v454 = vpack.c.b16 %v280, %v274
  %v455 = vpack.c.b16 %v281, %v275
  %v456 = vpack.c.b16 %v288, %v282
  %v457 = vpack.c.b16 %v289, %v283
  %v458 = vpack.c.b16 %v290, %v284
  %v459 = vpack.c.b16 %v291, %v285
  %v460 = vpack.c.b16 %v292, %v286
  %v461 = vpack.c.b16 %v293, %v287
  %v462 = vpack.c.b16 %v300, %v294
  %v463 = vpack.c.b16 %v301, %v295
  %v464 = vpack.c.b16 %v302, %v296
  %v465 = vpack.c.b16 %v303, %v297
  %v466 = vpack.c.b16 %v304, %v298
  %v467 = vpack.c.b16 %v305, %v299
  %v468 = vpack.c.b16 %v312, %v306
  %v469 = vpack.c.b16 %v313, %v307
  %v470 = vpack.c.b16 %v314, %v308
  %v471 = vpack.c.b16 %v315, %v309
  %v472 = vpack.c.b16 %v316, %v310
  %v473 = vpack.c.b16 %v317, %v311
  %v474 = vpack.c.b16 %v324, %v318
  %v475 = vpack.c.b16 %v325, %v319
  %v476 = vpack.c.b16 %v326, %v320
  %v477 = vpack.c.b16 %v327, %v321
  %v478 = vpack.c.b16 %v328, %v322
  %v479 = vpack.c.b16 %v329, %v323
  %v480 = vpack.c.b16 %v336, %v330
  %v481 = vpack.c.b16 %v337, %v331
  %v482 = vpack.c.b16 %v338, %v332
  %v483 = vpack.c.b16 %v339, %v333
  %v484 = vpack.c.b16 %v340, %v334
  %v485 = vpack.c.b16 %v341, %v335
  %v486 = vpack.c.b16 %v348, %v342
  %v487 = vpack.c.b16 %v349, %v343
  %v488 = vpack.c.b16 %v350, %v344
  %v489 = vpack.c.b16 %v351, %v345
  %v490 = vpack.c.b16 %v352, %v346
  %v491 = vpack.c.b16 %v353, %v347
  %v492 = vpack.c.b16 %v360, %v354
  %v493 = vpack.c.b16 %v361, %v355
  %v494 = vpack.c.b16 %v362, %v356
  %v495 = vpack.c.b16 %v363, %v357
  %v496 = vpack.c.b16 %v364, %v358
  %v497 = vpack.c.b16 %v365, %v359
  %v498 = vpack.c.b16 %v372, %v366
  %v499 = vpack.c.b16 %v373, %v367
  %v500 = vpack.c.b16 %v374, %v368
  %v501 = vpack.c.b16 %v375, %v369
  %v502 = vpack.c.b16 %v376, %v370
  %v503 = vpack.c.b16 %v377, %v371
  %v504 = vpack.c.b16 %v384, %v378
  %v505 = vpack.c.b16 %v385, %v379
  %v506 = vpack.c.b16 %v386, %v380
  %v507 = vpack.c.b16 %v387, %v381
  %v508 = vpack.c.b16 %v388, %v382
  %v509 = vpack.c.b16 %v389, %v383
  %v510 = vpack.c.b16 %v396, %v390
  %v511 = vpack.c.b16 %v397, %v391
  %v512 = vpack.c.b16 %v398, %v392
  %v513 = vpack.c.b16 %v399, %v393
  %v514 = vpack.c.b16 %v400, %v394
  %v515 = vpack.c.b16 %v401, %v395
  %v516 = vpack.c.b16 %v408, %v402
  %v517 = vpack.c.b16 %v409, %v403
  %v518 = vpack.c.b16 %v410, %v404
  %v519 = vpack.c.b16 %v411, %v405
  %v520 = vpack.c.b16 %v412, %v406
  %v521 = vpack.c.b16 %v413, %v407
  %v522 = vpack.c.b16 %v420, %v414
  %v523 = vpack.c.b16 %v421, %v415
  %v524 = vpack.c.b16 %v422, %v416
  %v525 = vpack.c.b16 %v423, %v417
  %v526 = vpack.c.b16 %v424, %v418
  %v527 = vpack.c.b16 %v425, %v419
  %v528 = vpack.c.b16 %v432, %v426
  %v529 = vpack.c.b16 %v433, %v427
  %v530 = vpack.c.b16 %v434, %v428
  %v531 = vpack.c.b16 %v435, %v429
  %v532 = vpack.c.b16 %v436, %v430
  %v533 = vpack.c.b16 %v437, %v431
  %630 = vmatprep.subr.bf16.mxu0 %v439
  %631 = vmatpush1.bf16.msra.mxu0 %v438
  %632 = vmatprep.subr.bf16.mxu0 %v445
  %633 = vmatpush1.bf16.msra.mxu0 %v444
  %634 = vmatprep.subr.bf16.mxu0 %v451
  %635 = vmatpush1.bf16.msra.mxu0 %v450
  %636 = vmatprep.subr.bf16.mxu0 %v457
  %637 = vmatpush1.bf16.msra.mxu0 %v456
  %638 = vmatprep.subr.bf16.mxu0 %v463
  %639 = vmatpush1.bf16.msra.mxu0 %v462
  %640 = vmatprep.subr.bf16.mxu0 %v469
  %641 = vmatpush1.bf16.msra.mxu0 %v468
  %642 = vmatprep.subr.bf16.mxu0 %v475
  %643 = vmatpush1.bf16.msra.mxu0 %v474
  %644 = vmatprep.subr.bf16.mxu0 %v481
  %645 = vmatpush1.bf16.msra.mxu0 %v480
  %646 = vmatprep.subr.bf16.mxu0 %v487
  %647 = vmatpush1.bf16.msra.mxu0 %v486
  %648 = vmatprep.subr.bf16.mxu0 %v493
  %649 = vmatpush1.bf16.msra.mxu0 %v492
  %650 = vmatprep.subr.bf16.mxu0 %v499
  %651 = vmatpush1.bf16.msra.mxu0 %v498
  %652 = vmatprep.subr.bf16.mxu0 %v505
  %653 = vmatpush1.bf16.msra.mxu0 %v504
  %654 = vmatprep.subr.bf16.mxu0 %v511
  %655 = vmatpush1.bf16.msra.mxu0 %v510
  %656 = vmatprep.subr.bf16.mxu0 %v517
  %657 = vmatpush1.bf16.msra.mxu0 %v516
  %658 = vmatprep.subr.bf16.mxu0 %v523
  %659 = vmatpush1.bf16.msra.mxu0 %v522
  %660 = vmatprep.subr.bf16.mxu0 %v529
  %661 = vmatpush1.bf16.msra.mxu0 %v528
  %662 = vmatprep.mubr.bf16.mxu0 %v147
  %663 = vmatmul.mubr.bf16.gmra.mrb[0].mxu0 %v146
  %v664 = vpop.f32.mrb[0].mxu0
  %v665 = vadd.f32 0.0, %v664
  %v666 = vpop.f32.mrb[0].mxu0
  %v667 = vadd.f32 0.0, %v666
  %v668 = vpop.f32.mrb[0].mxu0
  %v669 = vadd.f32 0.0, %v668
  %v670 = vpop.f32.mrb[0].mxu0
  %v671 = vadd.f32 0.0, %v670
  %672 = vdwg.mxu0
  %673 = vmatprep.subr.bf16.mxu0 %v441
  %674 = vmatpush1.bf16.msra.mxu0 %v440
  %675 = vmatprep.subr.bf16.mxu0 %v447
  %676 = vmatpush1.bf16.msra.mxu0 %v446
  %677 = vmatprep.subr.bf16.mxu0 %v453
  %678 = vmatpush1.bf16.msra.mxu0 %v452
  %679 = vmatprep.subr.bf16.mxu0 %v459
  %680 = vmatpush1.bf16.msra.mxu0 %v458
  %681 = vmatprep.subr.bf16.mxu0 %v465
  %682 = vmatpush1.bf16.msra.mxu0 %v464
  %683 = vmatprep.subr.bf16.mxu0 %v471
  %684 = vmatpush1.bf16.msra.mxu0 %v470
  %685 = vmatprep.subr.bf16.mxu0 %v477
  %686 = vmatpush1.bf16.msra.mxu0 %v476
  %687 = vmatprep.subr.bf16.mxu0 %v483
  %688 = vmatpush1.bf16.msra.mxu0 %v482
  %689 = vmatprep.subr.bf16.mxu0 %v489
  %690 = vmatpush1.bf16.msra.mxu0 %v488
  %691 = vmatprep.subr.bf16.mxu0 %v495
  %692 = vmatpush1.bf16.msra.mxu0 %v494
  %693 = vmatprep.subr.bf16.mxu0 %v501
  %694 = vmatpush1.bf16.msra.mxu0 %v500
  %695 = vmatprep.subr.bf16.mxu0 %v507
  %696 = vmatpush1.bf16.msra.mxu0 %v506
  %697 = vmatprep.subr.bf16.mxu0 %v513
  %698 = vmatpush1.bf16.msra.mxu0 %v512
  %699 = vmatprep.subr.bf16.mxu0 %v519
  %700 = vmatpush1.bf16.msra.mxu0 %v518
  %701 = vmatprep.subr.bf16.mxu0 %v525
  %702 = vmatpush1.bf16.msra.mxu0 %v524
  %703 = vmatprep.subr.bf16.mxu0 %v531
  %704 = vmatpush1.bf16.msra.mxu0 %v530
  %705 = vmatprep.mubr.bf16.mxu0 %v147
  %706 = vmatmul.mubr.bf16.gmra.mrb[0].mxu0 %v146
  %v707 = vpop.f32.mrb[0].mxu0
  %v708 = vadd.f32 0.0, %v707
  %v709 = vpop.f32.mrb[0].mxu0
  %v710 = vadd.f32 0.0, %v709
  %v711 = vpop.f32.mrb[0].mxu0
  %v712 = vadd.f32 0.0, %v711
  %v713 = vpop.f32.mrb[0].mxu0
  %v714 = vadd.f32 0.0, %v713
  %715 = vdwg.mxu0
  %716 = vmatprep.subr.bf16.mxu0 %v443
  %717 = vmatpush1.bf16.msra.mxu0 %v442
  %718 = vmatprep.subr.bf16.mxu0 %v449
  %719 = vmatpush1.bf16.msra.mxu0 %v448
  %720 = vmatprep.subr.bf16.mxu0 %v455
  %721 = vmatpush1.bf16.msra.mxu0 %v454
  %722 = vmatprep.subr.bf16.mxu0 %v461
  %723 = vmatpush1.bf16.msra.mxu0 %v460
  %724 = vmatprep.subr.bf16.mxu0 %v467
  %725 = vmatpush1.bf16.msra.mxu0 %v466
  %726 = vmatprep.subr.bf16.mxu0 %v473
  %727 = vmatpush1.bf16.msra.mxu0 %v472
  %728 = vmatprep.subr.bf16.mxu0 %v479
  %729 = vmatpush1.bf16.msra.mxu0 %v478
  %730 = vmatprep.subr.bf16.mxu0 %v485
  %731 = vmatpush1.bf16.msra.mxu0 %v484
  %732 = vmatprep.subr.bf16.mxu0 %v491
  %733 = vmatpush1.bf16.msra.mxu0 %v490
  %734 = vmatprep.subr.bf16.mxu0 %v497
  %735 = vmatpush1.bf16.msra.mxu0 %v496
  %736 = vmatprep.subr.bf16.mxu0 %v503
  %737 = vmatpush1.bf16.msra.mxu0 %v502
  %738 = vmatprep.subr.bf16.mxu0 %v509
  %739 = vmatpush1.bf16.msra.mxu0 %v508
  %740 = vmatprep.subr.bf16.mxu0 %v515
  %741 = vmatpush1.bf16.msra.mxu0 %v514
  %742 = vmatprep.subr.bf16.mxu0 %v521
  %743 = vmatpush1.bf16.msra.mxu0 %v520
  %744 = vmatprep.subr.bf16.mxu0 %v527
  %745 = vmatpush1.bf16.msra.mxu0 %v526
  %746 = vmatprep.subr.bf16.mxu0 %v533
  %747 = vmatpush1.bf16.msra.mxu0 %v532
  %748 = vmatprep.mubr.bf16.mxu0 %v147
  %749 = vmatmul.mubr.bf16.gmra.mrb[0].mxu0 %v146
  %v750 = vpop.f32.mrb[0].mxu0
  %v751 = vadd.f32 0.0, %v750
  %v752 = vpop.f32.mrb[0].mxu0
  %v753 = vadd.f32 0.0, %v752
  %v754 = vpop.f32.mrb[0].mxu0
  %v755 = vadd.f32 0.0, %v754
  %v756 = vpop.f32.mrb[0].mxu0
  %v757 = vadd.f32 0.0, %v756
  %758 = vdwg.mxu0
  %v759 = vadd.f32 %v30, %v665
  %v760 = vadd.f32 %v31, %v667
  %v761 = vadd.f32 %v32, %v708
  %v762 = vadd.f32 %v33, %v710
  %v763 = vadd.f32 %v34, %v751
  %v764 = vadd.f32 %v35, %v753
  %v765 = vadd.f32 %v36, %v669
  %v766 = vadd.f32 %v37, %v671
  %v767 = vadd.f32 %v38, %v712
  %v768 = vadd.f32 %v39, %v714
  %v769 = vadd.f32 %v40, %v755
  %v770 = vadd.f32 %v41, %v757
  %771 = vst [vmem:[#allocation2] sm:$0xff] %v759
  %772 = vst [vmem:[#allocation2 + $0x8] sm:$0xff] %v760
  %773 = vst [vmem:[#allocation2 + $0x10] sm:$0xff] %v761
  %774 = vst [vmem:[#allocation2 + $0x18] sm:$0xff] %v762
  %775 = vst [vmem:[#allocation2 + $0x20] sm:$0xff] %v763
  %776 = vst [vmem:[#allocation2 + $0x28] sm:$0xff] %v764
  %777 = vst [vmem:[#allocation2 + $0x30] sm:$0xff] %v765
  %778 = vst [vmem:[#allocation2 + $0x38] sm:$0xff] %v766
  %779 = vst [vmem:[#allocation2 + $0x40] sm:$0xff] %v767
  %780 = vst [vmem:[#allocation2 + $0x48] sm:$0xff] %v768
  %781 = vst [vmem:[#allocation2 + $0x50] sm:$0xff] %v769
  %782 = vst [vmem:[#allocation2 + $0x58] sm:$0xff] %v770
  // Predicated region
  $region18: #{bert_sentiment_forward.17} parent=0 // pred_check
    %p783 = pneg %p14
  $region19: #{bert_sentiment_forward.17} parent=0 // pred_check_branch
    %785 = sbr.rel (%p783) target = $region21
  $region20: #{bert_sentiment_forward.17} parent=0 // pred_region
    %v786 = vld [vmem:[#allocation2] sm:$0xff]
    %v787 = vld [vmem:[#allocation2 + $0x8] sm:$0xff]
    %v788 = vld [vmem:[#allocation2 + $0x10] sm:$0xff]
    %v789 = vld [vmem:[#allocation2 + $0x18] sm:$0xff]
    %v790 = vld [vmem:[#allocation2 + $0x20] sm:$0xff]
    %v791 = vld [vmem:[#allocation2 + $0x28] sm:$0xff]
    %v792 = vld [vmem:[#allocation2 + $0x30] sm:$0xff]
    %v793 = vld [vmem:[#allocation2 + $0x38] sm:$0xff]
    %v794 = vld [vmem:[#allocation2 + $0x40] sm:$0xff]
    %v795 = vld [vmem:[#allocation2 + $0x48] sm:$0xff]
    %v796 = vld [vmem:[#allocation2 + $0x50] sm:$0xff]
    %v797 = vld [vmem:[#allocation2 + $0x58] sm:$0xff]
    %v798 = vld [vmem:[%s2] sm:$0x3f]
    %v800 = vlaneseq
    %v801 = vshrl.u32 %v800, 7
    %v802 = vsub.s32 0, %v801
    %v803 = vrot.slane %v798, %v802
    %v804 = vlaneseq
    %v805 = vshrl.u32 %v804, 7
    %v806 = vsub.s32 1, %v805
    %v807 = vrot.slane %v798, %v806
    %v808 = vlaneseq
    %v809 = vshrl.u32 %v808, 7
    %v810 = vsub.s32 2, %v809
    %v811 = vrot.slane %v798, %v810
    %v812 = vlaneseq
    %v813 = vshrl.u32 %v812, 7
    %v814 = vsub.s32 3, %v813
    %v815 = vrot.slane %v798, %v814
    %v816 = vlaneseq
    %v817 = vshrl.u32 %v816, 7
    %v818 = vsub.s32 4, %v817
    %v819 = vrot.slane %v798, %v818
    %v820 = vlaneseq
    %v821 = vshrl.u32 %v820, 7
    %v822 = vsub.s32 5, %v821
    %v823 = vrot.slane %v798, %v822
    %v830 = vadd.f32 %v786, %v803
    %v831 = vadd.f32 %v787, %v807
    %v832 = vadd.f32 %v788, %v811
    %v833 = vadd.f32 %v789, %v815
    %v834 = vadd.f32 %v790, %v819
    %v835 = vadd.f32 %v791, %v823
    %v836 = vadd.f32 %v792, %v803
    %v837 = vadd.f32 %v793, %v807
    %v838 = vadd.f32 %v794, %v811
    %v839 = vadd.f32 %v795, %v815
    %v840 = vadd.f32 %v796, %v819
    %v841 = vadd.f32 %v797, %v823
    %v842 = vpack.c.bf16 %v836, %v830
    %v843 = vpack.c.bf16 %v837, %v831
    %v844 = vpack.c.bf16 %v838, %v832
    %v845 = vpack.c.bf16 %v839, %v833
    %v846 = vpack.c.bf16 %v840, %v834
    %v847 = vpack.c.bf16 %v841, %v835
    %v854 = vunpack.c.l.b16 %v842
    %v855 = vunpack.c.l.b16 %v843
    %v856 = vunpack.c.l.b16 %v844
    %v857 = vunpack.c.l.b16 %v845
    %v858 = vunpack.c.l.b16 %v846
    %v859 = vunpack.c.l.b16 %v847
    %v860 = vunpack.c.h.b16 %v842
    %v861 = vunpack.c.h.b16 %v843
    %v862 = vunpack.c.h.b16 %v844
    %v863 = vunpack.c.h.b16 %v845
    %v864 = vunpack.c.h.b16 %v846
    %v865 = vunpack.c.h.b16 %v847
    %v866 = vpack.c.b16 %v855, %v854
    %v867 = vpack.c.b16 %v857, %v856
    %v868 = vpack.c.b16 %v859, %v858
    %v869 = vpack.c.b16 %v861, %v860
    %v870 = vpack.c.b16 %v863, %v862
    %v871 = vpack.c.b16 %v865, %v864
    %878 = vst [vmem:[%s3] sm:$0xff] %v866
    %879 = vst [vmem:[%s3 + $0x8] sm:$0xff] %v867
    %880 = vst [vmem:[%s3 + $0x10] sm:$0xff] %v868
    %881 = vst [vmem:[%s3 + $0x18] sm:$0xff] %v869
    %882 = vst [vmem:[%s3 + $0x20] sm:$0xff] %v870
    %883 = vst [vmem:[%s3 + $0x28] sm:$0xff] %v871
  $region21: #{bert_sentiment_forward.17} parent=0 // pred_fallthru
    _
  // Predicated region
  $region22: #{bert_sentiment_forward.17} parent=0 // pred_check
    _
  $region23: #{bert_sentiment_forward.17} parent=0 // pred_check_branch
    %885 = sbr.rel (0) target = $region25
  $region24: #{bert_sentiment_forward.17} parent=0 // pred_region
    _
  $region25: #{bert_sentiment_forward.17} parent=0 // pred_fallthru
    _
  // Predicated region
  $region26: #{bert_sentiment_forward.17} parent=0 // pred_check
    _
  $region27: #{bert_sentiment_forward.17} parent=0 // pred_check_branch
    %887 = sbr.rel (0) target = $region29
  $region28: #{bert_sentiment_forward.17} parent=0 // pred_region
    _
  $region29: #{bert_sentiment_forward.17} parent=0 // pred_fallthru
    _

// kernel: bert_sentiment_forward.13
$region0: #{bert_sentiment_forward.13}
  #allocation0 [shape = 'u32[]', space=smem, size = 0x4, offset = 0x4, fixed_abs, tag = 'smem constant byte address 0x4 - core index']
  #allocation1 [shape = 'u32[144,128]{1,0:T(1,128)}', space=vmem, size = 0x12000, scoped, tag = 'internal scratch']
  %s0 = inlined_call_operand.vmem [shape: f32[2,1,8], index: 0, kind: input, shape index: {}]
  %s1 = inlined_call_operand.vmem [shape: bf16[2,8,768], index: 1, kind: input, shape index: {}, may-alias: {1,2,3}]
  %s2 = inlined_call_operand.vmem [shape: bf16[2,8,768], index: 2, kind: input, shape index: {}, may-alias: {1,2,3}]
  %s3 = inlined_call_operand.vmem [shape: bf16[2,8,768], index: 3, kind: input, shape index: {}, may-alias: {1,2,3}]
  %s4 = inlined_call_operand.vmem [shape: bf16[2,8,256], index: 4, kind: output, shape index: {}]
  %s5 = sld [smem:[#allocation0]]
  $region49: #{bert_sentiment_forward.13} parent=0
    _
  %s7 = ssub.s32 1, %s5
  %s8 = scalar_select 0, %s7, %s5
  loop: start=0, step=1, limit=4
  $region2: #{bert_sentiment_forward.13} parent=0 // loop_pre_header
    _
  $region3: #{bert_sentiment_forward.13} parent=0 // loop_header
    %s10 = sphi 0, %s14
    %p11 = scmp.ge.s32.totalorder %s10, 4
    %s20 = sphi 0, %s22
    %s23 = sphi 0, %s20
    %s24 = sphi 0, %s23
    %s40 = sphi 0, %s24
    %s46 = sphi 0, %s48
    %s49 = sphi 0, %s46
    %s50 = sphi 0, %s49
    %s66 = sphi 0, %s50
    %s72 = sphi 0, %s74
    %s75 = sphi 0, %s72
    %s76 = sphi 0, %s75
    %s92 = sphi 0, %s76
    %s98 = sphi 0, %s100
    %s101 = sphi 0, %s98
    %s102 = sphi 0, %s101
    %s118 = sphi 0, %s102
    %s124 = sphi 0, %s126
    %s127 = sphi 0, %s124
    %s128 = sphi 0, %s127
    %s144 = sphi 0, %s128
  $region4: #{bert_sentiment_forward.13} parent=0 // loop_header_branch
    %13 = sbr.rel (%p11) target = $region8
  $region5: #{bert_sentiment_forward.13} parent=0 // loop_body
    %s15 = ssub.s32 %s10, 1
    %s16 = ssub.s32 %s10, 2
    %s17 = sadd.s32 %s10, 1
    %s18 = ssub.s32 %s10, %s17
    %p19 = scmp.eq.s32.totalorder %s18, 0
    %s21 = sadd.s32 %s20, 1
    %s22 = scalar_select %p19, %s20, %s21
    %p25 = pneg %p19
    %p26 = scmp.eq.s32.totalorder %s10, 1
    %p27 = por %p25, %p26
    %p28 = scmp.ne.s32.totalorder %s20, %s23
    %p29 = scmp.eq.s32.totalorder %s10, 0
    %p30 = por %p28, %p29
    %p31 = scmp.ne.s32.totalorder %s20, %s23
    %p32 = scmp.eq.s32.totalorder %s15, 1
    %p33 = por %p31, %p32
    %p34 = scmp.ne.s32.totalorder %s23, %s24
    %p35 = scmp.eq.s32.totalorder %s15, 0
    %p36 = por %p34, %p35
    %p37 = scmp.ne.s32.totalorder %s23, %s24
    %p38 = scmp.eq.s32.totalorder %s16, 1
    %p39 = por %p37, %p38
    %p41 = scmp.ne.s32.totalorder %s24, %s40
    %p42 = scmp.eq.s32.totalorder %s16, 0
    %p43 = por %p41, %p42
    %s44 = ssub.s32 %s10, %s17
    %p45 = scmp.eq.s32.totalorder %s44, 0
    %s47 = sadd.s32 %s46, 1
    %s48 = scalar_select %p45, %s46, %s47
    %p51 = pneg %p45
    %p52 = scmp.eq.s32.totalorder %s10, 1
    %p53 = por %p51, %p52
    %p54 = scmp.ne.s32.totalorder %s46, %s49
    %p55 = scmp.eq.s32.totalorder %s10, 0
    %p56 = por %p54, %p55
    %p57 = scmp.ne.s32.totalorder %s46, %s49
    %p58 = scmp.eq.s32.totalorder %s15, 1
    %p59 = por %p57, %p58
    %p60 = scmp.ne.s32.totalorder %s49, %s50
    %p61 = scmp.eq.s32.totalorder %s15, 0
    %p62 = por %p60, %p61
    %p63 = scmp.ne.s32.totalorder %s49, %s50
    %p64 = scmp.eq.s32.totalorder %s16, 1
    %p65 = por %p63, %p64
    %p67 = scmp.ne.s32.totalorder %s50, %s66
    %p68 = scmp.eq.s32.totalorder %s16, 0
    %p69 = por %p67, %p68
    %s70 = ssub.s32 %s10, %s17
    %p71 = scmp.eq.s32.totalorder %s70, 0
    %s73 = sadd.s32 %s72, 1
    %s74 = scalar_select %p71, %s72, %s73
    %p77 = pneg %p71
    %p78 = scmp.eq.s32.totalorder %s10, 1
    %p79 = por %p77, %p78
    %p80 = scmp.ne.s32.totalorder %s72, %s75
    %p81 = scmp.eq.s32.totalorder %s10, 0
    %p82 = por %p80, %p81
    %p83 = scmp.ne.s32.totalorder %s72, %s75
    %p84 = scmp.eq.s32.totalorder %s15, 1
    %p85 = por %p83, %p84
    %p86 = scmp.ne.s32.totalorder %s75, %s76
    %p87 = scmp.eq.s32.totalorder %s15, 0
    %p88 = por %p86, %p87
    %p89 = scmp.ne.s32.totalorder %s75, %s76
    %p90 = scmp.eq.s32.totalorder %s16, 1
    %p91 = por %p89, %p90
    %p93 = scmp.ne.s32.totalorder %s76, %s92
    %p94 = scmp.eq.s32.totalorder %s16, 0
    %p95 = por %p93, %p94
    %s96 = ssub.s32 %s10, %s17
    %p97 = scmp.eq.s32.totalorder %s96, 0
    %s99 = sadd.s32 %s98, 1
    %s100 = scalar_select %p97, %s98, %s99
    %p103 = pneg %p97
    %p104 = scmp.eq.s32.totalorder %s10, 1
    %p105 = por %p103, %p104
    %p106 = scmp.ne.s32.totalorder %s98, %s101
    %p107 = scmp.eq.s32.totalorder %s10, 0
    %p108 = por %p106, %p107
    %p109 = scmp.ne.s32.totalorder %s98, %s101
    %p110 = scmp.eq.s32.totalorder %s15, 1
    %p111 = por %p109, %p110
    %p112 = scmp.ne.s32.totalorder %s101, %s102
    %p113 = scmp.eq.s32.totalorder %s15, 0
    %p114 = por %p112, %p113
    %p115 = scmp.ne.s32.totalorder %s101, %s102
    %p116 = scmp.eq.s32.totalorder %s16, 1
    %p117 = por %p115, %p116
    %p119 = scmp.ne.s32.totalorder %s102, %s118
    %p120 = scmp.eq.s32.totalorder %s16, 0
    %p121 = por %p119, %p120
    %s122 = ssub.s32 %s10, %s17
    %p123 = scmp.eq.s32.totalorder %s122, 0
    %s125 = sadd.s32 %s124, 1
    %s126 = scalar_select %p123, %s124, %s125
    %p129 = pneg %p123
    %p130 = scmp.eq.s32.totalorder %s10, 1
    %p131 = por %p129, %p130
    %p132 = scmp.ne.s32.totalorder %s124, %s127
    %p133 = scmp.eq.s32.totalorder %s10, 0
    %p134 = por %p132, %p133
    %p135 = scmp.ne.s32.totalorder %s124, %s127
    %p136 = scmp.eq.s32.totalorder %s15, 1
    %p137 = por %p135, %p136
    %p138 = scmp.ne.s32.totalorder %s127, %s128
    %p139 = scmp.eq.s32.totalorder %s15, 0
    %p140 = por %p138, %p139
    %p141 = scmp.ne.s32.totalorder %s127, %s128
    %p142 = scmp.eq.s32.totalorder %s16, 1
    %p143 = por %p141, %p142
    %p145 = scmp.ne.s32.totalorder %s128, %s144
    %p146 = scmp.eq.s32.totalorder %s16, 0
    %p147 = por %p145, %p146
    %p148 = scmp.le.s32.totalorder 1, %s10
    %p149 = scmp.lt.s32.totalorder %s10, 3
    %p150 = pnand %p148, %p149
    %p151 = pneg %p150
    // Predicated region
    $region9: #{bert_sentiment_forward.13} parent=5 // pred_check
      _
    $region10: #{bert_sentiment_forward.13} parent=5 // pred_check_branch
      %153 = sbr.rel (%p150) target = $region12
    $region11: #{bert_sentiment_forward.13} parent=5 // pred_region
      %s154 = ssub.s32 %s10, 1
    $region12: #{bert_sentiment_forward.13} parent=5 // pred_fallthru
      _
    %p155 = scmp.lt.s32.totalorder %s10, 2
    // Predicated region
    $region13: #{bert_sentiment_forward.13} parent=5 // pred_check
      %p156 = pneg %p155
    $region14: #{bert_sentiment_forward.13} parent=5 // pred_check_branch
      %158 = sbr.rel (%p156) target = $region16
    $region15: #{bert_sentiment_forward.13} parent=5 // pred_region
      // Predicated region
      $region17: #{bert_sentiment_forward.13} parent=15 // pred_check
        %p159 = pneg %p30
      $region18: #{bert_sentiment_forward.13} parent=15 // pred_check_branch
        %161 = sbr.rel (%p159) target = $region20
      $region19: #{bert_sentiment_forward.13} parent=15 // pred_region
        %p162 = scmp.lt.s32.totalorder %s10, 1
        %s163 = scalar_select %p162, %s10, 1
        %s164 = scalar_lea.vmem %s0, %s163
      $region20: #{bert_sentiment_forward.13} parent=15 // pred_fallthru
        _
      // Predicated region
      $region21: #{bert_sentiment_forward.13} parent=15 // pred_check
        %p165 = pneg %p56
      $region22: #{bert_sentiment_forward.13} parent=15 // pred_check_branch
        %167 = sbr.rel (%p165) target = $region24
      $region23: #{bert_sentiment_forward.13} parent=15 // pred_region
        %p168 = scmp.lt.s32.totalorder %s10, 1
        %s169 = scalar_select %p168, %s10, 1
        %s170 = smul.addr %s169, 6
        %s171 = smul.addr %s170, 4
        %s172 = scalar_lea.vmem %s1, %s171
      $region24: #{bert_sentiment_forward.13} parent=15 // pred_fallthru
        _
      // Predicated region
      $region25: #{bert_sentiment_forward.13} parent=15 // pred_check
        %p173 = pneg %p82
      $region26: #{bert_sentiment_forward.13} parent=15 // pred_check_branch
        %175 = sbr.rel (%p173) target = $region28
      $region27: #{bert_sentiment_forward.13} parent=15 // pred_region
        %p176 = scmp.lt.s32.totalorder %s10, 1
        %s177 = scalar_select %p176, %s10, 1
        %s178 = smul.addr %s177, 6
        %s179 = sadd.s32 2, %s178
        %s180 = smul.addr %s179, 4
        %s181 = scalar_lea.vmem %s2, %s180
      $region28: #{bert_sentiment_forward.13} parent=15 // pred_fallthru
        _
      // Predicated region
      $region29: #{bert_sentiment_forward.13} parent=15 // pred_check
        %p182 = pneg %p108
      $region30: #{bert_sentiment_forward.13} parent=15 // pred_check_branch
        %184 = sbr.rel (%p182) target = $region32
      $region31: #{bert_sentiment_forward.13} parent=15 // pred_region
        %p185 = scmp.lt.s32.totalorder %s10, 1
        %s186 = scalar_select %p185, %s10, 1
        %s187 = smul.addr %s186, 6
        %s188 = sadd.s32 4, %s187
        %s189 = smul.addr %s188, 4
        %s190 = scalar_lea.vmem %s3, %s189
      $region32: #{bert_sentiment_forward.13} parent=15 // pred_fallthru
        _
    $region16: #{bert_sentiment_forward.13} parent=5 // pred_fallthru
      _
    %p191 = scmp.le.s32.totalorder 1, %s10
    %p192 = scmp.lt.s32.totalorder %s10, 3
    %p193 = pnand %p191, %p192
    %p194 = pneg %p193
    // Predicated region
    $region33: #{bert_sentiment_forward.13} parent=5 // pred_check
      _
    $region34: #{bert_sentiment_forward.13} parent=5 // pred_check_branch
      %196 = sbr.rel (%p193) target = $region36
    $region35: #{bert_sentiment_forward.13} parent=5 // pred_region
      %s197 = ssub.s32 %s10, 1
      %p198 = scmp.lt.s32.totalorder %s15, 1
      %s199 = scalar_select %p198, %s15, 1
      %s200 = scalar_lea.vmem %s0, %s199
      %p201 = pneg %p36
      %p202 = pneg %p33
      %p203 = scmp.lt.s32.totalorder %s15, 1
      %s204 = scalar_select %p203, %s15, 1
      %s205 = smul.addr %s204, 6
      %s206 = smul.addr %s205, 4
      %s207 = scalar_lea.vmem %s1, %s206
      %p208 = pneg %p62
      %p209 = pneg %p59
      %p210 = scmp.lt.s32.totalorder %s15, 1
      %s211 = scalar_select %p210, %s15, 1
      %s212 = smul.addr %s211, 6
      %s213 = sadd.s32 2, %s212
      %s214 = smul.addr %s213, 4
      %s215 = scalar_lea.vmem %s2, %s214
      %p216 = pneg %p88
      %p217 = pneg %p85
      %p218 = scmp.lt.s32.totalorder %s15, 1
      %s219 = scalar_select %p218, %s15, 1
      %s220 = smul.addr %s219, 6
      %s221 = sadd.s32 4, %s220
      %s222 = smul.addr %s221, 4
      %s223 = scalar_lea.vmem %s3, %s222
      %p224 = pneg %p114
      %p225 = pneg %p111
      %p226 = pneg %p140
      %p227 = pneg %p137
      %p228 = scmp.lt.s32.totalorder %s15, 1
      %s229 = scalar_select %p228, %s15, 1
      %s230 = smul.addr %s229, 2
      %s231 = smul.addr %s230, 4
      %s232 = scalar_lea.vmem %s4, %s231
      %p233 = scmp.lt.s32.totalorder %s15, 1
      %s234 = scalar_select %p233, %s15, 1
      %s235 = scalar_lea.vmem %s0, %s234
      %p236 = scmp.lt.s32.totalorder %s15, 1
      %s237 = scalar_select %p236, %s15, 1
      %s238 = smul.addr %s237, 6
      %s239 = smul.addr %s238, 4
      %s240 = scalar_lea.vmem %s1, %s239
      %p241 = scmp.lt.s32.totalorder %s15, 1
      %s242 = scalar_select %p241, %s15, 1
      %s243 = smul.addr %s242, 6
      %s244 = sadd.s32 2, %s243
      %s245 = smul.addr %s244, 4
      %s246 = scalar_lea.vmem %s2, %s245
      %p247 = scmp.lt.s32.totalorder %s15, 1
      %s248 = scalar_select %p247, %s15, 1
      %s249 = smul.addr %s248, 6
      %s250 = sadd.s32 4, %s249
      %s251 = smul.addr %s250, 4
      %s252 = scalar_lea.vmem %s3, %s251
      %p253 = scmp.lt.s32.totalorder %s15, 1
      %s254 = scalar_select %p253, %s15, 1
      %s255 = smul.addr %s254, 2
      %s256 = smul.addr %s255, 4
      %s257 = scalar_lea.vmem %s4, %s256
      %v260 = vld [vmem:[%s240] sm:$0xff]
      %v261 = vmul.bf16 %v260, 1040203264
      %v263 = vrot.slane %v261, 4
      %264 = vrot.lane.b32.xlu0 %v261, 64
      %v265 = vpop.permute.xlu0 %264
      %v266 = vrot.slane %v265, 4
      %v267 = vld [vmem:[%s246] sm:$0xff]
      %v269 = vrot.slane %v267, 4
      %270 = vrot.lane.b32.xlu0 %v267, 64
      %v271 = vpop.permute.xlu0 %270
      %v272 = vrot.slane %v271, 4
      %v275 = vpack.i.b16 %v271, %v267
      %v276 = vshrl.u32 %v267, 16
      %v277 = vshrl.u32 %v271, 16
      %v278 = vpack.i.b16 %v277, %v276
      %v281 = vpack.i.b16 %v272, %v269
      %v282 = vshrl.u32 %v269, 16
      %v283 = vshrl.u32 %v272, 16
      %v284 = vpack.i.b16 %v283, %v282
      %v287 = vunpack.c.l.s4 1983009808
      %v288 = vunpack.c.0.s8 %v287
      %v289 = vlaneseq
      %v290 = vshrl.u32 %v289, 7
      %v291 = vsub.s32 %v288, %v290
      %v292 = vrot.slane %v275, %v291
      %v295 = vunpack.c.l.s4 1983009808
      %v296 = vunpack.c.0.s8 %v295
      %v297 = vlaneseq
      %v298 = vshrl.u32 %v297, 7
      %v299 = vsub.s32 %v296, %v298
      %v300 = vrot.slane %v281, %v299
      %v301 = vcombine.low %v292, %v300
      %v302 = vcombine.high %v292, %v300
      %v304 = vunpack.c.l.s4 1934713408
      %v305 = vunpack.c.0.s8 %v304
      %v306 = vlaneseq
      %v307 = vshrl.u32 %v306, 7
      %v308 = vsub.s32 %v305, %v307
      %v309 = vrot.slane %v301, %v308
      %v311 = vunpack.c.l.s4 1934713408
      %v312 = vunpack.c.0.s8 %v311
      %v313 = vlaneseq
      %v314 = vshrl.u32 %v313, 7
      %v315 = vsub.s32 %v312, %v314
      %v316 = vrot.slane %v302, %v315
      %v317 = vcombine.high %v309, 0
      %v318 = vcombine.high %v316, 0
      %v321 = vunpack.c.l.s4 1983009808
      %v322 = vunpack.c.0.s8 %v321
      %v323 = vlaneseq
      %v324 = vshrl.u32 %v323, 7
      %v325 = vsub.s32 %v322, %v324
      %v326 = vrot.slane %v278, %v325
      %v329 = vunpack.c.l.s4 1983009808
      %v330 = vunpack.c.0.s8 %v329
      %v331 = vlaneseq
      %v332 = vshrl.u32 %v331, 7
      %v333 = vsub.s32 %v330, %v332
      %v334 = vrot.slane %v284, %v333
      %v335 = vcombine.low %v326, %v334
      %v336 = vcombine.high %v326, %v334
      %v338 = vunpack.c.l.s4 1934713408
      %v339 = vunpack.c.0.s8 %v338
      %v340 = vlaneseq
      %v341 = vshrl.u32 %v340, 7
      %v342 = vsub.s32 %v339, %v341
      %v343 = vrot.slane %v335, %v342
      %v345 = vunpack.c.l.s4 1934713408
      %v346 = vunpack.c.0.s8 %v345
      %v347 = vlaneseq
      %v348 = vshrl.u32 %v347, 7
      %v349 = vsub.s32 %v346, %v348
      %v350 = vrot.slane %v336, %v349
      %v351 = vcombine.high %v343, 0
      %v352 = vcombine.high %v350, 0
      %v353 = vld [vmem:[%s252] sm:$0xff]
      %v355 = vrot.slane %v353, 4
      %356 = vrot.lane.b32.xlu0 %v353, 64
      %v357 = vpop.permute.xlu0 %356
      %v358 = vrot.slane %v357, 4
      %v361 = vpack.i.b16 %v357, %v353
      %v362 = vshrl.u32 %v353, 16
      %v363 = vshrl.u32 %v357, 16
      %v364 = vpack.i.b16 %v363, %v362
      %v367 = vpack.i.b16 %v358, %v355
      %v368 = vshrl.u32 %v355, 16
      %v369 = vshrl.u32 %v358, 16
      %v370 = vpack.i.b16 %v369, %v368
      %v373 = vunpack.c.l.s4 1983009808
      %v374 = vunpack.c.0.s8 %v373
      %v375 = vlaneseq
      %v376 = vshrl.u32 %v375, 7
      %v377 = vsub.s32 %v374, %v376
      %v378 = vrot.slane %v361, %v377
      %v381 = vunpack.c.l.s4 1983009808
      %v382 = vunpack.c.0.s8 %v381
      %v383 = vlaneseq
      %v384 = vshrl.u32 %v383, 7
      %v385 = vsub.s32 %v382, %v384
      %v386 = vrot.slane %v367, %v385
      %v387 = vcombine.low %v378, %v386
      %v388 = vcombine.high %v378, %v386
      %v390 = vunpack.c.l.s4 1934713408
      %v391 = vunpack.c.0.s8 %v390
      %v392 = vlaneseq
      %v393 = vshrl.u32 %v392, 7
      %v394 = vsub.s32 %v391, %v393
      %v395 = vrot.slane %v387, %v394
      %v397 = vunpack.c.l.s4 1934713408
      %v398 = vunpack.c.0.s8 %v397
      %v399 = vlaneseq
      %v400 = vshrl.u32 %v399, 7
      %v401 = vsub.s32 %v398, %v400
      %v402 = vrot.slane %v388, %v401
      %v403 = vcombine.high %v395, 0
      %v404 = vcombine.high %v402, 0
      %v407 = vunpack.c.l.s4 1983009808
      %v408 = vunpack.c.0.s8 %v407
      %v409 = vlaneseq
      %v410 = vshrl.u32 %v409, 7
      %v411 = vsub.s32 %v408, %v410
      %v412 = vrot.slane %v364, %v411
      %v415 = vunpack.c.l.s4 1983009808
      %v416 = vunpack.c.0.s8 %v415
      %v417 = vlaneseq
      %v418 = vshrl.u32 %v417, 7
      %v419 = vsub.s32 %v416, %v418
      %v420 = vrot.slane %v370, %v419
      %v421 = vcombine.low %v412, %v420
      %v422 = vcombine.high %v412, %v420
      %v424 = vunpack.c.l.s4 1934713408
      %v425 = vunpack.c.0.s8 %v424
      %v426 = vlaneseq
      %v427 = vshrl.u32 %v426, 7
      %v428 = vsub.s32 %v425, %v427
      %v429 = vrot.slane %v421, %v428
      %v431 = vunpack.c.l.s4 1934713408
      %v432 = vunpack.c.0.s8 %v431
      %v433 = vlaneseq
      %v434 = vshrl.u32 %v433, 7
      %v435 = vsub.s32 %v432, %v434
      %v436 = vrot.slane %v422, %v435
      %v437 = vcombine.high %v429, 0
      %v438 = vcombine.high %v436, 0
      %v439 = vld [vmem:[%s235] sm:$0x1]
      %v441 = vlaneseq
      %v442 = vshrl.u32 %v441, 7
      %v443 = vsub.s32 0, %v442
      %v444 = vrot.slane %v439, %v443
      %446 = vxpose.xlu0.c.b16.start [1/8] %v309, 128
      %447 = vxpose.xlu0.c.b16.cont [2/8] 0, 128
      %448 = vxpose.xlu0.c.b16.cont [3/8] 0, 128
      %449 = vxpose.xlu0.c.b16.cont [4/8] 0, 128
      %450 = vxpose.xlu0.c.b16.cont [5/8] 0, 128
      %451 = vxpose.xlu0.c.b16.cont [6/8] 0, 128
      %452 = vxpose.xlu0.c.b16.cont [7/8] 0, 128
      %453 = vxpose.xlu0.c.b16.end [8/8] 0, 128
      %v454 = vpop.trf.xlu0
      %v455 = vpop.trf.xlu0
      %v456 = vpop.trf.xlu0
      %v457 = vpop.trf.xlu0
      %v458 = vpop.trf.xlu0
      %v459 = vpop.trf.xlu0
      %v460 = vpop.trf.xlu0
      %v461 = vpop.trf.xlu0
      %462 = vxpose.xlu0.c.b16.start [1/8] %v343, 128
      %463 = vxpose.xlu0.c.b16.cont [2/8] 0, 128
      %464 = vxpose.xlu0.c.b16.cont [3/8] 0, 128
      %465 = vxpose.xlu0.c.b16.cont [4/8] 0, 128
      %466 = vxpose.xlu0.c.b16.cont [5/8] 0, 128
      %467 = vxpose.xlu0.c.b16.cont [6/8] 0, 128
      %468 = vxpose.xlu0.c.b16.cont [7/8] 0, 128
      %469 = vxpose.xlu0.c.b16.end [8/8] 0, 128
      %v470 = vpop.trf.xlu0
      %v471 = vpop.trf.xlu0
      %v472 = vpop.trf.xlu0
      %v473 = vpop.trf.xlu0
      %v474 = vpop.trf.xlu0
      %v475 = vpop.trf.xlu0
      %v476 = vpop.trf.xlu0
      %v477 = vpop.trf.xlu0
      %478 = vxpose.xlu0.c.b16.start [1/8] %v317, 128
      %479 = vxpose.xlu0.c.b16.cont [2/8] 0, 128
      %480 = vxpose.xlu0.c.b16.cont [3/8] 0, 128
      %481 = vxpose.xlu0.c.b16.cont [4/8] 0, 128
      %482 = vxpose.xlu0.c.b16.cont [5/8] 0, 128
      %483 = vxpose.xlu0.c.b16.cont [6/8] 0, 128
      %484 = vxpose.xlu0.c.b16.cont [7/8] 0, 128
      %485 = vxpose.xlu0.c.b16.end [8/8] 0, 128
      %v486 = vpop.trf.xlu0
      %v487 = vpop.trf.xlu0
      %v488 = vpop.trf.xlu0
      %v489 = vpop.trf.xlu0
      %v490 = vpop.trf.xlu0
      %v491 = vpop.trf.xlu0
      %v492 = vpop.trf.xlu0
      %v493 = vpop.trf.xlu0
      %494 = vxpose.xlu0.c.b16.start [1/8] %v351, 128
      %495 = vxpose.xlu0.c.b16.cont [2/8] 0, 128
      %496 = vxpose.xlu0.c.b16.cont [3/8] 0, 128
      %497 = vxpose.xlu0.c.b16.cont [4/8] 0, 128
      %498 = vxpose.xlu0.c.b16.cont [5/8] 0, 128
      %499 = vxpose.xlu0.c.b16.cont [6/8] 0, 128
      %500 = vxpose.xlu0.c.b16.cont [7/8] 0, 128
      %501 = vxpose.xlu0.c.b16.end [8/8] 0, 128
      %v502 = vpop.trf.xlu0
      %v503 = vpop.trf.xlu0
      %v504 = vpop.trf.xlu0
      %v505 = vpop.trf.xlu0
      %v506 = vpop.trf.xlu0
      %v507 = vpop.trf.xlu0
      %v508 = vpop.trf.xlu0
      %v509 = vpop.trf.xlu0
      %510 = vxpose.xlu0.c.b16.start [1/8] %v316, 128
      %511 = vxpose.xlu0.c.b16.cont [2/8] 0, 128
      %512 = vxpose.xlu0.c.b16.cont [3/8] 0, 128
      %513 = vxpose.xlu0.c.b16.cont [4/8] 0, 128
      %514 = vxpose.xlu0.c.b16.cont [5/8] 0, 128
      %515 = vxpose.xlu0.c.b16.cont [6/8] 0, 128
      %516 = vxpose.xlu0.c.b16.cont [7/8] 0, 128
      %517 = vxpose.xlu0.c.b16.end [8/8] 0, 128
      %v518 = vpop.trf.xlu0
      %v519 = vpop.trf.xlu0
      %v520 = vpop.trf.xlu0
      %v521 = vpop.trf.xlu0
      %v522 = vpop.trf.xlu0
      %v523 = vpop.trf.xlu0
      %v524 = vpop.trf.xlu0
      %v525 = vpop.trf.xlu0
      %526 = vxpose.xlu0.c.b16.start [1/8] %v350, 128
      %527 = vxpose.xlu0.c.b16.cont [2/8] 0, 128
      %528 = vxpose.xlu0.c.b16.cont [3/8] 0, 128
      %529 = vxpose.xlu0.c.b16.cont [4/8] 0, 128
      %530 = vxpose.xlu0.c.b16.cont [5/8] 0, 128
      %531 = vxpose.xlu0.c.b16.cont [6/8] 0, 128
      %532 = vxpose.xlu0.c.b16.cont [7/8] 0, 128
      %533 = vxpose.xlu0.c.b16.end [8/8] 0, 128
      %v534 = vpop.trf.xlu0
      %v535 = vpop.trf.xlu0
      %v536 = vpop.trf.xlu0
      %v537 = vpop.trf.xlu0
      %v538 = vpop.trf.xlu0
      %v539 = vpop.trf.xlu0
      %v540 = vpop.trf.xlu0
      %v541 = vpop.trf.xlu0
      %542 = vxpose.xlu0.c.b16.start [1/8] %v318, 128
      %543 = vxpose.xlu0.c.b16.cont [2/8] 0, 128
      %544 = vxpose.xlu0.c.b16.cont [3/8] 0, 128
      %545 = vxpose.xlu0.c.b16.cont [4/8] 0, 128
      %546 = vxpose.xlu0.c.b16.cont [5/8] 0, 128
      %547 = vxpose.xlu0.c.b16.cont [6/8] 0, 128
      %548 = vxpose.xlu0.c.b16.cont [7/8] 0, 128
      %549 = vxpose.xlu0.c.b16.end [8/8] 0, 128
      %v550 = vpop.trf.xlu0
      %v551 = vpop.trf.xlu0
      %v552 = vpop.trf.xlu0
      %v553 = vpop.trf.xlu0
      %v554 = vpop.trf.xlu0
      %v555 = vpop.trf.xlu0
      %v556 = vpop.trf.xlu0
      %v557 = vpop.trf.xlu0
      %558 = vxpose.xlu0.c.b16.start [1/8] %v352, 128
      %559 = vxpose.xlu0.c.b16.cont [2/8] 0, 128
      %560 = vxpose.xlu0.c.b16.cont [3/8] 0, 128
      %561 = vxpose.xlu0.c.b16.cont [4/8] 0, 128
      %562 = vxpose.xlu0.c.b16.cont [5/8] 0, 128
      %563 = vxpose.xlu0.c.b16.cont [6/8] 0, 128
      %564 = vxpose.xlu0.c.b16.cont [7/8] 0, 128
      %565 = vxpose.xlu0.c.b16.end [8/8] 0, 128
      %v566 = vpop.trf.xlu0
      %v567 = vpop.trf.xlu0
      %v568 = vpop.trf.xlu0
      %v569 = vpop.trf.xlu0
      %v570 = vpop.trf.xlu0
      %v571 = vpop.trf.xlu0
      %v572 = vpop.trf.xlu0
      %v573 = vpop.trf.xlu0
      %v576 = vpack.i.b16 %v470, %v454
      %v578 = vshrl.u32 %v454, 16
      %v579 = vshrl.u32 %v470, 16
      %v580 = vpack.i.b16 %v579, %v578
      %v584 = vpack.i.b16 %v502, %v486
      %v586 = vshrl.u32 %v486, 16
      %v587 = vshrl.u32 %v502, 16
      %v588 = vpack.i.b16 %v587, %v586
      %v592 = vpack.i.b16 %v534, %v518
      %v594 = vshrl.u32 %v518, 16
      %v595 = vshrl.u32 %v534, 16
      %v596 = vpack.i.b16 %v595, %v594
      %v600 = vpack.i.b16 %v566, %v550
      %v602 = vshrl.u32 %v550, 16
      %v603 = vshrl.u32 %v566, 16
      %v604 = vpack.i.b16 %v603, %v602
      %v608 = vpack.i.b16 %v471, %v455
      %v610 = vshrl.u32 %v455, 16
      %v611 = vshrl.u32 %v471, 16
      %v612 = vpack.i.b16 %v611, %v610
      %v616 = vpack.i.b16 %v503, %v487
      %v618 = vshrl.u32 %v487, 16
      %v619 = vshrl.u32 %v503, 16
      %v620 = vpack.i.b16 %v619, %v618
      %v624 = vpack.i.b16 %v535, %v519
      %v626 = vshrl.u32 %v519, 16
      %v627 = vshrl.u32 %v535, 16
      %v628 = vpack.i.b16 %v627, %v626
      %v632 = vpack.i.b16 %v567, %v551
      %v634 = vshrl.u32 %v551, 16
      %v635 = vshrl.u32 %v567, 16
      %v636 = vpack.i.b16 %v635, %v634
      %v640 = vpack.i.b16 %v472, %v456
      %v642 = vshrl.u32 %v456, 16
      %v643 = vshrl.u32 %v472, 16
      %v644 = vpack.i.b16 %v643, %v642
      %v648 = vpack.i.b16 %v504, %v488
      %v650 = vshrl.u32 %v488, 16
      %v651 = vshrl.u32 %v504, 16
      %v652 = vpack.i.b16 %v651, %v650
      %v656 = vpack.i.b16 %v536, %v520
      %v658 = vshrl.u32 %v520, 16
      %v659 = vshrl.u32 %v536, 16
      %v660 = vpack.i.b16 %v659, %v658
      %v664 = vpack.i.b16 %v568, %v552
      %v666 = vshrl.u32 %v552, 16
      %v667 = vshrl.u32 %v568, 16
      %v668 = vpack.i.b16 %v667, %v666
      %v672 = vpack.i.b16 %v473, %v457
      %v674 = vshrl.u32 %v457, 16
      %v675 = vshrl.u32 %v473, 16
      %v676 = vpack.i.b16 %v675, %v674
      %v680 = vpack.i.b16 %v505, %v489
      %v682 = vshrl.u32 %v489, 16
      %v683 = vshrl.u32 %v505, 16
      %v684 = vpack.i.b16 %v683, %v682
      %v688 = vpack.i.b16 %v537, %v521
      %v690 = vshrl.u32 %v521, 16
      %v691 = vshrl.u32 %v537, 16
      %v692 = vpack.i.b16 %v691, %v690
      %v696 = vpack.i.b16 %v569, %v553
      %v698 = vshrl.u32 %v553, 16
      %v699 = vshrl.u32 %v569, 16
      %v700 = vpack.i.b16 %v699, %v698
      %v702 = vcombine.low %v576, %v592
      %v703 = vcombine.high %v576, %v592
      %v705 = vunpack.c.l.s4 1983009808
      %v706 = vunpack.c.0.s8 %v705
      %v707 = vlaneseq
      %v708 = vshrl.u32 %v707, 7
      %v709 = vsub.s32 %v706, %v708
      %v710 = vrot.slane %v702, %v709
      %v712 = vunpack.c.l.s4 1983009808
      %v713 = vunpack.c.0.s8 %v712
      %v714 = vlaneseq
      %v715 = vshrl.u32 %v714, 7
      %v716 = vsub.s32 %v713, %v715
      %v717 = vrot.slane %v703, %v716
      %v718 = vcombine.low %v584, %v600
      %v719 = vcombine.high %v584, %v600
      %v721 = vunpack.c.l.s4 1983009808
      %v722 = vunpack.c.0.s8 %v721
      %v723 = vlaneseq
      %v724 = vshrl.u32 %v723, 7
      %v725 = vsub.s32 %v722, %v724
      %v726 = vrot.slane %v718, %v725
      %v728 = vunpack.c.l.s4 1983009808
      %v729 = vunpack.c.0.s8 %v728
      %v730 = vlaneseq
      %v731 = vshrl.u32 %v730, 7
      %v732 = vsub.s32 %v729, %v731
      %v733 = vrot.slane %v719, %v732
      %v734 = vcombine.low %v710, %v726
      %v735 = vcombine.high %v710, %v726
      %v737 = vunpack.c.l.s4 1934713408
      %v738 = vunpack.c.0.s8 %v737
      %v739 = vlaneseq
      %v740 = vshrl.u32 %v739, 7
      %v741 = vsub.s32 %v738, %v740
      %v742 = vrot.slane %v734, %v741
      %v744 = vunpack.c.l.s4 1934713408
      %v745 = vunpack.c.0.s8 %v744
      %v746 = vlaneseq
      %v747 = vshrl.u32 %v746, 7
      %v748 = vsub.s32 %v745, %v747
      %v749 = vrot.slane %v735, %v748
      %v750 = vcombine.low %v717, %v733
      %v751 = vcombine.high %v717, %v733
      %v753 = vunpack.c.l.s4 1934713408
      %v754 = vunpack.c.0.s8 %v753
      %v755 = vlaneseq
      %v756 = vshrl.u32 %v755, 7
      %v757 = vsub.s32 %v754, %v756
      %v758 = vrot.slane %v750, %v757
      %v760 = vunpack.c.l.s4 1934713408
      %v761 = vunpack.c.0.s8 %v760
      %v762 = vlaneseq
      %v763 = vshrl.u32 %v762, 7
      %v764 = vsub.s32 %v761, %v763
      %v765 = vrot.slane %v751, %v764
      %v766 = vcombine.high %v742, 0
      %v767 = vcombine.high %v749, 0
      %v768 = vcombine.high %v758, 0
      %v769 = vcombine.high %v765, 0
      %v770 = vcombine.low %v580, %v596
      %v771 = vcombine.high %v580, %v596
      %v773 = vunpack.c.l.s4 1983009808
      %v774 = vunpack.c.0.s8 %v773
      %v775 = vlaneseq
      %v776 = vshrl.u32 %v775, 7
      %v777 = vsub.s32 %v774, %v776
      %v778 = vrot.slane %v770, %v777
      %v780 = vunpack.c.l.s4 1983009808
      %v781 = vunpack.c.0.s8 %v780
      %v782 = vlaneseq
      %v783 = vshrl.u32 %v782, 7
      %v784 = vsub.s32 %v781, %v783
      %v785 = vrot.slane %v771, %v784
      %v786 = vcombine.low %v588, %v604
      %v787 = vcombine.high %v588, %v604
      %v789 = vunpack.c.l.s4 1983009808
      %v790 = vunpack.c.0.s8 %v789
      %v791 = vlaneseq
      %v792 = vshrl.u32 %v791, 7
      %v793 = vsub.s32 %v790, %v792
      %v794 = vrot.slane %v786, %v793
      %v796 = vunpack.c.l.s4 1983009808
      %v797 = vunpack.c.0.s8 %v796
      %v798 = vlaneseq
      %v799 = vshrl.u32 %v798, 7
      %v800 = vsub.s32 %v797, %v799
      %v801 = vrot.slane %v787, %v800
      %v802 = vcombine.low %v778, %v794
      %v803 = vcombine.high %v778, %v794
      %v805 = vunpack.c.l.s4 1934713408
      %v806 = vunpack.c.0.s8 %v805
      %v807 = vlaneseq
      %v808 = vshrl.u32 %v807, 7
      %v809 = vsub.s32 %v806, %v808
      %v810 = vrot.slane %v802, %v809
      %v812 = vunpack.c.l.s4 1934713408
      %v813 = vunpack.c.0.s8 %v812
      %v814 = vlaneseq
      %v815 = vshrl.u32 %v814, 7
      %v816 = vsub.s32 %v813, %v815
      %v817 = vrot.slane %v803, %v816
      %v818 = vcombine.low %v785, %v801
      %v819 = vcombine.high %v785, %v801
      %v821 = vunpack.c.l.s4 1934713408
      %v822 = vunpack.c.0.s8 %v821
      %v823 = vlaneseq
      %v824 = vshrl.u32 %v823, 7
      %v825 = vsub.s32 %v822, %v824
      %v826 = vrot.slane %v818, %v825
      %v828 = vunpack.c.l.s4 1934713408
      %v829 = vunpack.c.0.s8 %v828
      %v830 = vlaneseq
      %v831 = vshrl.u32 %v830, 7
      %v832 = vsub.s32 %v829, %v831
      %v833 = vrot.slane %v819, %v832
      %v834 = vcombine.high %v810, 0
      %v835 = vcombine.high %v817, 0
      %v836 = vcombine.high %v826, 0
      %v837 = vcombine.high %v833, 0
      %v838 = vcombine.low %v608, %v624
      %v839 = vcombine.high %v608, %v624
      %v841 = vunpack.c.l.s4 1983009808
      %v842 = vunpack.c.0.s8 %v841
      %v843 = vlaneseq
      %v844 = vshrl.u32 %v843, 7
      %v845 = vsub.s32 %v842, %v844
      %v846 = vrot.slane %v838, %v845
      %v848 = vunpack.c.l.s4 1983009808
      %v849 = vunpack.c.0.s8 %v848
      %v850 = vlaneseq
      %v851 = vshrl.u32 %v850, 7
      %v852 = vsub.s32 %v849, %v851
      %v853 = vrot.slane %v839, %v852
      %v854 = vcombine.low %v616, %v632
      %v855 = vcombine.high %v616, %v632
      %v857 = vunpack.c.l.s4 1983009808
      %v858 = vunpack.c.0.s8 %v857
      %v859 = vlaneseq
      %v860 = vshrl.u32 %v859, 7
      %v861 = vsub.s32 %v858, %v860
      %v862 = vrot.slane %v854, %v861
      %v864 = vunpack.c.l.s4 1983009808
      %v865 = vunpack.c.0.s8 %v864
      %v866 = vlaneseq
      %v867 = vshrl.u32 %v866, 7
      %v868 = vsub.s32 %v865, %v867
      %v869 = vrot.slane %v855, %v868
      %v870 = vcombine.low %v846, %v862
      %v871 = vcombine.high %v846, %v862
      %v873 = vunpack.c.l.s4 1934713408
      %v874 = vunpack.c.0.s8 %v873
      %v875 = vlaneseq
      %v876 = vshrl.u32 %v875, 7
      %v877 = vsub.s32 %v874, %v876
      %v878 = vrot.slane %v870, %v877
      %v880 = vunpack.c.l.s4 1934713408
      %v881 = vunpack.c.0.s8 %v880
      %v882 = vlaneseq
      %v883 = vshrl.u32 %v882, 7
      %v884 = vsub.s32 %v881, %v883
      %v885 = vrot.slane %v871, %v884
      %v886 = vcombine.low %v853, %v869
      %v887 = vcombine.high %v853, %v869
      %v889 = vunpack.c.l.s4 1934713408
      %v890 = vunpack.c.0.s8 %v889
      %v891 = vlaneseq
      %v892 = vshrl.u32 %v891, 7
      %v893 = vsub.s32 %v890, %v892
      %v894 = vrot.slane %v886, %v893
      %v896 = vunpack.c.l.s4 1934713408
      %v897 = vunpack.c.0.s8 %v896
      %v898 = vlaneseq
      %v899 = vshrl.u32 %v898, 7
      %v900 = vsub.s32 %v897, %v899
      %v901 = vrot.slane %v887, %v900
      %v902 = vcombine.high %v878, 0
      %v903 = vcombine.high %v885, 0
      %v904 = vcombine.high %v894, 0
      %v905 = vcombine.high %v901, 0
      %v906 = vcombine.low %v612, %v628
      %v907 = vcombine.high %v612, %v628
      %v909 = vunpack.c.l.s4 1983009808
      %v910 = vunpack.c.0.s8 %v909
      %v911 = vlaneseq
      %v912 = vshrl.u32 %v911, 7
      %v913 = vsub.s32 %v910, %v912
      %v914 = vrot.slane %v906, %v913
      %v916 = vunpack.c.l.s4 1983009808
      %v917 = vunpack.c.0.s8 %v916
      %v918 = vlaneseq
      %v919 = vshrl.u32 %v918, 7
      %v920 = vsub.s32 %v917, %v919
      %v921 = vrot.slane %v907, %v920
      %v922 = vcombine.low %v620, %v636
      %v923 = vcombine.high %v620, %v636
      %v925 = vunpack.c.l.s4 1983009808
      %v926 = vunpack.c.0.s8 %v925
      %v927 = vlaneseq
      %v928 = vshrl.u32 %v927, 7
      %v929 = vsub.s32 %v926, %v928
      %v930 = vrot.slane %v922, %v929
      %v932 = vunpack.c.l.s4 1983009808
      %v933 = vunpack.c.0.s8 %v932
      %v934 = vlaneseq
      %v935 = vshrl.u32 %v934, 7
      %v936 = vsub.s32 %v933, %v935
      %v937 = vrot.slane %v923, %v936
      %v938 = vcombine.low %v914, %v930
      %v939 = vcombine.high %v914, %v930
      %v941 = vunpack.c.l.s4 1934713408
      %v942 = vunpack.c.0.s8 %v941
      %v943 = vlaneseq
      %v944 = vshrl.u32 %v943, 7
      %v945 = vsub.s32 %v942, %v944
      %v946 = vrot.slane %v938, %v945
      %v948 = vunpack.c.l.s4 1934713408
      %v949 = vunpack.c.0.s8 %v948
      %v950 = vlaneseq
      %v951 = vshrl.u32 %v950, 7
      %v952 = vsub.s32 %v949, %v951
      %v953 = vrot.slane %v939, %v952
      %v954 = vcombine.low %v921, %v937
      %v955 = vcombine.high %v921, %v937
      %v957 = vunpack.c.l.s4 1934713408
      %v958 = vunpack.c.0.s8 %v957
      %v959 = vlaneseq
      %v960 = vshrl.u32 %v959, 7
      %v961 = vsub.s32 %v958, %v960
      %v962 = vrot.slane %v954, %v961
      %v964 = vunpack.c.l.s4 1934713408
      %v965 = vunpack.c.0.s8 %v964
      %v966 = vlaneseq
      %v967 = vshrl.u32 %v966, 7
      %v968 = vsub.s32 %v965, %v967
      %v969 = vrot.slane %v955, %v968
      %v970 = vcombine.high %v946, 0
      %v971 = vcombine.high %v953, 0
      %v972 = vcombine.high %v962, 0
      %v973 = vcombine.high %v969, 0
      %v974 = vcombine.low %v640, %v656
      %v975 = vcombine.high %v640, %v656
      %v977 = vunpack.c.l.s4 1983009808
      %v978 = vunpack.c.0.s8 %v977
      %v979 = vlaneseq
      %v980 = vshrl.u32 %v979, 7
      %v981 = vsub.s32 %v978, %v980
      %v982 = vrot.slane %v974, %v981
      %v984 = vunpack.c.l.s4 1983009808
      %v985 = vunpack.c.0.s8 %v984
      %v986 = vlaneseq
      %v987 = vshrl.u32 %v986, 7
      %v988 = vsub.s32 %v985, %v987
      %v989 = vrot.slane %v975, %v988
      %v990 = vcombine.low %v648, %v664
      %v991 = vcombine.high %v648, %v664
      %v993 = vunpack.c.l.s4 1983009808
      %v994 = vunpack.c.0.s8 %v993
      %v995 = vlaneseq
      %v996 = vshrl.u32 %v995, 7
      %v997 = vsub.s32 %v994, %v996
      %v998 = vrot.slane %v990, %v997
      %v1000 = vunpack.c.l.s4 1983009808
      %v1001 = vunpack.c.0.s8 %v1000
      %v1002 = vlaneseq
      %v1003 = vshrl.u32 %v1002, 7
      %v1004 = vsub.s32 %v1001, %v1003
      %v1005 = vrot.slane %v991, %v1004
      %v1006 = vcombine.low %v982, %v998
      %v1007 = vcombine.high %v982, %v998
      %v1009 = vunpack.c.l.s4 1934713408
      %v1010 = vunpack.c.0.s8 %v1009
      %v1011 = vlaneseq
      %v1012 = vshrl.u32 %v1011, 7
      %v1013 = vsub.s32 %v1010, %v1012
      %v1014 = vrot.slane %v1006, %v1013
      %v1016 = vunpack.c.l.s4 1934713408
      %v1017 = vunpack.c.0.s8 %v1016
      %v1018 = vlaneseq
      %v1019 = vshrl.u32 %v1018, 7
      %v1020 = vsub.s32 %v1017, %v1019
      %v1021 = vrot.slane %v1007, %v1020
      %v1022 = vcombine.low %v989, %v1005
      %v1023 = vcombine.high %v989, %v1005
      %v1025 = vunpack.c.l.s4 1934713408
      %v1026 = vunpack.c.0.s8 %v1025
      %v1027 = vlaneseq
      %v1028 = vshrl.u32 %v1027, 7
      %v1029 = vsub.s32 %v1026, %v1028
      %v1030 = vrot.slane %v1022, %v1029
      %v1032 = vunpack.c.l.s4 1934713408
      %v1033 = vunpack.c.0.s8 %v1032
      %v1034 = vlaneseq
      %v1035 = vshrl.u32 %v1034, 7
      %v1036 = vsub.s32 %v1033, %v1035
      %v1037 = vrot.slane %v1023, %v1036
      %v1038 = vcombine.high %v1014, 0
      %v1039 = vcombine.high %v1021, 0
      %v1040 = vcombine.high %v1030, 0
      %v1041 = vcombine.high %v1037, 0
      %v1042 = vcombine.low %v644, %v660
      %v1043 = vcombine.high %v644, %v660
      %v1045 = vunpack.c.l.s4 1983009808
      %v1046 = vunpack.c.0.s8 %v1045
      %v1047 = vlaneseq
      %v1048 = vshrl.u32 %v1047, 7
      %v1049 = vsub.s32 %v1046, %v1048
      %v1050 = vrot.slane %v1042, %v1049
      %v1052 = vunpack.c.l.s4 1983009808
      %v1053 = vunpack.c.0.s8 %v1052
      %v1054 = vlaneseq
      %v1055 = vshrl.u32 %v1054, 7
      %v1056 = vsub.s32 %v1053, %v1055
      %v1057 = vrot.slane %v1043, %v1056
      %v1058 = vcombine.low %v652, %v668
      %v1059 = vcombine.high %v652, %v668
      %v1061 = vunpack.c.l.s4 1983009808
      %v1062 = vunpack.c.0.s8 %v1061
      %v1063 = vlaneseq
      %v1064 = vshrl.u32 %v1063, 7
      %v1065 = vsub.s32 %v1062, %v1064
      %v1066 = vrot.slane %v1058, %v1065
      %v1068 = vunpack.c.l.s4 1983009808
      %v1069 = vunpack.c.0.s8 %v1068
      %v1070 = vlaneseq
      %v1071 = vshrl.u32 %v1070, 7
      %v1072 = vsub.s32 %v1069, %v1071
      %v1073 = vrot.slane %v1059, %v1072
      %v1074 = vcombine.low %v1050, %v1066
      %v1075 = vcombine.high %v1050, %v1066
      %v1077 = vunpack.c.l.s4 1934713408
      %v1078 = vunpack.c.0.s8 %v1077
      %v1079 = vlaneseq
      %v1080 = vshrl.u32 %v1079, 7
      %v1081 = vsub.s32 %v1078, %v1080
      %v1082 = vrot.slane %v1074, %v1081
      %v1084 = vunpack.c.l.s4 1934713408
      %v1085 = vunpack.c.0.s8 %v1084
      %v1086 = vlaneseq
      %v1087 = vshrl.u32 %v1086, 7
      %v1088 = vsub.s32 %v1085, %v1087
      %v1089 = vrot.slane %v1075, %v1088
      %v1090 = vcombine.low %v1057, %v1073
      %v1091 = vcombine.high %v1057, %v1073
      %v1093 = vunpack.c.l.s4 1934713408
      %v1094 = vunpack.c.0.s8 %v1093
      %v1095 = vlaneseq
      %v1096 = vshrl.u32 %v1095, 7
      %v1097 = vsub.s32 %v1094, %v1096
      %v1098 = vrot.slane %v1090, %v1097
      %v1100 = vunpack.c.l.s4 1934713408
      %v1101 = vunpack.c.0.s8 %v1100
      %v1102 = vlaneseq
      %v1103 = vshrl.u32 %v1102, 7
      %v1104 = vsub.s32 %v1101, %v1103
      %v1105 = vrot.slane %v1091, %v1104
      %v1106 = vcombine.high %v1082, 0
      %v1107 = vcombine.high %v1089, 0
      %v1108 = vcombine.high %v1098, 0
      %v1109 = vcombine.high %v1105, 0
      %v1110 = vcombine.low %v672, %v688
      %v1111 = vcombine.high %v672, %v688
      %v1113 = vunpack.c.l.s4 1983009808
      %v1114 = vunpack.c.0.s8 %v1113
      %v1115 = vlaneseq
      %v1116 = vshrl.u32 %v1115, 7
      %v1117 = vsub.s32 %v1114, %v1116
      %v1118 = vrot.slane %v1110, %v1117
      %v1120 = vunpack.c.l.s4 1983009808
      %v1121 = vunpack.c.0.s8 %v1120
      %v1122 = vlaneseq
      %v1123 = vshrl.u32 %v1122, 7
      %v1124 = vsub.s32 %v1121, %v1123
      %v1125 = vrot.slane %v1111, %v1124
      %v1126 = vcombine.low %v680, %v696
      %v1127 = vcombine.high %v680, %v696
      %v1129 = vunpack.c.l.s4 1983009808
      %v1130 = vunpack.c.0.s8 %v1129
      %v1131 = vlaneseq
      %v1132 = vshrl.u32 %v1131, 7
      %v1133 = vsub.s32 %v1130, %v1132
      %v1134 = vrot.slane %v1126, %v1133
      %v1136 = vunpack.c.l.s4 1983009808
      %v1137 = vunpack.c.0.s8 %v1136
      %v1138 = vlaneseq
      %v1139 = vshrl.u32 %v1138, 7
      %v1140 = vsub.s32 %v1137, %v1139
      %v1141 = vrot.slane %v1127, %v1140
      %v1142 = vcombine.low %v1118, %v1134
      %v1143 = vcombine.high %v1118, %v1134
      %v1145 = vunpack.c.l.s4 1934713408
      %v1146 = vunpack.c.0.s8 %v1145
      %v1147 = vlaneseq
      %v1148 = vshrl.u32 %v1147, 7
      %v1149 = vsub.s32 %v1146, %v1148
      %v1150 = vrot.slane %v1142, %v1149
      %v1152 = vunpack.c.l.s4 1934713408
      %v1153 = vunpack.c.0.s8 %v1152
      %v1154 = vlaneseq
      %v1155 = vshrl.u32 %v1154, 7
      %v1156 = vsub.s32 %v1153, %v1155
      %v1157 = vrot.slane %v1143, %v1156
      %v1158 = vcombine.low %v1125, %v1141
      %v1159 = vcombine.high %v1125, %v1141
      %v1161 = vunpack.c.l.s4 1934713408
      %v1162 = vunpack.c.0.s8 %v1161
      %v1163 = vlaneseq
      %v1164 = vshrl.u32 %v1163, 7
      %v1165 = vsub.s32 %v1162, %v1164
      %v1166 = vrot.slane %v1158, %v1165
      %v1168 = vunpack.c.l.s4 1934713408
      %v1169 = vunpack.c.0.s8 %v1168
      %v1170 = vlaneseq
      %v1171 = vshrl.u32 %v1170, 7
      %v1172 = vsub.s32 %v1169, %v1171
      %v1173 = vrot.slane %v1159, %v1172
      %v1174 = vcombine.high %v1150, 0
      %v1175 = vcombine.high %v1157, 0
      %v1176 = vcombine.high %v1166, 0
      %v1177 = vcombine.high %v1173, 0
      %v1178 = vcombine.low %v676, %v692
      %v1179 = vcombine.high %v676, %v692
      %v1181 = vunpack.c.l.s4 1983009808
      %v1182 = vunpack.c.0.s8 %v1181
      %v1183 = vlaneseq
      %v1184 = vshrl.u32 %v1183, 7
      %v1185 = vsub.s32 %v1182, %v1184
      %v1186 = vrot.slane %v1178, %v1185
      %v1188 = vunpack.c.l.s4 1983009808
      %v1189 = vunpack.c.0.s8 %v1188
      %v1190 = vlaneseq
      %v1191 = vshrl.u32 %v1190, 7
      %v1192 = vsub.s32 %v1189, %v1191
      %v1193 = vrot.slane %v1179, %v1192
      %v1194 = vcombine.low %v684, %v700
      %v1195 = vcombine.high %v684, %v700
      %v1197 = vunpack.c.l.s4 1983009808
      %v1198 = vunpack.c.0.s8 %v1197
      %v1199 = vlaneseq
      %v1200 = vshrl.u32 %v1199, 7
      %v1201 = vsub.s32 %v1198, %v1200
      %v1202 = vrot.slane %v1194, %v1201
      %v1204 = vunpack.c.l.s4 1983009808
      %v1205 = vunpack.c.0.s8 %v1204
      %v1206 = vlaneseq
      %v1207 = vshrl.u32 %v1206, 7
      %v1208 = vsub.s32 %v1205, %v1207
      %v1209 = vrot.slane %v1195, %v1208
      %v1210 = vcombine.low %v1186, %v1202
      %v1211 = vcombine.high %v1186, %v1202
      %v1213 = vunpack.c.l.s4 1934713408
      %v1214 = vunpack.c.0.s8 %v1213
      %v1215 = vlaneseq
      %v1216 = vshrl.u32 %v1215, 7
      %v1217 = vsub.s32 %v1214, %v1216
      %v1218 = vrot.slane %v1210, %v1217
      %v1220 = vunpack.c.l.s4 1934713408
      %v1221 = vunpack.c.0.s8 %v1220
      %v1222 = vlaneseq
      %v1223 = vshrl.u32 %v1222, 7
      %v1224 = vsub.s32 %v1221, %v1223
      %v1225 = vrot.slane %v1211, %v1224
      %v1226 = vcombine.low %v1193, %v1209
      %v1227 = vcombine.high %v1193, %v1209
      %v1229 = vunpack.c.l.s4 1934713408
      %v1230 = vunpack.c.0.s8 %v1229
      %v1231 = vlaneseq
      %v1232 = vshrl.u32 %v1231, 7
      %v1233 = vsub.s32 %v1230, %v1232
      %v1234 = vrot.slane %v1226, %v1233
      %v1236 = vunpack.c.l.s4 1934713408
      %v1237 = vunpack.c.0.s8 %v1236
      %v1238 = vlaneseq
      %v1239 = vshrl.u32 %v1238, 7
      %v1240 = vsub.s32 %v1237, %v1239
      %v1241 = vrot.slane %v1227, %v1240
      %v1242 = vcombine.high %v1218, 0
      %v1243 = vcombine.high %v1225, 0
      %v1244 = vcombine.high %v1234, 0
      %v1245 = vcombine.high %v1241, 0
      %1246 = vxpose.xlu0.c.b16.start [1/8] %v742, 128
      %1247 = vxpose.xlu0.c.b16.cont [2/8] 0, 128
      %1248 = vxpose.xlu0.c.b16.cont [3/8] 0, 128
      %1249 = vxpose.xlu0.c.b16.cont [4/8] 0, 128
      %1250 = vxpose.xlu0.c.b16.cont [5/8] 0, 128
      %1251 = vxpose.xlu0.c.b16.cont [6/8] 0, 128
      %1252 = vxpose.xlu0.c.b16.cont [7/8] 0, 128
      %1253 = vxpose.xlu0.c.b16.end [8/8] 0, 128
      %v1254 = vpop.trf.xlu0
      %v1255 = vpop.trf.xlu0
      %v1256 = vpop.trf.xlu0
      %v1257 = vpop.trf.xlu0
      %v1258 = vpop.trf.xlu0
      %v1259 = vpop.trf.xlu0
      %v1260 = vpop.trf.xlu0
      %v1261 = vpop.trf.xlu0
      %1262 = vxpose.xlu0.c.b16.start [1/8] %v810, 128
      %1263 = vxpose.xlu0.c.b16.cont [2/8] 0, 128
      %1264 = vxpose.xlu0.c.b16.cont [3/8] 0, 128
      %1265 = vxpose.xlu0.c.b16.cont [4/8] 0, 128
      %1266 = vxpose.xlu0.c.b16.cont [5/8] 0, 128
      %1267 = vxpose.xlu0.c.b16.cont [6/8] 0, 128
      %1268 = vxpose.xlu0.c.b16.cont [7/8] 0, 128
      %1269 = vxpose.xlu0.c.b16.end [8/8] 0, 128
      %v1270 = vpop.trf.xlu0
      %v1271 = vpop.trf.xlu0
      %v1272 = vpop.trf.xlu0
      %v1273 = vpop.trf.xlu0
      %v1274 = vpop.trf.xlu0
      %v1275 = vpop.trf.xlu0
      %v1276 = vpop.trf.xlu0
      %v1277 = vpop.trf.xlu0
      %1278 = vxpose.xlu0.c.b16.start [1/8] %v766, 128
      %1279 = vxpose.xlu0.c.b16.cont [2/8] 0, 128
      %1280 = vxpose.xlu0.c.b16.cont [3/8] 0, 128
      %1281 = vxpose.xlu0.c.b16.cont [4/8] 0, 128
      %1282 = vxpose.xlu0.c.b16.cont [5/8] 0, 128
      %1283 = vxpose.xlu0.c.b16.cont [6/8] 0, 128
      %1284 = vxpose.xlu0.c.b16.cont [7/8] 0, 128
      %1285 = vxpose.xlu0.c.b16.end [8/8] 0, 128
      %v1286 = vpop.trf.xlu0
      %v1287 = vpop.trf.xlu0
      %v1288 = vpop.trf.xlu0
      %v1289 = vpop.trf.xlu0
      %v1290 = vpop.trf.xlu0
      %v1291 = vpop.trf.xlu0
      %v1292 = vpop.trf.xlu0
      %v1293 = vpop.trf.xlu0
      %1294 = vxpose.xlu0.c.b16.start [1/8] %v834, 128
      %1295 = vxpose.xlu0.c.b16.cont [2/8] 0, 128
      %1296 = vxpose.xlu0.c.b16.cont [3/8] 0, 128
      %1297 = vxpose.xlu0.c.b16.cont [4/8] 0, 128
      %1298 = vxpose.xlu0.c.b16.cont [5/8] 0, 128
      %1299 = vxpose.xlu0.c.b16.cont [6/8] 0, 128
      %1300 = vxpose.xlu0.c.b16.cont [7/8] 0, 128
      %1301 = vxpose.xlu0.c.b16.end [8/8] 0, 128
      %v1302 = vpop.trf.xlu0
      %v1303 = vpop.trf.xlu0
      %v1304 = vpop.trf.xlu0
      %v1305 = vpop.trf.xlu0
      %v1306 = vpop.trf.xlu0
      %v1307 = vpop.trf.xlu0
      %v1308 = vpop.trf.xlu0
      %v1309 = vpop.trf.xlu0
      %1310 = vxpose.xlu0.c.b16.start [1/8] %v749, 128
      %1311 = vxpose.xlu0.c.b16.cont [2/8] 0, 128
      %1312 = vxpose.xlu0.c.b16.cont [3/8] 0, 128
      %1313 = vxpose.xlu0.c.b16.cont [4/8] 0, 128
      %1314 = vxpose.xlu0.c.b16.cont [5/8] 0, 128
      %1315 = vxpose.xlu0.c.b16.cont [6/8] 0, 128
      %1316 = vxpose.xlu0.c.b16.cont [7/8] 0, 128
      %1317 = vxpose.xlu0.c.b16.end [8/8] 0, 128
      %v1318 = vpop.trf.xlu0
      %v1319 = vpop.trf.xlu0
      %v1320 = vpop.trf.xlu0
      %v1321 = vpop.trf.xlu0
      %v1322 = vpop.trf.xlu0
      %v1323 = vpop.trf.xlu0
      %v1324 = vpop.trf.xlu0
      %v1325 = vpop.trf.xlu0
      %1326 = vxpose.xlu0.c.b16.start [1/8] %v817, 128
      %1327 = vxpose.xlu0.c.b16.cont [2/8] 0, 128
      %1328 = vxpose.xlu0.c.b16.cont [3/8] 0, 128
      %1329 = vxpose.xlu0.c.b16.cont [4/8] 0, 128
      %1330 = vxpose.xlu0.c.b16.cont [5/8] 0, 128
      %1331 = vxpose.xlu0.c.b16.cont [6/8] 0, 128
      %1332 = vxpose.xlu0.c.b16.cont [7/8] 0, 128
      %1333 = vxpose.xlu0.c.b16.end [8/8] 0, 128
      %v1334 = vpop.trf.xlu0
      %v1335 = vpop.trf.xlu0
      %v1336 = vpop.trf.xlu0
      %v1337 = vpop.trf.xlu0
      %v1338 = vpop.trf.xlu0
      %v1339 = vpop.trf.xlu0
      %v1340 = vpop.trf.xlu0
      %v1341 = vpop.trf.xlu0
      %1342 = vxpose.xlu0.c.b16.start [1/8] %v767, 128
      %1343 = vxpose.xlu0.c.b16.cont [2/8] 0, 128
      %1344 = vxpose.xlu0.c.b16.cont [3/8] 0, 128
      %1345 = vxpose.xlu0.c.b16.cont [4/8] 0, 128
      %1346 = vxpose.xlu0.c.b16.cont [5/8] 0, 128
      %1347 = vxpose.xlu0.c.b16.cont [6/8] 0, 128
      %1348 = vxpose.xlu0.c.b16.cont [7/8] 0, 128
      %1349 = vxpose.xlu0.c.b16.end [8/8] 0, 128
      %v1350 = vpop.trf.xlu0
      %v1351 = vpop.trf.xlu0
      %v1352 = vpop.trf.xlu0
      %v1353 = vpop.trf.xlu0
      %v1354 = vpop.trf.xlu0
      %v1355 = vpop.trf.xlu0
      %v1356 = vpop.trf.xlu0
      %v1357 = vpop.trf.xlu0
      %1358 = vxpose.xlu0.c.b16.start [1/8] %v835, 128
      %1359 = vxpose.xlu0.c.b16.cont [2/8] 0, 128
      %1360 = vxpose.xlu0.c.b16.cont [3/8] 0, 128
      %1361 = vxpose.xlu0.c.b16.cont [4/8] 0, 128
      %1362 = vxpose.xlu0.c.b16.cont [5/8] 0, 128
      %1363 = vxpose.xlu0.c.b16.cont [6/8] 0, 128
      %1364 = vxpose.xlu0.c.b16.cont [7/8] 0, 128
      %1365 = vxpose.xlu0.c.b16.end [8/8] 0, 128
      %v1366 = vpop.trf.xlu0
      %v1367 = vpop.trf.xlu0
      %v1368 = vpop.trf.xlu0
      %v1369 = vpop.trf.xlu0
      %v1370 = vpop.trf.xlu0
      %v1371 = vpop.trf.xlu0
      %v1372 = vpop.trf.xlu0
      %v1373 = vpop.trf.xlu0
      %1374 = vxpose.xlu0.c.b16.start [1/8] %v758, 128
      %1375 = vxpose.xlu0.c.b16.cont [2/8] 0, 128
      %1376 = vxpose.xlu0.c.b16.cont [3/8] 0, 128
      %1377 = vxpose.xlu0.c.b16.cont [4/8] 0, 128
      %1378 = vxpose.xlu0.c.b16.cont [5/8] 0, 128
      %1379 = vxpose.xlu0.c.b16.cont [6/8] 0, 128
      %1380 = vxpose.xlu0.c.b16.cont [7/8] 0, 128
      %1381 = vxpose.xlu0.c.b16.end [8/8] 0, 128
      %v1382 = vpop.trf.xlu0
      %v1383 = vpop.trf.xlu0
      %v1384 = vpop.trf.xlu0
      %v1385 = vpop.trf.xlu0
      %v1386 = vpop.trf.xlu0
      %v1387 = vpop.trf.xlu0
      %v1388 = vpop.trf.xlu0
      %v1389 = vpop.trf.xlu0
      %1390 = vxpose.xlu0.c.b16.start [1/8] %v826, 128
      %1391 = vxpose.xlu0.c.b16.cont [2/8] 0, 128
      %1392 = vxpose.xlu0.c.b16.cont [3/8] 0, 128
      %1393 = vxpose.xlu0.c.b16.cont [4/8] 0, 128
      %1394 = vxpose.xlu0.c.b16.cont [5/8] 0, 128
      %1395 = vxpose.xlu0.c.b16.cont [6/8] 0, 128
      %1396 = vxpose.xlu0.c.b16.cont [7/8] 0, 128
      %1397 = vxpose.xlu0.c.b16.end [8/8] 0, 128
      %v1398 = vpop.trf.xlu0
      %v1399 = vpop.trf.xlu0
      %v1400 = vpop.trf.xlu0
      %v1401 = vpop.trf.xlu0
      %v1402 = vpop.trf.xlu0
      %v1403 = vpop.trf.xlu0
      %v1404 = vpop.trf.xlu0
      %v1405 = vpop.trf.xlu0
      %1406 = vxpose.xlu0.c.b16.start [1/8] %v768, 128
      %1407 = vxpose.xlu0.c.b16.cont [2/8] 0, 128
      %1408 = vxpose.xlu0.c.b16.cont [3/8] 0, 128
      %1409 = vxpose.xlu0.c.b16.cont [4/8] 0, 128
      %1410 = vxpose.xlu0.c.b16.cont [5/8] 0, 128
      %1411 = vxpose.xlu0.c.b16.cont [6/8] 0, 128
      %1412 = vxpose.xlu0.c.b16.cont [7/8] 0, 128
      %1413 = vxpose.xlu0.c.b16.end [8/8] 0, 128
      %v1414 = vpop.trf.xlu0
      %v1415 = vpop.trf.xlu0
      %v1416 = vpop.trf.xlu0
      %v1417 = vpop.trf.xlu0
      %v1418 = vpop.trf.xlu0
      %v1419 = vpop.trf.xlu0
      %v1420 = vpop.trf.xlu0
      %v1421 = vpop.trf.xlu0
      %1422 = vxpose.xlu0.c.b16.start [1/8] %v836, 128
      %1423 = vxpose.xlu0.c.b16.cont [2/8] 0, 128
      %1424 = vxpose.xlu0.c.b16.cont [3/8] 0, 128
      %1425 = vxpose.xlu0.c.b16.cont [4/8] 0, 128
      %1426 = vxpose.xlu0.c.b16.cont [5/8] 0, 128
      %1427 = vxpose.xlu0.c.b16.cont [6/8] 0, 128
      %1428 = vxpose.xlu0.c.b16.cont [7/8] 0, 128
      %1429 = vxpose.xlu0.c.b16.end [8/8] 0, 128
      %v1430 = vpop.trf.xlu0
      %v1431 = vpop.trf.xlu0
      %v1432 = vpop.trf.xlu0
      %v1433 = vpop.trf.xlu0
      %v1434 = vpop.trf.xlu0
      %v1435 = vpop.trf.xlu0
      %v1436 = vpop.trf.xlu0
      %v1437 = vpop.trf.xlu0
      %1438 = vxpose.xlu0.c.b16.start [1/8] %v765, 128
      %1439 = vxpose.xlu0.c.b16.cont [2/8] 0, 128
      %1440 = vxpose.xlu0.c.b16.cont [3/8] 0, 128
      %1441 = vxpose.xlu0.c.b16.cont [4/8] 0, 128
      %1442 = vxpose.xlu0.c.b16.cont [5/8] 0, 128
      %1443 = vxpose.xlu0.c.b16.cont [6/8] 0, 128
      %1444 = vxpose.xlu0.c.b16.cont [7/8] 0, 128
      %1445 = vxpose.xlu0.c.b16.end [8/8] 0, 128
      %v1446 = vpop.trf.xlu0
      %v1447 = vpop.trf.xlu0
      %v1448 = vpop.trf.xlu0
      %v1449 = vpop.trf.xlu0
      %v1450 = vpop.trf.xlu0
      %v1451 = vpop.trf.xlu0
      %v1452 = vpop.trf.xlu0
      %v1453 = vpop.trf.xlu0
      %1454 = vxpose.xlu0.c.b16.start [1/8] %v833, 128
      %1455 = vxpose.xlu0.c.b16.cont [2/8] 0, 128
      %1456 = vxpose.xlu0.c.b16.cont [3/8] 0, 128
      %1457 = vxpose.xlu0.c.b16.cont [4/8] 0, 128
      %1458 = vxpose.xlu0.c.b16.cont [5/8] 0, 128
      %1459 = vxpose.xlu0.c.b16.cont [6/8] 0, 128
      %1460 = vxpose.xlu0.c.b16.cont [7/8] 0, 128
      %1461 = vxpose.xlu0.c.b16.end [8/8] 0, 128
      %v1462 = vpop.trf.xlu0
      %v1463 = vpop.trf.xlu0
      %v1464 = vpop.trf.xlu0
      %v1465 = vpop.trf.xlu0
      %v1466 = vpop.trf.xlu0
      %v1467 = vpop.trf.xlu0
      %v1468 = vpop.trf.xlu0
      %v1469 = vpop.trf.xlu0
      %1470 = vxpose.xlu0.c.b16.start [1/8] %v769, 128
      %1471 = vxpose.xlu0.c.b16.cont [2/8] 0, 128
      %1472 = vxpose.xlu0.c.b16.cont [3/8] 0, 128
      %1473 = vxpose.xlu0.c.b16.cont [4/8] 0, 128
      %1474 = vxpose.xlu0.c.b16.cont [5/8] 0, 128
      %1475 = vxpose.xlu0.c.b16.cont [6/8] 0, 128
      %1476 = vxpose.xlu0.c.b16.cont [7/8] 0, 128
      %1477 = vxpose.xlu0.c.b16.end [8/8] 0, 128
      %v1478 = vpop.trf.xlu0
      %v1479 = vpop.trf.xlu0
      %v1480 = vpop.trf.xlu0
      %v1481 = vpop.trf.xlu0
      %v1482 = vpop.trf.xlu0
      %v1483 = vpop.trf.xlu0
      %v1484 = vpop.trf.xlu0
      %v1485 = vpop.trf.xlu0
      %1486 = vxpose.xlu0.c.b16.start [1/8] %v837, 128
      %1487 = vxpose.xlu0.c.b16.cont [2/8] 0, 128
      %1488 = vxpose.xlu0.c.b16.cont [3/8] 0, 128
      %1489 = vxpose.xlu0.c.b16.cont [4/8] 0, 128
      %1490 = vxpose.xlu0.c.b16.cont [5/8] 0, 128
      %1491 = vxpose.xlu0.c.b16.cont [6/8] 0, 128
      %1492 = vxpose.xlu0.c.b16.cont [7/8] 0, 128
      %1493 = vxpose.xlu0.c.b16.end [8/8] 0, 128
      %v1494 = vpop.trf.xlu0
      %v1495 = vpop.trf.xlu0
      %v1496 = vpop.trf.xlu0
      %v1497 = vpop.trf.xlu0
      %v1498 = vpop.trf.xlu0
      %v1499 = vpop.trf.xlu0
      %v1500 = vpop.trf.xlu0
      %v1501 = vpop.trf.xlu0
      %1502 = vxpose.xlu0.c.b16.start [1/8] %v878, 128
      %1503 = vxpose.xlu0.c.b16.cont [2/8] 0, 128
      %1504 = vxpose.xlu0.c.b16.cont [3/8] 0, 128
      %1505 = vxpose.xlu0.c.b16.cont [4/8] 0, 128
      %1506 = vxpose.xlu0.c.b16.cont [5/8] 0, 128
      %1507 = vxpose.xlu0.c.b16.cont [6/8] 0, 128
      %1508 = vxpose.xlu0.c.b16.cont [7/8] 0, 128
      %1509 = vxpose.xlu0.c.b16.end [8/8] 0, 128
      %v1510 = vpop.trf.xlu0
      %v1511 = vpop.trf.xlu0
      %v1512 = vpop.trf.xlu0
      %v1513 = vpop.trf.xlu0
      %v1514 = vpop.trf.xlu0
      %v1515 = vpop.trf.xlu0
      %v1516 = vpop.trf.xlu0
      %v1517 = vpop.trf.xlu0
      %1518 = vxpose.xlu0.c.b16.start [1/8] %v946, 128
      %1519 = vxpose.xlu0.c.b16.cont [2/8] 0, 128
      %1520 = vxpose.xlu0.c.b16.cont [3/8] 0, 128
      %1521 = vxpose.xlu0.c.b16.cont [4/8] 0, 128
      %1522 = vxpose.xlu0.c.b16.cont [5/8] 0, 128
      %1523 = vxpose.xlu0.c.b16.cont [6/8] 0, 128
      %1524 = vxpose.xlu0.c.b16.cont [7/8] 0, 128
      %1525 = vxpose.xlu0.c.b16.end [8/8] 0, 128
      %v1526 = vpop.trf.xlu0
      %v1527 = vpop.trf.xlu0
      %v1528 = vpop.trf.xlu0
      %v1529 = vpop.trf.xlu0
      %v1530 = vpop.trf.xlu0
      %v1531 = vpop.trf.xlu0
      %v1532 = vpop.trf.xlu0
      %v1533 = vpop.trf.xlu0
      %1534 = vxpose.xlu0.c.b16.start [1/8] %v902, 128
      %1535 = vxpose.xlu0.c.b16.cont [2/8] 0, 128
      %1536 = vxpose.xlu0.c.b16.cont [3/8] 0, 128
      %1537 = vxpose.xlu0.c.b16.cont [4/8] 0, 128
      %1538 = vxpose.xlu0.c.b16.cont [5/8] 0, 128
      %1539 = vxpose.xlu0.c.b16.cont [6/8] 0, 128
      %1540 = vxpose.xlu0.c.b16.cont [7/8] 0, 128
      %1541 = vxpose.xlu0.c.b16.end [8/8] 0, 128
      %v1542 = vpop.trf.xlu0
      %v1543 = vpop.trf.xlu0
      %v1544 = vpop.trf.xlu0
      %v1545 = vpop.trf.xlu0
      %v1546 = vpop.trf.xlu0
      %v1547 = vpop.trf.xlu0
      %v1548 = vpop.trf.xlu0
      %v1549 = vpop.trf.xlu0
      %1550 = vxpose.xlu0.c.b16.start [1/8] %v970, 128
      %1551 = vxpose.xlu0.c.b16.cont [2/8] 0, 128
      %1552 = vxpose.xlu0.c.b16.cont [3/8] 0, 128
      %1553 = vxpose.xlu0.c.b16.cont [4/8] 0, 128
      %1554 = vxpose.xlu0.c.b16.cont [5/8] 0, 128
      %1555 = vxpose.xlu0.c.b16.cont [6/8] 0, 128
      %1556 = vxpose.xlu0.c.b16.cont [7/8] 0, 128
      %1557 = vxpose.xlu0.c.b16.end [8/8] 0, 128
      %v1558 = vpop.trf.xlu0
      %v1559 = vpop.trf.xlu0
      %v1560 = vpop.trf.xlu0
      %v1561 = vpop.trf.xlu0
      %v1562 = vpop.trf.xlu0
      %v1563 = vpop.trf.xlu0
      %v1564 = vpop.trf.xlu0
      %v1565 = vpop.trf.xlu0
      %1566 = vxpose.xlu0.c.b16.start [1/8] %v885, 128
      %1567 = vxpose.xlu0.c.b16.cont [2/8] 0, 128
      %1568 = vxpose.xlu0.c.b16.cont [3/8] 0, 128
      %1569 = vxpose.xlu0.c.b16.cont [4/8] 0, 128
      %1570 = vxpose.xlu0.c.b16.cont [5/8] 0, 128
      %1571 = vxpose.xlu0.c.b16.cont [6/8] 0, 128
      %1572 = vxpose.xlu0.c.b16.cont [7/8] 0, 128
      %1573 = vxpose.xlu0.c.b16.end [8/8] 0, 128
      %v1574 = vpop.trf.xlu0
      %v1575 = vpop.trf.xlu0
      %v1576 = vpop.trf.xlu0
      %v1577 = vpop.trf.xlu0
      %v1578 = vpop.trf.xlu0
      %v1579 = vpop.trf.xlu0
      %v1580 = vpop.trf.xlu0
      %v1581 = vpop.trf.xlu0
      %1582 = vxpose.xlu0.c.b16.start [1/8] %v953, 128
      %1583 = vxpose.xlu0.c.b16.cont [2/8] 0, 128
      %1584 = vxpose.xlu0.c.b16.cont [3/8] 0, 128
      %1585 = vxpose.xlu0.c.b16.cont [4/8] 0, 128
      %1586 = vxpose.xlu0.c.b16.cont [5/8] 0, 128
      %1587 = vxpose.xlu0.c.b16.cont [6/8] 0, 128
      %1588 = vxpose.xlu0.c.b16.cont [7/8] 0, 128
      %1589 = vxpose.xlu0.c.b16.end [8/8] 0, 128
      %v1590 = vpop.trf.xlu0
      %v1591 = vpop.trf.xlu0
      %v1592 = vpop.trf.xlu0
      %v1593 = vpop.trf.xlu0
      %v1594 = vpop.trf.xlu0
      %v1595 = vpop.trf.xlu0
      %v1596 = vpop.trf.xlu0
      %v1597 = vpop.trf.xlu0
      %1598 = vxpose.xlu0.c.b16.start [1/8] %v903, 128
      %1599 = vxpose.xlu0.c.b16.cont [2/8] 0, 128
      %1600 = vxpose.xlu0.c.b16.cont [3/8] 0, 128
      %1601 = vxpose.xlu0.c.b16.cont [4/8] 0, 128
      %1602 = vxpose.xlu0.c.b16.cont [5/8] 0, 128
      %1603 = vxpose.xlu0.c.b16.cont [6/8] 0, 128
      %1604 = vxpose.xlu0.c.b16.cont [7/8] 0, 128
      %1605 = vxpose.xlu0.c.b16.end [8/8] 0, 128
      %v1606 = vpop.trf.xlu0
      %v1607 = vpop.trf.xlu0
      %v1608 = vpop.trf.xlu0
      %v1609 = vpop.trf.xlu0
      %v1610 = vpop.trf.xlu0
      %v1611 = vpop.trf.xlu0
      %v1612 = vpop.trf.xlu0
      %v1613 = vpop.trf.xlu0
      %1614 = vxpose.xlu0.c.b16.start [1/8] %v971, 128
      %1615 = vxpose.xlu0.c.b16.cont [2/8] 0, 128
      %1616 = vxpose.xlu0.c.b16.cont [3/8] 0, 128
      %1617 = vxpose.xlu0.c.b16.cont [4/8] 0, 128
      %1618 = vxpose.xlu0.c.b16.cont [5/8] 0, 128
      %1619 = vxpose.xlu0.c.b16.cont [6/8] 0, 128
      %1620 = vxpose.xlu0.c.b16.cont [7/8] 0, 128
      %1621 = vxpose.xlu0.c.b16.end [8/8] 0, 128
      %v1622 = vpop.trf.xlu0
      %v1623 = vpop.trf.xlu0
      %v1624 = vpop.trf.xlu0
      %v1625 = vpop.trf.xlu0
      %v1626 = vpop.trf.xlu0
      %v1627 = vpop.trf.xlu0
      %v1628 = vpop.trf.xlu0
      %v1629 = vpop.trf.xlu0
      %1630 = vxpose.xlu0.c.b16.start [1/8] %v894, 128
      %1631 = vxpose.xlu0.c.b16.cont [2/8] 0, 128
      %1632 = vxpose.xlu0.c.b16.cont [3/8] 0, 128
      %1633 = vxpose.xlu0.c.b16.cont [4/8] 0, 128
      %1634 = vxpose.xlu0.c.b16.cont [5/8] 0, 128
      %1635 = vxpose.xlu0.c.b16.cont [6/8] 0, 128
      %1636 = vxpose.xlu0.c.b16.cont [7/8] 0, 128
      %1637 = vxpose.xlu0.c.b16.end [8/8] 0, 128
      %v1638 = vpop.trf.xlu0
      %v1639 = vpop.trf.xlu0
      %v1640 = vpop.trf.xlu0
      %v1641 = vpop.trf.xlu0
      %v1642 = vpop.trf.xlu0
      %v1643 = vpop.trf.xlu0
      %v1644 = vpop.trf.xlu0
      %v1645 = vpop.trf.xlu0
      %1646 = vxpose.xlu0.c.b16.start [1/8] %v962, 128
      %1647 = vxpose.xlu0.c.b16.cont [2/8] 0, 128
      %1648 = vxpose.xlu0.c.b16.cont [3/8] 0, 128
      %1649 = vxpose.xlu0.c.b16.cont [4/8] 0, 128
      %1650 = vxpose.xlu0.c.b16.cont [5/8] 0, 128
      %1651 = vxpose.xlu0.c.b16.cont [6/8] 0, 128
      %1652 = vxpose.xlu0.c.b16.cont [7/8] 0, 128
      %1653 = vxpose.xlu0.c.b16.end [8/8] 0, 128
      %v1654 = vpop.trf.xlu0
      %v1655 = vpop.trf.xlu0
      %v1656 = vpop.trf.xlu0
      %v1657 = vpop.trf.xlu0
      %v1658 = vpop.trf.xlu0
      %v1659 = vpop.trf.xlu0
      %v1660 = vpop.trf.xlu0
      %v1661 = vpop.trf.xlu0
      %1662 = vxpose.xlu0.c.b16.start [1/8] %v904, 128
      %1663 = vxpose.xlu0.c.b16.cont [2/8] 0, 128
      %1664 = vxpose.xlu0.c.b16.cont [3/8] 0, 128
      %1665 = vxpose.xlu0.c.b16.cont [4/8] 0, 128
      %1666 = vxpose.xlu0.c.b16.cont [5/8] 0, 128
      %1667 = vxpose.xlu0.c.b16.cont [6/8] 0, 128
      %1668 = vxpose.xlu0.c.b16.cont [7/8] 0, 128
      %1669 = vxpose.xlu0.c.b16.end [8/8] 0, 128
      %v1670 = vpop.trf.xlu0
      %v1671 = vpop.trf.xlu0
      %v1672 = vpop.trf.xlu0
      %v1673 = vpop.trf.xlu0
      %v1674 = vpop.trf.xlu0
      %v1675 = vpop.trf.xlu0
      %v1676 = vpop.trf.xlu0
      %v1677 = vpop.trf.xlu0
      %1678 = vxpose.xlu0.c.b16.start [1/8] %v972, 128
      %1679 = vxpose.xlu0.c.b16.cont [2/8] 0, 128
      %1680 = vxpose.xlu0.c.b16.cont [3/8] 0, 128
      %1681 = vxpose.xlu0.c.b16.cont [4/8] 0, 128
      %1682 = vxpose.xlu0.c.b16.cont [5/8] 0, 128
      %1683 = vxpose.xlu0.c.b16.cont [6/8] 0, 128
      %1684 = vxpose.xlu0.c.b16.cont [7/8] 0, 128
      %1685 = vxpose.xlu0.c.b16.end [8/8] 0, 128
      %v1686 = vpop.trf.xlu0
      %v1687 = vpop.trf.xlu0
      %v1688 = vpop.trf.xlu0
      %v1689 = vpop.trf.xlu0
      %v1690 = vpop.trf.xlu0
      %v1691 = vpop.trf.xlu0
      %v1692 = vpop.trf.xlu0
      %v1693 = vpop.trf.xlu0
      %1694 = vxpose.xlu0.c.b16.start [1/8] %v901, 128
      %1695 = vxpose.xlu0.c.b16.cont [2/8] 0, 128
      %1696 = vxpose.xlu0.c.b16.cont [3/8] 0, 128
      %1697 = vxpose.xlu0.c.b16.cont [4/8] 0, 128
      %1698 = vxpose.xlu0.c.b16.cont [5/8] 0, 128
      %1699 = vxpose.xlu0.c.b16.cont [6/8] 0, 128
      %1700 = vxpose.xlu0.c.b16.cont [7/8] 0, 128
      %1701 = vxpose.xlu0.c.b16.end [8/8] 0, 128
      %v1702 = vpop.trf.xlu0
      %v1703 = vpop.trf.xlu0
      %v1704 = vpop.trf.xlu0
      %v1705 = vpop.trf.xlu0
      %v1706 = vpop.trf.xlu0
      %v1707 = vpop.trf.xlu0
      %v1708 = vpop.trf.xlu0
      %v1709 = vpop.trf.xlu0
      %1710 = vxpose.xlu0.c.b16.start [1/8] %v969, 128
      %1711 = vxpose.xlu0.c.b16.cont [2/8] 0, 128
      %1712 = vxpose.xlu0.c.b16.cont [3/8] 0, 128
      %1713 = vxpose.xlu0.c.b16.cont [4/8] 0, 128
      %1714 = vxpose.xlu0.c.b16.cont [5/8] 0, 128
      %1715 = vxpose.xlu0.c.b16.cont [6/8] 0, 128
      %1716 = vxpose.xlu0.c.b16.cont [7/8] 0, 128
      %1717 = vxpose.xlu0.c.b16.end [8/8] 0, 128
      %v1718 = vpop.trf.xlu0
      %v1719 = vpop.trf.xlu0
      %v1720 = vpop.trf.xlu0
      %v1721 = vpop.trf.xlu0
      %v1722 = vpop.trf.xlu0
      %v1723 = vpop.trf.xlu0
      %v1724 = vpop.trf.xlu0
      %v1725 = vpop.trf.xlu0
      %1726 = vxpose.xlu0.c.b16.start [1/8] %v905, 128
      %1727 = vxpose.xlu0.c.b16.cont [2/8] 0, 128
      %1728 = vxpose.xlu0.c.b16.cont [3/8] 0, 128
      %1729 = vxpose.xlu0.c.b16.cont [4/8] 0, 128
      %1730 = vxpose.xlu0.c.b16.cont [5/8] 0, 128
      %1731 = vxpose.xlu0.c.b16.cont [6/8] 0, 128
      %1732 = vxpose.xlu0.c.b16.cont [7/8] 0, 128
      %1733 = vxpose.xlu0.c.b16.end [8/8] 0, 128
      %v1734 = vpop.trf.xlu0
      %v1735 = vpop.trf.xlu0
      %v1736 = vpop.trf.xlu0
      %v1737 = vpop.trf.xlu0
      %v1738 = vpop.trf.xlu0
      %v1739 = vpop.trf.xlu0
      %v1740 = vpop.trf.xlu0
      %v1741 = vpop.trf.xlu0
      %1742 = vxpose.xlu0.c.b16.start [1/8] %v973, 128
      %1743 = vxpose.xlu0.c.b16.cont [2/8] 0, 128
      %1744 = vxpose.xlu0.c.b16.cont [3/8] 0, 128
      %1745 = vxpose.xlu0.c.b16.cont [4/8] 0, 128
      %1746 = vxpose.xlu0.c.b16.cont [5/8] 0, 128
      %1747 = vxpose.xlu0.c.b16.cont [6/8] 0, 128
      %1748 = vxpose.xlu0.c.b16.cont [7/8] 0, 128
      %1749 = vxpose.xlu0.c.b16.end [8/8] 0, 128
      %v1750 = vpop.trf.xlu0
      %v1751 = vpop.trf.xlu0
      %v1752 = vpop.trf.xlu0
      %v1753 = vpop.trf.xlu0
      %v1754 = vpop.trf.xlu0
      %v1755 = vpop.trf.xlu0
      %v1756 = vpop.trf.xlu0
      %v1757 = vpop.trf.xlu0
      %1758 = vxpose.xlu0.c.b16.start [1/8] %v1014, 128
      %1759 = vxpose.xlu0.c.b16.cont [2/8] 0, 128
      %1760 = vxpose.xlu0.c.b16.cont [3/8] 0, 128
      %1761 = vxpose.xlu0.c.b16.cont [4/8] 0, 128
      %1762 = vxpose.xlu0.c.b16.cont [5/8] 0, 128
      %1763 = vxpose.xlu0.c.b16.cont [6/8] 0, 128
      %1764 = vxpose.xlu0.c.b16.cont [7/8] 0, 128
      %1765 = vxpose.xlu0.c.b16.end [8/8] 0, 128
      %v1766 = vpop.trf.xlu0
      %v1767 = vpop.trf.xlu0
      %v1768 = vpop.trf.xlu0
      %v1769 = vpop.trf.xlu0
      %v1770 = vpop.trf.xlu0
      %v1771 = vpop.trf.xlu0
      %v1772 = vpop.trf.xlu0
      %v1773 = vpop.trf.xlu0
      %1774 = vxpose.xlu0.c.b16.start [1/8] %v1082, 128
      %1775 = vxpose.xlu0.c.b16.cont [2/8] 0, 128
      %1776 = vxpose.xlu0.c.b16.cont [3/8] 0, 128
      %1777 = vxpose.xlu0.c.b16.cont [4/8] 0, 128
      %1778 = vxpose.xlu0.c.b16.cont [5/8] 0, 128
      %1779 = vxpose.xlu0.c.b16.cont [6/8] 0, 128
      %1780 = vxpose.xlu0.c.b16.cont [7/8] 0, 128
      %1781 = vxpose.xlu0.c.b16.end [8/8] 0, 128
      %v1782 = vpop.trf.xlu0
      %v1783 = vpop.trf.xlu0
      %v1784 = vpop.trf.xlu0
      %v1785 = vpop.trf.xlu0
      %v1786 = vpop.trf.xlu0
      %v1787 = vpop.trf.xlu0
      %v1788 = vpop.trf.xlu0
      %v1789 = vpop.trf.xlu0
      %1790 = vxpose.xlu0.c.b16.start [1/8] %v1038, 128
      %1791 = vxpose.xlu0.c.b16.cont [2/8] 0, 128
      %1792 = vxpose.xlu0.c.b16.cont [3/8] 0, 128
      %1793 = vxpose.xlu0.c.b16.cont [4/8] 0, 128
      %1794 = vxpose.xlu0.c.b16.cont [5/8] 0, 128
      %1795 = vxpose.xlu0.c.b16.cont [6/8] 0, 128
      %1796 = vxpose.xlu0.c.b16.cont [7/8] 0, 128
      %1797 = vxpose.xlu0.c.b16.end [8/8] 0, 128
      %v1798 = vpop.trf.xlu0
      %v1799 = vpop.trf.xlu0
      %v1800 = vpop.trf.xlu0
      %v1801 = vpop.trf.xlu0
      %v1802 = vpop.trf.xlu0
      %v1803 = vpop.trf.xlu0
      %v1804 = vpop.trf.xlu0
      %v1805 = vpop.trf.xlu0
      %1806 = vxpose.xlu0.c.b16.start [1/8] %v1106, 128
      %1807 = vxpose.xlu0.c.b16.cont [2/8] 0, 128
      %1808 = vxpose.xlu0.c.b16.cont [3/8] 0, 128
      %1809 = vxpose.xlu0.c.b16.cont [4/8] 0, 128
      %1810 = vxpose.xlu0.c.b16.cont [5/8] 0, 128
      %1811 = vxpose.xlu0.c.b16.cont [6/8] 0, 128
      %1812 = vxpose.xlu0.c.b16.cont [7/8] 0, 128
      %1813 = vxpose.xlu0.c.b16.end [8/8] 0, 128
      %v1814 = vpop.trf.xlu0
      %v1815 = vpop.trf.xlu0
      %v1816 = vpop.trf.xlu0
      %v1817 = vpop.trf.xlu0
      %v1818 = vpop.trf.xlu0
      %v1819 = vpop.trf.xlu0
      %v1820 = vpop.trf.xlu0
      %v1821 = vpop.trf.xlu0
      %1822 = vxpose.xlu0.c.b16.start [1/8] %v1021, 128
      %1823 = vxpose.xlu0.c.b16.cont [2/8] 0, 128
      %1824 = vxpose.xlu0.c.b16.cont [3/8] 0, 128
      %1825 = vxpose.xlu0.c.b16.cont [4/8] 0, 128
      %1826 = vxpose.xlu0.c.b16.cont [5/8] 0, 128
      %1827 = vxpose.xlu0.c.b16.cont [6/8] 0, 128
      %1828 = vxpose.xlu0.c.b16.cont [7/8] 0, 128
      %1829 = vxpose.xlu0.c.b16.end [8/8] 0, 128
      %v1830 = vpop.trf.xlu0
      %v1831 = vpop.trf.xlu0
      %v1832 = vpop.trf.xlu0
      %v1833 = vpop.trf.xlu0
      %v1834 = vpop.trf.xlu0
      %v1835 = vpop.trf.xlu0
      %v1836 = vpop.trf.xlu0
      %v1837 = vpop.trf.xlu0
      %1838 = vxpose.xlu0.c.b16.start [1/8] %v1089, 128
      %1839 = vxpose.xlu0.c.b16.cont [2/8] 0, 128
      %1840 = vxpose.xlu0.c.b16.cont [3/8] 0, 128
      %1841 = vxpose.xlu0.c.b16.cont [4/8] 0, 128
      %1842 = vxpose.xlu0.c.b16.cont [5/8] 0, 128
      %1843 = vxpose.xlu0.c.b16.cont [6/8] 0, 128
      %1844 = vxpose.xlu0.c.b16.cont [7/8] 0, 128
      %1845 = vxpose.xlu0.c.b16.end [8/8] 0, 128
      %v1846 = vpop.trf.xlu0
      %v1847 = vpop.trf.xlu0
      %v1848 = vpop.trf.xlu0
      %v1849 = vpop.trf.xlu0
      %v1850 = vpop.trf.xlu0
      %v1851 = vpop.trf.xlu0
      %v1852 = vpop.trf.xlu0
      %v1853 = vpop.trf.xlu0
      %1854 = vxpose.xlu0.c.b16.start [1/8] %v1039, 128
      %1855 = vxpose.xlu0.c.b16.cont [2/8] 0, 128
      %1856 = vxpose.xlu0.c.b16.cont [3/8] 0, 128
      %1857 = vxpose.xlu0.c.b16.cont [4/8] 0, 128
      %1858 = vxpose.xlu0.c.b16.cont [5/8] 0, 128
      %1859 = vxpose.xlu0.c.b16.cont [6/8] 0, 128
      %1860 = vxpose.xlu0.c.b16.cont [7/8] 0, 128
      %1861 = vxpose.xlu0.c.b16.end [8/8] 0, 128
      %v1862 = vpop.trf.xlu0
      %v1863 = vpop.trf.xlu0
      %v1864 = vpop.trf.xlu0
      %v1865 = vpop.trf.xlu0
      %v1866 = vpop.trf.xlu0
      %v1867 = vpop.trf.xlu0
      %v1868 = vpop.trf.xlu0
      %v1869 = vpop.trf.xlu0
      %1870 = vxpose.xlu0.c.b16.start [1/8] %v1107, 128
      %1871 = vxpose.xlu0.c.b16.cont [2/8] 0, 128
      %1872 = vxpose.xlu0.c.b16.cont [3/8] 0, 128
      %1873 = vxpose.xlu0.c.b16.cont [4/8] 0, 128
      %1874 = vxpose.xlu0.c.b16.cont [5/8] 0, 128
      %1875 = vxpose.xlu0.c.b16.cont [6/8] 0, 128
      %1876 = vxpose.xlu0.c.b16.cont [7/8] 0, 128
      %1877 = vxpose.xlu0.c.b16.end [8/8] 0, 128
      %v1878 = vpop.trf.xlu0
      %v1879 = vpop.trf.xlu0
      %v1880 = vpop.trf.xlu0
      %v1881 = vpop.trf.xlu0
      %v1882 = vpop.trf.xlu0
      %v1883 = vpop.trf.xlu0
      %v1884 = vpop.trf.xlu0
      %v1885 = vpop.trf.xlu0
      %1886 = vxpose.xlu0.c.b16.start [1/8] %v1030, 128
      %1887 = vxpose.xlu0.c.b16.cont [2/8] 0, 128
      %1888 = vxpose.xlu0.c.b16.cont [3/8] 0, 128
      %1889 = vxpose.xlu0.c.b16.cont [4/8] 0, 128
      %1890 = vxpose.xlu0.c.b16.cont [5/8] 0, 128
      %1891 = vxpose.xlu0.c.b16.cont [6/8] 0, 128
      %1892 = vxpose.xlu0.c.b16.cont [7/8] 0, 128
      %1893 = vxpose.xlu0.c.b16.end [8/8] 0, 128
      %v1894 = vpop.trf.xlu0
      %v1895 = vpop.trf.xlu0
      %v1896 = vpop.trf.xlu0
      %v1897 = vpop.trf.xlu0
      %v1898 = vpop.trf.xlu0
      %v1899 = vpop.trf.xlu0
      %v1900 = vpop.trf.xlu0
      %v1901 = vpop.trf.xlu0
      %1902 = vxpose.xlu0.c.b16.start [1/8] %v1098, 128
      %1903 = vxpose.xlu0.c.b16.cont [2/8] 0, 128
      %1904 = vxpose.xlu0.c.b16.cont [3/8] 0, 128
      %1905 = vxpose.xlu0.c.b16.cont [4/8] 0, 128
      %1906 = vxpose.xlu0.c.b16.cont [5/8] 0, 128
      %1907 = vxpose.xlu0.c.b16.cont [6/8] 0, 128
      %1908 = vxpose.xlu0.c.b16.cont [7/8] 0, 128
      %1909 = vxpose.xlu0.c.b16.end [8/8] 0, 128
      %v1910 = vpop.trf.xlu0
      %v1911 = vpop.trf.xlu0
      %v1912 = vpop.trf.xlu0
      %v1913 = vpop.trf.xlu0
      %v1914 = vpop.trf.xlu0
      %v1915 = vpop.trf.xlu0
      %v1916 = vpop.trf.xlu0
      %v1917 = vpop.trf.xlu0
      %1918 = vxpose.xlu0.c.b16.start [1/8] %v1040, 128
      %1919 = vxpose.xlu0.c.b16.cont [2/8] 0, 128
      %1920 = vxpose.xlu0.c.b16.cont [3/8] 0, 128
      %1921 = vxpose.xlu0.c.b16.cont [4/8] 0, 128
      %1922 = vxpose.xlu0.c.b16.cont [5/8] 0, 128
      %1923 = vxpose.xlu0.c.b16.cont [6/8] 0, 128
      %1924 = vxpose.xlu0.c.b16.cont [7/8] 0, 128
      %1925 = vxpose.xlu0.c.b16.end [8/8] 0, 128
      %v1926 = vpop.trf.xlu0
      %v1927 = vpop.trf.xlu0
      %v1928 = vpop.trf.xlu0
      %v1929 = vpop.trf.xlu0
      %v1930 = vpop.trf.xlu0
      %v1931 = vpop.trf.xlu0
      %v1932 = vpop.trf.xlu0
      %v1933 = vpop.trf.xlu0
      %1934 = vxpose.xlu0.c.b16.start [1/8] %v1108, 128
      %1935 = vxpose.xlu0.c.b16.cont [2/8] 0, 128
      %1936 = vxpose.xlu0.c.b16.cont [3/8] 0, 128
      %1937 = vxpose.xlu0.c.b16.cont [4/8] 0, 128
      %1938 = vxpose.xlu0.c.b16.cont [5/8] 0, 128
      %1939 = vxpose.xlu0.c.b16.cont [6/8] 0, 128
      %1940 = vxpose.xlu0.c.b16.cont [7/8] 0, 128
      %1941 = vxpose.xlu0.c.b16.end [8/8] 0, 128
      %v1942 = vpop.trf.xlu0
      %v1943 = vpop.trf.xlu0
      %v1944 = vpop.trf.xlu0
      %v1945 = vpop.trf.xlu0
      %v1946 = vpop.trf.xlu0
      %v1947 = vpop.trf.xlu0
      %v1948 = vpop.trf.xlu0
      %v1949 = vpop.trf.xlu0
      %1950 = vxpose.xlu0.c.b16.start [1/8] %v1037, 128
      %1951 = vxpose.xlu0.c.b16.cont [2/8] 0, 128
      %1952 = vxpose.xlu0.c.b16.cont [3/8] 0, 128
      %1953 = vxpose.xlu0.c.b16.cont [4/8] 0, 128
      %1954 = vxpose.xlu0.c.b16.cont [5/8] 0, 128
      %1955 = vxpose.xlu0.c.b16.cont [6/8] 0, 128
      %1956 = vxpose.xlu0.c.b16.cont [7/8] 0, 128
      %1957 = vxpose.xlu0.c.b16.end [8/8] 0, 128
      %v1958 = vpop.trf.xlu0
      %v1959 = vpop.trf.xlu0
      %v1960 = vpop.trf.xlu0
      %v1961 = vpop.trf.xlu0
      %v1962 = vpop.trf.xlu0
      %v1963 = vpop.trf.xlu0
      %v1964 = vpop.trf.xlu0
      %v1965 = vpop.trf.xlu0
      %1966 = vxpose.xlu0.c.b16.start [1/8] %v1105, 128
      %1967 = vxpose.xlu0.c.b16.cont [2/8] 0, 128
      %1968 = vxpose.xlu0.c.b16.cont [3/8] 0, 128
      %1969 = vxpose.xlu0.c.b16.cont [4/8] 0, 128
      %1970 = vxpose.xlu0.c.b16.cont [5/8] 0, 128
      %1971 = vxpose.xlu0.c.b16.cont [6/8] 0, 128
      %1972 = vxpose.xlu0.c.b16.cont [7/8] 0, 128
      %1973 = vxpose.xlu0.c.b16.end [8/8] 0, 128
      %v1974 = vpop.trf.xlu0
      %v1975 = vpop.trf.xlu0
      %v1976 = vpop.trf.xlu0
      %v1977 = vpop.trf.xlu0
      %v1978 = vpop.trf.xlu0
      %v1979 = vpop.trf.xlu0
      %v1980 = vpop.trf.xlu0
      %v1981 = vpop.trf.xlu0
      %1982 = vxpose.xlu0.c.b16.start [1/8] %v1041, 128
      %1983 = vxpose.xlu0.c.b16.cont [2/8] 0, 128
      %1984 = vxpose.xlu0.c.b16.cont [3/8] 0, 128
      %1985 = vxpose.xlu0.c.b16.cont [4/8] 0, 128
      %1986 = vxpose.xlu0.c.b16.cont [5/8] 0, 128
      %1987 = vxpose.xlu0.c.b16.cont [6/8] 0, 128
      %1988 = vxpose.xlu0.c.b16.cont [7/8] 0, 128
      %1989 = vxpose.xlu0.c.b16.end [8/8] 0, 128
      %v1990 = vpop.trf.xlu0
      %v1991 = vpop.trf.xlu0
      %v1992 = vpop.trf.xlu0
      %v1993 = vpop.trf.xlu0
      %v1994 = vpop.trf.xlu0
      %v1995 = vpop.trf.xlu0
      %v1996 = vpop.trf.xlu0
      %v1997 = vpop.trf.xlu0
      %1998 = vxpose.xlu0.c.b16.start [1/8] %v1109, 128
      %1999 = vxpose.xlu0.c.b16.cont [2/8] 0, 128
      %2000 = vxpose.xlu0.c.b16.cont [3/8] 0, 128
      %2001 = vxpose.xlu0.c.b16.cont [4/8] 0, 128
      %2002 = vxpose.xlu0.c.b16.cont [5/8] 0, 128
      %2003 = vxpose.xlu0.c.b16.cont [6/8] 0, 128
      %2004 = vxpose.xlu0.c.b16.cont [7/8] 0, 128
      %2005 = vxpose.xlu0.c.b16.end [8/8] 0, 128
      %v2006 = vpop.trf.xlu0
      %v2007 = vpop.trf.xlu0
      %v2008 = vpop.trf.xlu0
      %v2009 = vpop.trf.xlu0
      %v2010 = vpop.trf.xlu0
      %v2011 = vpop.trf.xlu0
      %v2012 = vpop.trf.xlu0
      %v2013 = vpop.trf.xlu0
      %2014 = vxpose.xlu0.c.b16.start [1/8] %v1150, 128
      %2015 = vxpose.xlu0.c.b16.cont [2/8] 0, 128
      %2016 = vxpose.xlu0.c.b16.cont [3/8] 0, 128
      %2017 = vxpose.xlu0.c.b16.cont [4/8] 0, 128
      %2018 = vxpose.xlu0.c.b16.cont [5/8] 0, 128
      %2019 = vxpose.xlu0.c.b16.cont [6/8] 0, 128
      %2020 = vxpose.xlu0.c.b16.cont [7/8] 0, 128
      %2021 = vxpose.xlu0.c.b16.end [8/8] 0, 128
      %v2022 = vpop.trf.xlu0
      %v2023 = vpop.trf.xlu0
      %v2024 = vpop.trf.xlu0
      %v2025 = vpop.trf.xlu0
      %v2026 = vpop.trf.xlu0
      %v2027 = vpop.trf.xlu0
      %v2028 = vpop.trf.xlu0
      %v2029 = vpop.trf.xlu0
      %2030 = vxpose.xlu0.c.b16.start [1/8] %v1218, 128
      %2031 = vxpose.xlu0.c.b16.cont [2/8] 0, 128
      %2032 = vxpose.xlu0.c.b16.cont [3/8] 0, 128
      %2033 = vxpose.xlu0.c.b16.cont [4/8] 0, 128
      %2034 = vxpose.xlu0.c.b16.cont [5/8] 0, 128
      %2035 = vxpose.xlu0.c.b16.cont [6/8] 0, 128
      %2036 = vxpose.xlu0.c.b16.cont [7/8] 0, 128
      %2037 = vxpose.xlu0.c.b16.end [8/8] 0, 128
      %v2038 = vpop.trf.xlu0
      %v2039 = vpop.trf.xlu0
      %v2040 = vpop.trf.xlu0
      %v2041 = vpop.trf.xlu0
      %v2042 = vpop.trf.xlu0
      %v2043 = vpop.trf.xlu0
      %v2044 = vpop.trf.xlu0
      %v2045 = vpop.trf.xlu0
      %2046 = vxpose.xlu0.c.b16.start [1/8] %v1174, 128
      %2047 = vxpose.xlu0.c.b16.cont [2/8] 0, 128
      %2048 = vxpose.xlu0.c.b16.cont [3/8] 0, 128
      %2049 = vxpose.xlu0.c.b16.cont [4/8] 0, 128
      %2050 = vxpose.xlu0.c.b16.cont [5/8] 0, 128
      %2051 = vxpose.xlu0.c.b16.cont [6/8] 0, 128
      %2052 = vxpose.xlu0.c.b16.cont [7/8] 0, 128
      %2053 = vxpose.xlu0.c.b16.end [8/8] 0, 128
      %v2054 = vpop.trf.xlu0
      %v2055 = vpop.trf.xlu0
      %v2056 = vpop.trf.xlu0
      %v2057 = vpop.trf.xlu0
      %v2058 = vpop.trf.xlu0
      %v2059 = vpop.trf.xlu0
      %v2060 = vpop.trf.xlu0
      %v2061 = vpop.trf.xlu0
      %2062 = vxpose.xlu0.c.b16.start [1/8] %v1242, 128
      %2063 = vxpose.xlu0.c.b16.cont [2/8] 0, 128
      %2064 = vxpose.xlu0.c.b16.cont [3/8] 0, 128
      %2065 = vxpose.xlu0.c.b16.cont [4/8] 0, 128
      %2066 = vxpose.xlu0.c.b16.cont [5/8] 0, 128
      %2067 = vxpose.xlu0.c.b16.cont [6/8] 0, 128
      %2068 = vxpose.xlu0.c.b16.cont [7/8] 0, 128
      %2069 = vxpose.xlu0.c.b16.end [8/8] 0, 128
      %v2070 = vpop.trf.xlu0
      %v2071 = vpop.trf.xlu0
      %v2072 = vpop.trf.xlu0
      %v2073 = vpop.trf.xlu0
      %v2074 = vpop.trf.xlu0
      %v2075 = vpop.trf.xlu0
      %v2076 = vpop.trf.xlu0
      %v2077 = vpop.trf.xlu0
      %2078 = vxpose.xlu0.c.b16.start [1/8] %v1157, 128
      %2079 = vxpose.xlu0.c.b16.cont [2/8] 0, 128
      %2080 = vxpose.xlu0.c.b16.cont [3/8] 0, 128
      %2081 = vxpose.xlu0.c.b16.cont [4/8] 0, 128
      %2082 = vxpose.xlu0.c.b16.cont [5/8] 0, 128
      %2083 = vxpose.xlu0.c.b16.cont [6/8] 0, 128
      %2084 = vxpose.xlu0.c.b16.cont [7/8] 0, 128
      %2085 = vxpose.xlu0.c.b16.end [8/8] 0, 128
      %v2086 = vpop.trf.xlu0
      %v2087 = vpop.trf.xlu0
      %v2088 = vpop.trf.xlu0
      %v2089 = vpop.trf.xlu0
      %v2090 = vpop.trf.xlu0
      %v2091 = vpop.trf.xlu0
      %v2092 = vpop.trf.xlu0
      %v2093 = vpop.trf.xlu0
      %2094 = vxpose.xlu0.c.b16.start [1/8] %v1225, 128
      %2095 = vxpose.xlu0.c.b16.cont [2/8] 0, 128
      %2096 = vxpose.xlu0.c.b16.cont [3/8] 0, 128
      %2097 = vxpose.xlu0.c.b16.cont [4/8] 0, 128
      %2098 = vxpose.xlu0.c.b16.cont [5/8] 0, 128
      %2099 = vxpose.xlu0.c.b16.cont [6/8] 0, 128
      %2100 = vxpose.xlu0.c.b16.cont [7/8] 0, 128
      %2101 = vxpose.xlu0.c.b16.end [8/8] 0, 128
      %v2102 = vpop.trf.xlu0
      %v2103 = vpop.trf.xlu0
      %v2104 = vpop.trf.xlu0
      %v2105 = vpop.trf.xlu0
      %v2106 = vpop.trf.xlu0
      %v2107 = vpop.trf.xlu0
      %v2108 = vpop.trf.xlu0
      %v2109 = vpop.trf.xlu0
      %2110 = vxpose.xlu0.c.b16.start [1/8] %v1175, 128
      %2111 = vxpose.xlu0.c.b16.cont [2/8] 0, 128
      %2112 = vxpose.xlu0.c.b16.cont [3/8] 0, 128
      %2113 = vxpose.xlu0.c.b16.cont [4/8] 0, 128
      %2114 = vxpose.xlu0.c.b16.cont [5/8] 0, 128
      %2115 = vxpose.xlu0.c.b16.cont [6/8] 0, 128
      %2116 = vxpose.xlu0.c.b16.cont [7/8] 0, 128
      %2117 = vxpose.xlu0.c.b16.end [8/8] 0, 128
      %v2118 = vpop.trf.xlu0
      %v2119 = vpop.trf.xlu0
      %v2120 = vpop.trf.xlu0
      %v2121 = vpop.trf.xlu0
      %v2122 = vpop.trf.xlu0
      %v2123 = vpop.trf.xlu0
      %v2124 = vpop.trf.xlu0
      %v2125 = vpop.trf.xlu0
      %2126 = vxpose.xlu0.c.b16.start [1/8] %v1243, 128
      %2127 = vxpose.xlu0.c.b16.cont [2/8] 0, 128
      %2128 = vxpose.xlu0.c.b16.cont [3/8] 0, 128
      %2129 = vxpose.xlu0.c.b16.cont [4/8] 0, 128
      %2130 = vxpose.xlu0.c.b16.cont [5/8] 0, 128
      %2131 = vxpose.xlu0.c.b16.cont [6/8] 0, 128
      %2132 = vxpose.xlu0.c.b16.cont [7/8] 0, 128
      %2133 = vxpose.xlu0.c.b16.end [8/8] 0, 128
      %v2134 = vpop.trf.xlu0
      %v2135 = vpop.trf.xlu0
      %v2136 = vpop.trf.xlu0
      %v2137 = vpop.trf.xlu0
      %v2138 = vpop.trf.xlu0
      %v2139 = vpop.trf.xlu0
      %v2140 = vpop.trf.xlu0
      %v2141 = vpop.trf.xlu0
      %2142 = vxpose.xlu0.c.b16.start [1/8] %v1166, 128
      %2143 = vxpose.xlu0.c.b16.cont [2/8] 0, 128
      %2144 = vxpose.xlu0.c.b16.cont [3/8] 0, 128
      %2145 = vxpose.xlu0.c.b16.cont [4/8] 0, 128
      %2146 = vxpose.xlu0.c.b16.cont [5/8] 0, 128
      %2147 = vxpose.xlu0.c.b16.cont [6/8] 0, 128
      %2148 = vxpose.xlu0.c.b16.cont [7/8] 0, 128
      %2149 = vxpose.xlu0.c.b16.end [8/8] 0, 128
      %v2150 = vpop.trf.xlu0
      %v2151 = vpop.trf.xlu0
      %v2152 = vpop.trf.xlu0
      %v2153 = vpop.trf.xlu0
      %v2154 = vpop.trf.xlu0
      %v2155 = vpop.trf.xlu0
      %v2156 = vpop.trf.xlu0
      %v2157 = vpop.trf.xlu0
      %2158 = vxpose.xlu0.c.b16.start [1/8] %v1234, 128
      %2159 = vxpose.xlu0.c.b16.cont [2/8] 0, 128
      %2160 = vxpose.xlu0.c.b16.cont [3/8] 0, 128
      %2161 = vxpose.xlu0.c.b16.cont [4/8] 0, 128
      %2162 = vxpose.xlu0.c.b16.cont [5/8] 0, 128
      %2163 = vxpose.xlu0.c.b16.cont [6/8] 0, 128
      %2164 = vxpose.xlu0.c.b16.cont [7/8] 0, 128
      %2165 = vxpose.xlu0.c.b16.end [8/8] 0, 128
      %v2166 = vpop.trf.xlu0
      %v2167 = vpop.trf.xlu0
      %v2168 = vpop.trf.xlu0
      %v2169 = vpop.trf.xlu0
      %v2170 = vpop.trf.xlu0
      %v2171 = vpop.trf.xlu0
      %v2172 = vpop.trf.xlu0
      %v2173 = vpop.trf.xlu0
      %2174 = vxpose.xlu0.c.b16.start [1/8] %v1176, 128
      %2175 = vxpose.xlu0.c.b16.cont [2/8] 0, 128
      %2176 = vxpose.xlu0.c.b16.cont [3/8] 0, 128
      %2177 = vxpose.xlu0.c.b16.cont [4/8] 0, 128
      %2178 = vxpose.xlu0.c.b16.cont [5/8] 0, 128
      %2179 = vxpose.xlu0.c.b16.cont [6/8] 0, 128
      %2180 = vxpose.xlu0.c.b16.cont [7/8] 0, 128
      %2181 = vxpose.xlu0.c.b16.end [8/8] 0, 128
      %v2182 = vpop.trf.xlu0
      %v2183 = vpop.trf.xlu0
      %v2184 = vpop.trf.xlu0
      %v2185 = vpop.trf.xlu0
      %v2186 = vpop.trf.xlu0
      %v2187 = vpop.trf.xlu0
      %v2188 = vpop.trf.xlu0
      %v2189 = vpop.trf.xlu0
      %2190 = vxpose.xlu0.c.b16.start [1/8] %v1244, 128
      %2191 = vxpose.xlu0.c.b16.cont [2/8] 0, 128
      %2192 = vxpose.xlu0.c.b16.cont [3/8] 0, 128
      %2193 = vxpose.xlu0.c.b16.cont [4/8] 0, 128
      %2194 = vxpose.xlu0.c.b16.cont [5/8] 0, 128
      %2195 = vxpose.xlu0.c.b16.cont [6/8] 0, 128
      %2196 = vxpose.xlu0.c.b16.cont [7/8] 0, 128
      %2197 = vxpose.xlu0.c.b16.end [8/8] 0, 128
      %v2198 = vpop.trf.xlu0
      %v2199 = vpop.trf.xlu0
      %v2200 = vpop.trf.xlu0
      %v2201 = vpop.trf.xlu0
      %v2202 = vpop.trf.xlu0
      %v2203 = vpop.trf.xlu0
      %v2204 = vpop.trf.xlu0
      %v2205 = vpop.trf.xlu0
      %2206 = vxpose.xlu0.c.b16.start [1/8] %v1173, 128
      %2207 = vxpose.xlu0.c.b16.cont [2/8] 0, 128
      %2208 = vxpose.xlu0.c.b16.cont [3/8] 0, 128
      %2209 = vxpose.xlu0.c.b16.cont [4/8] 0, 128
      %2210 = vxpose.xlu0.c.b16.cont [5/8] 0, 128
      %2211 = vxpose.xlu0.c.b16.cont [6/8] 0, 128
      %2212 = vxpose.xlu0.c.b16.cont [7/8] 0, 128
      %2213 = vxpose.xlu0.c.b16.end [8/8] 0, 128
      %v2214 = vpop.trf.xlu0
      %v2215 = vpop.trf.xlu0
      %v2216 = vpop.trf.xlu0
      %v2217 = vpop.trf.xlu0
      %v2218 = vpop.trf.xlu0
      %v2219 = vpop.trf.xlu0
      %v2220 = vpop.trf.xlu0
      %v2221 = vpop.trf.xlu0
      %2222 = vxpose.xlu0.c.b16.start [1/8] %v1241, 128
      %2223 = vxpose.xlu0.c.b16.cont [2/8] 0, 128
      %2224 = vxpose.xlu0.c.b16.cont [3/8] 0, 128
      %2225 = vxpose.xlu0.c.b16.cont [4/8] 0, 128
      %2226 = vxpose.xlu0.c.b16.cont [5/8] 0, 128
      %2227 = vxpose.xlu0.c.b16.cont [6/8] 0, 128
      %2228 = vxpose.xlu0.c.b16.cont [7/8] 0, 128
      %2229 = vxpose.xlu0.c.b16.end [8/8] 0, 128
      %v2230 = vpop.trf.xlu0
      %v2231 = vpop.trf.xlu0
      %v2232 = vpop.trf.xlu0
      %v2233 = vpop.trf.xlu0
      %v2234 = vpop.trf.xlu0
      %v2235 = vpop.trf.xlu0
      %v2236 = vpop.trf.xlu0
      %v2237 = vpop.trf.xlu0
      %2238 = vxpose.xlu0.c.b16.start [1/8] %v1177, 128
      %2239 = vxpose.xlu0.c.b16.cont [2/8] 0, 128
      %2240 = vxpose.xlu0.c.b16.cont [3/8] 0, 128
      %2241 = vxpose.xlu0.c.b16.cont [4/8] 0, 128
      %2242 = vxpose.xlu0.c.b16.cont [5/8] 0, 128
      %2243 = vxpose.xlu0.c.b16.cont [6/8] 0, 128
      %2244 = vxpose.xlu0.c.b16.cont [7/8] 0, 128
      %2245 = vxpose.xlu0.c.b16.end [8/8] 0, 128
      %v2246 = vpop.trf.xlu0
      %v2247 = vpop.trf.xlu0
      %v2248 = vpop.trf.xlu0
      %v2249 = vpop.trf.xlu0
      %v2250 = vpop.trf.xlu0
      %v2251 = vpop.trf.xlu0
      %v2252 = vpop.trf.xlu0
      %v2253 = vpop.trf.xlu0
      %2254 = vxpose.xlu0.c.b16.start [1/8] %v1245, 128
      %2255 = vxpose.xlu0.c.b16.cont [2/8] 0, 128
      %2256 = vxpose.xlu0.c.b16.cont [3/8] 0, 128
      %2257 = vxpose.xlu0.c.b16.cont [4/8] 0, 128
      %2258 = vxpose.xlu0.c.b16.cont [5/8] 0, 128
      %2259 = vxpose.xlu0.c.b16.cont [6/8] 0, 128
      %2260 = vxpose.xlu0.c.b16.cont [7/8] 0, 128
      %2261 = vxpose.xlu0.c.b16.end [8/8] 0, 128
      %v2262 = vpop.trf.xlu0
      %v2263 = vpop.trf.xlu0
      %v2264 = vpop.trf.xlu0
      %v2265 = vpop.trf.xlu0
      %v2266 = vpop.trf.xlu0
      %v2267 = vpop.trf.xlu0
      %v2268 = vpop.trf.xlu0
      %v2269 = vpop.trf.xlu0
      %v2270 = vcombine.low %v1254, %v1318
      %v2272 = vunpack.c.l.s4 1983009808
      %v2273 = vunpack.c.0.s8 %v2272
      %v2274 = vlaneseq
      %v2275 = vshrl.u32 %v2274, 7
      %v2276 = vsub.s32 %v2273, %v2275
      %v2277 = vrot.slane %v2270, %v2276
      %v2278 = vcombine.low %v1286, %v1350
      %v2280 = vunpack.c.l.s4 1983009808
      %v2281 = vunpack.c.0.s8 %v2280
      %v2282 = vlaneseq
      %v2283 = vshrl.u32 %v2282, 7
      %v2284 = vsub.s32 %v2281, %v2283
      %v2285 = vrot.slane %v2278, %v2284
      %v2286 = vcombine.low %v1382, %v1446
      %v2288 = vunpack.c.l.s4 1983009808
      %v2289 = vunpack.c.0.s8 %v2288
      %v2290 = vlaneseq
      %v2291 = vshrl.u32 %v2290, 7
      %v2292 = vsub.s32 %v2289, %v2291
      %v2293 = vrot.slane %v2286, %v2292
      %v2294 = vcombine.low %v1414, %v1478
      %v2296 = vunpack.c.l.s4 1983009808
      %v2297 = vunpack.c.0.s8 %v2296
      %v2298 = vlaneseq
      %v2299 = vshrl.u32 %v2298, 7
      %v2300 = vsub.s32 %v2297, %v2299
      %v2301 = vrot.slane %v2294, %v2300
      %v2302 = vcombine.low %v2277, %v2285
      %v2304 = vunpack.c.l.s4 1934713408
      %v2305 = vunpack.c.0.s8 %v2304
      %v2306 = vlaneseq
      %v2307 = vshrl.u32 %v2306, 7
      %v2308 = vsub.s32 %v2305, %v2307
      %v2309 = vrot.slane %v2302, %v2308
      %v2310 = vcombine.low %v2293, %v2301
      %v2312 = vunpack.c.l.s4 1934713408
      %v2313 = vunpack.c.0.s8 %v2312
      %v2314 = vlaneseq
      %v2315 = vshrl.u32 %v2314, 7
      %v2316 = vsub.s32 %v2313, %v2315
      %v2317 = vrot.slane %v2310, %v2316
      %v2318 = vcombine.low %v2309, %v2317
      %v2319 = vcombine.high %v2309, %v2317
      %v2320 = vcombine.low %v1270, %v1334
      %v2322 = vunpack.c.l.s4 1983009808
      %v2323 = vunpack.c.0.s8 %v2322
      %v2324 = vlaneseq
      %v2325 = vshrl.u32 %v2324, 7
      %v2326 = vsub.s32 %v2323, %v2325
      %v2327 = vrot.slane %v2320, %v2326
      %v2328 = vcombine.low %v1302, %v1366
      %v2330 = vunpack.c.l.s4 1983009808
      %v2331 = vunpack.c.0.s8 %v2330
      %v2332 = vlaneseq
      %v2333 = vshrl.u32 %v2332, 7
      %v2334 = vsub.s32 %v2331, %v2333
      %v2335 = vrot.slane %v2328, %v2334
      %v2336 = vcombine.low %v1398, %v1462
      %v2338 = vunpack.c.l.s4 1983009808
      %v2339 = vunpack.c.0.s8 %v2338
      %v2340 = vlaneseq
      %v2341 = vshrl.u32 %v2340, 7
      %v2342 = vsub.s32 %v2339, %v2341
      %v2343 = vrot.slane %v2336, %v2342
      %v2344 = vcombine.low %v1430, %v1494
      %v2346 = vunpack.c.l.s4 1983009808
      %v2347 = vunpack.c.0.s8 %v2346
      %v2348 = vlaneseq
      %v2349 = vshrl.u32 %v2348, 7
      %v2350 = vsub.s32 %v2347, %v2349
      %v2351 = vrot.slane %v2344, %v2350
      %v2352 = vcombine.low %v2327, %v2335
      %v2354 = vunpack.c.l.s4 1934713408
      %v2355 = vunpack.c.0.s8 %v2354
      %v2356 = vlaneseq
      %v2357 = vshrl.u32 %v2356, 7
      %v2358 = vsub.s32 %v2355, %v2357
      %v2359 = vrot.slane %v2352, %v2358
      %v2360 = vcombine.low %v2343, %v2351
      %v2362 = vunpack.c.l.s4 1934713408
      %v2363 = vunpack.c.0.s8 %v2362
      %v2364 = vlaneseq
      %v2365 = vshrl.u32 %v2364, 7
      %v2366 = vsub.s32 %v2363, %v2365
      %v2367 = vrot.slane %v2360, %v2366
      %v2368 = vcombine.low %v2359, %v2367
      %v2369 = vcombine.high %v2359, %v2367
      %v2370 = vcombine.low %v1510, %v1574
      %v2372 = vunpack.c.l.s4 1983009808
      %v2373 = vunpack.c.0.s8 %v2372
      %v2374 = vlaneseq
      %v2375 = vshrl.u32 %v2374, 7
      %v2376 = vsub.s32 %v2373, %v2375
      %v2377 = vrot.slane %v2370, %v2376
      %v2378 = vcombine.low %v1542, %v1606
      %v2380 = vunpack.c.l.s4 1983009808
      %v2381 = vunpack.c.0.s8 %v2380
      %v2382 = vlaneseq
      %v2383 = vshrl.u32 %v2382, 7
      %v2384 = vsub.s32 %v2381, %v2383
      %v2385 = vrot.slane %v2378, %v2384
      %v2386 = vcombine.low %v1638, %v1702
      %v2388 = vunpack.c.l.s4 1983009808
      %v2389 = vunpack.c.0.s8 %v2388
      %v2390 = vlaneseq
      %v2391 = vshrl.u32 %v2390, 7
      %v2392 = vsub.s32 %v2389, %v2391
      %v2393 = vrot.slane %v2386, %v2392
      %v2394 = vcombine.low %v1670, %v1734
      %v2396 = vunpack.c.l.s4 1983009808
      %v2397 = vunpack.c.0.s8 %v2396
      %v2398 = vlaneseq
      %v2399 = vshrl.u32 %v2398, 7
      %v2400 = vsub.s32 %v2397, %v2399
      %v2401 = vrot.slane %v2394, %v2400
      %v2402 = vcombine.low %v2377, %v2385
      %v2404 = vunpack.c.l.s4 1934713408
      %v2405 = vunpack.c.0.s8 %v2404
      %v2406 = vlaneseq
      %v2407 = vshrl.u32 %v2406, 7
      %v2408 = vsub.s32 %v2405, %v2407
      %v2409 = vrot.slane %v2402, %v2408
      %v2410 = vcombine.low %v2393, %v2401
      %v2412 = vunpack.c.l.s4 1934713408
      %v2413 = vunpack.c.0.s8 %v2412
      %v2414 = vlaneseq
      %v2415 = vshrl.u32 %v2414, 7
      %v2416 = vsub.s32 %v2413, %v2415
      %v2417 = vrot.slane %v2410, %v2416
      %v2418 = vcombine.low %v2409, %v2417
      %v2419 = vcombine.high %v2409, %v2417
      %v2420 = vcombine.low %v1526, %v1590
      %v2422 = vunpack.c.l.s4 1983009808
      %v2423 = vunpack.c.0.s8 %v2422
      %v2424 = vlaneseq
      %v2425 = vshrl.u32 %v2424, 7
      %v2426 = vsub.s32 %v2423, %v2425
      %v2427 = vrot.slane %v2420, %v2426
      %v2428 = vcombine.low %v1558, %v1622
      %v2430 = vunpack.c.l.s4 1983009808
      %v2431 = vunpack.c.0.s8 %v2430
      %v2432 = vlaneseq
      %v2433 = vshrl.u32 %v2432, 7
      %v2434 = vsub.s32 %v2431, %v2433
      %v2435 = vrot.slane %v2428, %v2434
      %v2436 = vcombine.low %v1654, %v1718
      %v2438 = vunpack.c.l.s4 1983009808
      %v2439 = vunpack.c.0.s8 %v2438
      %v2440 = vlaneseq
      %v2441 = vshrl.u32 %v2440, 7
      %v2442 = vsub.s32 %v2439, %v2441
      %v2443 = vrot.slane %v2436, %v2442
      %v2444 = vcombine.low %v1686, %v1750
      %v2446 = vunpack.c.l.s4 1983009808
      %v2447 = vunpack.c.0.s8 %v2446
      %v2448 = vlaneseq
      %v2449 = vshrl.u32 %v2448, 7
      %v2450 = vsub.s32 %v2447, %v2449
      %v2451 = vrot.slane %v2444, %v2450
      %v2452 = vcombine.low %v2427, %v2435
      %v2454 = vunpack.c.l.s4 1934713408
      %v2455 = vunpack.c.0.s8 %v2454
      %v2456 = vlaneseq
      %v2457 = vshrl.u32 %v2456, 7
      %v2458 = vsub.s32 %v2455, %v2457
      %v2459 = vrot.slane %v2452, %v2458
      %v2460 = vcombine.low %v2443, %v2451
      %v2462 = vunpack.c.l.s4 1934713408
      %v2463 = vunpack.c.0.s8 %v2462
      %v2464 = vlaneseq
      %v2465 = vshrl.u32 %v2464, 7
      %v2466 = vsub.s32 %v2463, %v2465
      %v2467 = vrot.slane %v2460, %v2466
      %v2468 = vcombine.low %v2459, %v2467
      %v2469 = vcombine.high %v2459, %v2467
      %v2470 = vcombine.low %v1766, %v1830
      %v2472 = vunpack.c.l.s4 1983009808
      %v2473 = vunpack.c.0.s8 %v2472
      %v2474 = vlaneseq
      %v2475 = vshrl.u32 %v2474, 7
      %v2476 = vsub.s32 %v2473, %v2475
      %v2477 = vrot.slane %v2470, %v2476
      %v2478 = vcombine.low %v1798, %v1862
      %v2480 = vunpack.c.l.s4 1983009808
      %v2481 = vunpack.c.0.s8 %v2480
      %v2482 = vlaneseq
      %v2483 = vshrl.u32 %v2482, 7
      %v2484 = vsub.s32 %v2481, %v2483
      %v2485 = vrot.slane %v2478, %v2484
      %v2486 = vcombine.low %v1894, %v1958
      %v2488 = vunpack.c.l.s4 1983009808
      %v2489 = vunpack.c.0.s8 %v2488
      %v2490 = vlaneseq
      %v2491 = vshrl.u32 %v2490, 7
      %v2492 = vsub.s32 %v2489, %v2491
      %v2493 = vrot.slane %v2486, %v2492
      %v2494 = vcombine.low %v1926, %v1990
      %v2496 = vunpack.c.l.s4 1983009808
      %v2497 = vunpack.c.0.s8 %v2496
      %v2498 = vlaneseq
      %v2499 = vshrl.u32 %v2498, 7
      %v2500 = vsub.s32 %v2497, %v2499
      %v2501 = vrot.slane %v2494, %v2500
      %v2502 = vcombine.low %v2477, %v2485
      %v2504 = vunpack.c.l.s4 1934713408
      %v2505 = vunpack.c.0.s8 %v2504
      %v2506 = vlaneseq
      %v2507 = vshrl.u32 %v2506, 7
      %v2508 = vsub.s32 %v2505, %v2507
      %v2509 = vrot.slane %v2502, %v2508
      %v2510 = vcombine.low %v2493, %v2501
      %v2512 = vunpack.c.l.s4 1934713408
      %v2513 = vunpack.c.0.s8 %v2512
      %v2514 = vlaneseq
      %v2515 = vshrl.u32 %v2514, 7
      %v2516 = vsub.s32 %v2513, %v2515
      %v2517 = vrot.slane %v2510, %v2516
      %v2518 = vcombine.low %v2509, %v2517
      %v2519 = vcombine.high %v2509, %v2517
      %v2520 = vcombine.low %v1782, %v1846
      %v2522 = vunpack.c.l.s4 1983009808
      %v2523 = vunpack.c.0.s8 %v2522
      %v2524 = vlaneseq
      %v2525 = vshrl.u32 %v2524, 7
      %v2526 = vsub.s32 %v2523, %v2525
      %v2527 = vrot.slane %v2520, %v2526
      %v2528 = vcombine.low %v1814, %v1878
      %v2530 = vunpack.c.l.s4 1983009808
      %v2531 = vunpack.c.0.s8 %v2530
      %v2532 = vlaneseq
      %v2533 = vshrl.u32 %v2532, 7
      %v2534 = vsub.s32 %v2531, %v2533
      %v2535 = vrot.slane %v2528, %v2534
      %v2536 = vcombine.low %v1910, %v1974
      %v2538 = vunpack.c.l.s4 1983009808
      %v2539 = vunpack.c.0.s8 %v2538
      %v2540 = vlaneseq
      %v2541 = vshrl.u32 %v2540, 7
      %v2542 = vsub.s32 %v2539, %v2541
      %v2543 = vrot.slane %v2536, %v2542
      %v2544 = vcombine.low %v1942, %v2006
      %v2546 = vunpack.c.l.s4 1983009808
      %v2547 = vunpack.c.0.s8 %v2546
      %v2548 = vlaneseq
      %v2549 = vshrl.u32 %v2548, 7
      %v2550 = vsub.s32 %v2547, %v2549
      %v2551 = vrot.slane %v2544, %v2550
      %v2552 = vcombine.low %v2527, %v2535
      %v2554 = vunpack.c.l.s4 1934713408
      %v2555 = vunpack.c.0.s8 %v2554
      %v2556 = vlaneseq
      %v2557 = vshrl.u32 %v2556, 7
      %v2558 = vsub.s32 %v2555, %v2557
      %v2559 = vrot.slane %v2552, %v2558
      %v2560 = vcombine.low %v2543, %v2551
      %v2562 = vunpack.c.l.s4 1934713408
      %v2563 = vunpack.c.0.s8 %v2562
      %v2564 = vlaneseq
      %v2565 = vshrl.u32 %v2564, 7
      %v2566 = vsub.s32 %v2563, %v2565
      %v2567 = vrot.slane %v2560, %v2566
      %v2568 = vcombine.low %v2559, %v2567
      %v2569 = vcombine.high %v2559, %v2567
      %v2570 = vcombine.low %v2022, %v2086
      %v2572 = vunpack.c.l.s4 1983009808
      %v2573 = vunpack.c.0.s8 %v2572
      %v2574 = vlaneseq
      %v2575 = vshrl.u32 %v2574, 7
      %v2576 = vsub.s32 %v2573, %v2575
      %v2577 = vrot.slane %v2570, %v2576
      %v2578 = vcombine.low %v2054, %v2118
      %v2580 = vunpack.c.l.s4 1983009808
      %v2581 = vunpack.c.0.s8 %v2580
      %v2582 = vlaneseq
      %v2583 = vshrl.u32 %v2582, 7
      %v2584 = vsub.s32 %v2581, %v2583
      %v2585 = vrot.slane %v2578, %v2584
      %v2586 = vcombine.low %v2150, %v2214
      %v2588 = vunpack.c.l.s4 1983009808
      %v2589 = vunpack.c.0.s8 %v2588
      %v2590 = vlaneseq
      %v2591 = vshrl.u32 %v2590, 7
      %v2592 = vsub.s32 %v2589, %v2591
      %v2593 = vrot.slane %v2586, %v2592
      %v2594 = vcombine.low %v2182, %v2246
      %v2596 = vunpack.c.l.s4 1983009808
      %v2597 = vunpack.c.0.s8 %v2596
      %v2598 = vlaneseq
      %v2599 = vshrl.u32 %v2598, 7
      %v2600 = vsub.s32 %v2597, %v2599
      %v2601 = vrot.slane %v2594, %v2600
      %v2602 = vcombine.low %v2577, %v2585
      %v2604 = vunpack.c.l.s4 1934713408
      %v2605 = vunpack.c.0.s8 %v2604
      %v2606 = vlaneseq
      %v2607 = vshrl.u32 %v2606, 7
      %v2608 = vsub.s32 %v2605, %v2607
      %v2609 = vrot.slane %v2602, %v2608
      %v2610 = vcombine.low %v2593, %v2601
      %v2612 = vunpack.c.l.s4 1934713408
      %v2613 = vunpack.c.0.s8 %v2612
      %v2614 = vlaneseq
      %v2615 = vshrl.u32 %v2614, 7
      %v2616 = vsub.s32 %v2613, %v2615
      %v2617 = vrot.slane %v2610, %v2616
      %v2618 = vcombine.low %v2609, %v2617
      %v2619 = vcombine.high %v2609, %v2617
      %v2620 = vcombine.low %v2038, %v2102
      %v2622 = vunpack.c.l.s4 1983009808
      %v2623 = vunpack.c.0.s8 %v2622
      %v2624 = vlaneseq
      %v2625 = vshrl.u32 %v2624, 7
      %v2626 = vsub.s32 %v2623, %v2625
      %v2627 = vrot.slane %v2620, %v2626
      %v2628 = vcombine.low %v2070, %v2134
      %v2630 = vunpack.c.l.s4 1983009808
      %v2631 = vunpack.c.0.s8 %v2630
      %v2632 = vlaneseq
      %v2633 = vshrl.u32 %v2632, 7
      %v2634 = vsub.s32 %v2631, %v2633
      %v2635 = vrot.slane %v2628, %v2634
      %v2636 = vcombine.low %v2166, %v2230
      %v2638 = vunpack.c.l.s4 1983009808
      %v2639 = vunpack.c.0.s8 %v2638
      %v2640 = vlaneseq
      %v2641 = vshrl.u32 %v2640, 7
      %v2642 = vsub.s32 %v2639, %v2641
      %v2643 = vrot.slane %v2636, %v2642
      %v2644 = vcombine.low %v2198, %v2262
      %v2646 = vunpack.c.l.s4 1983009808
      %v2647 = vunpack.c.0.s8 %v2646
      %v2648 = vlaneseq
      %v2649 = vshrl.u32 %v2648, 7
      %v2650 = vsub.s32 %v2647, %v2649
      %v2651 = vrot.slane %v2644, %v2650
      %v2652 = vcombine.low %v2627, %v2635
      %v2654 = vunpack.c.l.s4 1934713408
      %v2655 = vunpack.c.0.s8 %v2654
      %v2656 = vlaneseq
      %v2657 = vshrl.u32 %v2656, 7
      %v2658 = vsub.s32 %v2655, %v2657
      %v2659 = vrot.slane %v2652, %v2658
      %v2660 = vcombine.low %v2643, %v2651
      %v2662 = vunpack.c.l.s4 1934713408
      %v2663 = vunpack.c.0.s8 %v2662
      %v2664 = vlaneseq
      %v2665 = vshrl.u32 %v2664, 7
      %v2666 = vsub.s32 %v2663, %v2665
      %v2667 = vrot.slane %v2660, %v2666
      %v2668 = vcombine.low %v2659, %v2667
      %v2669 = vcombine.high %v2659, %v2667
      %v2672 = vpack.i.b16 %v2368, %v2318
      %v2674 = vshrl.u32 %v2318, 16
      %v2675 = vshrl.u32 %v2368, 16
      %v2676 = vpack.i.b16 %v2675, %v2674
      %v2680 = vpack.i.b16 %v2369, %v2319
      %v2682 = vshrl.u32 %v2319, 16
      %v2683 = vshrl.u32 %v2369, 16
      %v2684 = vpack.i.b16 %v2683, %v2682
      %v2688 = vpack.i.b16 %v2468, %v2418
      %v2690 = vshrl.u32 %v2418, 16
      %v2691 = vshrl.u32 %v2468, 16
      %v2692 = vpack.i.b16 %v2691, %v2690
      %v2696 = vpack.i.b16 %v2469, %v2419
      %v2698 = vshrl.u32 %v2419, 16
      %v2699 = vshrl.u32 %v2469, 16
      %v2700 = vpack.i.b16 %v2699, %v2698
      %v2704 = vpack.i.b16 %v2568, %v2518
      %v2706 = vshrl.u32 %v2518, 16
      %v2707 = vshrl.u32 %v2568, 16
      %v2708 = vpack.i.b16 %v2707, %v2706
      %v2712 = vpack.i.b16 %v2569, %v2519
      %v2714 = vshrl.u32 %v2519, 16
      %v2715 = vshrl.u32 %v2569, 16
      %v2716 = vpack.i.b16 %v2715, %v2714
      %v2720 = vpack.i.b16 %v2668, %v2618
      %v2722 = vshrl.u32 %v2618, 16
      %v2723 = vshrl.u32 %v2668, 16
      %v2724 = vpack.i.b16 %v2723, %v2722
      %v2728 = vpack.i.b16 %v2669, %v2619
      %v2730 = vshrl.u32 %v2619, 16
      %v2731 = vshrl.u32 %v2669, 16
      %v2732 = vpack.i.b16 %v2731, %v2730
      %vm2734 = vcmask 523264
      %v2736 = vsel %vm2734, %v261, 0
      %2738 = vmatprep.subr.bf16.mxu0 0
      %2739 = vmatpush1.bf16.msra.mxu0 %v2672
      %2740 = vmatprep.subr.bf16.mxu0 0
      %2741 = vmatpush1.bf16.msra.mxu0 %v2688
      %2742 = vmatprep.subr.bf16.mxu0 0
      %2743 = vmatpush1.bf16.msra.mxu0 %v2704
      %2744 = vmatprep.subr.bf16.mxu0 0
      %2745 = vmatpush1.bf16.msra.mxu0 %v2720
      %2746 = vmatprep.subr.bf16.mxu0 0
      %2747 = vmatpush1.bf16.msra.mxu0 0
      %2748 = vmatprep.subr.bf16.mxu0 0
      %2749 = vmatpush1.bf16.msra.mxu0 0
      %2750 = vmatprep.subr.bf16.mxu0 0
      %2751 = vmatpush1.bf16.msra.mxu0 0
      %2752 = vmatprep.subr.bf16.mxu0 0
      %2753 = vmatpush1.bf16.msra.mxu0 0
      %2754 = vmatprep.subr.bf16.mxu0 0
      %2755 = vmatpush1.bf16.msra.mxu0 0
      %2756 = vmatprep.subr.bf16.mxu0 0
      %2757 = vmatpush1.bf16.msra.mxu0 0
      %2758 = vmatprep.subr.bf16.mxu0 0
      %2759 = vmatpush1.bf16.msra.mxu0 0
      %2760 = vmatprep.subr.bf16.mxu0 0
      %2761 = vmatpush1.bf16.msra.mxu0 0
      %2762 = vmatprep.subr.bf16.mxu0 0
      %2763 = vmatpush1.bf16.msra.mxu0 0
      %2764 = vmatprep.subr.bf16.mxu0 0
      %2765 = vmatpush1.bf16.msra.mxu0 0
      %2766 = vmatprep.subr.bf16.mxu0 0
      %2767 = vmatpush1.bf16.msra.mxu0 0
      %2768 = vmatprep.subr.bf16.mxu0 0
      %2769 = vmatpush1.bf16.msra.mxu0 0
      %2770 = vmatprep.mubr.bf16.mxu0 0
      %2771 = vmatmul.mubr.bf16.gmra.mrb[0].mxu0 %v2736
      %v2772 = vpop.f32.mrb[0].mxu0
      %v2773 = vadd.f32 %v444, %v2772
      %v2774 = vpop.f32.mrb[0].mxu0
      %v2775 = vpop.f32.mrb[0].mxu0
      %v2776 = vpop.f32.mrb[0].mxu0
      %2777 = vdwg.mxu0
      %v2779 = vsel %vm2734, %v265, 0
      %2781 = vmatprep.subr.bf16.mxu0 0
      %2782 = vmatpush1.bf16.msra.mxu0 %v2676
      %2783 = vmatprep.subr.bf16.mxu0 0
      %2784 = vmatpush1.bf16.msra.mxu0 %v2692
      %2785 = vmatprep.subr.bf16.mxu0 0
      %2786 = vmatpush1.bf16.msra.mxu0 %v2708
      %2787 = vmatprep.subr.bf16.mxu0 0
      %2788 = vmatpush1.bf16.msra.mxu0 %v2724
      %2789 = vmatprep.subr.bf16.mxu0 0
      %2790 = vmatpush1.bf16.msra.mxu0 0
      %2791 = vmatprep.subr.bf16.mxu0 0
      %2792 = vmatpush1.bf16.msra.mxu0 0
      %2793 = vmatprep.subr.bf16.mxu0 0
      %2794 = vmatpush1.bf16.msra.mxu0 0
      %2795 = vmatprep.subr.bf16.mxu0 0
      %2796 = vmatpush1.bf16.msra.mxu0 0
      %2797 = vmatprep.subr.bf16.mxu0 0
      %2798 = vmatpush1.bf16.msra.mxu0 0
      %2799 = vmatprep.subr.bf16.mxu0 0
      %2800 = vmatpush1.bf16.msra.mxu0 0
      %2801 = vmatprep.subr.bf16.mxu0 0
      %2802 = vmatpush1.bf16.msra.mxu0 0
      %2803 = vmatprep.subr.bf16.mxu0 0
      %2804 = vmatpush1.bf16.msra.mxu0 0
      %2805 = vmatprep.subr.bf16.mxu0 0
      %2806 = vmatpush1.bf16.msra.mxu0 0
      %2807 = vmatprep.subr.bf16.mxu0 0
      %2808 = vmatpush1.bf16.msra.mxu0 0
      %2809 = vmatprep.subr.bf16.mxu0 0
      %2810 = vmatpush1.bf16.msra.mxu0 0
      %2811 = vmatprep.subr.bf16.mxu0 0
      %2812 = vmatpush1.bf16.msra.mxu0 0
      %2813 = vmatprep.mubr.bf16.mxu0 0
      %2814 = vmatmul.mubr.bf16.gmra.mrb[0].mxu0 %v2779
      %v2815 = vpop.f32.mrb[0].mxu0
      %v2816 = vadd.f32 %v444, %v2815
      %v2817 = vpop.f32.mrb[0].mxu0
      %v2818 = vpop.f32.mrb[0].mxu0
      %v2819 = vpop.f32.mrb[0].mxu0
      %2820 = vdwg.mxu0
      %v2822 = vsel %vm2734, %v263, 0
      %2824 = vmatprep.subr.bf16.mxu0 0
      %2825 = vmatpush1.bf16.msra.mxu0 %v2680
      %2826 = vmatprep.subr.bf16.mxu0 0
      %2827 = vmatpush1.bf16.msra.mxu0 %v2696
      %2828 = vmatprep.subr.bf16.mxu0 0
      %2829 = vmatpush1.bf16.msra.mxu0 %v2712
      %2830 = vmatprep.subr.bf16.mxu0 0
      %2831 = vmatpush1.bf16.msra.mxu0 %v2728
      %2832 = vmatprep.subr.bf16.mxu0 0
      %2833 = vmatpush1.bf16.msra.mxu0 0
      %2834 = vmatprep.subr.bf16.mxu0 0
      %2835 = vmatpush1.bf16.msra.mxu0 0
      %2836 = vmatprep.subr.bf16.mxu0 0
      %2837 = vmatpush1.bf16.msra.mxu0 0
      %2838 = vmatprep.subr.bf16.mxu0 0
      %2839 = vmatpush1.bf16.msra.mxu0 0
      %2840 = vmatprep.subr.bf16.mxu0 0
      %2841 = vmatpush1.bf16.msra.mxu0 0
      %2842 = vmatprep.subr.bf16.mxu0 0
      %2843 = vmatpush1.bf16.msra.mxu0 0
      %2844 = vmatprep.subr.bf16.mxu0 0
      %2845 = vmatpush1.bf16.msra.mxu0 0
      %2846 = vmatprep.subr.bf16.mxu0 0
      %2847 = vmatpush1.bf16.msra.mxu0 0
      %2848 = vmatprep.subr.bf16.mxu0 0
      %2849 = vmatpush1.bf16.msra.mxu0 0
      %2850 = vmatprep.subr.bf16.mxu0 0
      %2851 = vmatpush1.bf16.msra.mxu0 0
      %2852 = vmatprep.subr.bf16.mxu0 0
      %2853 = vmatpush1.bf16.msra.mxu0 0
      %2854 = vmatprep.subr.bf16.mxu0 0
      %2855 = vmatpush1.bf16.msra.mxu0 0
      %2856 = vmatprep.mubr.bf16.mxu0 0
      %2857 = vmatmul.mubr.bf16.gmra.mrb[0].mxu0 %v2822
      %v2858 = vpop.f32.mrb[0].mxu0
      %v2859 = vadd.f32 %v444, %v2858
      %v2860 = vpop.f32.mrb[0].mxu0
      %v2861 = vpop.f32.mrb[0].mxu0
      %v2862 = vpop.f32.mrb[0].mxu0
      %2863 = vdwg.mxu0
      %v2865 = vsel %vm2734, %v266, 0
      %2867 = vmatprep.subr.bf16.mxu0 0
      %2868 = vmatpush1.bf16.msra.mxu0 %v2684
      %2869 = vmatprep.subr.bf16.mxu0 0
      %2870 = vmatpush1.bf16.msra.mxu0 %v2700
      %2871 = vmatprep.subr.bf16.mxu0 0
      %2872 = vmatpush1.bf16.msra.mxu0 %v2716
      %2873 = vmatprep.subr.bf16.mxu0 0
      %2874 = vmatpush1.bf16.msra.mxu0 %v2732
      %2875 = vmatprep.subr.bf16.mxu0 0
      %2876 = vmatpush1.bf16.msra.mxu0 0
      %2877 = vmatprep.subr.bf16.mxu0 0
      %2878 = vmatpush1.bf16.msra.mxu0 0
      %2879 = vmatprep.subr.bf16.mxu0 0
      %2880 = vmatpush1.bf16.msra.mxu0 0
      %2881 = vmatprep.subr.bf16.mxu0 0
      %2882 = vmatpush1.bf16.msra.mxu0 0
      %2883 = vmatprep.subr.bf16.mxu0 0
      %2884 = vmatpush1.bf16.msra.mxu0 0
      %2885 = vmatprep.subr.bf16.mxu0 0
      %2886 = vmatpush1.bf16.msra.mxu0 0
      %2887 = vmatprep.subr.bf16.mxu0 0
      %2888 = vmatpush1.bf16.msra.mxu0 0
      %2889 = vmatprep.subr.bf16.mxu0 0
      %2890 = vmatpush1.bf16.msra.mxu0 0
      %2891 = vmatprep.subr.bf16.mxu0 0
      %2892 = vmatpush1.bf16.msra.mxu0 0
      %2893 = vmatprep.subr.bf16.mxu0 0
      %2894 = vmatpush1.bf16.msra.mxu0 0
      %2895 = vmatprep.subr.bf16.mxu0 0
      %2896 = vmatpush1.bf16.msra.mxu0 0
      %2897 = vmatprep.subr.bf16.mxu0 0
      %2898 = vmatpush1.bf16.msra.mxu0 0
      %2899 = vmatprep.mubr.bf16.mxu0 0
      %2900 = vmatmul.mubr.bf16.gmra.mrb[0].mxu0 %v2865
      %v2901 = vpop.f32.mrb[0].mxu0
      %v2902 = vadd.f32 %v444, %v2901
      %v2903 = vpop.f32.mrb[0].mxu0
      %v2904 = vpop.f32.mrb[0].mxu0
      %v2905 = vpop.f32.mrb[0].mxu0
      %2906 = vdwg.mxu0
      %vm2907 = vcmask 64512
      %v2908 = vsel %vm2907, %v2773, -inf
      %2909 = vmax.xlane.f32.xlu0 %v2908
      %v2910 = vpop.xlane.xlu0 %2909
      %v2911 = vsel %vm2907, %v2816, -inf
      %2912 = vmax.xlane.f32.xlu0 %v2911
      %v2913 = vpop.xlane.xlu0 %2912
      %v2914 = vsel %vm2907, %v2859, -inf
      %2915 = vmax.xlane.f32.xlu0 %v2914
      %v2916 = vpop.xlane.xlu0 %2915
      %v2917 = vsel %vm2907, %v2902, -inf
      %2918 = vmax.xlane.f32.xlu0 %v2917
      %v2919 = vpop.xlane.xlu0 %2918
      %v2920 = vsub.f32 %v2773, %v2910
      %v2921 = vsub.f32 %v2816, %v2913
      %v2922 = vsub.f32 %v2859, %v2916
      %v2923 = vsub.f32 %v2902, %v2919
      %v2924 = vpack.c.bf16 %v2920, %v2920
      %v2925 = vpack.c.bf16 %v2921, %v2921
      %v2926 = vpack.c.bf16 %v2922, %v2922
      %v2927 = vpack.c.bf16 %v2923, %v2923
      %v2929 = vmul.bf16 %v2924, 1069105081
      %v2930 = vpow.bf16.pop %v2929
      %v2932 = vmul.bf16 %v2925, 1069105081
      %v2933 = vpow.bf16.pop %v2932
      %v2935 = vmul.bf16 %v2926, 1069105081
      %v2936 = vpow.bf16.pop %v2935
      %v2938 = vmul.bf16 %v2927, 1069105081
      %v2939 = vpow.bf16.pop %v2938
      %v2940 = vunpack.c.l.bf16 %v2930
      %v2941 = vunpack.c.l.bf16 %v2933
      %v2942 = vunpack.c.l.bf16 %v2936
      %v2943 = vunpack.c.l.bf16 %v2939
      %v2944 = vsel %vm2907, %v2940, 0.0
      %2945 = vadd.xlane.f32.xlu0 %v2944
      %v2946 = vpop.xlane.xlu0 %2945
      %v2947 = vsel %vm2907, %v2941, 0.0
      %2948 = vadd.xlane.f32.xlu0 %v2947
      %v2949 = vpop.xlane.xlu0 %2948
      %v2950 = vsel %vm2907, %v2942, 0.0
      %2951 = vadd.xlane.f32.xlu0 %v2950
      %v2952 = vpop.xlane.xlu0 %2951
      %v2953 = vsel %vm2907, %v2943, 0.0
      %2954 = vadd.xlane.f32.xlu0 %v2953
      %v2955 = vpop.xlane.xlu0 %2954
      %v2956 = vrcp.pop %v2946
      %v2957 = vrcp.pop %v2949
      %v2958 = vrcp.pop %v2952
      %v2959 = vrcp.pop %v2955
      %2960 = vxpose.xlu0.c.b16.start [1/8] %v395, 128
      %2961 = vxpose.xlu0.c.b16.cont [2/8] 0, 128
      %2962 = vxpose.xlu0.c.b16.cont [3/8] 0, 128
      %2963 = vxpose.xlu0.c.b16.cont [4/8] 0, 128
      %2964 = vxpose.xlu0.c.b16.cont [5/8] 0, 128
      %2965 = vxpose.xlu0.c.b16.cont [6/8] 0, 128
      %2966 = vxpose.xlu0.c.b16.cont [7/8] 0, 128
      %2967 = vxpose.xlu0.c.b16.end [8/8] 0, 128
      %v2968 = vpop.trf.xlu0
      %v2969 = vpop.trf.xlu0
      %v2970 = vpop.trf.xlu0
      %v2971 = vpop.trf.xlu0
      %v2972 = vpop.trf.xlu0
      %v2973 = vpop.trf.xlu0
      %v2974 = vpop.trf.xlu0
      %v2975 = vpop.trf.xlu0
      %2976 = vxpose.xlu0.c.b16.start [1/8] %v429, 128
      %2977 = vxpose.xlu0.c.b16.cont [2/8] 0, 128
      %2978 = vxpose.xlu0.c.b16.cont [3/8] 0, 128
      %2979 = vxpose.xlu0.c.b16.cont [4/8] 0, 128
      %2980 = vxpose.xlu0.c.b16.cont [5/8] 0, 128
      %2981 = vxpose.xlu0.c.b16.cont [6/8] 0, 128
      %2982 = vxpose.xlu0.c.b16.cont [7/8] 0, 128
      %2983 = vxpose.xlu0.c.b16.end [8/8] 0, 128
      %v2984 = vpop.trf.xlu0
      %v2985 = vpop.trf.xlu0
      %v2986 = vpop.trf.xlu0
      %v2987 = vpop.trf.xlu0
      %v2988 = vpop.trf.xlu0
      %v2989 = vpop.trf.xlu0
      %v2990 = vpop.trf.xlu0
      %v2991 = vpop.trf.xlu0
      %2992 = vxpose.xlu0.c.b16.start [1/8] %v403, 128
      %2993 = vxpose.xlu0.c.b16.cont [2/8] 0, 128
      %2994 = vxpose.xlu0.c.b16.cont [3/8] 0, 128
      %2995 = vxpose.xlu0.c.b16.cont [4/8] 0, 128
      %2996 = vxpose.xlu0.c.b16.cont [5/8] 0, 128
      %2997 = vxpose.xlu0.c.b16.cont [6/8] 0, 128
      %2998 = vxpose.xlu0.c.b16.cont [7/8] 0, 128
      %2999 = vxpose.xlu0.c.b16.end [8/8] 0, 128
      %v3000 = vpop.trf.xlu0
      %v3001 = vpop.trf.xlu0
      %v3002 = vpop.trf.xlu0
      %v3003 = vpop.trf.xlu0
      %v3004 = vpop.trf.xlu0
      %v3005 = vpop.trf.xlu0
      %v3006 = vpop.trf.xlu0
      %v3007 = vpop.trf.xlu0
      %3008 = vxpose.xlu0.c.b16.start [1/8] %v437, 128
      %3009 = vxpose.xlu0.c.b16.cont [2/8] 0, 128
      %3010 = vxpose.xlu0.c.b16.cont [3/8] 0, 128
      %3011 = vxpose.xlu0.c.b16.cont [4/8] 0, 128
      %3012 = vxpose.xlu0.c.b16.cont [5/8] 0, 128
      %3013 = vxpose.xlu0.c.b16.cont [6/8] 0, 128
      %3014 = vxpose.xlu0.c.b16.cont [7/8] 0, 128
      %3015 = vxpose.xlu0.c.b16.end [8/8] 0, 128
      %v3016 = vpop.trf.xlu0
      %v3017 = vpop.trf.xlu0
      %v3018 = vpop.trf.xlu0
      %v3019 = vpop.trf.xlu0
      %v3020 = vpop.trf.xlu0
      %v3021 = vpop.trf.xlu0
      %v3022 = vpop.trf.xlu0
      %v3023 = vpop.trf.xlu0
      %3024 = vxpose.xlu0.c.b16.start [1/8] %v402, 128
      %3025 = vxpose.xlu0.c.b16.cont [2/8] 0, 128
      %3026 = vxpose.xlu0.c.b16.cont [3/8] 0, 128
      %3027 = vxpose.xlu0.c.b16.cont [4/8] 0, 128
      %3028 = vxpose.xlu0.c.b16.cont [5/8] 0, 128
      %3029 = vxpose.xlu0.c.b16.cont [6/8] 0, 128
      %3030 = vxpose.xlu0.c.b16.cont [7/8] 0, 128
      %3031 = vxpose.xlu0.c.b16.end [8/8] 0, 128
      %v3032 = vpop.trf.xlu0
      %v3033 = vpop.trf.xlu0
      %v3034 = vpop.trf.xlu0
      %v3035 = vpop.trf.xlu0
      %v3036 = vpop.trf.xlu0
      %v3037 = vpop.trf.xlu0
      %v3038 = vpop.trf.xlu0
      %v3039 = vpop.trf.xlu0
      %3040 = vxpose.xlu0.c.b16.start [1/8] %v436, 128
      %3041 = vxpose.xlu0.c.b16.cont [2/8] 0, 128
      %3042 = vxpose.xlu0.c.b16.cont [3/8] 0, 128
      %3043 = vxpose.xlu0.c.b16.cont [4/8] 0, 128
      %3044 = vxpose.xlu0.c.b16.cont [5/8] 0, 128
      %3045 = vxpose.xlu0.c.b16.cont [6/8] 0, 128
      %3046 = vxpose.xlu0.c.b16.cont [7/8] 0, 128
      %3047 = vxpose.xlu0.c.b16.end [8/8] 0, 128
      %v3048 = vpop.trf.xlu0
      %v3049 = vpop.trf.xlu0
      %v3050 = vpop.trf.xlu0
      %v3051 = vpop.trf.xlu0
      %v3052 = vpop.trf.xlu0
      %v3053 = vpop.trf.xlu0
      %v3054 = vpop.trf.xlu0
      %v3055 = vpop.trf.xlu0
      %3056 = vxpose.xlu0.c.b16.start [1/8] %v404, 128
      %3057 = vxpose.xlu0.c.b16.cont [2/8] 0, 128
      %3058 = vxpose.xlu0.c.b16.cont [3/8] 0, 128
      %3059 = vxpose.xlu0.c.b16.cont [4/8] 0, 128
      %3060 = vxpose.xlu0.c.b16.cont [5/8] 0, 128
      %3061 = vxpose.xlu0.c.b16.cont [6/8] 0, 128
      %3062 = vxpose.xlu0.c.b16.cont [7/8] 0, 128
      %3063 = vxpose.xlu0.c.b16.end [8/8] 0, 128
      %v3064 = vpop.trf.xlu0
      %v3065 = vpop.trf.xlu0
      %v3066 = vpop.trf.xlu0
      %v3067 = vpop.trf.xlu0
      %v3068 = vpop.trf.xlu0
      %v3069 = vpop.trf.xlu0
      %v3070 = vpop.trf.xlu0
      %v3071 = vpop.trf.xlu0
      %3072 = vxpose.xlu0.c.b16.start [1/8] %v438, 128
      %3073 = vxpose.xlu0.c.b16.cont [2/8] 0, 128
      %3074 = vxpose.xlu0.c.b16.cont [3/8] 0, 128
      %3075 = vxpose.xlu0.c.b16.cont [4/8] 0, 128
      %3076 = vxpose.xlu0.c.b16.cont [5/8] 0, 128
      %3077 = vxpose.xlu0.c.b16.cont [6/8] 0, 128
      %3078 = vxpose.xlu0.c.b16.cont [7/8] 0, 128
      %3079 = vxpose.xlu0.c.b16.end [8/8] 0, 128
      %v3080 = vpop.trf.xlu0
      %v3081 = vpop.trf.xlu0
      %v3082 = vpop.trf.xlu0
      %v3083 = vpop.trf.xlu0
      %v3084 = vpop.trf.xlu0
      %v3085 = vpop.trf.xlu0
      %v3086 = vpop.trf.xlu0
      %v3087 = vpop.trf.xlu0
      %v3090 = vpack.i.b16 %v2984, %v2968
      %v3092 = vshrl.u32 %v2968, 16
      %v3093 = vshrl.u32 %v2984, 16
      %v3094 = vpack.i.b16 %v3093, %v3092
      %v3098 = vpack.i.b16 %v3016, %v3000
      %v3100 = vshrl.u32 %v3000, 16
      %v3101 = vshrl.u32 %v3016, 16
      %v3102 = vpack.i.b16 %v3101, %v3100
      %v3106 = vpack.i.b16 %v3048, %v3032
      %v3108 = vshrl.u32 %v3032, 16
      %v3109 = vshrl.u32 %v3048, 16
      %v3110 = vpack.i.b16 %v3109, %v3108
      %v3114 = vpack.i.b16 %v3080, %v3064
      %v3116 = vshrl.u32 %v3064, 16
      %v3117 = vshrl.u32 %v3080, 16
      %v3118 = vpack.i.b16 %v3117, %v3116
      %v3122 = vpack.i.b16 %v2985, %v2969
      %v3124 = vshrl.u32 %v2969, 16
      %v3125 = vshrl.u32 %v2985, 16
      %v3126 = vpack.i.b16 %v3125, %v3124
      %v3130 = vpack.i.b16 %v3017, %v3001
      %v3132 = vshrl.u32 %v3001, 16
      %v3133 = vshrl.u32 %v3017, 16
      %v3134 = vpack.i.b16 %v3133, %v3132
      %v3138 = vpack.i.b16 %v3049, %v3033
      %v3140 = vshrl.u32 %v3033, 16
      %v3141 = vshrl.u32 %v3049, 16
      %v3142 = vpack.i.b16 %v3141, %v3140
      %v3146 = vpack.i.b16 %v3081, %v3065
      %v3148 = vshrl.u32 %v3065, 16
      %v3149 = vshrl.u32 %v3081, 16
      %v3150 = vpack.i.b16 %v3149, %v3148
      %v3154 = vpack.i.b16 %v2986, %v2970
      %v3156 = vshrl.u32 %v2970, 16
      %v3157 = vshrl.u32 %v2986, 16
      %v3158 = vpack.i.b16 %v3157, %v3156
      %v3162 = vpack.i.b16 %v3018, %v3002
      %v3164 = vshrl.u32 %v3002, 16
      %v3165 = vshrl.u32 %v3018, 16
      %v3166 = vpack.i.b16 %v3165, %v3164
      %v3170 = vpack.i.b16 %v3050, %v3034
      %v3172 = vshrl.u32 %v3034, 16
      %v3173 = vshrl.u32 %v3050, 16
      %v3174 = vpack.i.b16 %v3173, %v3172
      %v3178 = vpack.i.b16 %v3082, %v3066
      %v3180 = vshrl.u32 %v3066, 16
      %v3181 = vshrl.u32 %v3082, 16
      %v3182 = vpack.i.b16 %v3181, %v3180
      %v3186 = vpack.i.b16 %v2987, %v2971
      %v3188 = vshrl.u32 %v2971, 16
      %v3189 = vshrl.u32 %v2987, 16
      %v3190 = vpack.i.b16 %v3189, %v3188
      %v3194 = vpack.i.b16 %v3019, %v3003
      %v3196 = vshrl.u32 %v3003, 16
      %v3197 = vshrl.u32 %v3019, 16
      %v3198 = vpack.i.b16 %v3197, %v3196
      %v3202 = vpack.i.b16 %v3051, %v3035
      %v3204 = vshrl.u32 %v3035, 16
      %v3205 = vshrl.u32 %v3051, 16
      %v3206 = vpack.i.b16 %v3205, %v3204
      %v3210 = vpack.i.b16 %v3083, %v3067
      %v3212 = vshrl.u32 %v3067, 16
      %v3213 = vshrl.u32 %v3083, 16
      %v3214 = vpack.i.b16 %v3213, %v3212
      %v3216 = vcombine.low %v3090, %v3106
      %v3217 = vcombine.high %v3090, %v3106
      %v3219 = vunpack.c.l.s4 1983009808
      %v3220 = vunpack.c.0.s8 %v3219
      %v3221 = vlaneseq
      %v3222 = vshrl.u32 %v3221, 7
      %v3223 = vsub.s32 %v3220, %v3222
      %v3224 = vrot.slane %v3216, %v3223
      %v3226 = vunpack.c.l.s4 1983009808
      %v3227 = vunpack.c.0.s8 %v3226
      %v3228 = vlaneseq
      %v3229 = vshrl.u32 %v3228, 7
      %v3230 = vsub.s32 %v3227, %v3229
      %v3231 = vrot.slane %v3217, %v3230
      %v3232 = vcombine.low %v3098, %v3114
      %v3233 = vcombine.high %v3098, %v3114
      %v3235 = vunpack.c.l.s4 1983009808
      %v3236 = vunpack.c.0.s8 %v3235
      %v3237 = vlaneseq
      %v3238 = vshrl.u32 %v3237, 7
      %v3239 = vsub.s32 %v3236, %v3238
      %v3240 = vrot.slane %v3232, %v3239
      %v3242 = vunpack.c.l.s4 1983009808
      %v3243 = vunpack.c.0.s8 %v3242
      %v3244 = vlaneseq
      %v3245 = vshrl.u32 %v3244, 7
      %v3246 = vsub.s32 %v3243, %v3245
      %v3247 = vrot.slane %v3233, %v3246
      %v3248 = vcombine.low %v3224, %v3240
      %v3249 = vcombine.high %v3224, %v3240
      %v3251 = vunpack.c.l.s4 1934713408
      %v3252 = vunpack.c.0.s8 %v3251
      %v3253 = vlaneseq
      %v3254 = vshrl.u32 %v3253, 7
      %v3255 = vsub.s32 %v3252, %v3254
      %v3256 = vrot.slane %v3248, %v3255
      %v3258 = vunpack.c.l.s4 1934713408
      %v3259 = vunpack.c.0.s8 %v3258
      %v3260 = vlaneseq
      %v3261 = vshrl.u32 %v3260, 7
      %v3262 = vsub.s32 %v3259, %v3261
      %v3263 = vrot.slane %v3249, %v3262
      %v3264 = vcombine.low %v3231, %v3247
      %v3265 = vcombine.high %v3231, %v3247
      %v3267 = vunpack.c.l.s4 1934713408
      %v3268 = vunpack.c.0.s8 %v3267
      %v3269 = vlaneseq
      %v3270 = vshrl.u32 %v3269, 7
      %v3271 = vsub.s32 %v3268, %v3270
      %v3272 = vrot.slane %v3264, %v3271
      %v3274 = vunpack.c.l.s4 1934713408
      %v3275 = vunpack.c.0.s8 %v3274
      %v3276 = vlaneseq
      %v3277 = vshrl.u32 %v3276, 7
      %v3278 = vsub.s32 %v3275, %v3277
      %v3279 = vrot.slane %v3265, %v3278
      %v3280 = vcombine.high %v3256, 0
      %v3281 = vcombine.high %v3263, 0
      %v3282 = vcombine.high %v3272, 0
      %v3283 = vcombine.high %v3279, 0
      %v3284 = vcombine.low %v3094, %v3110
      %v3285 = vcombine.high %v3094, %v3110
      %v3287 = vunpack.c.l.s4 1983009808
      %v3288 = vunpack.c.0.s8 %v3287
      %v3289 = vlaneseq
      %v3290 = vshrl.u32 %v3289, 7
      %v3291 = vsub.s32 %v3288, %v3290
      %v3292 = vrot.slane %v3284, %v3291
      %v3294 = vunpack.c.l.s4 1983009808
      %v3295 = vunpack.c.0.s8 %v3294
      %v3296 = vlaneseq
      %v3297 = vshrl.u32 %v3296, 7
      %v3298 = vsub.s32 %v3295, %v3297
      %v3299 = vrot.slane %v3285, %v3298
      %v3300 = vcombine.low %v3102, %v3118
      %v3301 = vcombine.high %v3102, %v3118
      %v3303 = vunpack.c.l.s4 1983009808
      %v3304 = vunpack.c.0.s8 %v3303
      %v3305 = vlaneseq
      %v3306 = vshrl.u32 %v3305, 7
      %v3307 = vsub.s32 %v3304, %v3306
      %v3308 = vrot.slane %v3300, %v3307
      %v3310 = vunpack.c.l.s4 1983009808
      %v3311 = vunpack.c.0.s8 %v3310
      %v3312 = vlaneseq
      %v3313 = vshrl.u32 %v3312, 7
      %v3314 = vsub.s32 %v3311, %v3313
      %v3315 = vrot.slane %v3301, %v3314
      %v3316 = vcombine.low %v3292, %v3308
      %v3317 = vcombine.high %v3292, %v3308
      %v3319 = vunpack.c.l.s4 1934713408
      %v3320 = vunpack.c.0.s8 %v3319
      %v3321 = vlaneseq
      %v3322 = vshrl.u32 %v3321, 7
      %v3323 = vsub.s32 %v3320, %v3322
      %v3324 = vrot.slane %v3316, %v3323
      %v3326 = vunpack.c.l.s4 1934713408
      %v3327 = vunpack.c.0.s8 %v3326
      %v3328 = vlaneseq
      %v3329 = vshrl.u32 %v3328, 7
      %v3330 = vsub.s32 %v3327, %v3329
      %v3331 = vrot.slane %v3317, %v3330
      %v3332 = vcombine.low %v3299, %v3315
      %v3333 = vcombine.high %v3299, %v3315
      %v3335 = vunpack.c.l.s4 1934713408
      %v3336 = vunpack.c.0.s8 %v3335
      %v3337 = vlaneseq
      %v3338 = vshrl.u32 %v3337, 7
      %v3339 = vsub.s32 %v3336, %v3338
      %v3340 = vrot.slane %v3332, %v3339
      %v3342 = vunpack.c.l.s4 1934713408
      %v3343 = vunpack.c.0.s8 %v3342
      %v3344 = vlaneseq
      %v3345 = vshrl.u32 %v3344, 7
      %v3346 = vsub.s32 %v3343, %v3345
      %v3347 = vrot.slane %v3333, %v3346
      %v3348 = vcombine.high %v3324, 0
      %v3349 = vcombine.high %v3331, 0
      %v3350 = vcombine.high %v3340, 0
      %v3351 = vcombine.high %v3347, 0
      %v3352 = vcombine.low %v3122, %v3138
      %v3353 = vcombine.high %v3122, %v3138
      %v3355 = vunpack.c.l.s4 1983009808
      %v3356 = vunpack.c.0.s8 %v3355
      %v3357 = vlaneseq
      %v3358 = vshrl.u32 %v3357, 7
      %v3359 = vsub.s32 %v3356, %v3358
      %v3360 = vrot.slane %v3352, %v3359
      %v3362 = vunpack.c.l.s4 1983009808
      %v3363 = vunpack.c.0.s8 %v3362
      %v3364 = vlaneseq
      %v3365 = vshrl.u32 %v3364, 7
      %v3366 = vsub.s32 %v3363, %v3365
      %v3367 = vrot.slane %v3353, %v3366
      %v3368 = vcombine.low %v3130, %v3146
      %v3369 = vcombine.high %v3130, %v3146
      %v3371 = vunpack.c.l.s4 1983009808
      %v3372 = vunpack.c.0.s8 %v3371
      %v3373 = vlaneseq
      %v3374 = vshrl.u32 %v3373, 7
      %v3375 = vsub.s32 %v3372, %v3374
      %v3376 = vrot.slane %v3368, %v3375
      %v3378 = vunpack.c.l.s4 1983009808
      %v3379 = vunpack.c.0.s8 %v3378
      %v3380 = vlaneseq
      %v3381 = vshrl.u32 %v3380, 7
      %v3382 = vsub.s32 %v3379, %v3381
      %v3383 = vrot.slane %v3369, %v3382
      %v3384 = vcombine.low %v3360, %v3376
      %v3385 = vcombine.high %v3360, %v3376
      %v3387 = vunpack.c.l.s4 1934713408
      %v3388 = vunpack.c.0.s8 %v3387
      %v3389 = vlaneseq
      %v3390 = vshrl.u32 %v3389, 7
      %v3391 = vsub.s32 %v3388, %v3390
      %v3392 = vrot.slane %v3384, %v3391
      %v3394 = vunpack.c.l.s4 1934713408
      %v3395 = vunpack.c.0.s8 %v3394
      %v3396 = vlaneseq
      %v3397 = vshrl.u32 %v3396, 7
      %v3398 = vsub.s32 %v3395, %v3397
      %v3399 = vrot.slane %v3385, %v3398
      %v3400 = vcombine.low %v3367, %v3383
      %v3401 = vcombine.high %v3367, %v3383
      %v3403 = vunpack.c.l.s4 1934713408
      %v3404 = vunpack.c.0.s8 %v3403
      %v3405 = vlaneseq
      %v3406 = vshrl.u32 %v3405, 7
      %v3407 = vsub.s32 %v3404, %v3406
      %v3408 = vrot.slane %v3400, %v3407
      %v3410 = vunpack.c.l.s4 1934713408
      %v3411 = vunpack.c.0.s8 %v3410
      %v3412 = vlaneseq
      %v3413 = vshrl.u32 %v3412, 7
      %v3414 = vsub.s32 %v3411, %v3413
      %v3415 = vrot.slane %v3401, %v3414
      %v3416 = vcombine.high %v3392, 0
      %v3417 = vcombine.high %v3399, 0
      %v3418 = vcombine.high %v3408, 0
      %v3419 = vcombine.high %v3415, 0
      %v3420 = vcombine.low %v3126, %v3142
      %v3421 = vcombine.high %v3126, %v3142
      %v3423 = vunpack.c.l.s4 1983009808
      %v3424 = vunpack.c.0.s8 %v3423
      %v3425 = vlaneseq
      %v3426 = vshrl.u32 %v3425, 7
      %v3427 = vsub.s32 %v3424, %v3426
      %v3428 = vrot.slane %v3420, %v3427
      %v3430 = vunpack.c.l.s4 1983009808
      %v3431 = vunpack.c.0.s8 %v3430
      %v3432 = vlaneseq
      %v3433 = vshrl.u32 %v3432, 7
      %v3434 = vsub.s32 %v3431, %v3433
      %v3435 = vrot.slane %v3421, %v3434
      %v3436 = vcombine.low %v3134, %v3150
      %v3437 = vcombine.high %v3134, %v3150
      %v3439 = vunpack.c.l.s4 1983009808
      %v3440 = vunpack.c.0.s8 %v3439
      %v3441 = vlaneseq
      %v3442 = vshrl.u32 %v3441, 7
      %v3443 = vsub.s32 %v3440, %v3442
      %v3444 = vrot.slane %v3436, %v3443
      %v3446 = vunpack.c.l.s4 1983009808
      %v3447 = vunpack.c.0.s8 %v3446
      %v3448 = vlaneseq
      %v3449 = vshrl.u32 %v3448, 7
      %v3450 = vsub.s32 %v3447, %v3449
      %v3451 = vrot.slane %v3437, %v3450
      %v3452 = vcombine.low %v3428, %v3444
      %v3453 = vcombine.high %v3428, %v3444
      %v3455 = vunpack.c.l.s4 1934713408
      %v3456 = vunpack.c.0.s8 %v3455
      %v3457 = vlaneseq
      %v3458 = vshrl.u32 %v3457, 7
      %v3459 = vsub.s32 %v3456, %v3458
      %v3460 = vrot.slane %v3452, %v3459
      %v3462 = vunpack.c.l.s4 1934713408
      %v3463 = vunpack.c.0.s8 %v3462
      %v3464 = vlaneseq
      %v3465 = vshrl.u32 %v3464, 7
      %v3466 = vsub.s32 %v3463, %v3465
      %v3467 = vrot.slane %v3453, %v3466
      %v3468 = vcombine.low %v3435, %v3451
      %v3469 = vcombine.high %v3435, %v3451
      %v3471 = vunpack.c.l.s4 1934713408
      %v3472 = vunpack.c.0.s8 %v3471
      %v3473 = vlaneseq
      %v3474 = vshrl.u32 %v3473, 7
      %v3475 = vsub.s32 %v3472, %v3474
      %v3476 = vrot.slane %v3468, %v3475
      %v3478 = vunpack.c.l.s4 1934713408
      %v3479 = vunpack.c.0.s8 %v3478
      %v3480 = vlaneseq
      %v3481 = vshrl.u32 %v3480, 7
      %v3482 = vsub.s32 %v3479, %v3481
      %v3483 = vrot.slane %v3469, %v3482
      %v3484 = vcombine.high %v3460, 0
      %v3485 = vcombine.high %v3467, 0
      %v3486 = vcombine.high %v3476, 0
      %v3487 = vcombine.high %v3483, 0
      %v3488 = vcombine.low %v3154, %v3170
      %v3489 = vcombine.high %v3154, %v3170
      %v3491 = vunpack.c.l.s4 1983009808
      %v3492 = vunpack.c.0.s8 %v3491
      %v3493 = vlaneseq
      %v3494 = vshrl.u32 %v3493, 7
      %v3495 = vsub.s32 %v3492, %v3494
      %v3496 = vrot.slane %v3488, %v3495
      %v3498 = vunpack.c.l.s4 1983009808
      %v3499 = vunpack.c.0.s8 %v3498
      %v3500 = vlaneseq
      %v3501 = vshrl.u32 %v3500, 7
      %v3502 = vsub.s32 %v3499, %v3501
      %v3503 = vrot.slane %v3489, %v3502
      %v3504 = vcombine.low %v3162, %v3178
      %v3505 = vcombine.high %v3162, %v3178
      %v3507 = vunpack.c.l.s4 1983009808
      %v3508 = vunpack.c.0.s8 %v3507
      %v3509 = vlaneseq
      %v3510 = vshrl.u32 %v3509, 7
      %v3511 = vsub.s32 %v3508, %v3510
      %v3512 = vrot.slane %v3504, %v3511
      %v3514 = vunpack.c.l.s4 1983009808
      %v3515 = vunpack.c.0.s8 %v3514
      %v3516 = vlaneseq
      %v3517 = vshrl.u32 %v3516, 7
      %v3518 = vsub.s32 %v3515, %v3517
      %v3519 = vrot.slane %v3505, %v3518
      %v3520 = vcombine.low %v3496, %v3512
      %v3521 = vcombine.high %v3496, %v3512
      %v3523 = vunpack.c.l.s4 1934713408
      %v3524 = vunpack.c.0.s8 %v3523
      %v3525 = vlaneseq
      %v3526 = vshrl.u32 %v3525, 7
      %v3527 = vsub.s32 %v3524, %v3526
      %v3528 = vrot.slane %v3520, %v3527
      %v3530 = vunpack.c.l.s4 1934713408
      %v3531 = vunpack.c.0.s8 %v3530
      %v3532 = vlaneseq
      %v3533 = vshrl.u32 %v3532, 7
      %v3534 = vsub.s32 %v3531, %v3533
      %v3535 = vrot.slane %v3521, %v3534
      %v3536 = vcombine.low %v3503, %v3519
      %v3537 = vcombine.high %v3503, %v3519
      %v3539 = vunpack.c.l.s4 1934713408
      %v3540 = vunpack.c.0.s8 %v3539
      %v3541 = vlaneseq
      %v3542 = vshrl.u32 %v3541, 7
      %v3543 = vsub.s32 %v3540, %v3542
      %v3544 = vrot.slane %v3536, %v3543
      %v3546 = vunpack.c.l.s4 1934713408
      %v3547 = vunpack.c.0.s8 %v3546
      %v3548 = vlaneseq
      %v3549 = vshrl.u32 %v3548, 7
      %v3550 = vsub.s32 %v3547, %v3549
      %v3551 = vrot.slane %v3537, %v3550
      %v3552 = vcombine.high %v3528, 0
      %v3553 = vcombine.high %v3535, 0
      %v3554 = vcombine.high %v3544, 0
      %v3555 = vcombine.high %v3551, 0
      %v3556 = vcombine.low %v3158, %v3174
      %v3557 = vcombine.high %v3158, %v3174
      %v3559 = vunpack.c.l.s4 1983009808
      %v3560 = vunpack.c.0.s8 %v3559
      %v3561 = vlaneseq
      %v3562 = vshrl.u32 %v3561, 7
      %v3563 = vsub.s32 %v3560, %v3562
      %v3564 = vrot.slane %v3556, %v3563
      %v3566 = vunpack.c.l.s4 1983009808
      %v3567 = vunpack.c.0.s8 %v3566
      %v3568 = vlaneseq
      %v3569 = vshrl.u32 %v3568, 7
      %v3570 = vsub.s32 %v3567, %v3569
      %v3571 = vrot.slane %v3557, %v3570
      %v3572 = vcombine.low %v3166, %v3182
      %v3573 = vcombine.high %v3166, %v3182
      %v3575 = vunpack.c.l.s4 1983009808
      %v3576 = vunpack.c.0.s8 %v3575
      %v3577 = vlaneseq
      %v3578 = vshrl.u32 %v3577, 7
      %v3579 = vsub.s32 %v3576, %v3578
      %v3580 = vrot.slane %v3572, %v3579
      %v3582 = vunpack.c.l.s4 1983009808
      %v3583 = vunpack.c.0.s8 %v3582
      %v3584 = vlaneseq
      %v3585 = vshrl.u32 %v3584, 7
      %v3586 = vsub.s32 %v3583, %v3585
      %v3587 = vrot.slane %v3573, %v3586
      %v3588 = vcombine.low %v3564, %v3580
      %v3589 = vcombine.high %v3564, %v3580
      %v3591 = vunpack.c.l.s4 1934713408
      %v3592 = vunpack.c.0.s8 %v3591
      %v3593 = vlaneseq
      %v3594 = vshrl.u32 %v3593, 7
      %v3595 = vsub.s32 %v3592, %v3594
      %v3596 = vrot.slane %v3588, %v3595
      %v3598 = vunpack.c.l.s4 1934713408
      %v3599 = vunpack.c.0.s8 %v3598
      %v3600 = vlaneseq
      %v3601 = vshrl.u32 %v3600, 7
      %v3602 = vsub.s32 %v3599, %v3601
      %v3603 = vrot.slane %v3589, %v3602
      %v3604 = vcombine.low %v3571, %v3587
      %v3605 = vcombine.high %v3571, %v3587
      %v3607 = vunpack.c.l.s4 1934713408
      %v3608 = vunpack.c.0.s8 %v3607
      %v3609 = vlaneseq
      %v3610 = vshrl.u32 %v3609, 7
      %v3611 = vsub.s32 %v3608, %v3610
      %v3612 = vrot.slane %v3604, %v3611
      %v3614 = vunpack.c.l.s4 1934713408
      %v3615 = vunpack.c.0.s8 %v3614
      %v3616 = vlaneseq
      %v3617 = vshrl.u32 %v3616, 7
      %v3618 = vsub.s32 %v3615, %v3617
      %v3619 = vrot.slane %v3605, %v3618
      %v3620 = vcombine.high %v3596, 0
      %v3621 = vcombine.high %v3603, 0
      %v3622 = vcombine.high %v3612, 0
      %v3623 = vcombine.high %v3619, 0
      %v3624 = vcombine.low %v3186, %v3202
      %v3625 = vcombine.high %v3186, %v3202
      %v3627 = vunpack.c.l.s4 1983009808
      %v3628 = vunpack.c.0.s8 %v3627
      %v3629 = vlaneseq
      %v3630 = vshrl.u32 %v3629, 7
      %v3631 = vsub.s32 %v3628, %v3630
      %v3632 = vrot.slane %v3624, %v3631
      %v3634 = vunpack.c.l.s4 1983009808
      %v3635 = vunpack.c.0.s8 %v3634
      %v3636 = vlaneseq
      %v3637 = vshrl.u32 %v3636, 7
      %v3638 = vsub.s32 %v3635, %v3637
      %v3639 = vrot.slane %v3625, %v3638
      %v3640 = vcombine.low %v3194, %v3210
      %v3641 = vcombine.high %v3194, %v3210
      %v3643 = vunpack.c.l.s4 1983009808
      %v3644 = vunpack.c.0.s8 %v3643
      %v3645 = vlaneseq
      %v3646 = vshrl.u32 %v3645, 7
      %v3647 = vsub.s32 %v3644, %v3646
      %v3648 = vrot.slane %v3640, %v3647
      %v3650 = vunpack.c.l.s4 1983009808
      %v3651 = vunpack.c.0.s8 %v3650
      %v3652 = vlaneseq
      %v3653 = vshrl.u32 %v3652, 7
      %v3654 = vsub.s32 %v3651, %v3653
      %v3655 = vrot.slane %v3641, %v3654
      %v3656 = vcombine.low %v3632, %v3648
      %v3657 = vcombine.high %v3632, %v3648
      %v3659 = vunpack.c.l.s4 1934713408
      %v3660 = vunpack.c.0.s8 %v3659
      %v3661 = vlaneseq
      %v3662 = vshrl.u32 %v3661, 7
      %v3663 = vsub.s32 %v3660, %v3662
      %v3664 = vrot.slane %v3656, %v3663
      %v3666 = vunpack.c.l.s4 1934713408
      %v3667 = vunpack.c.0.s8 %v3666
      %v3668 = vlaneseq
      %v3669 = vshrl.u32 %v3668, 7
      %v3670 = vsub.s32 %v3667, %v3669
      %v3671 = vrot.slane %v3657, %v3670
      %v3672 = vcombine.low %v3639, %v3655
      %v3673 = vcombine.high %v3639, %v3655
      %v3675 = vunpack.c.l.s4 1934713408
      %v3676 = vunpack.c.0.s8 %v3675
      %v3677 = vlaneseq
      %v3678 = vshrl.u32 %v3677, 7
      %v3679 = vsub.s32 %v3676, %v3678
      %v3680 = vrot.slane %v3672, %v3679
      %v3682 = vunpack.c.l.s4 1934713408
      %v3683 = vunpack.c.0.s8 %v3682
      %v3684 = vlaneseq
      %v3685 = vshrl.u32 %v3684, 7
      %v3686 = vsub.s32 %v3683, %v3685
      %v3687 = vrot.slane %v3673, %v3686
      %v3688 = vcombine.high %v3664, 0
      %v3689 = vcombine.high %v3671, 0
      %v3690 = vcombine.high %v3680, 0
      %v3691 = vcombine.high %v3687, 0
      %v3692 = vcombine.low %v3190, %v3206
      %v3693 = vcombine.high %v3190, %v3206
      %v3695 = vunpack.c.l.s4 1983009808
      %v3696 = vunpack.c.0.s8 %v3695
      %v3697 = vlaneseq
      %v3698 = vshrl.u32 %v3697, 7
      %v3699 = vsub.s32 %v3696, %v3698
      %v3700 = vrot.slane %v3692, %v3699
      %v3702 = vunpack.c.l.s4 1983009808
      %v3703 = vunpack.c.0.s8 %v3702
      %v3704 = vlaneseq
      %v3705 = vshrl.u32 %v3704, 7
      %v3706 = vsub.s32 %v3703, %v3705
      %v3707 = vrot.slane %v3693, %v3706
      %v3708 = vcombine.low %v3198, %v3214
      %v3709 = vcombine.high %v3198, %v3214
      %v3711 = vunpack.c.l.s4 1983009808
      %v3712 = vunpack.c.0.s8 %v3711
      %v3713 = vlaneseq
      %v3714 = vshrl.u32 %v3713, 7
      %v3715 = vsub.s32 %v3712, %v3714
      %v3716 = vrot.slane %v3708, %v3715
      %v3718 = vunpack.c.l.s4 1983009808
      %v3719 = vunpack.c.0.s8 %v3718
      %v3720 = vlaneseq
      %v3721 = vshrl.u32 %v3720, 7
      %v3722 = vsub.s32 %v3719, %v3721
      %v3723 = vrot.slane %v3709, %v3722
      %v3724 = vcombine.low %v3700, %v3716
      %v3725 = vcombine.high %v3700, %v3716
      %v3727 = vunpack.c.l.s4 1934713408
      %v3728 = vunpack.c.0.s8 %v3727
      %v3729 = vlaneseq
      %v3730 = vshrl.u32 %v3729, 7
      %v3731 = vsub.s32 %v3728, %v3730
      %v3732 = vrot.slane %v3724, %v3731
      %v3734 = vunpack.c.l.s4 1934713408
      %v3735 = vunpack.c.0.s8 %v3734
      %v3736 = vlaneseq
      %v3737 = vshrl.u32 %v3736, 7
      %v3738 = vsub.s32 %v3735, %v3737
      %v3739 = vrot.slane %v3725, %v3738
      %v3740 = vcombine.low %v3707, %v3723
      %v3741 = vcombine.high %v3707, %v3723
      %v3743 = vunpack.c.l.s4 1934713408
      %v3744 = vunpack.c.0.s8 %v3743
      %v3745 = vlaneseq
      %v3746 = vshrl.u32 %v3745, 7
      %v3747 = vsub.s32 %v3744, %v3746
      %v3748 = vrot.slane %v3740, %v3747
      %v3750 = vunpack.c.l.s4 1934713408
      %v3751 = vunpack.c.0.s8 %v3750
      %v3752 = vlaneseq
      %v3753 = vshrl.u32 %v3752, 7
      %v3754 = vsub.s32 %v3751, %v3753
      %v3755 = vrot.slane %v3741, %v3754
      %v3756 = vcombine.high %v3732, 0
      %v3757 = vcombine.high %v3739, 0
      %v3758 = vcombine.high %v3748, 0
      %v3759 = vcombine.high %v3755, 0
      %3760 = vxpose.xlu0.c.b16.start [1/8] %v3256, 128
      %3761 = vxpose.xlu0.c.b16.cont [2/8] 0, 128
      %3762 = vxpose.xlu0.c.b16.cont [3/8] 0, 128
      %3763 = vxpose.xlu0.c.b16.cont [4/8] 0, 128
      %3764 = vxpose.xlu0.c.b16.cont [5/8] 0, 128
      %3765 = vxpose.xlu0.c.b16.cont [6/8] 0, 128
      %3766 = vxpose.xlu0.c.b16.cont [7/8] 0, 128
      %3767 = vxpose.xlu0.c.b16.end [8/8] 0, 128
      %v3768 = vpop.trf.xlu0
      %v3769 = vpop.trf.xlu0
      %v3770 = vpop.trf.xlu0
      %v3771 = vpop.trf.xlu0
      %v3772 = vpop.trf.xlu0
      %v3773 = vpop.trf.xlu0
      %v3774 = vpop.trf.xlu0
      %v3775 = vpop.trf.xlu0
      %3776 = vxpose.xlu0.c.b16.start [1/8] %v3324, 128
      %3777 = vxpose.xlu0.c.b16.cont [2/8] 0, 128
      %3778 = vxpose.xlu0.c.b16.cont [3/8] 0, 128
      %3779 = vxpose.xlu0.c.b16.cont [4/8] 0, 128
      %3780 = vxpose.xlu0.c.b16.cont [5/8] 0, 128
      %3781 = vxpose.xlu0.c.b16.cont [6/8] 0, 128
      %3782 = vxpose.xlu0.c.b16.cont [7/8] 0, 128
      %3783 = vxpose.xlu0.c.b16.end [8/8] 0, 128
      %v3784 = vpop.trf.xlu0
      %v3785 = vpop.trf.xlu0
      %v3786 = vpop.trf.xlu0
      %v3787 = vpop.trf.xlu0
      %v3788 = vpop.trf.xlu0
      %v3789 = vpop.trf.xlu0
      %v3790 = vpop.trf.xlu0
      %v3791 = vpop.trf.xlu0
      %3792 = vxpose.xlu0.c.b16.start [1/8] %v3280, 128
      %3793 = vxpose.xlu0.c.b16.cont [2/8] 0, 128
      %3794 = vxpose.xlu0.c.b16.cont [3/8] 0, 128
      %3795 = vxpose.xlu0.c.b16.cont [4/8] 0, 128
      %3796 = vxpose.xlu0.c.b16.cont [5/8] 0, 128
      %3797 = vxpose.xlu0.c.b16.cont [6/8] 0, 128
      %3798 = vxpose.xlu0.c.b16.cont [7/8] 0, 128
      %3799 = vxpose.xlu0.c.b16.end [8/8] 0, 128
      %v3800 = vpop.trf.xlu0
      %v3801 = vpop.trf.xlu0
      %v3802 = vpop.trf.xlu0
      %v3803 = vpop.trf.xlu0
      %v3804 = vpop.trf.xlu0
      %v3805 = vpop.trf.xlu0
      %v3806 = vpop.trf.xlu0
      %v3807 = vpop.trf.xlu0
      %3808 = vxpose.xlu0.c.b16.start [1/8] %v3348, 128
      %3809 = vxpose.xlu0.c.b16.cont [2/8] 0, 128
      %3810 = vxpose.xlu0.c.b16.cont [3/8] 0, 128
      %3811 = vxpose.xlu0.c.b16.cont [4/8] 0, 128
      %3812 = vxpose.xlu0.c.b16.cont [5/8] 0, 128
      %3813 = vxpose.xlu0.c.b16.cont [6/8] 0, 128
      %3814 = vxpose.xlu0.c.b16.cont [7/8] 0, 128
      %3815 = vxpose.xlu0.c.b16.end [8/8] 0, 128
      %v3816 = vpop.trf.xlu0
      %v3817 = vpop.trf.xlu0
      %v3818 = vpop.trf.xlu0
      %v3819 = vpop.trf.xlu0
      %v3820 = vpop.trf.xlu0
      %v3821 = vpop.trf.xlu0
      %v3822 = vpop.trf.xlu0
      %v3823 = vpop.trf.xlu0
      %3824 = vxpose.xlu0.c.b16.start [1/8] %v3263, 128
      %3825 = vxpose.xlu0.c.b16.cont [2/8] 0, 128
      %3826 = vxpose.xlu0.c.b16.cont [3/8] 0, 128
      %3827 = vxpose.xlu0.c.b16.cont [4/8] 0, 128
      %3828 = vxpose.xlu0.c.b16.cont [5/8] 0, 128
      %3829 = vxpose.xlu0.c.b16.cont [6/8] 0, 128
      %3830 = vxpose.xlu0.c.b16.cont [7/8] 0, 128
      %3831 = vxpose.xlu0.c.b16.end [8/8] 0, 128
      %v3832 = vpop.trf.xlu0
      %v3833 = vpop.trf.xlu0
      %v3834 = vpop.trf.xlu0
      %v3835 = vpop.trf.xlu0
      %v3836 = vpop.trf.xlu0
      %v3837 = vpop.trf.xlu0
      %v3838 = vpop.trf.xlu0
      %v3839 = vpop.trf.xlu0
      %3840 = vxpose.xlu0.c.b16.start [1/8] %v3331, 128
      %3841 = vxpose.xlu0.c.b16.cont [2/8] 0, 128
      %3842 = vxpose.xlu0.c.b16.cont [3/8] 0, 128
      %3843 = vxpose.xlu0.c.b16.cont [4/8] 0, 128
      %3844 = vxpose.xlu0.c.b16.cont [5/8] 0, 128
      %3845 = vxpose.xlu0.c.b16.cont [6/8] 0, 128
      %3846 = vxpose.xlu0.c.b16.cont [7/8] 0, 128
      %3847 = vxpose.xlu0.c.b16.end [8/8] 0, 128
      %v3848 = vpop.trf.xlu0
      %v3849 = vpop.trf.xlu0
      %v3850 = vpop.trf.xlu0
      %v3851 = vpop.trf.xlu0
      %v3852 = vpop.trf.xlu0
      %v3853 = vpop.trf.xlu0
      %v3854 = vpop.trf.xlu0
      %v3855 = vpop.trf.xlu0
      %3856 = vxpose.xlu0.c.b16.start [1/8] %v3281, 128
      %3857 = vxpose.xlu0.c.b16.cont [2/8] 0, 128
      %3858 = vxpose.xlu0.c.b16.cont [3/8] 0, 128
      %3859 = vxpose.xlu0.c.b16.cont [4/8] 0, 128
      %3860 = vxpose.xlu0.c.b16.cont [5/8] 0, 128
      %3861 = vxpose.xlu0.c.b16.cont [6/8] 0, 128
      %3862 = vxpose.xlu0.c.b16.cont [7/8] 0, 128
      %3863 = vxpose.xlu0.c.b16.end [8/8] 0, 128
      %v3864 = vpop.trf.xlu0
      %v3865 = vpop.trf.xlu0
      %v3866 = vpop.trf.xlu0
      %v3867 = vpop.trf.xlu0
      %v3868 = vpop.trf.xlu0
      %v3869 = vpop.trf.xlu0
      %v3870 = vpop.trf.xlu0
      %v3871 = vpop.trf.xlu0
      %3872 = vxpose.xlu0.c.b16.start [1/8] %v3349, 128
      %3873 = vxpose.xlu0.c.b16.cont [2/8] 0, 128
      %3874 = vxpose.xlu0.c.b16.cont [3/8] 0, 128
      %3875 = vxpose.xlu0.c.b16.cont [4/8] 0, 128
      %3876 = vxpose.xlu0.c.b16.cont [5/8] 0, 128
      %3877 = vxpose.xlu0.c.b16.cont [6/8] 0, 128
      %3878 = vxpose.xlu0.c.b16.cont [7/8] 0, 128
      %3879 = vxpose.xlu0.c.b16.end [8/8] 0, 128
      %v3880 = vpop.trf.xlu0
      %v3881 = vpop.trf.xlu0
      %v3882 = vpop.trf.xlu0
      %v3883 = vpop.trf.xlu0
      %v3884 = vpop.trf.xlu0
      %v3885 = vpop.trf.xlu0
      %v3886 = vpop.trf.xlu0
      %v3887 = vpop.trf.xlu0
      %3888 = vxpose.xlu0.c.b16.start [1/8] %v3272, 128
      %3889 = vxpose.xlu0.c.b16.cont [2/8] 0, 128
      %3890 = vxpose.xlu0.c.b16.cont [3/8] 0, 128
      %3891 = vxpose.xlu0.c.b16.cont [4/8] 0, 128
      %3892 = vxpose.xlu0.c.b16.cont [5/8] 0, 128
      %3893 = vxpose.xlu0.c.b16.cont [6/8] 0, 128
      %3894 = vxpose.xlu0.c.b16.cont [7/8] 0, 128
      %3895 = vxpose.xlu0.c.b16.end [8/8] 0, 128
      %v3896 = vpop.trf.xlu0
      %v3897 = vpop.trf.xlu0
      %v3898 = vpop.trf.xlu0
      %v3899 = vpop.trf.xlu0
      %v3900 = vpop.trf.xlu0
      %v3901 = vpop.trf.xlu0
      %v3902 = vpop.trf.xlu0
      %v3903 = vpop.trf.xlu0
      %3904 = vxpose.xlu0.c.b16.start [1/8] %v3340, 128
      %3905 = vxpose.xlu0.c.b16.cont [2/8] 0, 128
      %3906 = vxpose.xlu0.c.b16.cont [3/8] 0, 128
      %3907 = vxpose.xlu0.c.b16.cont [4/8] 0, 128
      %3908 = vxpose.xlu0.c.b16.cont [5/8] 0, 128
      %3909 = vxpose.xlu0.c.b16.cont [6/8] 0, 128
      %3910 = vxpose.xlu0.c.b16.cont [7/8] 0, 128
      %3911 = vxpose.xlu0.c.b16.end [8/8] 0, 128
      %v3912 = vpop.trf.xlu0
      %v3913 = vpop.trf.xlu0
      %v3914 = vpop.trf.xlu0
      %v3915 = vpop.trf.xlu0
      %v3916 = vpop.trf.xlu0
      %v3917 = vpop.trf.xlu0
      %v3918 = vpop.trf.xlu0
      %v3919 = vpop.trf.xlu0
      %3920 = vxpose.xlu0.c.b16.start [1/8] %v3282, 128
      %3921 = vxpose.xlu0.c.b16.cont [2/8] 0, 128
      %3922 = vxpose.xlu0.c.b16.cont [3/8] 0, 128
      %3923 = vxpose.xlu0.c.b16.cont [4/8] 0, 128
      %3924 = vxpose.xlu0.c.b16.cont [5/8] 0, 128
      %3925 = vxpose.xlu0.c.b16.cont [6/8] 0, 128
      %3926 = vxpose.xlu0.c.b16.cont [7/8] 0, 128
      %3927 = vxpose.xlu0.c.b16.end [8/8] 0, 128
      %v3928 = vpop.trf.xlu0
      %v3929 = vpop.trf.xlu0
      %v3930 = vpop.trf.xlu0
      %v3931 = vpop.trf.xlu0
      %v3932 = vpop.trf.xlu0
      %v3933 = vpop.trf.xlu0
      %v3934 = vpop.trf.xlu0
      %v3935 = vpop.trf.xlu0
      %3936 = vxpose.xlu0.c.b16.start [1/8] %v3350, 128
      %3937 = vxpose.xlu0.c.b16.cont [2/8] 0, 128
      %3938 = vxpose.xlu0.c.b16.cont [3/8] 0, 128
      %3939 = vxpose.xlu0.c.b16.cont [4/8] 0, 128
      %3940 = vxpose.xlu0.c.b16.cont [5/8] 0, 128
      %3941 = vxpose.xlu0.c.b16.cont [6/8] 0, 128
      %3942 = vxpose.xlu0.c.b16.cont [7/8] 0, 128
      %3943 = vxpose.xlu0.c.b16.end [8/8] 0, 128
      %v3944 = vpop.trf.xlu0
      %v3945 = vpop.trf.xlu0
      %v3946 = vpop.trf.xlu0
      %v3947 = vpop.trf.xlu0
      %v3948 = vpop.trf.xlu0
      %v3949 = vpop.trf.xlu0
      %v3950 = vpop.trf.xlu0
      %v3951 = vpop.trf.xlu0
      %3952 = vxpose.xlu0.c.b16.start [1/8] %v3279, 128
      %3953 = vxpose.xlu0.c.b16.cont [2/8] 0, 128
      %3954 = vxpose.xlu0.c.b16.cont [3/8] 0, 128
      %3955 = vxpose.xlu0.c.b16.cont [4/8] 0, 128
      %3956 = vxpose.xlu0.c.b16.cont [5/8] 0, 128
      %3957 = vxpose.xlu0.c.b16.cont [6/8] 0, 128
      %3958 = vxpose.xlu0.c.b16.cont [7/8] 0, 128
      %3959 = vxpose.xlu0.c.b16.end [8/8] 0, 128
      %v3960 = vpop.trf.xlu0
      %v3961 = vpop.trf.xlu0
      %v3962 = vpop.trf.xlu0
      %v3963 = vpop.trf.xlu0
      %v3964 = vpop.trf.xlu0
      %v3965 = vpop.trf.xlu0
      %v3966 = vpop.trf.xlu0
      %v3967 = vpop.trf.xlu0
      %3968 = vxpose.xlu0.c.b16.start [1/8] %v3347, 128
      %3969 = vxpose.xlu0.c.b16.cont [2/8] 0, 128
      %3970 = vxpose.xlu0.c.b16.cont [3/8] 0, 128
      %3971 = vxpose.xlu0.c.b16.cont [4/8] 0, 128
      %3972 = vxpose.xlu0.c.b16.cont [5/8] 0, 128
      %3973 = vxpose.xlu0.c.b16.cont [6/8] 0, 128
      %3974 = vxpose.xlu0.c.b16.cont [7/8] 0, 128
      %3975 = vxpose.xlu0.c.b16.end [8/8] 0, 128
      %v3976 = vpop.trf.xlu0
      %v3977 = vpop.trf.xlu0
      %v3978 = vpop.trf.xlu0
      %v3979 = vpop.trf.xlu0
      %v3980 = vpop.trf.xlu0
      %v3981 = vpop.trf.xlu0
      %v3982 = vpop.trf.xlu0
      %v3983 = vpop.trf.xlu0
      %3984 = vxpose.xlu0.c.b16.start [1/8] %v3283, 128
      %3985 = vxpose.xlu0.c.b16.cont [2/8] 0, 128
      %3986 = vxpose.xlu0.c.b16.cont [3/8] 0, 128
      %3987 = vxpose.xlu0.c.b16.cont [4/8] 0, 128
      %3988 = vxpose.xlu0.c.b16.cont [5/8] 0, 128
      %3989 = vxpose.xlu0.c.b16.cont [6/8] 0, 128
      %3990 = vxpose.xlu0.c.b16.cont [7/8] 0, 128
      %3991 = vxpose.xlu0.c.b16.end [8/8] 0, 128
      %v3992 = vpop.trf.xlu0
      %v3993 = vpop.trf.xlu0
      %v3994 = vpop.trf.xlu0
      %v3995 = vpop.trf.xlu0
      %v3996 = vpop.trf.xlu0
      %v3997 = vpop.trf.xlu0
      %v3998 = vpop.trf.xlu0
      %v3999 = vpop.trf.xlu0
      %4000 = vxpose.xlu0.c.b16.start [1/8] %v3351, 128
      %4001 = vxpose.xlu0.c.b16.cont [2/8] 0, 128
      %4002 = vxpose.xlu0.c.b16.cont [3/8] 0, 128
      %4003 = vxpose.xlu0.c.b16.cont [4/8] 0, 128
      %4004 = vxpose.xlu0.c.b16.cont [5/8] 0, 128
      %4005 = vxpose.xlu0.c.b16.cont [6/8] 0, 128
      %4006 = vxpose.xlu0.c.b16.cont [7/8] 0, 128
      %4007 = vxpose.xlu0.c.b16.end [8/8] 0, 128
      %v4008 = vpop.trf.xlu0
      %v4009 = vpop.trf.xlu0
      %v4010 = vpop.trf.xlu0
      %v4011 = vpop.trf.xlu0
      %v4012 = vpop.trf.xlu0
      %v4013 = vpop.trf.xlu0
      %v4014 = vpop.trf.xlu0
      %v4015 = vpop.trf.xlu0
      %4016 = vxpose.xlu0.c.b16.start [1/8] %v3392, 128
      %4017 = vxpose.xlu0.c.b16.cont [2/8] 0, 128
      %4018 = vxpose.xlu0.c.b16.cont [3/8] 0, 128
      %4019 = vxpose.xlu0.c.b16.cont [4/8] 0, 128
      %4020 = vxpose.xlu0.c.b16.cont [5/8] 0, 128
      %4021 = vxpose.xlu0.c.b16.cont [6/8] 0, 128
      %4022 = vxpose.xlu0.c.b16.cont [7/8] 0, 128
      %4023 = vxpose.xlu0.c.b16.end [8/8] 0, 128
      %v4024 = vpop.trf.xlu0
      %v4025 = vpop.trf.xlu0
      %v4026 = vpop.trf.xlu0
      %v4027 = vpop.trf.xlu0
      %v4028 = vpop.trf.xlu0
      %v4029 = vpop.trf.xlu0
      %v4030 = vpop.trf.xlu0
      %v4031 = vpop.trf.xlu0
      %4032 = vxpose.xlu0.c.b16.start [1/8] %v3460, 128
      %4033 = vxpose.xlu0.c.b16.cont [2/8] 0, 128
      %4034 = vxpose.xlu0.c.b16.cont [3/8] 0, 128
      %4035 = vxpose.xlu0.c.b16.cont [4/8] 0, 128
      %4036 = vxpose.xlu0.c.b16.cont [5/8] 0, 128
      %4037 = vxpose.xlu0.c.b16.cont [6/8] 0, 128
      %4038 = vxpose.xlu0.c.b16.cont [7/8] 0, 128
      %4039 = vxpose.xlu0.c.b16.end [8/8] 0, 128
      %v4040 = vpop.trf.xlu0
      %v4041 = vpop.trf.xlu0
      %v4042 = vpop.trf.xlu0
      %v4043 = vpop.trf.xlu0
      %v4044 = vpop.trf.xlu0
      %v4045 = vpop.trf.xlu0
      %v4046 = vpop.trf.xlu0
      %v4047 = vpop.trf.xlu0
      %4048 = vxpose.xlu0.c.b16.start [1/8] %v3416, 128
      %4049 = vxpose.xlu0.c.b16.cont [2/8] 0, 128
      %4050 = vxpose.xlu0.c.b16.cont [3/8] 0, 128
      %4051 = vxpose.xlu0.c.b16.cont [4/8] 0, 128
      %4052 = vxpose.xlu0.c.b16.cont [5/8] 0, 128
      %4053 = vxpose.xlu0.c.b16.cont [6/8] 0, 128
      %4054 = vxpose.xlu0.c.b16.cont [7/8] 0, 128
      %4055 = vxpose.xlu0.c.b16.end [8/8] 0, 128
      %v4056 = vpop.trf.xlu0
      %v4057 = vpop.trf.xlu0
      %v4058 = vpop.trf.xlu0
      %v4059 = vpop.trf.xlu0
      %v4060 = vpop.trf.xlu0
      %v4061 = vpop.trf.xlu0
      %v4062 = vpop.trf.xlu0
      %v4063 = vpop.trf.xlu0
      %4064 = vxpose.xlu0.c.b16.start [1/8] %v3484, 128
      %4065 = vxpose.xlu0.c.b16.cont [2/8] 0, 128
      %4066 = vxpose.xlu0.c.b16.cont [3/8] 0, 128
      %4067 = vxpose.xlu0.c.b16.cont [4/8] 0, 128
      %4068 = vxpose.xlu0.c.b16.cont [5/8] 0, 128
      %4069 = vxpose.xlu0.c.b16.cont [6/8] 0, 128
      %4070 = vxpose.xlu0.c.b16.cont [7/8] 0, 128
      %4071 = vxpose.xlu0.c.b16.end [8/8] 0, 128
      %v4072 = vpop.trf.xlu0
      %v4073 = vpop.trf.xlu0
      %v4074 = vpop.trf.xlu0
      %v4075 = vpop.trf.xlu0
      %v4076 = vpop.trf.xlu0
      %v4077 = vpop.trf.xlu0
      %v4078 = vpop.trf.xlu0
      %v4079 = vpop.trf.xlu0
      %4080 = vxpose.xlu0.c.b16.start [1/8] %v3399, 128
      %4081 = vxpose.xlu0.c.b16.cont [2/8] 0, 128
      %4082 = vxpose.xlu0.c.b16.cont [3/8] 0, 128
      %4083 = vxpose.xlu0.c.b16.cont [4/8] 0, 128
      %4084 = vxpose.xlu0.c.b16.cont [5/8] 0, 128
      %4085 = vxpose.xlu0.c.b16.cont [6/8] 0, 128
      %4086 = vxpose.xlu0.c.b16.cont [7/8] 0, 128
      %4087 = vxpose.xlu0.c.b16.end [8/8] 0, 128
      %v4088 = vpop.trf.xlu0
      %v4089 = vpop.trf.xlu0
      %v4090 = vpop.trf.xlu0
      %v4091 = vpop.trf.xlu0
      %v4092 = vpop.trf.xlu0
      %v4093 = vpop.trf.xlu0
      %v4094 = vpop.trf.xlu0
      %v4095 = vpop.trf.xlu0
      %4096 = vxpose.xlu0.c.b16.start [1/8] %v3467, 128
      %4097 = vxpose.xlu0.c.b16.cont [2/8] 0, 128
      %4098 = vxpose.xlu0.c.b16.cont [3/8] 0, 128
      %4099 = vxpose.xlu0.c.b16.cont [4/8] 0, 128
      %4100 = vxpose.xlu0.c.b16.cont [5/8] 0, 128
      %4101 = vxpose.xlu0.c.b16.cont [6/8] 0, 128
      %4102 = vxpose.xlu0.c.b16.cont [7/8] 0, 128
      %4103 = vxpose.xlu0.c.b16.end [8/8] 0, 128
      %v4104 = vpop.trf.xlu0
      %v4105 = vpop.trf.xlu0
      %v4106 = vpop.trf.xlu0
      %v4107 = vpop.trf.xlu0
      %v4108 = vpop.trf.xlu0
      %v4109 = vpop.trf.xlu0
      %v4110 = vpop.trf.xlu0
      %v4111 = vpop.trf.xlu0
      %4112 = vxpose.xlu0.c.b16.start [1/8] %v3417, 128
      %4113 = vxpose.xlu0.c.b16.cont [2/8] 0, 128
      %4114 = vxpose.xlu0.c.b16.cont [3/8] 0, 128
      %4115 = vxpose.xlu0.c.b16.cont [4/8] 0, 128
      %4116 = vxpose.xlu0.c.b16.cont [5/8] 0, 128
      %4117 = vxpose.xlu0.c.b16.cont [6/8] 0, 128
      %4118 = vxpose.xlu0.c.b16.cont [7/8] 0, 128
      %4119 = vxpose.xlu0.c.b16.end [8/8] 0, 128
      %v4120 = vpop.trf.xlu0
      %v4121 = vpop.trf.xlu0
      %v4122 = vpop.trf.xlu0
      %v4123 = vpop.trf.xlu0
      %v4124 = vpop.trf.xlu0
      %v4125 = vpop.trf.xlu0
      %v4126 = vpop.trf.xlu0
      %v4127 = vpop.trf.xlu0
      %4128 = vxpose.xlu0.c.b16.start [1/8] %v3485, 128
      %4129 = vxpose.xlu0.c.b16.cont [2/8] 0, 128
      %4130 = vxpose.xlu0.c.b16.cont [3/8] 0, 128
      %4131 = vxpose.xlu0.c.b16.cont [4/8] 0, 128
      %4132 = vxpose.xlu0.c.b16.cont [5/8] 0, 128
      %4133 = vxpose.xlu0.c.b16.cont [6/8] 0, 128
      %4134 = vxpose.xlu0.c.b16.cont [7/8] 0, 128
      %4135 = vxpose.xlu0.c.b16.end [8/8] 0, 128
      %v4136 = vpop.trf.xlu0
      %v4137 = vpop.trf.xlu0
      %v4138 = vpop.trf.xlu0
      %v4139 = vpop.trf.xlu0
      %v4140 = vpop.trf.xlu0
      %v4141 = vpop.trf.xlu0
      %v4142 = vpop.trf.xlu0
      %v4143 = vpop.trf.xlu0
      %4144 = vxpose.xlu0.c.b16.start [1/8] %v3408, 128
      %4145 = vxpose.xlu0.c.b16.cont [2/8] 0, 128
      %4146 = vxpose.xlu0.c.b16.cont [3/8] 0, 128
      %4147 = vxpose.xlu0.c.b16.cont [4/8] 0, 128
      %4148 = vxpose.xlu0.c.b16.cont [5/8] 0, 128
      %4149 = vxpose.xlu0.c.b16.cont [6/8] 0, 128
      %4150 = vxpose.xlu0.c.b16.cont [7/8] 0, 128
      %4151 = vxpose.xlu0.c.b16.end [8/8] 0, 128
      %v4152 = vpop.trf.xlu0
      %v4153 = vpop.trf.xlu0
      %v4154 = vpop.trf.xlu0
      %v4155 = vpop.trf.xlu0
      %v4156 = vpop.trf.xlu0
      %v4157 = vpop.trf.xlu0
      %v4158 = vpop.trf.xlu0
      %v4159 = vpop.trf.xlu0
      %4160 = vxpose.xlu0.c.b16.start [1/8] %v3476, 128
      %4161 = vxpose.xlu0.c.b16.cont [2/8] 0, 128
      %4162 = vxpose.xlu0.c.b16.cont [3/8] 0, 128
      %4163 = vxpose.xlu0.c.b16.cont [4/8] 0, 128
      %4164 = vxpose.xlu0.c.b16.cont [5/8] 0, 128
      %4165 = vxpose.xlu0.c.b16.cont [6/8] 0, 128
      %4166 = vxpose.xlu0.c.b16.cont [7/8] 0, 128
      %4167 = vxpose.xlu0.c.b16.end [8/8] 0, 128
      %v4168 = vpop.trf.xlu0
      %v4169 = vpop.trf.xlu0
      %v4170 = vpop.trf.xlu0
      %v4171 = vpop.trf.xlu0
      %v4172 = vpop.trf.xlu0
      %v4173 = vpop.trf.xlu0
      %v4174 = vpop.trf.xlu0
      %v4175 = vpop.trf.xlu0
      %4176 = vxpose.xlu0.c.b16.start [1/8] %v3418, 128
      %4177 = vxpose.xlu0.c.b16.cont [2/8] 0, 128
      %4178 = vxpose.xlu0.c.b16.cont [3/8] 0, 128
      %4179 = vxpose.xlu0.c.b16.cont [4/8] 0, 128
      %4180 = vxpose.xlu0.c.b16.cont [5/8] 0, 128
      %4181 = vxpose.xlu0.c.b16.cont [6/8] 0, 128
      %4182 = vxpose.xlu0.c.b16.cont [7/8] 0, 128
      %4183 = vxpose.xlu0.c.b16.end [8/8] 0, 128
      %v4184 = vpop.trf.xlu0
      %v4185 = vpop.trf.xlu0
      %v4186 = vpop.trf.xlu0
      %v4187 = vpop.trf.xlu0
      %v4188 = vpop.trf.xlu0
      %v4189 = vpop.trf.xlu0
      %v4190 = vpop.trf.xlu0
      %v4191 = vpop.trf.xlu0
      %4192 = vxpose.xlu0.c.b16.start [1/8] %v3486, 128
      %4193 = vxpose.xlu0.c.b16.cont [2/8] 0, 128
      %4194 = vxpose.xlu0.c.b16.cont [3/8] 0, 128
      %4195 = vxpose.xlu0.c.b16.cont [4/8] 0, 128
      %4196 = vxpose.xlu0.c.b16.cont [5/8] 0, 128
      %4197 = vxpose.xlu0.c.b16.cont [6/8] 0, 128
      %4198 = vxpose.xlu0.c.b16.cont [7/8] 0, 128
      %4199 = vxpose.xlu0.c.b16.end [8/8] 0, 128
      %v4200 = vpop.trf.xlu0
      %v4201 = vpop.trf.xlu0
      %v4202 = vpop.trf.xlu0
      %v4203 = vpop.trf.xlu0
      %v4204 = vpop.trf.xlu0
      %v4205 = vpop.trf.xlu0
      %v4206 = vpop.trf.xlu0
      %v4207 = vpop.trf.xlu0
      %4208 = vxpose.xlu0.c.b16.start [1/8] %v3415, 128
      %4209 = vxpose.xlu0.c.b16.cont [2/8] 0, 128
      %4210 = vxpose.xlu0.c.b16.cont [3/8] 0, 128
      %4211 = vxpose.xlu0.c.b16.cont [4/8] 0, 128
      %4212 = vxpose.xlu0.c.b16.cont [5/8] 0, 128
      %4213 = vxpose.xlu0.c.b16.cont [6/8] 0, 128
      %4214 = vxpose.xlu0.c.b16.cont [7/8] 0, 128
      %4215 = vxpose.xlu0.c.b16.end [8/8] 0, 128
      %v4216 = vpop.trf.xlu0
      %v4217 = vpop.trf.xlu0
      %v4218 = vpop.trf.xlu0
      %v4219 = vpop.trf.xlu0
      %v4220 = vpop.trf.xlu0
      %v4221 = vpop.trf.xlu0
      %v4222 = vpop.trf.xlu0
      %v4223 = vpop.trf.xlu0
      %4224 = vxpose.xlu0.c.b16.start [1/8] %v3483, 128
      %4225 = vxpose.xlu0.c.b16.cont [2/8] 0, 128
      %4226 = vxpose.xlu0.c.b16.cont [3/8] 0, 128
      %4227 = vxpose.xlu0.c.b16.cont [4/8] 0, 128
      %4228 = vxpose.xlu0.c.b16.cont [5/8] 0, 128
      %4229 = vxpose.xlu0.c.b16.cont [6/8] 0, 128
      %4230 = vxpose.xlu0.c.b16.cont [7/8] 0, 128
      %4231 = vxpose.xlu0.c.b16.end [8/8] 0, 128
      %v4232 = vpop.trf.xlu0
      %v4233 = vpop.trf.xlu0
      %v4234 = vpop.trf.xlu0
      %v4235 = vpop.trf.xlu0
      %v4236 = vpop.trf.xlu0
      %v4237 = vpop.trf.xlu0
      %v4238 = vpop.trf.xlu0
      %v4239 = vpop.trf.xlu0
      %4240 = vxpose.xlu0.c.b16.start [1/8] %v3419, 128
      %4241 = vxpose.xlu0.c.b16.cont [2/8] 0, 128
      %4242 = vxpose.xlu0.c.b16.cont [3/8] 0, 128
      %4243 = vxpose.xlu0.c.b16.cont [4/8] 0, 128
      %4244 = vxpose.xlu0.c.b16.cont [5/8] 0, 128
      %4245 = vxpose.xlu0.c.b16.cont [6/8] 0, 128
      %4246 = vxpose.xlu0.c.b16.cont [7/8] 0, 128
      %4247 = vxpose.xlu0.c.b16.end [8/8] 0, 128
      %v4248 = vpop.trf.xlu0
      %v4249 = vpop.trf.xlu0
      %v4250 = vpop.trf.xlu0
      %v4251 = vpop.trf.xlu0
      %v4252 = vpop.trf.xlu0
      %v4253 = vpop.trf.xlu0
      %v4254 = vpop.trf.xlu0
      %v4255 = vpop.trf.xlu0
      %4256 = vxpose.xlu0.c.b16.start [1/8] %v3487, 128
      %4257 = vxpose.xlu0.c.b16.cont [2/8] 0, 128
      %4258 = vxpose.xlu0.c.b16.cont [3/8] 0, 128
      %4259 = vxpose.xlu0.c.b16.cont [4/8] 0, 128
      %4260 = vxpose.xlu0.c.b16.cont [5/8] 0, 128
      %4261 = vxpose.xlu0.c.b16.cont [6/8] 0, 128
      %4262 = vxpose.xlu0.c.b16.cont [7/8] 0, 128
      %4263 = vxpose.xlu0.c.b16.end [8/8] 0, 128
      %v4264 = vpop.trf.xlu0
      %v4265 = vpop.trf.xlu0
      %v4266 = vpop.trf.xlu0
      %v4267 = vpop.trf.xlu0
      %v4268 = vpop.trf.xlu0
      %v4269 = vpop.trf.xlu0
      %v4270 = vpop.trf.xlu0
      %v4271 = vpop.trf.xlu0
      %4272 = vxpose.xlu0.c.b16.start [1/8] %v3528, 128
      %4273 = vxpose.xlu0.c.b16.cont [2/8] 0, 128
      %4274 = vxpose.xlu0.c.b16.cont [3/8] 0, 128
      %4275 = vxpose.xlu0.c.b16.cont [4/8] 0, 128
      %4276 = vxpose.xlu0.c.b16.cont [5/8] 0, 128
      %4277 = vxpose.xlu0.c.b16.cont [6/8] 0, 128
      %4278 = vxpose.xlu0.c.b16.cont [7/8] 0, 128
      %4279 = vxpose.xlu0.c.b16.end [8/8] 0, 128
      %v4280 = vpop.trf.xlu0
      %v4281 = vpop.trf.xlu0
      %v4282 = vpop.trf.xlu0
      %v4283 = vpop.trf.xlu0
      %v4284 = vpop.trf.xlu0
      %v4285 = vpop.trf.xlu0
      %v4286 = vpop.trf.xlu0
      %v4287 = vpop.trf.xlu0
      %4288 = vxpose.xlu0.c.b16.start [1/8] %v3596, 128
      %4289 = vxpose.xlu0.c.b16.cont [2/8] 0, 128
      %4290 = vxpose.xlu0.c.b16.cont [3/8] 0, 128
      %4291 = vxpose.xlu0.c.b16.cont [4/8] 0, 128
      %4292 = vxpose.xlu0.c.b16.cont [5/8] 0, 128
      %4293 = vxpose.xlu0.c.b16.cont [6/8] 0, 128
      %4294 = vxpose.xlu0.c.b16.cont [7/8] 0, 128
      %4295 = vxpose.xlu0.c.b16.end [8/8] 0, 128
      %v4296 = vpop.trf.xlu0
      %v4297 = vpop.trf.xlu0
      %v4298 = vpop.trf.xlu0
      %v4299 = vpop.trf.xlu0
      %v4300 = vpop.trf.xlu0
      %v4301 = vpop.trf.xlu0
      %v4302 = vpop.trf.xlu0
      %v4303 = vpop.trf.xlu0
      %4304 = vxpose.xlu0.c.b16.start [1/8] %v3552, 128
      %4305 = vxpose.xlu0.c.b16.cont [2/8] 0, 128
      %4306 = vxpose.xlu0.c.b16.cont [3/8] 0, 128
      %4307 = vxpose.xlu0.c.b16.cont [4/8] 0, 128
      %4308 = vxpose.xlu0.c.b16.cont [5/8] 0, 128
      %4309 = vxpose.xlu0.c.b16.cont [6/8] 0, 128
      %4310 = vxpose.xlu0.c.b16.cont [7/8] 0, 128
      %4311 = vxpose.xlu0.c.b16.end [8/8] 0, 128
      %v4312 = vpop.trf.xlu0
      %v4313 = vpop.trf.xlu0
      %v4314 = vpop.trf.xlu0
      %v4315 = vpop.trf.xlu0
      %v4316 = vpop.trf.xlu0
      %v4317 = vpop.trf.xlu0
      %v4318 = vpop.trf.xlu0
      %v4319 = vpop.trf.xlu0
      %4320 = vxpose.xlu0.c.b16.start [1/8] %v3620, 128
      %4321 = vxpose.xlu0.c.b16.cont [2/8] 0, 128
      %4322 = vxpose.xlu0.c.b16.cont [3/8] 0, 128
      %4323 = vxpose.xlu0.c.b16.cont [4/8] 0, 128
      %4324 = vxpose.xlu0.c.b16.cont [5/8] 0, 128
      %4325 = vxpose.xlu0.c.b16.cont [6/8] 0, 128
      %4326 = vxpose.xlu0.c.b16.cont [7/8] 0, 128
      %4327 = vxpose.xlu0.c.b16.end [8/8] 0, 128
      %v4328 = vpop.trf.xlu0
      %v4329 = vpop.trf.xlu0
      %v4330 = vpop.trf.xlu0
      %v4331 = vpop.trf.xlu0
      %v4332 = vpop.trf.xlu0
      %v4333 = vpop.trf.xlu0
      %v4334 = vpop.trf.xlu0
      %v4335 = vpop.trf.xlu0
      %4336 = vxpose.xlu0.c.b16.start [1/8] %v3535, 128
      %4337 = vxpose.xlu0.c.b16.cont [2/8] 0, 128
      %4338 = vxpose.xlu0.c.b16.cont [3/8] 0, 128
      %4339 = vxpose.xlu0.c.b16.cont [4/8] 0, 128
      %4340 = vxpose.xlu0.c.b16.cont [5/8] 0, 128
      %4341 = vxpose.xlu0.c.b16.cont [6/8] 0, 128
      %4342 = vxpose.xlu0.c.b16.cont [7/8] 0, 128
      %4343 = vxpose.xlu0.c.b16.end [8/8] 0, 128
      %v4344 = vpop.trf.xlu0
      %v4345 = vpop.trf.xlu0
      %v4346 = vpop.trf.xlu0
      %v4347 = vpop.trf.xlu0
      %v4348 = vpop.trf.xlu0
      %v4349 = vpop.trf.xlu0
      %v4350 = vpop.trf.xlu0
      %v4351 = vpop.trf.xlu0
      %4352 = vxpose.xlu0.c.b16.start [1/8] %v3603, 128
      %4353 = vxpose.xlu0.c.b16.cont [2/8] 0, 128
      %4354 = vxpose.xlu0.c.b16.cont [3/8] 0, 128
      %4355 = vxpose.xlu0.c.b16.cont [4/8] 0, 128
      %4356 = vxpose.xlu0.c.b16.cont [5/8] 0, 128
      %4357 = vxpose.xlu0.c.b16.cont [6/8] 0, 128
      %4358 = vxpose.xlu0.c.b16.cont [7/8] 0, 128
      %4359 = vxpose.xlu0.c.b16.end [8/8] 0, 128
      %v4360 = vpop.trf.xlu0
      %v4361 = vpop.trf.xlu0
      %v4362 = vpop.trf.xlu0
      %v4363 = vpop.trf.xlu0
      %v4364 = vpop.trf.xlu0
      %v4365 = vpop.trf.xlu0
      %v4366 = vpop.trf.xlu0
      %v4367 = vpop.trf.xlu0
      %4368 = vxpose.xlu0.c.b16.start [1/8] %v3553, 128
      %4369 = vxpose.xlu0.c.b16.cont [2/8] 0, 128
      %4370 = vxpose.xlu0.c.b16.cont [3/8] 0, 128
      %4371 = vxpose.xlu0.c.b16.cont [4/8] 0, 128
      %4372 = vxpose.xlu0.c.b16.cont [5/8] 0, 128
      %4373 = vxpose.xlu0.c.b16.cont [6/8] 0, 128
      %4374 = vxpose.xlu0.c.b16.cont [7/8] 0, 128
      %4375 = vxpose.xlu0.c.b16.end [8/8] 0, 128
      %v4376 = vpop.trf.xlu0
      %v4377 = vpop.trf.xlu0
      %v4378 = vpop.trf.xlu0
      %v4379 = vpop.trf.xlu0
      %v4380 = vpop.trf.xlu0
      %v4381 = vpop.trf.xlu0
      %v4382 = vpop.trf.xlu0
      %v4383 = vpop.trf.xlu0
      %4384 = vxpose.xlu0.c.b16.start [1/8] %v3621, 128
      %4385 = vxpose.xlu0.c.b16.cont [2/8] 0, 128
      %4386 = vxpose.xlu0.c.b16.cont [3/8] 0, 128
      %4387 = vxpose.xlu0.c.b16.cont [4/8] 0, 128
      %4388 = vxpose.xlu0.c.b16.cont [5/8] 0, 128
      %4389 = vxpose.xlu0.c.b16.cont [6/8] 0, 128
      %4390 = vxpose.xlu0.c.b16.cont [7/8] 0, 128
      %4391 = vxpose.xlu0.c.b16.end [8/8] 0, 128
      %v4392 = vpop.trf.xlu0
      %v4393 = vpop.trf.xlu0
      %v4394 = vpop.trf.xlu0
      %v4395 = vpop.trf.xlu0
      %v4396 = vpop.trf.xlu0
      %v4397 = vpop.trf.xlu0
      %v4398 = vpop.trf.xlu0
      %v4399 = vpop.trf.xlu0
      %4400 = vxpose.xlu0.c.b16.start [1/8] %v3544, 128
      %4401 = vxpose.xlu0.c.b16.cont [2/8] 0, 128
      %4402 = vxpose.xlu0.c.b16.cont [3/8] 0, 128
      %4403 = vxpose.xlu0.c.b16.cont [4/8] 0, 128
      %4404 = vxpose.xlu0.c.b16.cont [5/8] 0, 128
      %4405 = vxpose.xlu0.c.b16.cont [6/8] 0, 128
      %4406 = vxpose.xlu0.c.b16.cont [7/8] 0, 128
      %4407 = vxpose.xlu0.c.b16.end [8/8] 0, 128
      %v4408 = vpop.trf.xlu0
      %v4409 = vpop.trf.xlu0
      %v4410 = vpop.trf.xlu0
      %v4411 = vpop.trf.xlu0
      %v4412 = vpop.trf.xlu0
      %v4413 = vpop.trf.xlu0
      %v4414 = vpop.trf.xlu0
      %v4415 = vpop.trf.xlu0
      %4416 = vxpose.xlu0.c.b16.start [1/8] %v3612, 128
      %4417 = vxpose.xlu0.c.b16.cont [2/8] 0, 128
      %4418 = vxpose.xlu0.c.b16.cont [3/8] 0, 128
      %4419 = vxpose.xlu0.c.b16.cont [4/8] 0, 128
      %4420 = vxpose.xlu0.c.b16.cont [5/8] 0, 128
      %4421 = vxpose.xlu0.c.b16.cont [6/8] 0, 128
      %4422 = vxpose.xlu0.c.b16.cont [7/8] 0, 128
      %4423 = vxpose.xlu0.c.b16.end [8/8] 0, 128
      %v4424 = vpop.trf.xlu0
      %v4425 = vpop.trf.xlu0
      %v4426 = vpop.trf.xlu0
      %v4427 = vpop.trf.xlu0
      %v4428 = vpop.trf.xlu0
      %v4429 = vpop.trf.xlu0
      %v4430 = vpop.trf.xlu0
      %v4431 = vpop.trf.xlu0
      %4432 = vxpose.xlu0.c.b16.start [1/8] %v3554, 128
      %4433 = vxpose.xlu0.c.b16.cont [2/8] 0, 128
      %4434 = vxpose.xlu0.c.b16.cont [3/8] 0, 128
      %4435 = vxpose.xlu0.c.b16.cont [4/8] 0, 128
      %4436 = vxpose.xlu0.c.b16.cont [5/8] 0, 128
      %4437 = vxpose.xlu0.c.b16.cont [6/8] 0, 128
      %4438 = vxpose.xlu0.c.b16.cont [7/8] 0, 128
      %4439 = vxpose.xlu0.c.b16.end [8/8] 0, 128
      %v4440 = vpop.trf.xlu0
      %v4441 = vpop.trf.xlu0
      %v4442 = vpop.trf.xlu0
      %v4443 = vpop.trf.xlu0
      %v4444 = vpop.trf.xlu0
      %v4445 = vpop.trf.xlu0
      %v4446 = vpop.trf.xlu0
      %v4447 = vpop.trf.xlu0
      %4448 = vxpose.xlu0.c.b16.start [1/8] %v3622, 128
      %4449 = vxpose.xlu0.c.b16.cont [2/8] 0, 128
      %4450 = vxpose.xlu0.c.b16.cont [3/8] 0, 128
      %4451 = vxpose.xlu0.c.b16.cont [4/8] 0, 128
      %4452 = vxpose.xlu0.c.b16.cont [5/8] 0, 128
      %4453 = vxpose.xlu0.c.b16.cont [6/8] 0, 128
      %4454 = vxpose.xlu0.c.b16.cont [7/8] 0, 128
      %4455 = vxpose.xlu0.c.b16.end [8/8] 0, 128
      %v4456 = vpop.trf.xlu0
      %v4457 = vpop.trf.xlu0
      %v4458 = vpop.trf.xlu0
      %v4459 = vpop.trf.xlu0
      %v4460 = vpop.trf.xlu0
      %v4461 = vpop.trf.xlu0
      %v4462 = vpop.trf.xlu0
      %v4463 = vpop.trf.xlu0
      %4464 = vxpose.xlu0.c.b16.start [1/8] %v3551, 128
      %4465 = vxpose.xlu0.c.b16.cont [2/8] 0, 128
      %4466 = vxpose.xlu0.c.b16.cont [3/8] 0, 128
      %4467 = vxpose.xlu0.c.b16.cont [4/8] 0, 128
      %4468 = vxpose.xlu0.c.b16.cont [5/8] 0, 128
      %4469 = vxpose.xlu0.c.b16.cont [6/8] 0, 128
      %4470 = vxpose.xlu0.c.b16.cont [7/8] 0, 128
      %4471 = vxpose.xlu0.c.b16.end [8/8] 0, 128
      %v4472 = vpop.trf.xlu0
      %v4473 = vpop.trf.xlu0
      %v4474 = vpop.trf.xlu0
      %v4475 = vpop.trf.xlu0
      %v4476 = vpop.trf.xlu0
      %v4477 = vpop.trf.xlu0
      %v4478 = vpop.trf.xlu0
      %v4479 = vpop.trf.xlu0
      %4480 = vxpose.xlu0.c.b16.start [1/8] %v3619, 128
      %4481 = vxpose.xlu0.c.b16.cont [2/8] 0, 128
      %4482 = vxpose.xlu0.c.b16.cont [3/8] 0, 128
      %4483 = vxpose.xlu0.c.b16.cont [4/8] 0, 128
      %4484 = vxpose.xlu0.c.b16.cont [5/8] 0, 128
      %4485 = vxpose.xlu0.c.b16.cont [6/8] 0, 128
      %4486 = vxpose.xlu0.c.b16.cont [7/8] 0, 128
      %4487 = vxpose.xlu0.c.b16.end [8/8] 0, 128
      %v4488 = vpop.trf.xlu0
      %v4489 = vpop.trf.xlu0
      %v4490 = vpop.trf.xlu0
      %v4491 = vpop.trf.xlu0
      %v4492 = vpop.trf.xlu0
      %v4493 = vpop.trf.xlu0
      %v4494 = vpop.trf.xlu0
      %v4495 = vpop.trf.xlu0
      %4496 = vxpose.xlu0.c.b16.start [1/8] %v3555, 128
      %4497 = vxpose.xlu0.c.b16.cont [2/8] 0, 128
      %4498 = vxpose.xlu0.c.b16.cont [3/8] 0, 128
      %4499 = vxpose.xlu0.c.b16.cont [4/8] 0, 128
      %4500 = vxpose.xlu0.c.b16.cont [5/8] 0, 128
      %4501 = vxpose.xlu0.c.b16.cont [6/8] 0, 128
      %4502 = vxpose.xlu0.c.b16.cont [7/8] 0, 128
      %4503 = vxpose.xlu0.c.b16.end [8/8] 0, 128
      %v4504 = vpop.trf.xlu0
      %v4505 = vpop.trf.xlu0
      %v4506 = vpop.trf.xlu0
      %v4507 = vpop.trf.xlu0
      %v4508 = vpop.trf.xlu0
      %v4509 = vpop.trf.xlu0
      %v4510 = vpop.trf.xlu0
      %v4511 = vpop.trf.xlu0
      %4512 = vxpose.xlu0.c.b16.start [1/8] %v3623, 128
      %4513 = vxpose.xlu0.c.b16.cont [2/8] 0, 128
      %4514 = vxpose.xlu0.c.b16.cont [3/8] 0, 128
      %4515 = vxpose.xlu0.c.b16.cont [4/8] 0, 128
      %4516 = vxpose.xlu0.c.b16.cont [5/8] 0, 128
      %4517 = vxpose.xlu0.c.b16.cont [6/8] 0, 128
      %4518 = vxpose.xlu0.c.b16.cont [7/8] 0, 128
      %4519 = vxpose.xlu0.c.b16.end [8/8] 0, 128
      %v4520 = vpop.trf.xlu0
      %v4521 = vpop.trf.xlu0
      %v4522 = vpop.trf.xlu0
      %v4523 = vpop.trf.xlu0
      %v4524 = vpop.trf.xlu0
      %v4525 = vpop.trf.xlu0
      %v4526 = vpop.trf.xlu0
      %v4527 = vpop.trf.xlu0
      %4528 = vxpose.xlu0.c.b16.start [1/8] %v3664, 128
      %4529 = vxpose.xlu0.c.b16.cont [2/8] 0, 128
      %4530 = vxpose.xlu0.c.b16.cont [3/8] 0, 128
      %4531 = vxpose.xlu0.c.b16.cont [4/8] 0, 128
      %4532 = vxpose.xlu0.c.b16.cont [5/8] 0, 128
      %4533 = vxpose.xlu0.c.b16.cont [6/8] 0, 128
      %4534 = vxpose.xlu0.c.b16.cont [7/8] 0, 128
      %4535 = vxpose.xlu0.c.b16.end [8/8] 0, 128
      %v4536 = vpop.trf.xlu0
      %v4537 = vpop.trf.xlu0
      %v4538 = vpop.trf.xlu0
      %v4539 = vpop.trf.xlu0
      %v4540 = vpop.trf.xlu0
      %v4541 = vpop.trf.xlu0
      %v4542 = vpop.trf.xlu0
      %v4543 = vpop.trf.xlu0
      %4544 = vxpose.xlu0.c.b16.start [1/8] %v3732, 128
      %4545 = vxpose.xlu0.c.b16.cont [2/8] 0, 128
      %4546 = vxpose.xlu0.c.b16.cont [3/8] 0, 128
      %4547 = vxpose.xlu0.c.b16.cont [4/8] 0, 128
      %4548 = vxpose.xlu0.c.b16.cont [5/8] 0, 128
      %4549 = vxpose.xlu0.c.b16.cont [6/8] 0, 128
      %4550 = vxpose.xlu0.c.b16.cont [7/8] 0, 128
      %4551 = vxpose.xlu0.c.b16.end [8/8] 0, 128
      %v4552 = vpop.trf.xlu0
      %v4553 = vpop.trf.xlu0
      %v4554 = vpop.trf.xlu0
      %v4555 = vpop.trf.xlu0
      %v4556 = vpop.trf.xlu0
      %v4557 = vpop.trf.xlu0
      %v4558 = vpop.trf.xlu0
      %v4559 = vpop.trf.xlu0
      %4560 = vxpose.xlu0.c.b16.start [1/8] %v3688, 128
      %4561 = vxpose.xlu0.c.b16.cont [2/8] 0, 128
      %4562 = vxpose.xlu0.c.b16.cont [3/8] 0, 128
      %4563 = vxpose.xlu0.c.b16.cont [4/8] 0, 128
      %4564 = vxpose.xlu0.c.b16.cont [5/8] 0, 128
      %4565 = vxpose.xlu0.c.b16.cont [6/8] 0, 128
      %4566 = vxpose.xlu0.c.b16.cont [7/8] 0, 128
      %4567 = vxpose.xlu0.c.b16.end [8/8] 0, 128
      %v4568 = vpop.trf.xlu0
      %v4569 = vpop.trf.xlu0
      %v4570 = vpop.trf.xlu0
      %v4571 = vpop.trf.xlu0
      %v4572 = vpop.trf.xlu0
      %v4573 = vpop.trf.xlu0
      %v4574 = vpop.trf.xlu0
      %v4575 = vpop.trf.xlu0
      %4576 = vxpose.xlu0.c.b16.start [1/8] %v3756, 128
      %4577 = vxpose.xlu0.c.b16.cont [2/8] 0, 128
      %4578 = vxpose.xlu0.c.b16.cont [3/8] 0, 128
      %4579 = vxpose.xlu0.c.b16.cont [4/8] 0, 128
      %4580 = vxpose.xlu0.c.b16.cont [5/8] 0, 128
      %4581 = vxpose.xlu0.c.b16.cont [6/8] 0, 128
      %4582 = vxpose.xlu0.c.b16.cont [7/8] 0, 128
      %4583 = vxpose.xlu0.c.b16.end [8/8] 0, 128
      %v4584 = vpop.trf.xlu0
      %v4585 = vpop.trf.xlu0
      %v4586 = vpop.trf.xlu0
      %v4587 = vpop.trf.xlu0
      %v4588 = vpop.trf.xlu0
      %v4589 = vpop.trf.xlu0
      %v4590 = vpop.trf.xlu0
      %v4591 = vpop.trf.xlu0
      %4592 = vxpose.xlu0.c.b16.start [1/8] %v3671, 128
      %4593 = vxpose.xlu0.c.b16.cont [2/8] 0, 128
      %4594 = vxpose.xlu0.c.b16.cont [3/8] 0, 128
      %4595 = vxpose.xlu0.c.b16.cont [4/8] 0, 128
      %4596 = vxpose.xlu0.c.b16.cont [5/8] 0, 128
      %4597 = vxpose.xlu0.c.b16.cont [6/8] 0, 128
      %4598 = vxpose.xlu0.c.b16.cont [7/8] 0, 128
      %4599 = vxpose.xlu0.c.b16.end [8/8] 0, 128
      %v4600 = vpop.trf.xlu0
      %v4601 = vpop.trf.xlu0
      %v4602 = vpop.trf.xlu0
      %v4603 = vpop.trf.xlu0
      %v4604 = vpop.trf.xlu0
      %v4605 = vpop.trf.xlu0
      %v4606 = vpop.trf.xlu0
      %v4607 = vpop.trf.xlu0
      %4608 = vxpose.xlu0.c.b16.start [1/8] %v3739, 128
      %4609 = vxpose.xlu0.c.b16.cont [2/8] 0, 128
      %4610 = vxpose.xlu0.c.b16.cont [3/8] 0, 128
      %4611 = vxpose.xlu0.c.b16.cont [4/8] 0, 128
      %4612 = vxpose.xlu0.c.b16.cont [5/8] 0, 128
      %4613 = vxpose.xlu0.c.b16.cont [6/8] 0, 128
      %4614 = vxpose.xlu0.c.b16.cont [7/8] 0, 128
      %4615 = vxpose.xlu0.c.b16.end [8/8] 0, 128
      %v4616 = vpop.trf.xlu0
      %v4617 = vpop.trf.xlu0
      %v4618 = vpop.trf.xlu0
      %v4619 = vpop.trf.xlu0
      %v4620 = vpop.trf.xlu0
      %v4621 = vpop.trf.xlu0
      %v4622 = vpop.trf.xlu0
      %v4623 = vpop.trf.xlu0
      %4624 = vxpose.xlu0.c.b16.start [1/8] %v3689, 128
      %4625 = vxpose.xlu0.c.b16.cont [2/8] 0, 128
      %4626 = vxpose.xlu0.c.b16.cont [3/8] 0, 128
      %4627 = vxpose.xlu0.c.b16.cont [4/8] 0, 128
      %4628 = vxpose.xlu0.c.b16.cont [5/8] 0, 128
      %4629 = vxpose.xlu0.c.b16.cont [6/8] 0, 128
      %4630 = vxpose.xlu0.c.b16.cont [7/8] 0, 128
      %4631 = vxpose.xlu0.c.b16.end [8/8] 0, 128
      %v4632 = vpop.trf.xlu0
      %v4633 = vpop.trf.xlu0
      %v4634 = vpop.trf.xlu0
      %v4635 = vpop.trf.xlu0
      %v4636 = vpop.trf.xlu0
      %v4637 = vpop.trf.xlu0
      %v4638 = vpop.trf.xlu0
      %v4639 = vpop.trf.xlu0
      %4640 = vxpose.xlu0.c.b16.start [1/8] %v3757, 128
      %4641 = vxpose.xlu0.c.b16.cont [2/8] 0, 128
      %4642 = vxpose.xlu0.c.b16.cont [3/8] 0, 128
      %4643 = vxpose.xlu0.c.b16.cont [4/8] 0, 128
      %4644 = vxpose.xlu0.c.b16.cont [5/8] 0, 128
      %4645 = vxpose.xlu0.c.b16.cont [6/8] 0, 128
      %4646 = vxpose.xlu0.c.b16.cont [7/8] 0, 128
      %4647 = vxpose.xlu0.c.b16.end [8/8] 0, 128
      %v4648 = vpop.trf.xlu0
      %v4649 = vpop.trf.xlu0
      %v4650 = vpop.trf.xlu0
      %v4651 = vpop.trf.xlu0
      %v4652 = vpop.trf.xlu0
      %v4653 = vpop.trf.xlu0
      %v4654 = vpop.trf.xlu0
      %v4655 = vpop.trf.xlu0
      %4656 = vxpose.xlu0.c.b16.start [1/8] %v3680, 128
      %4657 = vxpose.xlu0.c.b16.cont [2/8] 0, 128
      %4658 = vxpose.xlu0.c.b16.cont [3/8] 0, 128
      %4659 = vxpose.xlu0.c.b16.cont [4/8] 0, 128
      %4660 = vxpose.xlu0.c.b16.cont [5/8] 0, 128
      %4661 = vxpose.xlu0.c.b16.cont [6/8] 0, 128
      %4662 = vxpose.xlu0.c.b16.cont [7/8] 0, 128
      %4663 = vxpose.xlu0.c.b16.end [8/8] 0, 128
      %v4664 = vpop.trf.xlu0
      %v4665 = vpop.trf.xlu0
      %v4666 = vpop.trf.xlu0
      %v4667 = vpop.trf.xlu0
      %v4668 = vpop.trf.xlu0
      %v4669 = vpop.trf.xlu0
      %v4670 = vpop.trf.xlu0
      %v4671 = vpop.trf.xlu0
      %4672 = vxpose.xlu0.c.b16.start [1/8] %v3748, 128
      %4673 = vxpose.xlu0.c.b16.cont [2/8] 0, 128
      %4674 = vxpose.xlu0.c.b16.cont [3/8] 0, 128
      %4675 = vxpose.xlu0.c.b16.cont [4/8] 0, 128
      %4676 = vxpose.xlu0.c.b16.cont [5/8] 0, 128
      %4677 = vxpose.xlu0.c.b16.cont [6/8] 0, 128
      %4678 = vxpose.xlu0.c.b16.cont [7/8] 0, 128
      %4679 = vxpose.xlu0.c.b16.end [8/8] 0, 128
      %v4680 = vpop.trf.xlu0
      %v4681 = vpop.trf.xlu0
      %v4682 = vpop.trf.xlu0
      %v4683 = vpop.trf.xlu0
      %v4684 = vpop.trf.xlu0
      %v4685 = vpop.trf.xlu0
      %v4686 = vpop.trf.xlu0
      %v4687 = vpop.trf.xlu0
      %4688 = vxpose.xlu0.c.b16.start [1/8] %v3690, 128
      %4689 = vxpose.xlu0.c.b16.cont [2/8] 0, 128
      %4690 = vxpose.xlu0.c.b16.cont [3/8] 0, 128
      %4691 = vxpose.xlu0.c.b16.cont [4/8] 0, 128
      %4692 = vxpose.xlu0.c.b16.cont [5/8] 0, 128
      %4693 = vxpose.xlu0.c.b16.cont [6/8] 0, 128
      %4694 = vxpose.xlu0.c.b16.cont [7/8] 0, 128
      %4695 = vxpose.xlu0.c.b16.end [8/8] 0, 128
      %v4696 = vpop.trf.xlu0
      %v4697 = vpop.trf.xlu0
      %v4698 = vpop.trf.xlu0
      %v4699 = vpop.trf.xlu0
      %v4700 = vpop.trf.xlu0
      %v4701 = vpop.trf.xlu0
      %v4702 = vpop.trf.xlu0
      %v4703 = vpop.trf.xlu0
      %4704 = vxpose.xlu0.c.b16.start [1/8] %v3758, 128
      %4705 = vxpose.xlu0.c.b16.cont [2/8] 0, 128
      %4706 = vxpose.xlu0.c.b16.cont [3/8] 0, 128
      %4707 = vxpose.xlu0.c.b16.cont [4/8] 0, 128
      %4708 = vxpose.xlu0.c.b16.cont [5/8] 0, 128
      %4709 = vxpose.xlu0.c.b16.cont [6/8] 0, 128
      %4710 = vxpose.xlu0.c.b16.cont [7/8] 0, 128
      %4711 = vxpose.xlu0.c.b16.end [8/8] 0, 128
      %v4712 = vpop.trf.xlu0
      %v4713 = vpop.trf.xlu0
      %v4714 = vpop.trf.xlu0
      %v4715 = vpop.trf.xlu0
      %v4716 = vpop.trf.xlu0
      %v4717 = vpop.trf.xlu0
      %v4718 = vpop.trf.xlu0
      %v4719 = vpop.trf.xlu0
      %4720 = vxpose.xlu0.c.b16.start [1/8] %v3687, 128
      %4721 = vxpose.xlu0.c.b16.cont [2/8] 0, 128
      %4722 = vxpose.xlu0.c.b16.cont [3/8] 0, 128
      %4723 = vxpose.xlu0.c.b16.cont [4/8] 0, 128
      %4724 = vxpose.xlu0.c.b16.cont [5/8] 0, 128
      %4725 = vxpose.xlu0.c.b16.cont [6/8] 0, 128
      %4726 = vxpose.xlu0.c.b16.cont [7/8] 0, 128
      %4727 = vxpose.xlu0.c.b16.end [8/8] 0, 128
      %v4728 = vpop.trf.xlu0
      %v4729 = vpop.trf.xlu0
      %v4730 = vpop.trf.xlu0
      %v4731 = vpop.trf.xlu0
      %v4732 = vpop.trf.xlu0
      %v4733 = vpop.trf.xlu0
      %v4734 = vpop.trf.xlu0
      %v4735 = vpop.trf.xlu0
      %4736 = vxpose.xlu0.c.b16.start [1/8] %v3755, 128
      %4737 = vxpose.xlu0.c.b16.cont [2/8] 0, 128
      %4738 = vxpose.xlu0.c.b16.cont [3/8] 0, 128
      %4739 = vxpose.xlu0.c.b16.cont [4/8] 0, 128
      %4740 = vxpose.xlu0.c.b16.cont [5/8] 0, 128
      %4741 = vxpose.xlu0.c.b16.cont [6/8] 0, 128
      %4742 = vxpose.xlu0.c.b16.cont [7/8] 0, 128
      %4743 = vxpose.xlu0.c.b16.end [8/8] 0, 128
      %v4744 = vpop.trf.xlu0
      %v4745 = vpop.trf.xlu0
      %v4746 = vpop.trf.xlu0
      %v4747 = vpop.trf.xlu0
      %v4748 = vpop.trf.xlu0
      %v4749 = vpop.trf.xlu0
      %v4750 = vpop.trf.xlu0
      %v4751 = vpop.trf.xlu0
      %4752 = vxpose.xlu0.c.b16.start [1/8] %v3691, 128
      %4753 = vxpose.xlu0.c.b16.cont [2/8] 0, 128
      %4754 = vxpose.xlu0.c.b16.cont [3/8] 0, 128
      %4755 = vxpose.xlu0.c.b16.cont [4/8] 0, 128
      %4756 = vxpose.xlu0.c.b16.cont [5/8] 0, 128
      %4757 = vxpose.xlu0.c.b16.cont [6/8] 0, 128
      %4758 = vxpose.xlu0.c.b16.cont [7/8] 0, 128
      %4759 = vxpose.xlu0.c.b16.end [8/8] 0, 128
      %v4760 = vpop.trf.xlu0
      %v4761 = vpop.trf.xlu0
      %v4762 = vpop.trf.xlu0
      %v4763 = vpop.trf.xlu0
      %v4764 = vpop.trf.xlu0
      %v4765 = vpop.trf.xlu0
      %v4766 = vpop.trf.xlu0
      %v4767 = vpop.trf.xlu0
      %4768 = vxpose.xlu0.c.b16.start [1/8] %v3759, 128
      %4769 = vxpose.xlu0.c.b16.cont [2/8] 0, 128
      %4770 = vxpose.xlu0.c.b16.cont [3/8] 0, 128
      %4771 = vxpose.xlu0.c.b16.cont [4/8] 0, 128
      %4772 = vxpose.xlu0.c.b16.cont [5/8] 0, 128
      %4773 = vxpose.xlu0.c.b16.cont [6/8] 0, 128
      %4774 = vxpose.xlu0.c.b16.cont [7/8] 0, 128
      %4775 = vxpose.xlu0.c.b16.end [8/8] 0, 128
      %v4776 = vpop.trf.xlu0
      %v4777 = vpop.trf.xlu0
      %v4778 = vpop.trf.xlu0
      %v4779 = vpop.trf.xlu0
      %v4780 = vpop.trf.xlu0
      %v4781 = vpop.trf.xlu0
      %v4782 = vpop.trf.xlu0
      %v4783 = vpop.trf.xlu0
      %v4784 = vcombine.low %v3768, %v3832
      %v4786 = vunpack.c.l.s4 1983009808
      %v4787 = vunpack.c.0.s8 %v4786
      %v4788 = vlaneseq
      %v4789 = vshrl.u32 %v4788, 7
      %v4790 = vsub.s32 %v4787, %v4789
      %v4791 = vrot.slane %v4784, %v4790
      %v4792 = vcombine.low %v3800, %v3864
      %v4794 = vunpack.c.l.s4 1983009808
      %v4795 = vunpack.c.0.s8 %v4794
      %v4796 = vlaneseq
      %v4797 = vshrl.u32 %v4796, 7
      %v4798 = vsub.s32 %v4795, %v4797
      %v4799 = vrot.slane %v4792, %v4798
      %v4800 = vcombine.low %v3896, %v3960
      %v4802 = vunpack.c.l.s4 1983009808
      %v4803 = vunpack.c.0.s8 %v4802
      %v4804 = vlaneseq
      %v4805 = vshrl.u32 %v4804, 7
      %v4806 = vsub.s32 %v4803, %v4805
      %v4807 = vrot.slane %v4800, %v4806
      %v4808 = vcombine.low %v3928, %v3992
      %v4810 = vunpack.c.l.s4 1983009808
      %v4811 = vunpack.c.0.s8 %v4810
      %v4812 = vlaneseq
      %v4813 = vshrl.u32 %v4812, 7
      %v4814 = vsub.s32 %v4811, %v4813
      %v4815 = vrot.slane %v4808, %v4814
      %v4816 = vcombine.low %v4791, %v4799
      %v4818 = vunpack.c.l.s4 1934713408
      %v4819 = vunpack.c.0.s8 %v4818
      %v4820 = vlaneseq
      %v4821 = vshrl.u32 %v4820, 7
      %v4822 = vsub.s32 %v4819, %v4821
      %v4823 = vrot.slane %v4816, %v4822
      %v4824 = vcombine.low %v4807, %v4815
      %v4826 = vunpack.c.l.s4 1934713408
      %v4827 = vunpack.c.0.s8 %v4826
      %v4828 = vlaneseq
      %v4829 = vshrl.u32 %v4828, 7
      %v4830 = vsub.s32 %v4827, %v4829
      %v4831 = vrot.slane %v4824, %v4830
      %v4832 = vcombine.low %v4823, %v4831
      %v4833 = vcombine.high %v4823, %v4831
      %v4834 = vcombine.low %v3784, %v3848
      %v4836 = vunpack.c.l.s4 1983009808
      %v4837 = vunpack.c.0.s8 %v4836
      %v4838 = vlaneseq
      %v4839 = vshrl.u32 %v4838, 7
      %v4840 = vsub.s32 %v4837, %v4839
      %v4841 = vrot.slane %v4834, %v4840
      %v4842 = vcombine.low %v3816, %v3880
      %v4844 = vunpack.c.l.s4 1983009808
      %v4845 = vunpack.c.0.s8 %v4844
      %v4846 = vlaneseq
      %v4847 = vshrl.u32 %v4846, 7
      %v4848 = vsub.s32 %v4845, %v4847
      %v4849 = vrot.slane %v4842, %v4848
      %v4850 = vcombine.low %v3912, %v3976
      %v4852 = vunpack.c.l.s4 1983009808
      %v4853 = vunpack.c.0.s8 %v4852
      %v4854 = vlaneseq
      %v4855 = vshrl.u32 %v4854, 7
      %v4856 = vsub.s32 %v4853, %v4855
      %v4857 = vrot.slane %v4850, %v4856
      %v4858 = vcombine.low %v3944, %v4008
      %v4860 = vunpack.c.l.s4 1983009808
      %v4861 = vunpack.c.0.s8 %v4860
      %v4862 = vlaneseq
      %v4863 = vshrl.u32 %v4862, 7
      %v4864 = vsub.s32 %v4861, %v4863
      %v4865 = vrot.slane %v4858, %v4864
      %v4866 = vcombine.low %v4841, %v4849
      %v4868 = vunpack.c.l.s4 1934713408
      %v4869 = vunpack.c.0.s8 %v4868
      %v4870 = vlaneseq
      %v4871 = vshrl.u32 %v4870, 7
      %v4872 = vsub.s32 %v4869, %v4871
      %v4873 = vrot.slane %v4866, %v4872
      %v4874 = vcombine.low %v4857, %v4865
      %v4876 = vunpack.c.l.s4 1934713408
      %v4877 = vunpack.c.0.s8 %v4876
      %v4878 = vlaneseq
      %v4879 = vshrl.u32 %v4878, 7
      %v4880 = vsub.s32 %v4877, %v4879
      %v4881 = vrot.slane %v4874, %v4880
      %v4882 = vcombine.low %v4873, %v4881
      %v4883 = vcombine.high %v4873, %v4881
      %v4884 = vcombine.low %v4024, %v4088
      %v4886 = vunpack.c.l.s4 1983009808
      %v4887 = vunpack.c.0.s8 %v4886
      %v4888 = vlaneseq
      %v4889 = vshrl.u32 %v4888, 7
      %v4890 = vsub.s32 %v4887, %v4889
      %v4891 = vrot.slane %v4884, %v4890
      %v4892 = vcombine.low %v4056, %v4120
      %v4894 = vunpack.c.l.s4 1983009808
      %v4895 = vunpack.c.0.s8 %v4894
      %v4896 = vlaneseq
      %v4897 = vshrl.u32 %v4896, 7
      %v4898 = vsub.s32 %v4895, %v4897
      %v4899 = vrot.slane %v4892, %v4898
      %v4900 = vcombine.low %v4152, %v4216
      %v4902 = vunpack.c.l.s4 1983009808
      %v4903 = vunpack.c.0.s8 %v4902
      %v4904 = vlaneseq
      %v4905 = vshrl.u32 %v4904, 7
      %v4906 = vsub.s32 %v4903, %v4905
      %v4907 = vrot.slane %v4900, %v4906
      %v4908 = vcombine.low %v4184, %v4248
      %v4910 = vunpack.c.l.s4 1983009808
      %v4911 = vunpack.c.0.s8 %v4910
      %v4912 = vlaneseq
      %v4913 = vshrl.u32 %v4912, 7
      %v4914 = vsub.s32 %v4911, %v4913
      %v4915 = vrot.slane %v4908, %v4914
      %v4916 = vcombine.low %v4891, %v4899
      %v4918 = vunpack.c.l.s4 1934713408
      %v4919 = vunpack.c.0.s8 %v4918
      %v4920 = vlaneseq
      %v4921 = vshrl.u32 %v4920, 7
      %v4922 = vsub.s32 %v4919, %v4921
      %v4923 = vrot.slane %v4916, %v4922
      %v4924 = vcombine.low %v4907, %v4915
      %v4926 = vunpack.c.l.s4 1934713408
      %v4927 = vunpack.c.0.s8 %v4926
      %v4928 = vlaneseq
      %v4929 = vshrl.u32 %v4928, 7
      %v4930 = vsub.s32 %v4927, %v4929
      %v4931 = vrot.slane %v4924, %v4930
      %v4932 = vcombine.low %v4923, %v4931
      %v4933 = vcombine.high %v4923, %v4931
      %v4934 = vcombine.low %v4040, %v4104
      %v4936 = vunpack.c.l.s4 1983009808
      %v4937 = vunpack.c.0.s8 %v4936
      %v4938 = vlaneseq
      %v4939 = vshrl.u32 %v4938, 7
      %v4940 = vsub.s32 %v4937, %v4939
      %v4941 = vrot.slane %v4934, %v4940
      %v4942 = vcombine.low %v4072, %v4136
      %v4944 = vunpack.c.l.s4 1983009808
      %v4945 = vunpack.c.0.s8 %v4944
      %v4946 = vlaneseq
      %v4947 = vshrl.u32 %v4946, 7
      %v4948 = vsub.s32 %v4945, %v4947
      %v4949 = vrot.slane %v4942, %v4948
      %v4950 = vcombine.low %v4168, %v4232
      %v4952 = vunpack.c.l.s4 1983009808
      %v4953 = vunpack.c.0.s8 %v4952
      %v4954 = vlaneseq
      %v4955 = vshrl.u32 %v4954, 7
      %v4956 = vsub.s32 %v4953, %v4955
      %v4957 = vrot.slane %v4950, %v4956
      %v4958 = vcombine.low %v4200, %v4264
      %v4960 = vunpack.c.l.s4 1983009808
      %v4961 = vunpack.c.0.s8 %v4960
      %v4962 = vlaneseq
      %v4963 = vshrl.u32 %v4962, 7
      %v4964 = vsub.s32 %v4961, %v4963
      %v4965 = vrot.slane %v4958, %v4964
      %v4966 = vcombine.low %v4941, %v4949
      %v4968 = vunpack.c.l.s4 1934713408
      %v4969 = vunpack.c.0.s8 %v4968
      %v4970 = vlaneseq
      %v4971 = vshrl.u32 %v4970, 7
      %v4972 = vsub.s32 %v4969, %v4971
      %v4973 = vrot.slane %v4966, %v4972
      %v4974 = vcombine.low %v4957, %v4965
      %v4976 = vunpack.c.l.s4 1934713408
      %v4977 = vunpack.c.0.s8 %v4976
      %v4978 = vlaneseq
      %v4979 = vshrl.u32 %v4978, 7
      %v4980 = vsub.s32 %v4977, %v4979
      %v4981 = vrot.slane %v4974, %v4980
      %v4982 = vcombine.low %v4973, %v4981
      %v4983 = vcombine.high %v4973, %v4981
      %v4984 = vcombine.low %v4280, %v4344
      %v4986 = vunpack.c.l.s4 1983009808
      %v4987 = vunpack.c.0.s8 %v4986
      %v4988 = vlaneseq
      %v4989 = vshrl.u32 %v4988, 7
      %v4990 = vsub.s32 %v4987, %v4989
      %v4991 = vrot.slane %v4984, %v4990
      %v4992 = vcombine.low %v4312, %v4376
      %v4994 = vunpack.c.l.s4 1983009808
      %v4995 = vunpack.c.0.s8 %v4994
      %v4996 = vlaneseq
      %v4997 = vshrl.u32 %v4996, 7
      %v4998 = vsub.s32 %v4995, %v4997
      %v4999 = vrot.slane %v4992, %v4998
      %v5000 = vcombine.low %v4408, %v4472
      %v5002 = vunpack.c.l.s4 1983009808
      %v5003 = vunpack.c.0.s8 %v5002
      %v5004 = vlaneseq
      %v5005 = vshrl.u32 %v5004, 7
      %v5006 = vsub.s32 %v5003, %v5005
      %v5007 = vrot.slane %v5000, %v5006
      %v5008 = vcombine.low %v4440, %v4504
      %v5010 = vunpack.c.l.s4 1983009808
      %v5011 = vunpack.c.0.s8 %v5010
      %v5012 = vlaneseq
      %v5013 = vshrl.u32 %v5012, 7
      %v5014 = vsub.s32 %v5011, %v5013
      %v5015 = vrot.slane %v5008, %v5014
      %v5016 = vcombine.low %v4991, %v4999
      %v5018 = vunpack.c.l.s4 1934713408
      %v5019 = vunpack.c.0.s8 %v5018
      %v5020 = vlaneseq
      %v5021 = vshrl.u32 %v5020, 7
      %v5022 = vsub.s32 %v5019, %v5021
      %v5023 = vrot.slane %v5016, %v5022
      %v5024 = vcombine.low %v5007, %v5015
      %v5026 = vunpack.c.l.s4 1934713408
      %v5027 = vunpack.c.0.s8 %v5026
      %v5028 = vlaneseq
      %v5029 = vshrl.u32 %v5028, 7
      %v5030 = vsub.s32 %v5027, %v5029
      %v5031 = vrot.slane %v5024, %v5030
      %v5032 = vcombine.low %v5023, %v5031
      %v5033 = vcombine.high %v5023, %v5031
      %v5034 = vcombine.low %v4296, %v4360
      %v5036 = vunpack.c.l.s4 1983009808
      %v5037 = vunpack.c.0.s8 %v5036
      %v5038 = vlaneseq
      %v5039 = vshrl.u32 %v5038, 7
      %v5040 = vsub.s32 %v5037, %v5039
      %v5041 = vrot.slane %v5034, %v5040
      %v5042 = vcombine.low %v4328, %v4392
      %v5044 = vunpack.c.l.s4 1983009808
      %v5045 = vunpack.c.0.s8 %v5044
      %v5046 = vlaneseq
      %v5047 = vshrl.u32 %v5046, 7
      %v5048 = vsub.s32 %v5045, %v5047
      %v5049 = vrot.slane %v5042, %v5048
      %v5050 = vcombine.low %v4424, %v4488
      %v5052 = vunpack.c.l.s4 1983009808
      %v5053 = vunpack.c.0.s8 %v5052
      %v5054 = vlaneseq
      %v5055 = vshrl.u32 %v5054, 7
      %v5056 = vsub.s32 %v5053, %v5055
      %v5057 = vrot.slane %v5050, %v5056
      %v5058 = vcombine.low %v4456, %v4520
      %v5060 = vunpack.c.l.s4 1983009808
      %v5061 = vunpack.c.0.s8 %v5060
      %v5062 = vlaneseq
      %v5063 = vshrl.u32 %v5062, 7
      %v5064 = vsub.s32 %v5061, %v5063
      %v5065 = vrot.slane %v5058, %v5064
      %v5066 = vcombine.low %v5041, %v5049
      %v5068 = vunpack.c.l.s4 1934713408
      %v5069 = vunpack.c.0.s8 %v5068
      %v5070 = vlaneseq
      %v5071 = vshrl.u32 %v5070, 7
      %v5072 = vsub.s32 %v5069, %v5071
      %v5073 = vrot.slane %v5066, %v5072
      %v5074 = vcombine.low %v5057, %v5065
      %v5076 = vunpack.c.l.s4 1934713408
      %v5077 = vunpack.c.0.s8 %v5076
      %v5078 = vlaneseq
      %v5079 = vshrl.u32 %v5078, 7
      %v5080 = vsub.s32 %v5077, %v5079
      %v5081 = vrot.slane %v5074, %v5080
      %v5082 = vcombine.low %v5073, %v5081
      %v5083 = vcombine.high %v5073, %v5081
      %v5084 = vcombine.low %v4536, %v4600
      %v5086 = vunpack.c.l.s4 1983009808
      %v5087 = vunpack.c.0.s8 %v5086
      %v5088 = vlaneseq
      %v5089 = vshrl.u32 %v5088, 7
      %v5090 = vsub.s32 %v5087, %v5089
      %v5091 = vrot.slane %v5084, %v5090
      %v5092 = vcombine.low %v4568, %v4632
      %v5094 = vunpack.c.l.s4 1983009808
      %v5095 = vunpack.c.0.s8 %v5094
      %v5096 = vlaneseq
      %v5097 = vshrl.u32 %v5096, 7
      %v5098 = vsub.s32 %v5095, %v5097
      %v5099 = vrot.slane %v5092, %v5098
      %v5100 = vcombine.low %v4664, %v4728
      %v5102 = vunpack.c.l.s4 1983009808
      %v5103 = vunpack.c.0.s8 %v5102
      %v5104 = vlaneseq
      %v5105 = vshrl.u32 %v5104, 7
      %v5106 = vsub.s32 %v5103, %v5105
      %v5107 = vrot.slane %v5100, %v5106
      %v5108 = vcombine.low %v4696, %v4760
      %v5110 = vunpack.c.l.s4 1983009808
      %v5111 = vunpack.c.0.s8 %v5110
      %v5112 = vlaneseq
      %v5113 = vshrl.u32 %v5112, 7
      %v5114 = vsub.s32 %v5111, %v5113
      %v5115 = vrot.slane %v5108, %v5114
      %v5116 = vcombine.low %v5091, %v5099
      %v5118 = vunpack.c.l.s4 1934713408
      %v5119 = vunpack.c.0.s8 %v5118
      %v5120 = vlaneseq
      %v5121 = vshrl.u32 %v5120, 7
      %v5122 = vsub.s32 %v5119, %v5121
      %v5123 = vrot.slane %v5116, %v5122
      %v5124 = vcombine.low %v5107, %v5115
      %v5126 = vunpack.c.l.s4 1934713408
      %v5127 = vunpack.c.0.s8 %v5126
      %v5128 = vlaneseq
      %v5129 = vshrl.u32 %v5128, 7
      %v5130 = vsub.s32 %v5127, %v5129
      %v5131 = vrot.slane %v5124, %v5130
      %v5132 = vcombine.low %v5123, %v5131
      %v5133 = vcombine.high %v5123, %v5131
      %v5134 = vcombine.low %v4552, %v4616
      %v5136 = vunpack.c.l.s4 1983009808
      %v5137 = vunpack.c.0.s8 %v5136
      %v5138 = vlaneseq
      %v5139 = vshrl.u32 %v5138, 7
      %v5140 = vsub.s32 %v5137, %v5139
      %v5141 = vrot.slane %v5134, %v5140
      %v5142 = vcombine.low %v4584, %v4648
      %v5144 = vunpack.c.l.s4 1983009808
      %v5145 = vunpack.c.0.s8 %v5144
      %v5146 = vlaneseq
      %v5147 = vshrl.u32 %v5146, 7
      %v5148 = vsub.s32 %v5145, %v5147
      %v5149 = vrot.slane %v5142, %v5148
      %v5150 = vcombine.low %v4680, %v4744
      %v5152 = vunpack.c.l.s4 1983009808
      %v5153 = vunpack.c.0.s8 %v5152
      %v5154 = vlaneseq
      %v5155 = vshrl.u32 %v5154, 7
      %v5156 = vsub.s32 %v5153, %v5155
      %v5157 = vrot.slane %v5150, %v5156
      %v5158 = vcombine.low %v4712, %v4776
      %v5160 = vunpack.c.l.s4 1983009808
      %v5161 = vunpack.c.0.s8 %v5160
      %v5162 = vlaneseq
      %v5163 = vshrl.u32 %v5162, 7
      %v5164 = vsub.s32 %v5161, %v5163
      %v5165 = vrot.slane %v5158, %v5164
      %v5166 = vcombine.low %v5141, %v5149
      %v5168 = vunpack.c.l.s4 1934713408
      %v5169 = vunpack.c.0.s8 %v5168
      %v5170 = vlaneseq
      %v5171 = vshrl.u32 %v5170, 7
      %v5172 = vsub.s32 %v5169, %v5171
      %v5173 = vrot.slane %v5166, %v5172
      %v5174 = vcombine.low %v5157, %v5165
      %v5176 = vunpack.c.l.s4 1934713408
      %v5177 = vunpack.c.0.s8 %v5176
      %v5178 = vlaneseq
      %v5179 = vshrl.u32 %v5178, 7
      %v5180 = vsub.s32 %v5177, %v5179
      %v5181 = vrot.slane %v5174, %v5180
      %v5182 = vcombine.low %v5173, %v5181
      %v5183 = vcombine.high %v5173, %v5181
      %v5186 = vpack.i.b16 %v4882, %v4832
      %v5187 = vshrl.u32 %v4832, 16
      %v5188 = vshrl.u32 %v4882, 16
      %v5189 = vpack.i.b16 %v5188, %v5187
      %v5192 = vpack.i.b16 %v4883, %v4833
      %v5193 = vshrl.u32 %v4833, 16
      %v5194 = vshrl.u32 %v4883, 16
      %v5195 = vpack.i.b16 %v5194, %v5193
      %v5198 = vpack.i.b16 %v4982, %v4932
      %v5199 = vshrl.u32 %v4932, 16
      %v5200 = vshrl.u32 %v4982, 16
      %v5201 = vpack.i.b16 %v5200, %v5199
      %v5204 = vpack.i.b16 %v4983, %v4933
      %v5205 = vshrl.u32 %v4933, 16
      %v5206 = vshrl.u32 %v4983, 16
      %v5207 = vpack.i.b16 %v5206, %v5205
      %v5210 = vpack.i.b16 %v5082, %v5032
      %v5211 = vshrl.u32 %v5032, 16
      %v5212 = vshrl.u32 %v5082, 16
      %v5213 = vpack.i.b16 %v5212, %v5211
      %v5216 = vpack.i.b16 %v5083, %v5033
      %v5217 = vshrl.u32 %v5033, 16
      %v5218 = vshrl.u32 %v5083, 16
      %v5219 = vpack.i.b16 %v5218, %v5217
      %v5222 = vpack.i.b16 %v5182, %v5132
      %v5223 = vshrl.u32 %v5132, 16
      %v5224 = vshrl.u32 %v5182, 16
      %v5225 = vpack.i.b16 %v5224, %v5223
      %v5228 = vpack.i.b16 %v5183, %v5133
      %v5229 = vshrl.u32 %v5133, 16
      %v5230 = vshrl.u32 %v5183, 16
      %v5231 = vpack.i.b16 %v5230, %v5229
      %v5233 = vsel %vm2907, %v5186, 0
      %v5236 = vsel %vm2907, %v5198, 0
      %v5239 = vsel %vm2907, %v5210, 0
      %v5242 = vsel %vm2907, %v5222, 0
      %v5245 = vsel %vm2907, %v2930, 0
      %5247 = vmatprep.subr.bf16.mxu0 0
      %5248 = vmatpush1.bf16.xpose.msra.mxu0 %v5245
      %5249 = vmatprep.subr.bf16.mxu0 0
      %5250 = vmatpush1.bf16.xpose.msra.mxu0 0
      %5251 = vmatprep.subr.bf16.mxu0 0
      %5252 = vmatpush1.bf16.xpose.msra.mxu0 0
      %5253 = vmatprep.subr.bf16.mxu0 0
      %5254 = vmatpush1.bf16.xpose.msra.mxu0 0
      %5255 = vmatprep.subr.bf16.mxu0 0
      %5256 = vmatpush1.bf16.xpose.msra.mxu0 0
      %5257 = vmatprep.subr.bf16.mxu0 0
      %5258 = vmatpush1.bf16.xpose.msra.mxu0 0
      %5259 = vmatprep.subr.bf16.mxu0 0
      %5260 = vmatpush1.bf16.xpose.msra.mxu0 0
      %5261 = vmatprep.subr.bf16.mxu0 0
      %5262 = vmatpush1.bf16.xpose.msra.mxu0 0
      %5263 = vmatprep.subr.bf16.mxu0 0
      %5264 = vmatpush1.bf16.xpose.msra.mxu0 0
      %5265 = vmatprep.subr.bf16.mxu0 0
      %5266 = vmatpush1.bf16.xpose.msra.mxu0 0
      %5267 = vmatprep.subr.bf16.mxu0 0
      %5268 = vmatpush1.bf16.xpose.msra.mxu0 0
      %5269 = vmatprep.subr.bf16.mxu0 0
      %5270 = vmatpush1.bf16.xpose.msra.mxu0 0
      %5271 = vmatprep.subr.bf16.mxu0 0
      %5272 = vmatpush1.bf16.xpose.msra.mxu0 0
      %5273 = vmatprep.subr.bf16.mxu0 0
      %5274 = vmatpush1.bf16.xpose.msra.mxu0 0
      %5275 = vmatprep.subr.bf16.mxu0 0
      %5276 = vmatpush1.bf16.xpose.msra.mxu0 0
      %5277 = vmatprep.subr.bf16.mxu0 0
      %5278 = vmatpush1.bf16.xpose.msra.mxu0 0
      %5279 = vmatprep.mubr.bf16.mxu0 0
      %5280 = vmatmul.mubr.bf16.gmra.mrb[0].mxu0 %v5233
      %v5281 = vpop.f32.mrb[0].mxu0
      %v5282 = vadd.f32 0.0, %v5281
      %v5283 = vpop.f32.mrb[0].mxu0
      %v5284 = vpop.f32.mrb[0].mxu0
      %v5285 = vadd.f32 0.0, %v5284
      %v5286 = vpop.f32.mrb[0].mxu0
      %5287 = vmatprep.mubr.bf16.mxu0 0
      %5288 = vmatmul.mubr.bf16.gmra.mrb[0].mxu0 %v5236
      %v5289 = vpop.f32.mrb[0].mxu0
      %v5290 = vadd.f32 0.0, %v5289
      %v5291 = vpop.f32.mrb[0].mxu0
      %v5292 = vpop.f32.mrb[0].mxu0
      %v5293 = vadd.f32 0.0, %v5292
      %v5294 = vpop.f32.mrb[0].mxu0
      %5295 = vmatprep.mubr.bf16.mxu0 0
      %5296 = vmatmul.mubr.bf16.gmra.mrb[0].mxu0 %v5239
      %v5297 = vpop.f32.mrb[0].mxu0
      %v5298 = vadd.f32 0.0, %v5297
      %v5299 = vpop.f32.mrb[0].mxu0
      %v5300 = vpop.f32.mrb[0].mxu0
      %v5301 = vadd.f32 0.0, %v5300
      %v5302 = vpop.f32.mrb[0].mxu0
      %5303 = vmatprep.mubr.bf16.mxu0 0
      %5304 = vmatmul.mubr.bf16.gmra.mrb[0].mxu0 %v5242
      %v5305 = vpop.f32.mrb[0].mxu0
      %v5306 = vadd.f32 0.0, %v5305
      %v5307 = vpop.f32.mrb[0].mxu0
      %v5308 = vpop.f32.mrb[0].mxu0
      %v5309 = vadd.f32 0.0, %v5308
      %v5310 = vpop.f32.mrb[0].mxu0
      %5311 = vdwg.mxu0
      %v5313 = vsel %vm2907, %v5189, 0
      %v5316 = vsel %vm2907, %v5201, 0
      %v5319 = vsel %vm2907, %v5213, 0
      %v5322 = vsel %vm2907, %v5225, 0
      %v5325 = vsel %vm2907, %v2933, 0
      %5327 = vmatprep.subr.bf16.mxu0 0
      %5328 = vmatpush1.bf16.xpose.msra.mxu0 %v5325
      %5329 = vmatprep.subr.bf16.mxu0 0
      %5330 = vmatpush1.bf16.xpose.msra.mxu0 0
      %5331 = vmatprep.subr.bf16.mxu0 0
      %5332 = vmatpush1.bf16.xpose.msra.mxu0 0
      %5333 = vmatprep.subr.bf16.mxu0 0
      %5334 = vmatpush1.bf16.xpose.msra.mxu0 0
      %5335 = vmatprep.subr.bf16.mxu0 0
      %5336 = vmatpush1.bf16.xpose.msra.mxu0 0
      %5337 = vmatprep.subr.bf16.mxu0 0
      %5338 = vmatpush1.bf16.xpose.msra.mxu0 0
      %5339 = vmatprep.subr.bf16.mxu0 0
      %5340 = vmatpush1.bf16.xpose.msra.mxu0 0
      %5341 = vmatprep.subr.bf16.mxu0 0
      %5342 = vmatpush1.bf16.xpose.msra.mxu0 0
      %5343 = vmatprep.subr.bf16.mxu0 0
      %5344 = vmatpush1.bf16.xpose.msra.mxu0 0
      %5345 = vmatprep.subr.bf16.mxu0 0
      %5346 = vmatpush1.bf16.xpose.msra.mxu0 0
      %5347 = vmatprep.subr.bf16.mxu0 0
      %5348 = vmatpush1.bf16.xpose.msra.mxu0 0
      %5349 = vmatprep.subr.bf16.mxu0 0
      %5350 = vmatpush1.bf16.xpose.msra.mxu0 0
      %5351 = vmatprep.subr.bf16.mxu0 0
      %5352 = vmatpush1.bf16.xpose.msra.mxu0 0
      %5353 = vmatprep.subr.bf16.mxu0 0
      %5354 = vmatpush1.bf16.xpose.msra.mxu0 0
      %5355 = vmatprep.subr.bf16.mxu0 0
      %5356 = vmatpush1.bf16.xpose.msra.mxu0 0
      %5357 = vmatprep.subr.bf16.mxu0 0
      %5358 = vmatpush1.bf16.xpose.msra.mxu0 0
      %5359 = vmatprep.mubr.bf16.mxu0 0
      %5360 = vmatmul.mubr.bf16.gmra.mrb[0].mxu0 %v5313
      %v5361 = vpop.f32.mrb[0].mxu0
      %v5362 = vadd.f32 0.0, %v5361
      %v5363 = vpop.f32.mrb[0].mxu0
      %v5364 = vpop.f32.mrb[0].mxu0
      %v5365 = vadd.f32 0.0, %v5364
      %v5366 = vpop.f32.mrb[0].mxu0
      %5367 = vmatprep.mubr.bf16.mxu0 0
      %5368 = vmatmul.mubr.bf16.gmra.mrb[0].mxu0 %v5316
      %v5369 = vpop.f32.mrb[0].mxu0
      %v5370 = vadd.f32 0.0, %v5369
      %v5371 = vpop.f32.mrb[0].mxu0
      %v5372 = vpop.f32.mrb[0].mxu0
      %v5373 = vadd.f32 0.0, %v5372
      %v5374 = vpop.f32.mrb[0].mxu0
      %5375 = vmatprep.mubr.bf16.mxu0 0
      %5376 = vmatmul.mubr.bf16.gmra.mrb[0].mxu0 %v5319
      %v5377 = vpop.f32.mrb[0].mxu0
      %v5378 = vadd.f32 0.0, %v5377
      %v5379 = vpop.f32.mrb[0].mxu0
      %v5380 = vpop.f32.mrb[0].mxu0
      %v5381 = vadd.f32 0.0, %v5380
      %v5382 = vpop.f32.mrb[0].mxu0
      %5383 = vmatprep.mubr.bf16.mxu0 0
      %5384 = vmatmul.mubr.bf16.gmra.mrb[0].mxu0 %v5322
      %v5385 = vpop.f32.mrb[0].mxu0
      %v5386 = vadd.f32 0.0, %v5385
      %v5387 = vpop.f32.mrb[0].mxu0
      %v5388 = vpop.f32.mrb[0].mxu0
      %v5389 = vadd.f32 0.0, %v5388
      %v5390 = vpop.f32.mrb[0].mxu0
      %5391 = vdwg.mxu0
      %v5393 = vsel %vm2907, %v5192, 0
      %v5396 = vsel %vm2907, %v5204, 0
      %v5399 = vsel %vm2907, %v5216, 0
      %v5402 = vsel %vm2907, %v5228, 0
      %v5405 = vsel %vm2907, %v2936, 0
      %5407 = vmatprep.subr.bf16.mxu0 0
      %5408 = vmatpush1.bf16.xpose.msra.mxu0 %v5405
      %5409 = vmatprep.subr.bf16.mxu0 0
      %5410 = vmatpush1.bf16.xpose.msra.mxu0 0
      %5411 = vmatprep.subr.bf16.mxu0 0
      %5412 = vmatpush1.bf16.xpose.msra.mxu0 0
      %5413 = vmatprep.subr.bf16.mxu0 0
      %5414 = vmatpush1.bf16.xpose.msra.mxu0 0
      %5415 = vmatprep.subr.bf16.mxu0 0
      %5416 = vmatpush1.bf16.xpose.msra.mxu0 0
      %5417 = vmatprep.subr.bf16.mxu0 0
      %5418 = vmatpush1.bf16.xpose.msra.mxu0 0
      %5419 = vmatprep.subr.bf16.mxu0 0
      %5420 = vmatpush1.bf16.xpose.msra.mxu0 0
      %5421 = vmatprep.subr.bf16.mxu0 0
      %5422 = vmatpush1.bf16.xpose.msra.mxu0 0
      %5423 = vmatprep.subr.bf16.mxu0 0
      %5424 = vmatpush1.bf16.xpose.msra.mxu0 0
      %5425 = vmatprep.subr.bf16.mxu0 0
      %5426 = vmatpush1.bf16.xpose.msra.mxu0 0
      %5427 = vmatprep.subr.bf16.mxu0 0
      %5428 = vmatpush1.bf16.xpose.msra.mxu0 0
      %5429 = vmatprep.subr.bf16.mxu0 0
      %5430 = vmatpush1.bf16.xpose.msra.mxu0 0
      %5431 = vmatprep.subr.bf16.mxu0 0
      %5432 = vmatpush1.bf16.xpose.msra.mxu0 0
      %5433 = vmatprep.subr.bf16.mxu0 0
      %5434 = vmatpush1.bf16.xpose.msra.mxu0 0
      %5435 = vmatprep.subr.bf16.mxu0 0
      %5436 = vmatpush1.bf16.xpose.msra.mxu0 0
      %5437 = vmatprep.subr.bf16.mxu0 0
      %5438 = vmatpush1.bf16.xpose.msra.mxu0 0
      %5439 = vmatprep.mubr.bf16.mxu0 0
      %5440 = vmatmul.mubr.bf16.gmra.mrb[0].mxu0 %v5393
      %v5441 = vpop.f32.mrb[0].mxu0
      %v5442 = vadd.f32 0.0, %v5441
      %v5443 = vpop.f32.mrb[0].mxu0
      %v5444 = vpop.f32.mrb[0].mxu0
      %v5445 = vadd.f32 0.0, %v5444
      %v5446 = vpop.f32.mrb[0].mxu0
      %5447 = vmatprep.mubr.bf16.mxu0 0
      %5448 = vmatmul.mubr.bf16.gmra.mrb[0].mxu0 %v5396
      %v5449 = vpop.f32.mrb[0].mxu0
      %v5450 = vadd.f32 0.0, %v5449
      %v5451 = vpop.f32.mrb[0].mxu0
      %v5452 = vpop.f32.mrb[0].mxu0
      %v5453 = vadd.f32 0.0, %v5452
      %v5454 = vpop.f32.mrb[0].mxu0
      %5455 = vmatprep.mubr.bf16.mxu0 0
      %5456 = vmatmul.mubr.bf16.gmra.mrb[0].mxu0 %v5399
      %v5457 = vpop.f32.mrb[0].mxu0
      %v5458 = vadd.f32 0.0, %v5457
      %v5459 = vpop.f32.mrb[0].mxu0
      %v5460 = vpop.f32.mrb[0].mxu0
      %v5461 = vadd.f32 0.0, %v5460
      %v5462 = vpop.f32.mrb[0].mxu0
      %5463 = vmatprep.mubr.bf16.mxu0 0
      %5464 = vmatmul.mubr.bf16.gmra.mrb[0].mxu0 %v5402
      %v5465 = vpop.f32.mrb[0].mxu0
      %v5466 = vadd.f32 0.0, %v5465
      %v5467 = vpop.f32.mrb[0].mxu0
      %v5468 = vpop.f32.mrb[0].mxu0
      %v5469 = vadd.f32 0.0, %v5468
      %v5470 = vpop.f32.mrb[0].mxu0
      %5471 = vdwg.mxu0
      %v5473 = vsel %vm2907, %v5195, 0
      %v5476 = vsel %vm2907, %v5207, 0
      %v5479 = vsel %vm2907, %v5219, 0
      %v5482 = vsel %vm2907, %v5231, 0
      %v5485 = vsel %vm2907, %v2939, 0
      %5487 = vmatprep.subr.bf16.mxu0 0
      %5488 = vmatpush1.bf16.xpose.msra.mxu0 %v5485
      %5489 = vmatprep.subr.bf16.mxu0 0
      %5490 = vmatpush1.bf16.xpose.msra.mxu0 0
      %5491 = vmatprep.subr.bf16.mxu0 0
      %5492 = vmatpush1.bf16.xpose.msra.mxu0 0
      %5493 = vmatprep.subr.bf16.mxu0 0
      %5494 = vmatpush1.bf16.xpose.msra.mxu0 0
      %5495 = vmatprep.subr.bf16.mxu0 0
      %5496 = vmatpush1.bf16.xpose.msra.mxu0 0
      %5497 = vmatprep.subr.bf16.mxu0 0
      %5498 = vmatpush1.bf16.xpose.msra.mxu0 0
      %5499 = vmatprep.subr.bf16.mxu0 0
      %5500 = vmatpush1.bf16.xpose.msra.mxu0 0
      %5501 = vmatprep.subr.bf16.mxu0 0
      %5502 = vmatpush1.bf16.xpose.msra.mxu0 0
      %5503 = vmatprep.subr.bf16.mxu0 0
      %5504 = vmatpush1.bf16.xpose.msra.mxu0 0
      %5505 = vmatprep.subr.bf16.mxu0 0
      %5506 = vmatpush1.bf16.xpose.msra.mxu0 0
      %5507 = vmatprep.subr.bf16.mxu0 0
      %5508 = vmatpush1.bf16.xpose.msra.mxu0 0
      %5509 = vmatprep.subr.bf16.mxu0 0
      %5510 = vmatpush1.bf16.xpose.msra.mxu0 0
      %5511 = vmatprep.subr.bf16.mxu0 0
      %5512 = vmatpush1.bf16.xpose.msra.mxu0 0
      %5513 = vmatprep.subr.bf16.mxu0 0
      %5514 = vmatpush1.bf16.xpose.msra.mxu0 0
      %5515 = vmatprep.subr.bf16.mxu0 0
      %5516 = vmatpush1.bf16.xpose.msra.mxu0 0
      %5517 = vmatprep.subr.bf16.mxu0 0
      %5518 = vmatpush1.bf16.xpose.msra.mxu0 0
      %5519 = vmatprep.mubr.bf16.mxu0 0
      %5520 = vmatmul.mubr.bf16.gmra.mrb[0].mxu0 %v5473
      %v5521 = vpop.f32.mrb[0].mxu0
      %v5522 = vadd.f32 0.0, %v5521
      %v5523 = vpop.f32.mrb[0].mxu0
      %v5524 = vpop.f32.mrb[0].mxu0
      %v5525 = vadd.f32 0.0, %v5524
      %v5526 = vpop.f32.mrb[0].mxu0
      %5527 = vmatprep.mubr.bf16.mxu0 0
      %5528 = vmatmul.mubr.bf16.gmra.mrb[0].mxu0 %v5476
      %v5529 = vpop.f32.mrb[0].mxu0
      %v5530 = vadd.f32 0.0, %v5529
      %v5531 = vpop.f32.mrb[0].mxu0
      %v5532 = vpop.f32.mrb[0].mxu0
      %v5533 = vadd.f32 0.0, %v5532
      %v5534 = vpop.f32.mrb[0].mxu0
      %5535 = vmatprep.mubr.bf16.mxu0 0
      %5536 = vmatmul.mubr.bf16.gmra.mrb[0].mxu0 %v5479
      %v5537 = vpop.f32.mrb[0].mxu0
      %v5538 = vadd.f32 0.0, %v5537
      %v5539 = vpop.f32.mrb[0].mxu0
      %v5540 = vpop.f32.mrb[0].mxu0
      %v5541 = vadd.f32 0.0, %v5540
      %v5542 = vpop.f32.mrb[0].mxu0
      %5543 = vmatprep.mubr.bf16.mxu0 0
      %5544 = vmatmul.mubr.bf16.gmra.mrb[0].mxu0 %v5482
      %v5545 = vpop.f32.mrb[0].mxu0
      %v5546 = vadd.f32 0.0, %v5545
      %v5547 = vpop.f32.mrb[0].mxu0
      %v5548 = vpop.f32.mrb[0].mxu0
      %v5549 = vadd.f32 0.0, %v5548
      %v5550 = vpop.f32.mrb[0].mxu0
      %5551 = vdwg.mxu0
      %5552 = vxpose.xlu0.b32.start [1/16] %v5282, 128
      %5553 = vxpose.xlu0.b32.cont [2/16] %v5285, 128
      %5554 = vxpose.xlu0.b32.cont [3/16] %v5290, 128
      %5555 = vxpose.xlu0.b32.cont [4/16] %v5293, 128
      %5556 = vxpose.xlu0.b32.cont [5/16] %v5298, 128
      %5557 = vxpose.xlu0.b32.cont [6/16] %v5301, 128
      %5558 = vxpose.xlu0.b32.cont [7/16] %v5306, 128
      %5559 = vxpose.xlu0.b32.cont [8/16] %v5309, 128
      %5560 = vxpose.xlu0.b32.cont [9/16] 0.0, 128
      %5561 = vxpose.xlu0.b32.cont [10/16] 0.0, 128
      %5562 = vxpose.xlu0.b32.cont [11/16] 0.0, 128
      %5563 = vxpose.xlu0.b32.cont [12/16] 0.0, 128
      %5564 = vxpose.xlu0.b32.cont [13/16] 0.0, 128
      %5565 = vxpose.xlu0.b32.cont [14/16] 0.0, 128
      %5566 = vxpose.xlu0.b32.cont [15/16] 0.0, 128
      %5567 = vxpose.xlu0.b32.end [16/16] 0.0, 128
      %v5568 = vpop.trf.xlu0
      %v5569 = vpop.trf.xlu0
      %v5570 = vpop.trf.xlu0
      %v5571 = vpop.trf.xlu0
      %v5572 = vpop.trf.xlu0
      %v5573 = vpop.trf.xlu0
      %v5574 = vpop.trf.xlu0
      %v5575 = vpop.trf.xlu0
      %v5576 = vpop.trf.xlu0
      %v5577 = vpop.trf.xlu0
      %v5578 = vpop.trf.xlu0
      %v5579 = vpop.trf.xlu0
      %v5580 = vpop.trf.xlu0
      %v5581 = vpop.trf.xlu0
      %v5582 = vpop.trf.xlu0
      %v5583 = vpop.trf.xlu0
      %5584 = vxpose.xlu0.b32.start [1/16] %v5362, 128
      %5585 = vxpose.xlu0.b32.cont [2/16] %v5365, 128
      %5586 = vxpose.xlu0.b32.cont [3/16] %v5370, 128
      %5587 = vxpose.xlu0.b32.cont [4/16] %v5373, 128
      %5588 = vxpose.xlu0.b32.cont [5/16] %v5378, 128
      %5589 = vxpose.xlu0.b32.cont [6/16] %v5381, 128
      %5590 = vxpose.xlu0.b32.cont [7/16] %v5386, 128
      %5591 = vxpose.xlu0.b32.cont [8/16] %v5389, 128
      %5592 = vxpose.xlu0.b32.cont [9/16] 0.0, 128
      %5593 = vxpose.xlu0.b32.cont [10/16] 0.0, 128
      %5594 = vxpose.xlu0.b32.cont [11/16] 0.0, 128
      %5595 = vxpose.xlu0.b32.cont [12/16] 0.0, 128
      %5596 = vxpose.xlu0.b32.cont [13/16] 0.0, 128
      %5597 = vxpose.xlu0.b32.cont [14/16] 0.0, 128
      %5598 = vxpose.xlu0.b32.cont [15/16] 0.0, 128
      %5599 = vxpose.xlu0.b32.end [16/16] 0.0, 128
      %v5600 = vpop.trf.xlu0
      %v5601 = vpop.trf.xlu0
      %v5602 = vpop.trf.xlu0
      %v5603 = vpop.trf.xlu0
      %v5604 = vpop.trf.xlu0
      %v5605 = vpop.trf.xlu0
      %v5606 = vpop.trf.xlu0
      %v5607 = vpop.trf.xlu0
      %v5608 = vpop.trf.xlu0
      %v5609 = vpop.trf.xlu0
      %v5610 = vpop.trf.xlu0
      %v5611 = vpop.trf.xlu0
      %v5612 = vpop.trf.xlu0
      %v5613 = vpop.trf.xlu0
      %v5614 = vpop.trf.xlu0
      %v5615 = vpop.trf.xlu0
      %5616 = vxpose.xlu0.b32.start [1/16] %v5442, 128
      %5617 = vxpose.xlu0.b32.cont [2/16] %v5445, 128
      %5618 = vxpose.xlu0.b32.cont [3/16] %v5450, 128
      %5619 = vxpose.xlu0.b32.cont [4/16] %v5453, 128
      %5620 = vxpose.xlu0.b32.cont [5/16] %v5458, 128
      %5621 = vxpose.xlu0.b32.cont [6/16] %v5461, 128
      %5622 = vxpose.xlu0.b32.cont [7/16] %v5466, 128
      %5623 = vxpose.xlu0.b32.cont [8/16] %v5469, 128
      %5624 = vxpose.xlu0.b32.cont [9/16] 0.0, 128
      %5625 = vxpose.xlu0.b32.cont [10/16] 0.0, 128
      %5626 = vxpose.xlu0.b32.cont [11/16] 0.0, 128
      %5627 = vxpose.xlu0.b32.cont [12/16] 0.0, 128
      %5628 = vxpose.xlu0.b32.cont [13/16] 0.0, 128
      %5629 = vxpose.xlu0.b32.cont [14/16] 0.0, 128
      %5630 = vxpose.xlu0.b32.cont [15/16] 0.0, 128
      %5631 = vxpose.xlu0.b32.end [16/16] 0.0, 128
      %v5632 = vpop.trf.xlu0
      %v5633 = vpop.trf.xlu0
      %v5634 = vpop.trf.xlu0
      %v5635 = vpop.trf.xlu0
      %v5636 = vpop.trf.xlu0
      %v5637 = vpop.trf.xlu0
      %v5638 = vpop.trf.xlu0
      %v5639 = vpop.trf.xlu0
      %v5640 = vpop.trf.xlu0
      %v5641 = vpop.trf.xlu0
      %v5642 = vpop.trf.xlu0
      %v5643 = vpop.trf.xlu0
      %v5644 = vpop.trf.xlu0
      %v5645 = vpop.trf.xlu0
      %v5646 = vpop.trf.xlu0
      %v5647 = vpop.trf.xlu0
      %5648 = vxpose.xlu0.b32.start [1/16] %v5522, 128
      %5649 = vxpose.xlu0.b32.cont [2/16] %v5525, 128
      %5650 = vxpose.xlu0.b32.cont [3/16] %v5530, 128
      %5651 = vxpose.xlu0.b32.cont [4/16] %v5533, 128
      %5652 = vxpose.xlu0.b32.cont [5/16] %v5538, 128
      %5653 = vxpose.xlu0.b32.cont [6/16] %v5541, 128
      %5654 = vxpose.xlu0.b32.cont [7/16] %v5546, 128
      %5655 = vxpose.xlu0.b32.cont [8/16] %v5549, 128
      %5656 = vxpose.xlu0.b32.cont [9/16] 0.0, 128
      %5657 = vxpose.xlu0.b32.cont [10/16] 0.0, 128
      %5658 = vxpose.xlu0.b32.cont [11/16] 0.0, 128
      %5659 = vxpose.xlu0.b32.cont [12/16] 0.0, 128
      %5660 = vxpose.xlu0.b32.cont [13/16] 0.0, 128
      %5661 = vxpose.xlu0.b32.cont [14/16] 0.0, 128
      %5662 = vxpose.xlu0.b32.cont [15/16] 0.0, 128
      %5663 = vxpose.xlu0.b32.end [16/16] 0.0, 128
      %v5664 = vpop.trf.xlu0
      %v5665 = vpop.trf.xlu0
      %v5666 = vpop.trf.xlu0
      %v5667 = vpop.trf.xlu0
      %v5668 = vpop.trf.xlu0
      %v5669 = vpop.trf.xlu0
      %v5670 = vpop.trf.xlu0
      %v5671 = vpop.trf.xlu0
      %v5672 = vpop.trf.xlu0
      %v5673 = vpop.trf.xlu0
      %v5674 = vpop.trf.xlu0
      %v5675 = vpop.trf.xlu0
      %v5676 = vpop.trf.xlu0
      %v5677 = vpop.trf.xlu0
      %v5678 = vpop.trf.xlu0
      %v5679 = vpop.trf.xlu0
      %v5680 = vcombine.low %v5568, %v5632
      %v5681 = vcombine.high %v5568, %v5632
      %v5683 = vunpack.c.l.s4 1983009808
      %v5684 = vunpack.c.0.s8 %v5683
      %v5685 = vlaneseq
      %v5686 = vshrl.u32 %v5685, 7
      %v5687 = vsub.s32 %v5684, %v5686
      %v5688 = vrot.slane %v5680, %v5687
      %v5690 = vunpack.c.l.s4 1983009808
      %v5691 = vunpack.c.0.s8 %v5690
      %v5692 = vlaneseq
      %v5693 = vshrl.u32 %v5692, 7
      %v5694 = vsub.s32 %v5691, %v5693
      %v5695 = vrot.slane %v5681, %v5694
      %v5696 = vcombine.low %v5600, %v5664
      %v5697 = vcombine.high %v5600, %v5664
      %v5699 = vunpack.c.l.s4 1983009808
      %v5700 = vunpack.c.0.s8 %v5699
      %v5701 = vlaneseq
      %v5702 = vshrl.u32 %v5701, 7
      %v5703 = vsub.s32 %v5700, %v5702
      %v5704 = vrot.slane %v5696, %v5703
      %v5706 = vunpack.c.l.s4 1983009808
      %v5707 = vunpack.c.0.s8 %v5706
      %v5708 = vlaneseq
      %v5709 = vshrl.u32 %v5708, 7
      %v5710 = vsub.s32 %v5707, %v5709
      %v5711 = vrot.slane %v5697, %v5710
      %v5712 = vcombine.low %v5688, %v5704
      %v5713 = vcombine.high %v5688, %v5704
      %v5715 = vunpack.c.l.s4 1934713408
      %v5716 = vunpack.c.0.s8 %v5715
      %v5717 = vlaneseq
      %v5718 = vshrl.u32 %v5717, 7
      %v5719 = vsub.s32 %v5716, %v5718
      %v5720 = vrot.slane %v5712, %v5719
      %v5722 = vunpack.c.l.s4 1934713408
      %v5723 = vunpack.c.0.s8 %v5722
      %v5724 = vlaneseq
      %v5725 = vshrl.u32 %v5724, 7
      %v5726 = vsub.s32 %v5723, %v5725
      %v5727 = vrot.slane %v5713, %v5726
      %v5728 = vcombine.low %v5695, %v5711
      %v5729 = vcombine.high %v5695, %v5711
      %v5731 = vunpack.c.l.s4 1934713408
      %v5732 = vunpack.c.0.s8 %v5731
      %v5733 = vlaneseq
      %v5734 = vshrl.u32 %v5733, 7
      %v5735 = vsub.s32 %v5732, %v5734
      %v5736 = vrot.slane %v5728, %v5735
      %v5738 = vunpack.c.l.s4 1934713408
      %v5739 = vunpack.c.0.s8 %v5738
      %v5740 = vlaneseq
      %v5741 = vshrl.u32 %v5740, 7
      %v5742 = vsub.s32 %v5739, %v5741
      %v5743 = vrot.slane %v5729, %v5742
      %v5744 = vcombine.high %v5720, 0.0
      %v5745 = vcombine.high %v5727, 0.0
      %v5746 = vcombine.high %v5736, 0.0
      %v5747 = vcombine.high %v5743, 0.0
      %v5748 = vcombine.low %v2956, %v2958
      %v5749 = vcombine.high %v2956, %v2958
      %v5751 = vunpack.c.l.s4 1983009808
      %v5752 = vunpack.c.0.s8 %v5751
      %v5753 = vlaneseq
      %v5754 = vshrl.u32 %v5753, 7
      %v5755 = vsub.s32 %v5752, %v5754
      %v5756 = vrot.slane %v5748, %v5755
      %v5758 = vunpack.c.l.s4 1983009808
      %v5759 = vunpack.c.0.s8 %v5758
      %v5760 = vlaneseq
      %v5761 = vshrl.u32 %v5760, 7
      %v5762 = vsub.s32 %v5759, %v5761
      %v5763 = vrot.slane %v5749, %v5762
      %v5764 = vcombine.low %v2957, %v2959
      %v5765 = vcombine.high %v2957, %v2959
      %v5767 = vunpack.c.l.s4 1983009808
      %v5768 = vunpack.c.0.s8 %v5767
      %v5769 = vlaneseq
      %v5770 = vshrl.u32 %v5769, 7
      %v5771 = vsub.s32 %v5768, %v5770
      %v5772 = vrot.slane %v5764, %v5771
      %v5774 = vunpack.c.l.s4 1983009808
      %v5775 = vunpack.c.0.s8 %v5774
      %v5776 = vlaneseq
      %v5777 = vshrl.u32 %v5776, 7
      %v5778 = vsub.s32 %v5775, %v5777
      %v5779 = vrot.slane %v5765, %v5778
      %v5780 = vcombine.low %v5756, %v5772
      %v5781 = vcombine.high %v5756, %v5772
      %v5783 = vunpack.c.l.s4 1934713408
      %v5784 = vunpack.c.0.s8 %v5783
      %v5785 = vlaneseq
      %v5786 = vshrl.u32 %v5785, 7
      %v5787 = vsub.s32 %v5784, %v5786
      %v5788 = vrot.slane %v5780, %v5787
      %v5790 = vunpack.c.l.s4 1934713408
      %v5791 = vunpack.c.0.s8 %v5790
      %v5792 = vlaneseq
      %v5793 = vshrl.u32 %v5792, 7
      %v5794 = vsub.s32 %v5791, %v5793
      %v5795 = vrot.slane %v5781, %v5794
      %v5796 = vcombine.low %v5763, %v5779
      %v5797 = vcombine.high %v5763, %v5779
      %v5799 = vunpack.c.l.s4 1934713408
      %v5800 = vunpack.c.0.s8 %v5799
      %v5801 = vlaneseq
      %v5802 = vshrl.u32 %v5801, 7
      %v5803 = vsub.s32 %v5800, %v5802
      %v5804 = vrot.slane %v5796, %v5803
      %v5806 = vunpack.c.l.s4 1934713408
      %v5807 = vunpack.c.0.s8 %v5806
      %v5808 = vlaneseq
      %v5809 = vshrl.u32 %v5808, 7
      %v5810 = vsub.s32 %v5807, %v5809
      %v5811 = vrot.slane %v5797, %v5810
      %v5812 = vcombine.high %v5788, 0.0
      %v5813 = vcombine.high %v5795, 0.0
      %v5814 = vcombine.high %v5804, 0.0
      %v5815 = vcombine.high %v5811, 0.0
      %5817 = vset.pattern.permute.xlu0 0
      %5818 = vperm.xlu0 %5817, %v5788
      %v5819 = vpop.permute.xlu0 %5818
      %5822 = vset.pattern.permute.xlu0 0
      %5823 = vperm.xlu0 %5822, %v5812
      %v5824 = vpop.permute.xlu0 %5823
      %5827 = vset.pattern.permute.xlu0 0
      %5828 = vperm.xlu0 %5827, %v5795
      %v5829 = vpop.permute.xlu0 %5828
      %5832 = vset.pattern.permute.xlu0 0
      %5833 = vperm.xlu0 %5832, %v5813
      %v5834 = vpop.permute.xlu0 %5833
      %5837 = vset.pattern.permute.xlu0 0
      %5838 = vperm.xlu0 %5837, %v5804
      %v5839 = vpop.permute.xlu0 %5838
      %5842 = vset.pattern.permute.xlu0 0
      %5843 = vperm.xlu0 %5842, %v5814
      %v5844 = vpop.permute.xlu0 %5843
      %5847 = vset.pattern.permute.xlu0 0
      %5848 = vperm.xlu0 %5847, %v5811
      %v5849 = vpop.permute.xlu0 %5848
      %5852 = vset.pattern.permute.xlu0 0
      %5853 = vperm.xlu0 %5852, %v5815
      %v5854 = vpop.permute.xlu0 %5853
      %v5856 = vmul.f32 %v5720, %v5819
      %v5857 = vmul.f32 %v5744, %v5824
      %v5858 = vmul.f32 %v5727, %v5829
      %v5859 = vmul.f32 %v5745, %v5834
      %v5860 = vmul.f32 %v5736, %v5839
      %v5861 = vmul.f32 %v5746, %v5844
      %v5862 = vmul.f32 %v5743, %v5849
      %v5863 = vmul.f32 %v5747, %v5854
      %v5864 = vcombine.low %v5856, %v5858
      %v5866 = vunpack.c.l.s4 1983009808
      %v5867 = vunpack.c.0.s8 %v5866
      %v5868 = vlaneseq
      %v5869 = vshrl.u32 %v5868, 7
      %v5870 = vsub.s32 %v5867, %v5869
      %v5871 = vrot.slane %v5864, %v5870
      %v5872 = vcombine.low %v5857, %v5859
      %v5874 = vunpack.c.l.s4 1983009808
      %v5875 = vunpack.c.0.s8 %v5874
      %v5876 = vlaneseq
      %v5877 = vshrl.u32 %v5876, 7
      %v5878 = vsub.s32 %v5875, %v5877
      %v5879 = vrot.slane %v5872, %v5878
      %v5880 = vcombine.low %v5860, %v5862
      %v5882 = vunpack.c.l.s4 1983009808
      %v5883 = vunpack.c.0.s8 %v5882
      %v5884 = vlaneseq
      %v5885 = vshrl.u32 %v5884, 7
      %v5886 = vsub.s32 %v5883, %v5885
      %v5887 = vrot.slane %v5880, %v5886
      %v5888 = vcombine.low %v5861, %v5863
      %v5890 = vunpack.c.l.s4 1983009808
      %v5891 = vunpack.c.0.s8 %v5890
      %v5892 = vlaneseq
      %v5893 = vshrl.u32 %v5892, 7
      %v5894 = vsub.s32 %v5891, %v5893
      %v5895 = vrot.slane %v5888, %v5894
      %v5896 = vcombine.low %v5871, %v5879
      %v5897 = vcombine.high %v5871, %v5879
      %v5899 = vunpack.c.l.s4 1934713408
      %v5900 = vunpack.c.0.s8 %v5899
      %v5901 = vlaneseq
      %v5902 = vshrl.u32 %v5901, 7
      %v5903 = vsub.s32 %v5900, %v5902
      %v5904 = vrot.slane %v5896, %v5903
      %v5906 = vunpack.c.l.s4 1934713408
      %v5907 = vunpack.c.0.s8 %v5906
      %v5908 = vlaneseq
      %v5909 = vshrl.u32 %v5908, 7
      %v5910 = vsub.s32 %v5907, %v5909
      %v5911 = vrot.slane %v5897, %v5910
      %v5912 = vcombine.low %v5887, %v5895
      %v5913 = vcombine.high %v5887, %v5895
      %v5915 = vunpack.c.l.s4 1934713408
      %v5916 = vunpack.c.0.s8 %v5915
      %v5917 = vlaneseq
      %v5918 = vshrl.u32 %v5917, 7
      %v5919 = vsub.s32 %v5916, %v5918
      %v5920 = vrot.slane %v5912, %v5919
      %v5922 = vunpack.c.l.s4 1934713408
      %v5923 = vunpack.c.0.s8 %v5922
      %v5924 = vlaneseq
      %v5925 = vshrl.u32 %v5924, 7
      %v5926 = vsub.s32 %v5923, %v5925
      %v5927 = vrot.slane %v5913, %v5926
      %v5928 = vcombine.low %v5904, %v5920
      %v5929 = vcombine.high %v5904, %v5920
      %v5930 = vcombine.low %v5911, %v5927
      %v5931 = vcombine.high %v5911, %v5927
      %5933 = vrot.lane.b32.xlu0 %v5929, 64
      %v5934 = vpop.permute.xlu0 %5933
      %5937 = vrot.lane.b32.xlu0 %v5931, 64
      %v5938 = vpop.permute.xlu0 %5937
      %v5940 = vsel %vm2734, %v5928, %v5934
      %v5941 = vsel %vm2734, %v5930, %v5938
      %v5942 = vpack.c.bf16 %v5940, %v5940
      %v5943 = vpack.c.bf16 %v5941, %v5941
      %v5946 = vunpack.c.l.b16 %v5942
      %v5947 = vunpack.c.l.b16 %v5943
      %v5948 = vpack.c.b16 %v5947, %v5946
      %5950 = vst [vmem:[%s257] sm:$0xff] %v5948
      %p5951 = scmp.lt.s32.totalorder %s15, 1
      %s5952 = scalar_select %p5951, %s15, 1
      %s5953 = smul.addr %s5952, 2
      %s5954 = smul.addr %s5953, 4
      %s5955 = scalar_lea.vmem %s4, %s5954
      // Predicated region
      $region37: #{bert_sentiment_forward.13} parent=35 // pred_check
        %p5956 = pneg %p137
      $region38: #{bert_sentiment_forward.13} parent=35 // pred_check_branch
        %5958 = sbr.rel (%p5956) target = $region40
      $region39: #{bert_sentiment_forward.13} parent=35 // pred_region
        _
      $region40: #{bert_sentiment_forward.13} parent=35 // pred_fallthru
        _
    $region36: #{bert_sentiment_forward.13} parent=5 // pred_fallthru
      _
    %p5959 = scmp.le.s32.totalorder 2, %s10
    // Predicated region
    $region41: #{bert_sentiment_forward.13} parent=5 // pred_check
      %p5960 = pneg %p5959
    $region42: #{bert_sentiment_forward.13} parent=5 // pred_check_branch
      %5962 = sbr.rel (%p5960) target = $region44
    $region43: #{bert_sentiment_forward.13} parent=5 // pred_region
      %s5963 = ssub.s32 %s10, 2
      // Predicated region
      $region45: #{bert_sentiment_forward.13} parent=43 // pred_check
        %p5964 = pneg %p143
      $region46: #{bert_sentiment_forward.13} parent=43 // pred_check_branch
        %5966 = sbr.rel (%p5964) target = $region48
      $region47: #{bert_sentiment_forward.13} parent=43 // pred_region
        %p5967 = scmp.lt.s32.totalorder %s16, 1
        %s5968 = scalar_select %p5967, %s16, 1
        %s5969 = smul.addr %s5968, 2
        %s5970 = smul.addr %s5969, 4
        %s5971 = scalar_lea.vmem %s4, %s5970
      $region48: #{bert_sentiment_forward.13} parent=43 // pred_fallthru
        _
    $region44: #{bert_sentiment_forward.13} parent=5 // pred_fallthru
      _
  $region6: #{bert_sentiment_forward.13} parent=0 // loop_footer
    %s14 = sadd.s32 1, %s10
  $region7: #{bert_sentiment_forward.13} parent=0 // loop_footer_branch
    %9 = sbr.rel target = $region3
  $region8: #{bert_sentiment_forward.13} parent=0 // loop_exit
    _

// kernel: bert_sentiment_forward.16
$region0: #{bert_sentiment_forward.16}
  #allocation0 [shape = 'u32[]', space=smem, size = 0x4, offset = 0x4, fixed_abs, tag = 'smem constant byte address 0x4 - core index']
  #allocation1 [shape = 'u32[144,128]{1,0:T(1,128)}', space=vmem, size = 0x12000, scoped, tag = 'internal scratch']
  #allocation2 [shape = 'f32[16,256]{1,0:T(8,128)}', space=vmem, size = 0x4000, scoped, tag = 'scratch operand']
  %s0 = inlined_call_operand.vmem [shape: bf16[16,512], index: 0, kind: input, shape index: {}]
  %s1 = inlined_call_operand.vmem [shape: bf16[512,256], index: 1, kind: input, shape index: {}]
  %s2 = inlined_call_operand.vmem [shape: f32[1,256], index: 2, kind: input, shape index: {}]
  %s3 = inlined_call_operand.vmem [shape: bf16[16,256], index: 3, kind: input, shape index: {}]
  %s4 = inlined_call_operand.vmem [shape: f32[1,256], index: 4, kind: input, shape index: {}]
  %s5 = inlined_call_operand.vmem [shape: f32[1,256], index: 5, kind: input, shape index: {}]
  %s6 = inlined_call_operand.vmem [shape: bf16[16,256], index: 6, kind: output, shape index: {}]
  %s7 = sld [smem:[#allocation0]]
  $region42: #{bert_sentiment_forward.16} parent=0
    _
  %s9 = ssub.s32 1, %s7
  %s10 = scalar_select 0, %s9, %s7
  // Predicated region
  $region2: #{bert_sentiment_forward.16} parent=0 // pred_check
    _
  $region3: #{bert_sentiment_forward.16} parent=0 // pred_check_branch
    %12 = sbr.rel (0) target = $region5
  $region4: #{bert_sentiment_forward.16} parent=0 // pred_region
    _
  $region5: #{bert_sentiment_forward.16} parent=0 // pred_fallthru
    _
  // Predicated region
  $region6: #{bert_sentiment_forward.16} parent=0 // pred_check
    _
  $region7: #{bert_sentiment_forward.16} parent=0 // pred_check_branch
    %14 = sbr.rel (0) target = $region9
  $region8: #{bert_sentiment_forward.16} parent=0 // pred_region
    _
  $region9: #{bert_sentiment_forward.16} parent=0 // pred_fallthru
    _
  // Predicated region
  $region10: #{bert_sentiment_forward.16} parent=0 // pred_check
    _
  $region11: #{bert_sentiment_forward.16} parent=0 // pred_check_branch
    %16 = sbr.rel (0) target = $region13
  $region12: #{bert_sentiment_forward.16} parent=0 // pred_region
    _
  $region13: #{bert_sentiment_forward.16} parent=0 // pred_fallthru
    _
  // Predicated region
  $region14: #{bert_sentiment_forward.16} parent=0 // pred_check
    _
  $region15: #{bert_sentiment_forward.16} parent=0 // pred_check_branch
    %18 = sbr.rel (0) target = $region17
  $region16: #{bert_sentiment_forward.16} parent=0 // pred_region
    _
  $region17: #{bert_sentiment_forward.16} parent=0 // pred_fallthru
    _
  // Predicated region
  $region18: #{bert_sentiment_forward.16} parent=0 // pred_check
    _
  $region19: #{bert_sentiment_forward.16} parent=0 // pred_check_branch
    %20 = sbr.rel (0) target = $region21
  $region20: #{bert_sentiment_forward.16} parent=0 // pred_region
    _
  $region21: #{bert_sentiment_forward.16} parent=0 // pred_fallthru
    _
  // Predicated region
  $region22: #{bert_sentiment_forward.16} parent=0 // pred_check
    _
  $region23: #{bert_sentiment_forward.16} parent=0 // pred_check_branch
    %22 = sbr.rel (0) target = $region25
  $region24: #{bert_sentiment_forward.16} parent=0 // pred_region
    _
  $region25: #{bert_sentiment_forward.16} parent=0 // pred_fallthru
    _
  %p23 = scmp.eq.s32.totalorder 0, 0
  // Predicated region
  $region26: #{bert_sentiment_forward.16} parent=0 // pred_check
    %p24 = pneg %p23
  $region27: #{bert_sentiment_forward.16} parent=0 // pred_check_branch
    %26 = sbr.rel (%p24) target = $region29
  $region28: #{bert_sentiment_forward.16} parent=0 // pred_region
    %27 = vst [vmem:[#allocation2] sm:$0xff] 0.0
    %28 = vst [vmem:[#allocation2 + $0x8] sm:$0xff] 0.0
    %29 = vst [vmem:[#allocation2 + $0x10] sm:$0xff] 0.0
    %30 = vst [vmem:[#allocation2 + $0x18] sm:$0xff] 0.0
  $region29: #{bert_sentiment_forward.16} parent=0 // pred_fallthru
    _
  %v31 = vld [vmem:[#allocation2] sm:$0xff]
  %v32 = vld [vmem:[#allocation2 + $0x8] sm:$0xff]
  %v33 = vld [vmem:[#allocation2 + $0x10] sm:$0xff]
  %v34 = vld [vmem:[#allocation2 + $0x18] sm:$0xff]
  %v35 = vld [vmem:[%s0] sm:$0xff]
  %v36 = vld [vmem:[%s0 + $0x8] sm:$0xff]
  %v37 = vld [vmem:[%s0 + $0x10] sm:$0xff]
  %v38 = vld [vmem:[%s0 + $0x18] sm:$0xff]
  %v39 = vld [vmem:[%s1] sm:$0xff]
  %v40 = vld [vmem:[%s1 + $0x8] sm:$0xff]
  %v41 = vld [vmem:[%s1 + $0x10] sm:$0xff]
  %v42 = vld [vmem:[%s1 + $0x18] sm:$0xff]
  %v43 = vld [vmem:[%s1 + $0x20] sm:$0xff]
  %v44 = vld [vmem:[%s1 + $0x28] sm:$0xff]
  %v45 = vld [vmem:[%s1 + $0x30] sm:$0xff]
  %v46 = vld [vmem:[%s1 + $0x38] sm:$0xff]
  %v47 = vld [vmem:[%s1 + $0x40] sm:$0xff]
  %v48 = vld [vmem:[%s1 + $0x48] sm:$0xff]
  %v49 = vld [vmem:[%s1 + $0x50] sm:$0xff]
  %v50 = vld [vmem:[%s1 + $0x58] sm:$0xff]
  %v51 = vld [vmem:[%s1 + $0x60] sm:$0xff]
  %v52 = vld [vmem:[%s1 + $0x68] sm:$0xff]
  %v53 = vld [vmem:[%s1 + $0x70] sm:$0xff]
  %v54 = vld [vmem:[%s1 + $0x78] sm:$0xff]
  %v55 = vld [vmem:[%s1 + $0x80] sm:$0xff]
  %v56 = vld [vmem:[%s1 + $0x88] sm:$0xff]
  %v57 = vld [vmem:[%s1 + $0x90] sm:$0xff]
  %v58 = vld [vmem:[%s1 + $0x98] sm:$0xff]
  %v59 = vld [vmem:[%s1 + $0xa0] sm:$0xff]
  %v60 = vld [vmem:[%s1 + $0xa8] sm:$0xff]
  %v61 = vld [vmem:[%s1 + $0xb0] sm:$0xff]
  %v62 = vld [vmem:[%s1 + $0xb8] sm:$0xff]
  %v63 = vld [vmem:[%s1 + $0xc0] sm:$0xff]
  %v64 = vld [vmem:[%s1 + $0xc8] sm:$0xff]
  %v65 = vld [vmem:[%s1 + $0xd0] sm:$0xff]
  %v66 = vld [vmem:[%s1 + $0xd8] sm:$0xff]
  %v67 = vld [vmem:[%s1 + $0xe0] sm:$0xff]
  %v68 = vld [vmem:[%s1 + $0xe8] sm:$0xff]
  %v69 = vld [vmem:[%s1 + $0xf0] sm:$0xff]
  %v70 = vld [vmem:[%s1 + $0xf8] sm:$0xff]
  %v71 = vld [vmem:[%s1 + $0x100] sm:$0xff]
  %v72 = vld [vmem:[%s1 + $0x108] sm:$0xff]
  %v73 = vld [vmem:[%s1 + $0x110] sm:$0xff]
  %v74 = vld [vmem:[%s1 + $0x118] sm:$0xff]
  %v75 = vld [vmem:[%s1 + $0x120] sm:$0xff]
  %v76 = vld [vmem:[%s1 + $0x128] sm:$0xff]
  %v77 = vld [vmem:[%s1 + $0x130] sm:$0xff]
  %v78 = vld [vmem:[%s1 + $0x138] sm:$0xff]
  %v79 = vld [vmem:[%s1 + $0x140] sm:$0xff]
  %v80 = vld [vmem:[%s1 + $0x148] sm:$0xff]
  %v81 = vld [vmem:[%s1 + $0x150] sm:$0xff]
  %v82 = vld [vmem:[%s1 + $0x158] sm:$0xff]
  %v83 = vld [vmem:[%s1 + $0x160] sm:$0xff]
  %v84 = vld [vmem:[%s1 + $0x168] sm:$0xff]
  %v85 = vld [vmem:[%s1 + $0x170] sm:$0xff]
  %v86 = vld [vmem:[%s1 + $0x178] sm:$0xff]
  %v87 = vld [vmem:[%s1 + $0x180] sm:$0xff]
  %v88 = vld [vmem:[%s1 + $0x188] sm:$0xff]
  %v89 = vld [vmem:[%s1 + $0x190] sm:$0xff]
  %v90 = vld [vmem:[%s1 + $0x198] sm:$0xff]
  %v91 = vld [vmem:[%s1 + $0x1a0] sm:$0xff]
  %v92 = vld [vmem:[%s1 + $0x1a8] sm:$0xff]
  %v93 = vld [vmem:[%s1 + $0x1b0] sm:$0xff]
  %v94 = vld [vmem:[%s1 + $0x1b8] sm:$0xff]
  %v95 = vld [vmem:[%s1 + $0x1c0] sm:$0xff]
  %v96 = vld [vmem:[%s1 + $0x1c8] sm:$0xff]
  %v97 = vld [vmem:[%s1 + $0x1d0] sm:$0xff]
  %v98 = vld [vmem:[%s1 + $0x1d8] sm:$0xff]
  %v99 = vld [vmem:[%s1 + $0x1e0] sm:$0xff]
  %v100 = vld [vmem:[%s1 + $0x1e8] sm:$0xff]
  %v101 = vld [vmem:[%s1 + $0x1f0] sm:$0xff]
  %v102 = vld [vmem:[%s1 + $0x1f8] sm:$0xff]
  %v107 = vunpack.c.l.b16 %v35
  %v108 = vunpack.c.h.b16 %v35
  %v109 = vunpack.c.l.b16 %v36
  %v110 = vunpack.c.h.b16 %v36
  %v111 = vunpack.c.l.b16 %v37
  %v112 = vunpack.c.h.b16 %v37
  %v113 = vunpack.c.l.b16 %v38
  %v114 = vunpack.c.h.b16 %v38
  %v115 = vpack.c.b16 %v111, %v107
  %v116 = vpack.c.b16 %v112, %v108
  %v117 = vpack.c.b16 %v113, %v109
  %v118 = vpack.c.b16 %v114, %v110
  %v187 = vunpack.c.l.b16 %v39
  %v188 = vunpack.c.h.b16 %v39
  %v189 = vunpack.c.l.b16 %v40
  %v190 = vunpack.c.h.b16 %v40
  %v191 = vunpack.c.l.b16 %v41
  %v192 = vunpack.c.h.b16 %v41
  %v193 = vunpack.c.l.b16 %v42
  %v194 = vunpack.c.h.b16 %v42
  %v195 = vunpack.c.l.b16 %v43
  %v196 = vunpack.c.h.b16 %v43
  %v197 = vunpack.c.l.b16 %v44
  %v198 = vunpack.c.h.b16 %v44
  %v199 = vunpack.c.l.b16 %v45
  %v200 = vunpack.c.h.b16 %v45
  %v201 = vunpack.c.l.b16 %v46
  %v202 = vunpack.c.h.b16 %v46
  %v203 = vunpack.c.l.b16 %v47
  %v204 = vunpack.c.h.b16 %v47
  %v205 = vunpack.c.l.b16 %v48
  %v206 = vunpack.c.h.b16 %v48
  %v207 = vunpack.c.l.b16 %v49
  %v208 = vunpack.c.h.b16 %v49
  %v209 = vunpack.c.l.b16 %v50
  %v210 = vunpack.c.h.b16 %v50
  %v211 = vunpack.c.l.b16 %v51
  %v212 = vunpack.c.h.b16 %v51
  %v213 = vunpack.c.l.b16 %v52
  %v214 = vunpack.c.h.b16 %v52
  %v215 = vunpack.c.l.b16 %v53
  %v216 = vunpack.c.h.b16 %v53
  %v217 = vunpack.c.l.b16 %v54
  %v218 = vunpack.c.h.b16 %v54
  %v219 = vunpack.c.l.b16 %v55
  %v220 = vunpack.c.h.b16 %v55
  %v221 = vunpack.c.l.b16 %v56
  %v222 = vunpack.c.h.b16 %v56
  %v223 = vunpack.c.l.b16 %v57
  %v224 = vunpack.c.h.b16 %v57
  %v225 = vunpack.c.l.b16 %v58
  %v226 = vunpack.c.h.b16 %v58
  %v227 = vunpack.c.l.b16 %v59
  %v228 = vunpack.c.h.b16 %v59
  %v229 = vunpack.c.l.b16 %v60
  %v230 = vunpack.c.h.b16 %v60
  %v231 = vunpack.c.l.b16 %v61
  %v232 = vunpack.c.h.b16 %v61
  %v233 = vunpack.c.l.b16 %v62
  %v234 = vunpack.c.h.b16 %v62
  %v235 = vunpack.c.l.b16 %v63
  %v236 = vunpack.c.h.b16 %v63
  %v237 = vunpack.c.l.b16 %v64
  %v238 = vunpack.c.h.b16 %v64
  %v239 = vunpack.c.l.b16 %v65
  %v240 = vunpack.c.h.b16 %v65
  %v241 = vunpack.c.l.b16 %v66
  %v242 = vunpack.c.h.b16 %v66
  %v243 = vunpack.c.l.b16 %v67
  %v244 = vunpack.c.h.b16 %v67
  %v245 = vunpack.c.l.b16 %v68
  %v246 = vunpack.c.h.b16 %v68
  %v247 = vunpack.c.l.b16 %v69
  %v248 = vunpack.c.h.b16 %v69
  %v249 = vunpack.c.l.b16 %v70
  %v250 = vunpack.c.h.b16 %v70
  %v251 = vunpack.c.l.b16 %v71
  %v252 = vunpack.c.h.b16 %v71
  %v253 = vunpack.c.l.b16 %v72
  %v254 = vunpack.c.h.b16 %v72
  %v255 = vunpack.c.l.b16 %v73
  %v256 = vunpack.c.h.b16 %v73
  %v257 = vunpack.c.l.b16 %v74
  %v258 = vunpack.c.h.b16 %v74
  %v259 = vunpack.c.l.b16 %v75
  %v260 = vunpack.c.h.b16 %v75
  %v261 = vunpack.c.l.b16 %v76
  %v262 = vunpack.c.h.b16 %v76
  %v263 = vunpack.c.l.b16 %v77
  %v264 = vunpack.c.h.b16 %v77
  %v265 = vunpack.c.l.b16 %v78
  %v266 = vunpack.c.h.b16 %v78
  %v267 = vunpack.c.l.b16 %v79
  %v268 = vunpack.c.h.b16 %v79
  %v269 = vunpack.c.l.b16 %v80
  %v270 = vunpack.c.h.b16 %v80
  %v271 = vunpack.c.l.b16 %v81
  %v272 = vunpack.c.h.b16 %v81
  %v273 = vunpack.c.l.b16 %v82
  %v274 = vunpack.c.h.b16 %v82
  %v275 = vunpack.c.l.b16 %v83
  %v276 = vunpack.c.h.b16 %v83
  %v277 = vunpack.c.l.b16 %v84
  %v278 = vunpack.c.h.b16 %v84
  %v279 = vunpack.c.l.b16 %v85
  %v280 = vunpack.c.h.b16 %v85
  %v281 = vunpack.c.l.b16 %v86
  %v282 = vunpack.c.h.b16 %v86
  %v283 = vunpack.c.l.b16 %v87
  %v284 = vunpack.c.h.b16 %v87
  %v285 = vunpack.c.l.b16 %v88
  %v286 = vunpack.c.h.b16 %v88
  %v287 = vunpack.c.l.b16 %v89
  %v288 = vunpack.c.h.b16 %v89
  %v289 = vunpack.c.l.b16 %v90
  %v290 = vunpack.c.h.b16 %v90
  %v291 = vunpack.c.l.b16 %v91
  %v292 = vunpack.c.h.b16 %v91
  %v293 = vunpack.c.l.b16 %v92
  %v294 = vunpack.c.h.b16 %v92
  %v295 = vunpack.c.l.b16 %v93
  %v296 = vunpack.c.h.b16 %v93
  %v297 = vunpack.c.l.b16 %v94
  %v298 = vunpack.c.h.b16 %v94
  %v299 = vunpack.c.l.b16 %v95
  %v300 = vunpack.c.h.b16 %v95
  %v301 = vunpack.c.l.b16 %v96
  %v302 = vunpack.c.h.b16 %v96
  %v303 = vunpack.c.l.b16 %v97
  %v304 = vunpack.c.h.b16 %v97
  %v305 = vunpack.c.l.b16 %v98
  %v306 = vunpack.c.h.b16 %v98
  %v307 = vunpack.c.l.b16 %v99
  %v308 = vunpack.c.h.b16 %v99
  %v309 = vunpack.c.l.b16 %v100
  %v310 = vunpack.c.h.b16 %v100
  %v311 = vunpack.c.l.b16 %v101
  %v312 = vunpack.c.h.b16 %v101
  %v313 = vunpack.c.l.b16 %v102
  %v314 = vunpack.c.h.b16 %v102
  %v315 = vpack.c.b16 %v189, %v187
  %v316 = vpack.c.b16 %v190, %v188
  %v317 = vpack.c.b16 %v193, %v191
  %v318 = vpack.c.b16 %v194, %v192
  %v319 = vpack.c.b16 %v197, %v195
  %v320 = vpack.c.b16 %v198, %v196
  %v321 = vpack.c.b16 %v201, %v199
  %v322 = vpack.c.b16 %v202, %v200
  %v323 = vpack.c.b16 %v205, %v203
  %v324 = vpack.c.b16 %v206, %v204
  %v325 = vpack.c.b16 %v209, %v207
  %v326 = vpack.c.b16 %v210, %v208
  %v327 = vpack.c.b16 %v213, %v211
  %v328 = vpack.c.b16 %v214, %v212
  %v329 = vpack.c.b16 %v217, %v215
  %v330 = vpack.c.b16 %v218, %v216
  %v331 = vpack.c.b16 %v221, %v219
  %v332 = vpack.c.b16 %v222, %v220
  %v333 = vpack.c.b16 %v225, %v223
  %v334 = vpack.c.b16 %v226, %v224
  %v335 = vpack.c.b16 %v229, %v227
  %v336 = vpack.c.b16 %v230, %v228
  %v337 = vpack.c.b16 %v233, %v231
  %v338 = vpack.c.b16 %v234, %v232
  %v339 = vpack.c.b16 %v237, %v235
  %v340 = vpack.c.b16 %v238, %v236
  %v341 = vpack.c.b16 %v241, %v239
  %v342 = vpack.c.b16 %v242, %v240
  %v343 = vpack.c.b16 %v245, %v243
  %v344 = vpack.c.b16 %v246, %v244
  %v345 = vpack.c.b16 %v249, %v247
  %v346 = vpack.c.b16 %v250, %v248
  %v347 = vpack.c.b16 %v253, %v251
  %v348 = vpack.c.b16 %v254, %v252
  %v349 = vpack.c.b16 %v257, %v255
  %v350 = vpack.c.b16 %v258, %v256
  %v351 = vpack.c.b16 %v261, %v259
  %v352 = vpack.c.b16 %v262, %v260
  %v353 = vpack.c.b16 %v265, %v263
  %v354 = vpack.c.b16 %v266, %v264
  %v355 = vpack.c.b16 %v269, %v267
  %v356 = vpack.c.b16 %v270, %v268
  %v357 = vpack.c.b16 %v273, %v271
  %v358 = vpack.c.b16 %v274, %v272
  %v359 = vpack.c.b16 %v277, %v275
  %v360 = vpack.c.b16 %v278, %v276
  %v361 = vpack.c.b16 %v281, %v279
  %v362 = vpack.c.b16 %v282, %v280
  %v363 = vpack.c.b16 %v285, %v283
  %v364 = vpack.c.b16 %v286, %v284
  %v365 = vpack.c.b16 %v289, %v287
  %v366 = vpack.c.b16 %v290, %v288
  %v367 = vpack.c.b16 %v293, %v291
  %v368 = vpack.c.b16 %v294, %v292
  %v369 = vpack.c.b16 %v297, %v295
  %v370 = vpack.c.b16 %v298, %v296
  %v371 = vpack.c.b16 %v301, %v299
  %v372 = vpack.c.b16 %v302, %v300
  %v373 = vpack.c.b16 %v305, %v303
  %v374 = vpack.c.b16 %v306, %v304
  %v375 = vpack.c.b16 %v309, %v307
  %v376 = vpack.c.b16 %v310, %v308
  %v377 = vpack.c.b16 %v313, %v311
  %v378 = vpack.c.b16 %v314, %v312
  %443 = vmatprep.subr.bf16.mxu0 %v316
  %444 = vmatpush1.bf16.msra.mxu0 %v315
  %445 = vmatprep.subr.bf16.mxu0 %v318
  %446 = vmatpush1.bf16.msra.mxu0 %v317
  %447 = vmatprep.subr.bf16.mxu0 %v320
  %448 = vmatpush1.bf16.msra.mxu0 %v319
  %449 = vmatprep.subr.bf16.mxu0 %v322
  %450 = vmatpush1.bf16.msra.mxu0 %v321
  %451 = vmatprep.subr.bf16.mxu0 %v324
  %452 = vmatpush1.bf16.msra.mxu0 %v323
  %453 = vmatprep.subr.bf16.mxu0 %v326
  %454 = vmatpush1.bf16.msra.mxu0 %v325
  %455 = vmatprep.subr.bf16.mxu0 %v328
  %456 = vmatpush1.bf16.msra.mxu0 %v327
  %457 = vmatprep.subr.bf16.mxu0 %v330
  %458 = vmatpush1.bf16.msra.mxu0 %v329
  %459 = vmatprep.subr.bf16.mxu0 %v332
  %460 = vmatpush1.bf16.msra.mxu0 %v331
  %461 = vmatprep.subr.bf16.mxu0 %v334
  %462 = vmatpush1.bf16.msra.mxu0 %v333
  %463 = vmatprep.subr.bf16.mxu0 %v336
  %464 = vmatpush1.bf16.msra.mxu0 %v335
  %465 = vmatprep.subr.bf16.mxu0 %v338
  %466 = vmatpush1.bf16.msra.mxu0 %v337
  %467 = vmatprep.subr.bf16.mxu0 %v340
  %468 = vmatpush1.bf16.msra.mxu0 %v339
  %469 = vmatprep.subr.bf16.mxu0 %v342
  %470 = vmatpush1.bf16.msra.mxu0 %v341
  %471 = vmatprep.subr.bf16.mxu0 %v344
  %472 = vmatpush1.bf16.msra.mxu0 %v343
  %473 = vmatprep.subr.bf16.mxu0 %v346
  %474 = vmatpush1.bf16.msra.mxu0 %v345
  %475 = vmatprep.mubr.bf16.mxu0 %v116
  %476 = vmatmul.mubr.bf16.gmra.mrb[0].mxu0 %v115
  %v477 = vpop.f32.mrb[0].mxu0
  %v478 = vadd.f32 0.0, %v477
  %v479 = vpop.f32.mrb[0].mxu0
  %v480 = vadd.f32 0.0, %v479
  %v481 = vpop.f32.mrb[0].mxu0
  %v482 = vadd.f32 0.0, %v481
  %v483 = vpop.f32.mrb[0].mxu0
  %v484 = vadd.f32 0.0, %v483
  %485 = vdwg.mxu0
  %486 = vmatprep.subr.bf16.mxu0 %v348
  %487 = vmatpush1.bf16.msra.mxu0 %v347
  %488 = vmatprep.subr.bf16.mxu0 %v350
  %489 = vmatpush1.bf16.msra.mxu0 %v349
  %490 = vmatprep.subr.bf16.mxu0 %v352
  %491 = vmatpush1.bf16.msra.mxu0 %v351
  %492 = vmatprep.subr.bf16.mxu0 %v354
  %493 = vmatpush1.bf16.msra.mxu0 %v353
  %494 = vmatprep.subr.bf16.mxu0 %v356
  %495 = vmatpush1.bf16.msra.mxu0 %v355
  %496 = vmatprep.subr.bf16.mxu0 %v358
  %497 = vmatpush1.bf16.msra.mxu0 %v357
  %498 = vmatprep.subr.bf16.mxu0 %v360
  %499 = vmatpush1.bf16.msra.mxu0 %v359
  %500 = vmatprep.subr.bf16.mxu0 %v362
  %501 = vmatpush1.bf16.msra.mxu0 %v361
  %502 = vmatprep.subr.bf16.mxu0 %v364
  %503 = vmatpush1.bf16.msra.mxu0 %v363
  %504 = vmatprep.subr.bf16.mxu0 %v366
  %505 = vmatpush1.bf16.msra.mxu0 %v365
  %506 = vmatprep.subr.bf16.mxu0 %v368
  %507 = vmatpush1.bf16.msra.mxu0 %v367
  %508 = vmatprep.subr.bf16.mxu0 %v370
  %509 = vmatpush1.bf16.msra.mxu0 %v369
  %510 = vmatprep.subr.bf16.mxu0 %v372
  %511 = vmatpush1.bf16.msra.mxu0 %v371
  %512 = vmatprep.subr.bf16.mxu0 %v374
  %513 = vmatpush1.bf16.msra.mxu0 %v373
  %514 = vmatprep.subr.bf16.mxu0 %v376
  %515 = vmatpush1.bf16.msra.mxu0 %v375
  %516 = vmatprep.subr.bf16.mxu0 %v378
  %517 = vmatpush1.bf16.msra.mxu0 %v377
  %518 = vmatprep.mubr.bf16.mxu0 %v118
  %519 = vmatmul.mubr.bf16.gmra.mrb[0].mxu0 %v117
  %v520 = vpop.f32.mrb[0].mxu0
  %v521 = vadd.f32 %v478, %v520
  %v522 = vpop.f32.mrb[0].mxu0
  %v523 = vadd.f32 %v480, %v522
  %v524 = vpop.f32.mrb[0].mxu0
  %v525 = vadd.f32 %v482, %v524
  %v526 = vpop.f32.mrb[0].mxu0
  %v527 = vadd.f32 %v484, %v526
  %528 = vdwg.mxu0
  %v529 = vadd.f32 %v31, %v521
  %v530 = vadd.f32 %v32, %v523
  %v531 = vadd.f32 %v33, %v525
  %v532 = vadd.f32 %v34, %v527
  %533 = vst [vmem:[#allocation2] sm:$0xff] %v529
  %534 = vst [vmem:[#allocation2 + $0x8] sm:$0xff] %v530
  %535 = vst [vmem:[#allocation2 + $0x10] sm:$0xff] %v531
  %536 = vst [vmem:[#allocation2 + $0x18] sm:$0xff] %v532
  // Predicated region
  $region30: #{bert_sentiment_forward.16} parent=0 // pred_check
    %p537 = pneg %p23
  $region31: #{bert_sentiment_forward.16} parent=0 // pred_check_branch
    %539 = sbr.rel (%p537) target = $region33
  $region32: #{bert_sentiment_forward.16} parent=0 // pred_region
    %v540 = vld [vmem:[#allocation2] sm:$0xff]
    %v541 = vld [vmem:[#allocation2 + $0x8] sm:$0xff]
    %v542 = vld [vmem:[#allocation2 + $0x10] sm:$0xff]
    %v543 = vld [vmem:[#allocation2 + $0x18] sm:$0xff]
    %v544 = vld [vmem:[%s2] sm:$0x3]
    %v546 = vlaneseq
    %v547 = vshrl.u32 %v546, 7
    %v548 = vsub.s32 0, %v547
    %v549 = vrot.slane %v544, %v548
    %v550 = vlaneseq
    %v551 = vshrl.u32 %v550, 7
    %v552 = vsub.s32 1, %v551
    %v553 = vrot.slane %v544, %v552
    %v556 = vadd.f32 %v540, %v549
    %v557 = vadd.f32 %v541, %v553
    %v558 = vadd.f32 %v542, %v549
    %v559 = vadd.f32 %v543, %v553
    %v560 = vld [vmem:[%s3] sm:$0xff]
    %v561 = vld [vmem:[%s3 + $0x8] sm:$0xff]
    %v562 = vunpack.c.l.bf16 %v560
    %v563 = vunpack.c.h.bf16 %v560
    %v564 = vunpack.c.l.bf16 %v561
    %v565 = vunpack.c.h.bf16 %v561
    %v566 = vadd.f32 %v556, %v562
    %v567 = vadd.f32 %v557, %v563
    %v568 = vadd.f32 %v558, %v564
    %v569 = vadd.f32 %v559, %v565
    %v570 = vadd.f32 %v566, %v567
    %571 = vadd.xlane.f32.xlu0 %v570
    %v572 = vpop.xlane.xlu0 %571
    %v573 = vadd.f32 %v568, %v569
    %574 = vadd.xlane.f32.xlu0 %v573
    %v575 = vpop.xlane.xlu0 %574
    %v576 = vrcp.pop 256.0
    %v577 = vmul.f32 %v572, %v576
    %v578 = vmul.f32 %v575, %v576
    %v579 = vsub.f32 %v566, %v577
    %v580 = vsub.f32 %v567, %v577
    %v581 = vsub.f32 %v568, %v578
    %v582 = vsub.f32 %v569, %v578
    %v583 = vmul.f32 %v579, %v579
    %v584 = vmul.f32 %v580, %v580
    %v585 = vmul.f32 %v581, %v581
    %v586 = vmul.f32 %v582, %v582
    %v587 = vadd.f32 %v583, %v584
    %588 = vadd.xlane.f32.xlu0 %v587
    %v589 = vpop.xlane.xlu0 %588
    %v590 = vadd.f32 %v585, %v586
    %591 = vadd.xlane.f32.xlu0 %v590
    %v592 = vpop.xlane.xlu0 %591
    %v593 = vmul.f32 %v589, %v576
    %v594 = vmul.f32 %v592, %v576
    %v595 = vadd.f32 %v593, 1e-12
    %v596 = vadd.f32 %v594, 1e-12
    %v597 = vrsqrt.pop %v595
    %v598 = vrsqrt.pop %v596
    %v599 = vmul.f32 %v579, %v597
    %v600 = vmul.f32 %v580, %v597
    %v601 = vmul.f32 %v581, %v598
    %v602 = vmul.f32 %v582, %v598
    %v603 = vld [vmem:[%s4] sm:$0x3]
    %v605 = vlaneseq
    %v606 = vshrl.u32 %v605, 7
    %v607 = vsub.s32 0, %v606
    %v608 = vrot.slane %v603, %v607
    %v609 = vlaneseq
    %v610 = vshrl.u32 %v609, 7
    %v611 = vsub.s32 1, %v610
    %v612 = vrot.slane %v603, %v611
    %v615 = vmul.f32 %v599, %v608
    %v616 = vmul.f32 %v600, %v612
    %v617 = vmul.f32 %v601, %v608
    %v618 = vmul.f32 %v602, %v612
    %v619 = vld [vmem:[%s5] sm:$0x3]
    %v621 = vlaneseq
    %v622 = vshrl.u32 %v621, 7
    %v623 = vsub.s32 0, %v622
    %v624 = vrot.slane %v619, %v623
    %v625 = vlaneseq
    %v626 = vshrl.u32 %v625, 7
    %v627 = vsub.s32 1, %v626
    %v628 = vrot.slane %v619, %v627
    %v631 = vadd.f32 %v615, %v624
    %v632 = vadd.f32 %v616, %v628
    %v633 = vadd.f32 %v617, %v624
    %v634 = vadd.f32 %v618, %v628
    %v635 = vpack.c.bf16 %v633, %v631
    %v636 = vpack.c.bf16 %v634, %v632
    %v639 = vunpack.c.l.b16 %v635
    %v640 = vunpack.c.l.b16 %v636
    %v641 = vunpack.c.h.b16 %v635
    %v642 = vunpack.c.h.b16 %v636
    %v643 = vpack.c.b16 %v640, %v639
    %v644 = vpack.c.b16 %v642, %v641
    %647 = vst [vmem:[%s6] sm:$0xff] %v643
    %648 = vst [vmem:[%s6 + $0x8] sm:$0xff] %v644
  $region33: #{bert_sentiment_forward.16} parent=0 // pred_fallthru
    _
  // Predicated region
  $region34: #{bert_sentiment_forward.16} parent=0 // pred_check
    _
  $region35: #{bert_sentiment_forward.16} parent=0 // pred_check_branch
    %650 = sbr.rel (0) target = $region37
  $region36: #{bert_sentiment_forward.16} parent=0 // pred_region
    _
  $region37: #{bert_sentiment_forward.16} parent=0 // pred_fallthru
    _
  // Predicated region
  $region38: #{bert_sentiment_forward.16} parent=0 // pred_check
    _
  $region39: #{bert_sentiment_forward.16} parent=0 // pred_check_branch
    %652 = sbr.rel (0) target = $region41
  $region40: #{bert_sentiment_forward.16} parent=0 // pred_region
    _
  $region41: #{bert_sentiment_forward.16} parent=0 // pred_fallthru
    _

</llo_original>
